<compile_context>
chip_gen: v5e
topology: v5e:2x2
jax: 0.10.0
libtpu: 0.0.40
codegen_flags: <defaults>
</compile_context>

<pallas_src>
import numpy as np
import jax
import jax.numpy as jnp
from jax import lax
from jax.experimental import pallas as pl
from jax.experimental.pallas import tpu as pltpu

K = 5                  # Chebyshev order (conv_kwargs K=5)
H1 = 128               # bi1 output features
H2 = 512               # bi2 output features
NCLS = 4               # n_classes
NCLS_PAD = 128         # lane-dense logits slab
LAMBDA_MAX = 3.0       # ManEmbedder default
_PREC = lax.Precision.HIGHEST
_NEG = -1e30           # "minus infinity" for padded logit lanes


# ----------------------------- kernel ---------------------------------------

def mannet_kernel(x_ref, lf_hbm, lb_hbm,
                  w1_ref, b1_ref, w2_ref, b2_ref,
                  pool_ref, wc_ref, bc_ref,
                  out_ref,
                  lbuf, sem, zcat1_ref, zcat2_ref):
    n_pad = x_ref.shape[0]
    f_in = x_ref.shape[1]
    tm = lbuf.shape[1]
    n_strips = n_pad // tm
    h1w = w1_ref.shape[1]          # 128

    def stream_matmul(l_hbm, z):
        """Returns (2 * L_hat) @ z in f32, streaming L row-strips HBM->VMEM
        with a double-buffered DMA (bf16 operands, f32 accumulate)."""
        z = z.astype(jnp.bfloat16)
        copies = [None, None]

        def start(s):
            slot = s % 2
            cp = pltpu.make_async_copy(
                l_hbm.at[pl.ds(s * tm, tm), :], lbuf.at[slot], sem.at[slot])
            cp.start()
            copies[slot] = cp

        start(0)
        pieces = []
        for s in range(n_strips):
            slot = s % 2
            copies[slot].wait()
            if s + 1 < n_strips:
                start(s + 1)                       # prefetch next strip
            pieces.append(jnp.dot(lbuf[slot], z,
                                  preferred_element_type=jnp.float32))
        return pieces[0] if n_strips == 1 else jnp.concatenate(pieces, axis=0)

    # ---------------- BidirectionalBlock 1 (fused weight matmul) ------------
    # Chebyshev basis columns [T_0 x | T_1^f x .. T_4^f x | T_1^b x .. T_4^b x]
    # assembled into a zero-padded (n_pad, cin1_pad) slab, then ONE matmul
    # against the host-stacked weight.
    zcat1_ref[...] = jnp.zeros(zcat1_ref.shape, zcat1_ref.dtype)
    x32 = x_ref[...]
    zcat1_ref[:, 0:f_in] = x32
    col = f_in
    for l_hbm in (lf_hbm, lb_hbm):
        t_pm1 = x32
        t_cur = 0.5 * stream_matmul(l_hbm, x32)            # T_1 = L_hat x
        zcat1_ref[:, col:col + f_in] = t_cur
        col += f_in
        for _ in range(2, K):
            t_nxt = stream_matmul(l_hbm, t_cur) - t_pm1    # T_k = 2 L_hat T_{k-1} - T_{k-2}
            zcat1_ref[:, col:col + f_in] = t_nxt
            col += f_in
            t_pm1, t_cur = t_cur, t_nxt

    z1 = zcat1_ref[...].astype(jnp.bfloat16)
    h1 = jnp.dot(z1, w1_ref[...], preferred_element_type=jnp.float32) + b1_ref[...]
    h1 = jnp.maximum(h1, 0.0)                              # ReLU

    # ---------------- BidirectionalBlock 2 (fused weight matmul) ------------
    # Slab 0 holds T_0 = h1 (shared by both directions; its weights were
    # pre-summed on host). Slabs 1..4: fwd T_1..T_4, slabs 5..8: bwd T_1..T_4.
    zcat2_ref[:, 0:h1w] = h1.astype(jnp.bfloat16)
    for d, l_hbm in enumerate((lf_hbm, lb_hbm)):
        s1 = 1 + d * (K - 1)
        t1 = 0.5 * stream_matmul(l_hbm, zcat2_ref[:, 0:h1w])
        zcat2_ref[:, s1 * h1w:(s1 + 1) * h1w] = t1.astype(jnp.bfloat16)
        for k in range(2, K):
            sk = s1 + (k - 1)
            skm1 = s1 + (k - 2)
            skm2 = 0 if k == 2 else s1 + (k - 3)
            zkm1 = zcat2_ref[:, skm1 * h1w:(skm1 + 1) * h1w]
            zkm2 = zcat2_ref[:, skm2 * h1w:(skm2 + 1) * h1w]
            tk = stream_matmul(l_hbm, zkm1) - zkm2.astype(jnp.float32)
            zcat2_ref[:, sk * h1w:(sk + 1) * h1w] = tk.astype(jnp.bfloat16)

    h2 = jnp.dot(zcat2_ref[...], w2_ref[...],
                 preferred_element_type=jnp.float32) + b2_ref[...]
    h2 = jnp.maximum(h2, 0.0)                              # ReLU

    # ------------- global mean pool + classifier + log_softmax --------------
    g = jnp.dot(pool_ref[...], h2.astype(jnp.bfloat16),
                preferred_element_type=jnp.float32)        # (G_pad, 512)
    logits = jnp.dot(g, wc_ref[...], preferred_element_type=jnp.float32,
                     precision=_PREC) + bc_ref[...]        # (G_pad, 128)
    m = jnp.max(logits, axis=1, keepdims=True)
    s = logits - m
    lse = jnp.log(jnp.sum(jnp.exp(s), axis=1, keepdims=True))
    out_ref[...] = s - lse


# ----------------------------- wrapper / glue --------------------------------

def _round_up(x, m):
    return ((x + m - 1) // m) * m


def _full_spec(shape):
    nd = len(shape)
    return pl.BlockSpec(shape, lambda i, _nd=nd: (0,) * _nd)


def _stack_cheb_weights(wa, wb, pad_rows=None):
    """Stack per-order ChebConv weights of both directions into one matrix.

    wa, wb: (K, F_in, F_out). Since T_0 is shared, its weights are summed.
    Row order matches the in-kernel slab order: [wa0+wb0, wa1..wa4, wb1..wb4].
    """
    rows = [wa[0] + wb[0]] + [wa[k] for k in range(1, K)] + [wb[k] for k in range(1, K)]
    w = jnp.concatenate(rows, axis=0)
    if pad_rows is not None and w.shape[0] < pad_rows:
        w = jnp.pad(w, ((0, pad_rows - w.shape[0]), (0, 0)))
    return w.astype(jnp.bfloat16)


def mannet_forward(x, l_fwd, l_bwd, params, pool):
    n_nodes, f_in = x.shape
    n_graphs = pool.shape[0]
    n_pad = max(128, _round_up(n_nodes, 128))
    g_pad = max(8, _round_up(n_graphs, 8))
    tm = 512 if n_pad % 512 == 0 else (256 if n_pad % 256 == 0 else 128)
    tm = min(tm, n_pad)

    # --- one-time host-side padding / stacking / dtype prep -----------------
    x_pad = jnp.zeros((n_pad, f_in), jnp.float32).at[:n_nodes].set(
        x.astype(jnp.float32))

    def pad_l(l):
        lp = jnp.zeros((n_pad, n_pad), jnp.float32).at[:n_nodes, :n_nodes].set(l)
        return (2.0 * lp).astype(jnp.bfloat16)        # pre-fold Chebyshev factor 2

    l2f = pad_l(l_fwd)
    l2b = pad_l(l_bwd)
    pool_pad = jnp.zeros((g_pad, n_pad), jnp.float32).at[:n_graphs, :n_nodes].set(
        pool.astype(jnp.float32)).astype(jnp.bfloat16)

    cin1 = (2 * K - 1) * f_in
    cin1_pad = _round_up(cin1, 16)
    cin2 = (2 * K - 1) * H1
    w1s = _stack_cheb_weights(params["w1a"], params["w1b"], pad_rows=cin1_pad)
    b1s = (params["b1a"] + params["b1b"]).astype(jnp.float32)
    w2s = _stack_cheb_weights(params["w2a"], params["w2b"])
    b2s = (params["b2a"] + params["b2b"]).astype(jnp.float32)

    wc_pad = jnp.zeros((H2, NCLS_PAD), jnp.float32).at[:, :NCLS].set(
        params["wc"].astype(jnp.float32))
    bc_pad = jnp.full((1, NCLS_PAD), _NEG, jnp.float32).at[:, :NCLS].set(
        params["bc"].astype(jnp.float32))

    inputs = (x_pad, l2f, l2b, w1s, b1s, w2s, b2s, pool_pad, wc_pad, bc_pad)
    in_specs = [
        _full_spec(x_pad.shape),
        pl.BlockSpec(memory_space=pl.ANY),     # L_fwd stays in HBM, streamed
        pl.BlockSpec(memory_space=pl.ANY),     # L_bwd stays in HBM, streamed
        _full_spec(w1s.shape), _full_spec(b1s.shape),
        _full_spec(w2s.shape), _full_spec(b2s.shape),
        _full_spec(pool_pad.shape), _full_spec(wc_pad.shape),
        _full_spec(bc_pad.shape),
    ]

    # --- advisory cost estimate (rough roofline numbers) ---------------------
    n2 = n_pad * n_pad
    flops = (4 * (K - 1) * n2 * (f_in + H1)            # streamed L @ z products
             + 2 * n_pad * cin1_pad * H1               # fused block-1 matmul
             + 2 * n_pad * cin2 * H2                   # fused block-2 matmul
             + 2 * g_pad * n_pad * H2                  # mean pool
             + 2 * g_pad * H2 * NCLS_PAD)              # classifier
    bytes_accessed = (4 * (K - 1) * n2 * 2             # L streamed per product (bf16)
                      + x_pad.size * 4 + pool_pad.size * 2
                      + w1s.size * 2 + w2s.size * 2
                      + (b1s.size + b2s.size + wc_pad.size + bc_pad.size) * 4
                      + g_pad * NCLS_PAD * 4)
    cost = pl.CostEstimate(flops=int(flops),
                           transcendentals=int(g_pad * (NCLS_PAD + 1)),
                           bytes_accessed=int(bytes_accessed))

    # --- VMEM budget: strip double-buffer + Chebyshev slabs + stacked W2 -----
    resident = (2 * tm * n_pad * 2          # L strip double buffer (bf16)
                + n_pad * cin1_pad * 4      # block-1 basis slab (f32)
                + n_pad * cin2 * 2          # block-2 basis slab (bf16)
                + w2s.size * 2              # stacked block-2 weights
                + n_pad * H2 * 4)           # h2 value headroom
    vmem_limit = int(min(48 * 1024 * 1024,
                         max(32 * 1024 * 1024, 2 * resident)))  # <= v7x 64 MiB

    grid_spec = pltpu.PrefetchScalarGridSpec(
        num_scalar_prefetch=0,
        grid=(1,),
        in_specs=in_specs,
        out_specs=_full_spec((g_pad, NCLS_PAD)),
        scratch_shapes=[
            pltpu.VMEM((2, tm, n_pad), jnp.bfloat16),      # L row-strip buffers
            pltpu.SemaphoreType.DMA((2,)),
            pltpu.VMEM((n_pad, cin1_pad), jnp.float32),    # block-1 Cheb basis
            pltpu.VMEM((n_pad, cin2), jnp.bfloat16),       # block-2 Cheb basis
        ])

    out = pl.pallas_call(
        mannet_kernel,
        out_shape=jax.ShapeDtypeStruct((g_pad, NCLS_PAD), jnp.float32),
        grid_spec=grid_spec,
        compiler_params=pltpu.CompilerParams(
            dimension_semantics=("arbitrary",),
            vmem_limit_bytes=vmem_limit),
        cost_estimate=cost,
    )(*inputs)
    return out[:n_graphs, :NCLS]


# ----------------------------- graph glue ------------------------------------

def scaled_laplacian(edge_index, num_nodes, flow, lambda_max=LAMBDA_MAX):
    """Dense scaled Laplacian used by ChebConv (normalization='sym').

    flow='target_to_source': A[src, dst] = 1; flow='source_to_target': A[dst, src] = 1.
    L_hat = (2 / lambda_max) * (I - D^-1/2 A D^-1/2) - I
    """
    src, dst = np.asarray(edge_index)
    A = np.zeros((num_nodes, num_nodes), np.float32)
    if flow == "target_to_source":
        A[src, dst] = 1.0
    else:
        A[dst, src] = 1.0
    deg = A.sum(axis=1)
    dinv = np.where(deg > 0, 1.0 / np.sqrt(np.maximum(deg, 1e-12)), 0.0)
    L = np.eye(num_nodes, dtype=np.float32) - dinv[:, None] * A * dinv[None, :]
    return (2.0 / lambda_max) * L - np.eye(num_nodes, dtype=np.float32)


def mean_pool_matrix(batch, n_graphs):
    batch = np.asarray(batch)
    P = np.zeros((n_graphs, batch.shape[0]), np.float32)
    for g in range(n_graphs):
        members = batch == g
        cnt = max(int(members.sum()), 1)
        P[g, members] = 1.0 / cnt
    return P


def init_params(key, n_features=1):
    ks = jax.random.split(key, 10)

    def w(k, shape, fan_in):
        return (jax.random.normal(k, shape, jnp.float32) / np.sqrt(fan_in)).astype(jnp.float32)

    return {
        "w1a": w(ks[0], (K, n_features, H1), n_features * K),
        "b1a": w(ks[1], (1, H1), H1),
        "w1b": w(ks[2], (K, n_features, H1), n_features * K),
        "b1b": w(ks[3], (1, H1), H1),
        "w2a": w(ks[4], (K, H1, H2), H1 * K),
        "b2a": w(ks[5], (1, H2), H2),
        "w2b": w(ks[6], (K, H1, H2), H1 * K),
        "b2b": w(ks[7], (1, H2), H2),
        "wc":  w(ks[8], (H2, NCLS), H2),
        "bc":  w(ks[9], (1, NCLS), H2),
    }


def mannet_reference(x, l_fwd, l_bwd, params, pool):
    """Pure-JAX f32 reference with identical math (correctness check)."""
    def cheb(h, L, W, b):
        z_prev = h
        out = jnp.dot(z_prev, W[0], precision=_PREC)
        z_cur = jnp.dot(L, h, precision=_PREC)
        out = out + jnp.dot(z_cur, W[1], precision=_PREC)
        for k in range(2, W.shape[0]):
            z_next = 2.0 * jnp.dot(L, z_cur, precision=_PREC) - z_prev
            out = out + jnp.dot(z_next, W[k], precision=_PREC)
            z_prev, z_cur = z_cur, z_next
        return out + b

    h = cheb(x, l_fwd, params["w1a"], params["b1a"]) + \
        cheb(x, l_bwd, params["w1b"], params["b1b"])
    h = jnp.maximum(h, 0.0)
    h = cheb(h, l_fwd, params["w2a"], params["b2a"]) + \
        cheb(h, l_bwd, params["w2b"], params["b2b"])
    h = jnp.maximum(h, 0.0)
    g = jnp.dot(pool, h, precision=_PREC)
    logits = jnp.dot(g, params["wc"], precision=_PREC) + params["bc"]
    return jax.nn.log_softmax(logits, axis=1)


# ----------------------------- main ------------------------------------------

if __name__ == "__main__":
    key = jax.random.PRNGKey(0)
    k_x, k_p = jax.random.split(key)

    # Two small "morphology" graphs, 8 nodes each (chains), 1 feature per node.
    n_nodes, n_graphs = 16, 2
    x = jax.random.normal(k_x, (n_nodes, 1), jnp.float32)
    edges = []
    for g in range(n_graphs):
        base = g * 8
        for i in range(7):
            edges.append((base + i, base + i + 1))    # (source, target)
    edge_index = np.asarray(edges, np.int64).T        # (2, E)
    batch = np.asarray([0] * 8 + [1] * 8, np.int64)   # graph id per node

    # Dense scaled Laplacians for both flow directions + mean-pool matrix.
    l_fwd = jnp.asarray(scaled_laplacian(edge_index, n_nodes, "target_to_source"))
    l_bwd = jnp.asarray(scaled_laplacian(edge_index, n_nodes, "source_to_target"))
    pool = jnp.asarray(mean_pool_matrix(batch, n_graphs))

    params = init_params(k_p, n_features=1)

    out = mannet_forward(x, l_fwd, l_bwd, params, pool)
    out = jax.block_until_ready(out)

    ref = jax.block_until_ready(mannet_reference(x, l_fwd, l_bwd, params, pool))
    np.testing.assert_allclose(np.asarray(out), np.asarray(ref),
                               rtol=2e-2, atol=2e-2)
    assert out.shape == (n_graphs, NCLS)
    print("KERNEL_OK")
</pallas_src>

<mosaic_0001>
module attributes {stable_mosaic.version = 11 : i64} {
  func.func @mannet_kernel(%arg0: i32, %arg1: memref<128x1xf32, #tpu.memory_space<vmem>>, %arg2: memref<128x128xbf16, #tpu.memory_space<any>>, %arg3: memref<128x128xbf16, #tpu.memory_space<any>>, %arg4: memref<16x128xbf16, #tpu.memory_space<vmem>>, %arg5: memref<1x128xf32, #tpu.memory_space<vmem>>, %arg6: memref<1152x512xbf16, #tpu.memory_space<vmem>>, %arg7: memref<1x512xf32, #tpu.memory_space<vmem>>, %arg8: memref<8x128xbf16, #tpu.memory_space<vmem>>, %arg9: memref<512x128xf32, #tpu.memory_space<vmem>>, %arg10: memref<1x128xf32, #tpu.memory_space<vmem>>, %arg11: memref<8x128xf32, #tpu.memory_space<vmem>>, %arg12: memref<2x128x128xbf16, #tpu.memory_space<vmem>>, %arg13: memref<2x!tpu.dma_semaphore, #tpu.memory_space<semaphore_mem>>, %arg14: memref<128x16xf32, #tpu.memory_space<vmem>>, %arg15: memref<128x1152xbf16, #tpu.memory_space<vmem>>) attributes {dimension_semantics = [#tpu.dimension_semantics<arbitrary>], iteration_bounds = array<i64: 1>, scalar_prefetch = 0 : i64, scratch_operands = 4 : i64, tpu.core_type = #tpu.core_type<tc>, window_params = [{pipeline_mode = #tpu.pipeline_mode<synchronous>, transform_indices = @transform_0, window_bounds = array<i64: 128, 1>}, {}, {}, {pipeline_mode = #tpu.pipeline_mode<synchronous>, transform_indices = @transform_3, window_bounds = array<i64: 16, 128>}, {pipeline_mode = #tpu.pipeline_mode<synchronous>, transform_indices = @transform_4, window_bounds = array<i64: 1, 128>}, {pipeline_mode = #tpu.pipeline_mode<synchronous>, transform_indices = @transform_5, window_bounds = array<i64: 1152, 512>}, {pipeline_mode = #tpu.pipeline_mode<synchronous>, transform_indices = @transform_6, window_bounds = array<i64: 1, 512>}, {pipeline_mode = #tpu.pipeline_mode<synchronous>, transform_indices = @transform_7, window_bounds = array<i64: 8, 128>}, {pipeline_mode = #tpu.pipeline_mode<synchronous>, transform_indices = @transform_8, window_bounds = array<i64: 512, 128>}, {pipeline_mode = #tpu.pipeline_mode<synchronous>, transform_indices = @transform_9, window_bounds = array<i64: 1, 128>}, {pipeline_mode = #tpu.pipeline_mode<synchronous>, transform_indices = @transform_10, window_bounds = array<i64: 8, 128>}]} {
    %cst = arith.constant 0.000000e+00 : f32
    %0 = vector.broadcast %cst : f32 to vector<128x16xf32>
    %c0 = arith.constant 0 : index
    %c0_0 = arith.constant 0 : index
    %1 = vector.load %arg14[%c0, %c0_0] : memref<128x16xf32, #tpu.memory_space<vmem>>, vector<128x16xf32>
    tpu.vector_store %arg14[%c0, %c0_0], %0 {strides = array<i32>} : memref<128x16xf32, #tpu.memory_space<vmem>>, vector<128x16xf32>,
    %c0_1 = arith.constant 0 : index
    %c0_2 = arith.constant 0 : index
    %2 = vector.load %arg1[%c0_1, %c0_2] : memref<128x1xf32, #tpu.memory_space<vmem>>, vector<128x1xf32>
    %c0_3 = arith.constant 0 : index
    %c0_4 = arith.constant 0 : index
    %3 = vector.load %arg14[%c0_3, %c0_4] : memref<128x16xf32, #tpu.memory_space<vmem>>, vector<128x1xf32>
    tpu.vector_store %arg14[%c0_3, %c0_4], %2 {strides = array<i32>} : memref<128x16xf32, #tpu.memory_space<vmem>>, vector<128x1xf32>,
    %4 = arith.truncf %2 : vector<128x1xf32> to vector<128x1xbf16>
    %c0_i32 = arith.constant 0 : i32
    %c0_i32_5 = arith.constant 0 : i32
    %c0_i32_6 = arith.constant 0 : i32
    %c0_i32_7 = arith.constant 0 : i32
    %5 = tpu.memref_slice %arg2[%c0_i32_6, %c0_i32_7] : memref<128x128xbf16, #tpu.memory_space<any>> -> memref<128x128xbf16, #tpu.memory_space<any>>
    %c0_i32_8 = arith.constant 0 : i32
    %c0_i32_9 = arith.constant 0 : i32
    %6 = tpu.memref_slice %arg12[%c0_i32, %c0_i32_8, %c0_i32_9] : memref<2x128x128xbf16, #tpu.memory_space<vmem>> -> memref<1x128x128xbf16, #tpu.memory_space<vmem>>
    %7 = tpu.memref_squeeze %6 : memref<1x128x128xbf16, #tpu.memory_space<vmem>> -> memref<128x128xbf16, #tpu.memory_space<vmem>>
    %8 = tpu.memref_slice %arg13[%c0_i32_5] : memref<2x!tpu.dma_semaphore, #tpu.memory_space<semaphore_mem>> -> memref<1x!tpu.dma_semaphore, #tpu.memory_space<semaphore_mem>>
    %9 = tpu.memref_squeeze %8 : memref<1x!tpu.dma_semaphore, #tpu.memory_space<semaphore_mem>> -> memref<!tpu.dma_semaphore, #tpu.memory_space<semaphore_mem>>
    tpu.enqueue_dma source(%5 : memref<128x128xbf16, #tpu.memory_space<any>>) target(%7 : memref<128x128xbf16, #tpu.memory_space<vmem>>) target_semaphore(%9 : memref<!tpu.dma_semaphore, #tpu.memory_space<semaphore_mem>>)
    %c0_i32_10 = arith.constant 0 : i32
    %c0_i32_11 = arith.constant 0 : i32
    %c0_i32_12 = arith.constant 0 : i32
    %c0_i32_13 = arith.constant 0 : i32
    %10 = tpu.memref_slice %arg2[%c0_i32_12, %c0_i32_13] : memref<128x128xbf16, #tpu.memory_space<any>> -> memref<128x128xbf16, #tpu.memory_space<any>>
    %c0_i32_14 = arith.constant 0 : i32
    %c0_i32_15 = arith.constant 0 : i32
    %11 = tpu.memref_slice %arg12[%c0_i32_10, %c0_i32_14, %c0_i32_15] : memref<2x128x128xbf16, #tpu.memory_space<vmem>> -> memref<1x128x128xbf16, #tpu.memory_space<vmem>>
    %12 = tpu.memref_squeeze %11 : memref<1x128x128xbf16, #tpu.memory_space<vmem>> -> memref<128x128xbf16, #tpu.memory_space<vmem>>
    %13 = tpu.memref_slice %arg13[%c0_i32_11] : memref<2x!tpu.dma_semaphore, #tpu.memory_space<semaphore_mem>> -> memref<1x!tpu.dma_semaphore, #tpu.memory_space<semaphore_mem>>
    %14 = tpu.memref_squeeze %13 : memref<1x!tpu.dma_semaphore, #tpu.memory_space<semaphore_mem>> -> memref<!tpu.dma_semaphore, #tpu.memory_space<semaphore_mem>>
    tpu.wait_dma2 semaphore(%14 : memref<!tpu.dma_semaphore, #tpu.memory_space<semaphore_mem>>) src(%10 : memref<128x128xbf16, #tpu.memory_space<any>>) dst(%12 : memref<128x128xbf16, #tpu.memory_space<vmem>>)
    %c0_16 = arith.constant 0 : index
    %c0_17 = arith.constant 0 : index
    %c0_18 = arith.constant 0 : index
    %15 = vector.load %arg12[%c0_16, %c0_17, %c0_18] : memref<2x128x128xbf16, #tpu.memory_space<vmem>>, vector<1x128x128xbf16>
    %16 = vector.shape_cast %15 : vector<1x128x128xbf16> to vector<128x128xbf16>
    %cst_19 = arith.constant dense<0.000000e+00> : vector<128x1xf32>
    %17 = tpu.matmul %16, %4, %cst_19 {dimension_numbers = #tpu.dot_dimension_numbers<[1], [0], [0], [1], [0, 0, 1, 1], [], []>} : vector<128x128xbf16>, vector<128x1xbf16>, vector<128x1xf32> -> vector<128x1xf32>
    %cst_20 = arith.constant 5.000000e-01 : f32
    %18 = vector.broadcast %cst_20 : f32 to vector<128x1xf32>
    %19 = arith.mulf %18, %17 : vector<128x1xf32>
    %c0_21 = arith.constant 0 : index
    %c1 = arith.constant 1 : index
    %20 = vector.load %arg14[%c0_21, %c1] : memref<128x16xf32, #tpu.memory_space<vmem>>, vector<128x1xf32>
    tpu.vector_store %arg14[%c0_21, %c1], %19 {strides = array<i32>} : memref<128x16xf32, #tpu.memory_space<vmem>>, vector<128x1xf32>,
    %21 = arith.truncf %19 : vector<128x1xf32> to vector<128x1xbf16>
    %c0_i32_22 = arith.constant 0 : i32
    %c0_i32_23 = arith.constant 0 : i32
    %c0_i32_24 = arith.constant 0 : i32
    %c0_i32_25 = arith.constant 0 : i32
    %22 = tpu.memref_slice %arg2[%c0_i32_24, %c0_i32_25] : memref<128x128xbf16, #tpu.memory_space<any>> -> memref<128x128xbf16, #tpu.memory_space<any>>
    %c0_i32_26 = arith.constant 0 : i32
    %c0_i32_27 = arith.constant 0 : i32
    %23 = tpu.memref_slice %arg12[%c0_i32_22, %c0_i32_26, %c0_i32_27] : memref<2x128x128xbf16, #tpu.memory_space<vmem>> -> memref<1x128x128xbf16, #tpu.memory_space<vmem>>
    %24 = tpu.memref_squeeze %23 : memref<1x128x128xbf16, #tpu.memory_space<vmem>> -> memref<128x128xbf16, #tpu.memory_space<vmem>>
    %25 = tpu.memref_slice %arg13[%c0_i32_23] : memref<2x!tpu.dma_semaphore, #tpu.memory_space<semaphore_mem>> -> memref<1x!tpu.dma_semaphore, #tpu.memory_space<semaphore_mem>>
    %26 = tpu.memref_squeeze %25 : memref<1x!tpu.dma_semaphore, #tpu.memory_space<semaphore_mem>> -> memref<!tpu.dma_semaphore, #tpu.memory_space<semaphore_mem>>
    tpu.enqueue_dma source(%22 : memref<128x128xbf16, #tpu.memory_space<any>>) target(%24 : memref<128x128xbf16, #tpu.memory_space<vmem>>) target_semaphore(%26 : memref<!tpu.dma_semaphore, #tpu.memory_space<semaphore_mem>>)
    %c0_i32_28 = arith.constant 0 : i32
    %c0_i32_29 = arith.constant 0 : i32
    %c0_i32_30 = arith.constant 0 : i32
    %c0_i32_31 = arith.constant 0 : i32
    %27 = tpu.memref_slice %arg2[%c0_i32_30, %c0_i32_31] : memref<128x128xbf16, #tpu.memory_space<any>> -> memref<128x128xbf16, #tpu.memory_space<any>>
    %c0_i32_32 = arith.constant 0 : i32
    %c0_i32_33 = arith.constant 0 : i32
    %28 = tpu.memref_slice %arg12[%c0_i32_28, %c0_i32_32, %c0_i32_33] : memref<2x128x128xbf16, #tpu.memory_space<vmem>> -> memref<1x128x128xbf16, #tpu.memory_space<vmem>>
    %29 = tpu.memref_squeeze %28 : memref<1x128x128xbf16, #tpu.memory_space<vmem>> -> memref<128x128xbf16, #tpu.memory_space<vmem>>
    %30 = tpu.memref_slice %arg13[%c0_i32_29] : memref<2x!tpu.dma_semaphore, #tpu.memory_space<semaphore_mem>> -> memref<1x!tpu.dma_semaphore, #tpu.memory_space<semaphore_mem>>
    %31 = tpu.memref_squeeze %30 : memref<1x!tpu.dma_semaphore, #tpu.memory_space<semaphore_mem>> -> memref<!tpu.dma_semaphore, #tpu.memory_space<semaphore_mem>>
    tpu.wait_dma2 semaphore(%31 : memref<!tpu.dma_semaphore, #tpu.memory_space<semaphore_mem>>) src(%27 : memref<128x128xbf16, #tpu.memory_space<any>>) dst(%29 : memref<128x128xbf16, #tpu.memory_space<vmem>>)
    %c0_34 = arith.constant 0 : index
    %c0_35 = arith.constant 0 : index
    %c0_36 = arith.constant 0 : index
    %32 = vector.load %arg12[%c0_34, %c0_35, %c0_36] : memref<2x128x128xbf16, #tpu.memory_space<vmem>>, vector<1x128x128xbf16>
    %33 = vector.shape_cast %32 : vector<1x128x128xbf16> to vector<128x128xbf16>
    %cst_37 = arith.constant dense<0.000000e+00> : vector<128x1xf32>
    %34 = tpu.matmul %33, %21, %cst_37 {dimension_numbers = #tpu.dot_dimension_numbers<[1], [0], [0], [1], [0, 0, 1, 1], [], []>} : vector<128x128xbf16>, vector<128x1xbf16>, vector<128x1xf32> -> vector<128x1xf32>
    %35 = arith.subf %34, %2 : vector<128x1xf32>
    %c0_38 = arith.constant 0 : index
    %c2 = arith.constant 2 : index
    %36 = vector.load %arg14[%c0_38, %c2] : memref<128x16xf32, #tpu.memory_space<vmem>>, vector<128x1xf32>
    tpu.vector_store %arg14[%c0_38, %c2], %35 {strides = array<i32>} : memref<128x16xf32, #tpu.memory_space<vmem>>, vector<128x1xf32>,
    %37 = arith.truncf %35 : vector<128x1xf32> to vector<128x1xbf16>
    %c0_i32_39 = arith.constant 0 : i32
    %c0_i32_40 = arith.constant 0 : i32
    %c0_i32_41 = arith.constant 0 : i32
    %c0_i32_42 = arith.constant 0 : i32
    %38 = tpu.memref_slice %arg2[%c0_i32_41, %c0_i32_42] : memref<128x128xbf16, #tpu.memory_space<any>> -> memref<128x128xbf16, #tpu.memory_space<any>>
    %c0_i32_43 = arith.constant 0 : i32
    %c0_i32_44 = arith.constant 0 : i32
    %39 = tpu.memref_slice %arg12[%c0_i32_39, %c0_i32_43, %c0_i32_44] : memref<2x128x128xbf16, #tpu.memory_space<vmem>> -> memref<1x128x128xbf16, #tpu.memory_space<vmem>>
    %40 = tpu.memref_squeeze %39 : memref<1x128x128xbf16, #tpu.memory_space<vmem>> -> memref<128x128xbf16, #tpu.memory_space<vmem>>
    %41 = tpu.memref_slice %arg13[%c0_i32_40] : memref<2x!tpu.dma_semaphore, #tpu.memory_space<semaphore_mem>> -> memref<1x!tpu.dma_semaphore, #tpu.memory_space<semaphore_mem>>
    %42 = tpu.memref_squeeze %41 : memref<1x!tpu.dma_semaphore, #tpu.memory_space<semaphore_mem>> -> memref<!tpu.dma_semaphore, #tpu.memory_space<semaphore_mem>>
    tpu.enqueue_dma source(%38 : memref<128x128xbf16, #tpu.memory_space<any>>) target(%40 : memref<128x128xbf16, #tpu.memory_space<vmem>>) target_semaphore(%42 : memref<!tpu.dma_semaphore, #tpu.memory_space<semaphore_mem>>)
    %c0_i32_45 = arith.constant 0 : i32
    %c0_i32_46 = arith.constant 0 : i32
    %c0_i32_47 = arith.constant 0 : i32
    %c0_i32_48 = arith.constant 0 : i32
    %43 = tpu.memref_slice %arg2[%c0_i32_47, %c0_i32_48] : memref<128x128xbf16, #tpu.memory_space<any>> -> memref<128x128xbf16, #tpu.memory_space<any>>
    %c0_i32_49 = arith.constant 0 : i32
    %c0_i32_50 = arith.constant 0 : i32
    %44 = tpu.memref_slice %arg12[%c0_i32_45, %c0_i32_49, %c0_i32_50] : memref<2x128x128xbf16, #tpu.memory_space<vmem>> -> memref<1x128x128xbf16, #tpu.memory_space<vmem>>
    %45 = tpu.memref_squeeze %44 : memref<1x128x128xbf16, #tpu.memory_space<vmem>> -> memref<128x128xbf16, #tpu.memory_space<vmem>>
    %46 = tpu.memref_slice %arg13[%c0_i32_46] : memref<2x!tpu.dma_semaphore, #tpu.memory_space<semaphore_mem>> -> memref<1x!tpu.dma_semaphore, #tpu.memory_space<semaphore_mem>>
    %47 = tpu.memref_squeeze %46 : memref<1x!tpu.dma_semaphore, #tpu.memory_space<semaphore_mem>> -> memref<!tpu.dma_semaphore, #tpu.memory_space<semaphore_mem>>
    tpu.wait_dma2 semaphore(%47 : memref<!tpu.dma_semaphore, #tpu.memory_space<semaphore_mem>>) src(%43 : memref<128x128xbf16, #tpu.memory_space<any>>) dst(%45 : memref<128x128xbf16, #tpu.memory_space<vmem>>)
    %c0_51 = arith.constant 0 : index
    %c0_52 = arith.constant 0 : index
    %c0_53 = arith.constant 0 : index
    %48 = vector.load %arg12[%c0_51, %c0_52, %c0_53] : memref<2x128x128xbf16, #tpu.memory_space<vmem>>, vector<1x128x128xbf16>
    %49 = vector.shape_cast %48 : vector<1x128x128xbf16> to vector<128x128xbf16>
    %cst_54 = arith.constant dense<0.000000e+00> : vector<128x1xf32>
    %50 = tpu.matmul %49, %37, %cst_54 {dimension_numbers = #tpu.dot_dimension_numbers<[1], [0], [0], [1], [0, 0, 1, 1], [], []>} : vector<128x128xbf16>, vector<128x1xbf16>, vector<128x1xf32> -> vector<128x1xf32>
    %51 = arith.subf %50, %19 : vector<128x1xf32>
    %c0_55 = arith.constant 0 : index
    %c3 = arith.constant 3 : index
    %52 = vector.load %arg14[%c0_55, %c3] : memref<128x16xf32, #tpu.memory_space<vmem>>, vector<128x1xf32>
    tpu.vector_store %arg14[%c0_55, %c3], %51 {strides = array<i32>} : memref<128x16xf32, #tpu.memory_space<vmem>>, vector<128x1xf32>,
    %53 = arith.truncf %51 : vector<128x1xf32> to vector<128x1xbf16>
    %c0_i32_56 = arith.constant 0 : i32
    %c0_i32_57 = arith.constant 0 : i32
    %c0_i32_58 = arith.constant 0 : i32
    %c0_i32_59 = arith.constant 0 : i32
    %54 = tpu.memref_slice %arg2[%c0_i32_58, %c0_i32_59] : memref<128x128xbf16, #tpu.memory_space<any>> -> memref<128x128xbf16, #tpu.memory_space<any>>
    %c0_i32_60 = arith.constant 0 : i32
    %c0_i32_61 = arith.constant 0 : i32
    %55 = tpu.memref_slice %arg12[%c0_i32_56, %c0_i32_60, %c0_i32_61] : memref<2x128x128xbf16, #tpu.memory_space<vmem>> -> memref<1x128x128xbf16, #tpu.memory_space<vmem>>
    %56 = tpu.memref_squeeze %55 : memref<1x128x128xbf16, #tpu.memory_space<vmem>> -> memref<128x128xbf16, #tpu.memory_space<vmem>>
    %57 = tpu.memref_slice %arg13[%c0_i32_57] : memref<2x!tpu.dma_semaphore, #tpu.memory_space<semaphore_mem>> -> memref<1x!tpu.dma_semaphore, #tpu.memory_space<semaphore_mem>>
    %58 = tpu.memref_squeeze %57 : memref<1x!tpu.dma_semaphore, #tpu.memory_space<semaphore_mem>> -> memref<!tpu.dma_semaphore, #tpu.memory_space<semaphore_mem>>
    tpu.enqueue_dma source(%54 : memref<128x128xbf16, #tpu.memory_space<any>>) target(%56 : memref<128x128xbf16, #tpu.memory_space<vmem>>) target_semaphore(%58 : memref<!tpu.dma_semaphore, #tpu.memory_space<semaphore_mem>>)
    %c0_i32_62 = arith.constant 0 : i32
    %c0_i32_63 = arith.constant 0 : i32
    %c0_i32_64 = arith.constant 0 : i32
    %c0_i32_65 = arith.constant 0 : i32
    %59 = tpu.memref_slice %arg2[%c0_i32_64, %c0_i32_65] : memref<128x128xbf16, #tpu.memory_space<any>> -> memref<128x128xbf16, #tpu.memory_space<any>>
    %c0_i32_66 = arith.constant 0 : i32
    %c0_i32_67 = arith.constant 0 : i32
    %60 = tpu.memref_slice %arg12[%c0_i32_62, %c0_i32_66, %c0_i32_67] : memref<2x128x128xbf16, #tpu.memory_space<vmem>> -> memref<1x128x128xbf16, #tpu.memory_space<vmem>>
    %61 = tpu.memref_squeeze %60 : memref<1x128x128xbf16, #tpu.memory_space<vmem>> -> memref<128x128xbf16, #tpu.memory_space<vmem>>
    %62 = tpu.memref_slice %arg13[%c0_i32_63] : memref<2x!tpu.dma_semaphore, #tpu.memory_space<semaphore_mem>> -> memref<1x!tpu.dma_semaphore, #tpu.memory_space<semaphore_mem>>
    %63 = tpu.memref_squeeze %62 : memref<1x!tpu.dma_semaphore, #tpu.memory_space<semaphore_mem>> -> memref<!tpu.dma_semaphore, #tpu.memory_space<semaphore_mem>>
    tpu.wait_dma2 semaphore(%63 : memref<!tpu.dma_semaphore, #tpu.memory_space<semaphore_mem>>) src(%59 : memref<128x128xbf16, #tpu.memory_space<any>>) dst(%61 : memref<128x128xbf16, #tpu.memory_space<vmem>>)
    %c0_68 = arith.constant 0 : index
    %c0_69 = arith.constant 0 : index
    %c0_70 = arith.constant 0 : index
    %64 = vector.load %arg12[%c0_68, %c0_69, %c0_70] : memref<2x128x128xbf16, #tpu.memory_space<vmem>>, vector<1x128x128xbf16>
    %65 = vector.shape_cast %64 : vector<1x128x128xbf16> to vector<128x128xbf16>
    %cst_71 = arith.constant dense<0.000000e+00> : vector<128x1xf32>
    %66 = tpu.matmul %65, %53, %cst_71 {dimension_numbers = #tpu.dot_dimension_numbers<[1], [0], [0], [1], [0, 0, 1, 1], [], []>} : vector<128x128xbf16>, vector<128x1xbf16>, vector<128x1xf32> -> vector<128x1xf32>
    %67 = arith.subf %66, %35 : vector<128x1xf32>
    %c0_72 = arith.constant 0 : index
    %c4 = arith.constant 4 : index
    %68 = vector.load %arg14[%c0_72, %c4] : memref<128x16xf32, #tpu.memory_space<vmem>>, vector<128x1xf32>
    tpu.vector_store %arg14[%c0_72, %c4], %67 {strides = array<i32>} : memref<128x16xf32, #tpu.memory_space<vmem>>, vector<128x1xf32>,
    %69 = arith.truncf %2 : vector<128x1xf32> to vector<128x1xbf16>
    %c0_i32_73 = arith.constant 0 : i32
    %c0_i32_74 = arith.constant 0 : i32
    %c0_i32_75 = arith.constant 0 : i32
    %c0_i32_76 = arith.constant 0 : i32
    %70 = tpu.memref_slice %arg3[%c0_i32_75, %c0_i32_76] : memref<128x128xbf16, #tpu.memory_space<any>> -> memref<128x128xbf16, #tpu.memory_space<any>>
    %c0_i32_77 = arith.constant 0 : i32
    %c0_i32_78 = arith.constant 0 : i32
    %71 = tpu.memref_slice %arg12[%c0_i32_73, %c0_i32_77, %c0_i32_78] : memref<2x128x128xbf16, #tpu.memory_space<vmem>> -> memref<1x128x128xbf16, #tpu.memory_space<vmem>>
    %72 = tpu.memref_squeeze %71 : memref<1x128x128xbf16, #tpu.memory_space<vmem>> -> memref<128x128xbf16, #tpu.memory_space<vmem>>
    %73 = tpu.memref_slice %arg13[%c0_i32_74] : memref<2x!tpu.dma_semaphore, #tpu.memory_space<semaphore_mem>> -> memref<1x!tpu.dma_semaphore, #tpu.memory_space<semaphore_mem>>
    %74 = tpu.memref_squeeze %73 : memref<1x!tpu.dma_semaphore, #tpu.memory_space<semaphore_mem>> -> memref<!tpu.dma_semaphore, #tpu.memory_space<semaphore_mem>>
    tpu.enqueue_dma source(%70 : memref<128x128xbf16, #tpu.memory_space<any>>) target(%72 : memref<128x128xbf16, #tpu.memory_space<vmem>>) target_semaphore(%74 : memref<!tpu.dma_semaphore, #tpu.memory_space<semaphore_mem>>)
    %c0_i32_79 = arith.constant 0 : i32
    %c0_i32_80 = arith.constant 0 : i32
    %c0_i32_81 = arith.constant 0 : i32
    %c0_i32_82 = arith.constant 0 : i32
    %75 = tpu.memref_slice %arg3[%c0_i32_81, %c0_i32_82] : memref<128x128xbf16, #tpu.memory_space<any>> -> memref<128x128xbf16, #tpu.memory_space<any>>
    %c0_i32_83 = arith.constant 0 : i32
    %c0_i32_84 = arith.constant 0 : i32
    %76 = tpu.memref_slice %arg12[%c0_i32_79, %c0_i32_83, %c0_i32_84] : memref<2x128x128xbf16, #tpu.memory_space<vmem>> -> memref<1x128x128xbf16, #tpu.memory_space<vmem>>
    %77 = tpu.memref_squeeze %76 : memref<1x128x128xbf16, #tpu.memory_space<vmem>> -> memref<128x128xbf16, #tpu.memory_space<vmem>>
    %78 = tpu.memref_slice %arg13[%c0_i32_80] : memref<2x!tpu.dma_semaphore, #tpu.memory_space<semaphore_mem>> -> memref<1x!tpu.dma_semaphore, #tpu.memory_space<semaphore_mem>>
    %79 = tpu.memref_squeeze %78 : memref<1x!tpu.dma_semaphore, #tpu.memory_space<semaphore_mem>> -> memref<!tpu.dma_semaphore, #tpu.memory_space<semaphore_mem>>
    tpu.wait_dma2 semaphore(%79 : memref<!tpu.dma_semaphore, #tpu.memory_space<semaphore_mem>>) src(%75 : memref<128x128xbf16, #tpu.memory_space<any>>) dst(%77 : memref<128x128xbf16, #tpu.memory_space<vmem>>)
    %c0_85 = arith.constant 0 : index
    %c0_86 = arith.constant 0 : index
    %c0_87 = arith.constant 0 : index
    %80 = vector.load %arg12[%c0_85, %c0_86, %c0_87] : memref<2x128x128xbf16, #tpu.memory_space<vmem>>, vector<1x128x128xbf16>
    %81 = vector.shape_cast %80 : vector<1x128x128xbf16> to vector<128x128xbf16>
    %cst_88 = arith.constant dense<0.000000e+00> : vector<128x1xf32>
    %82 = tpu.matmul %81, %69, %cst_88 {dimension_numbers = #tpu.dot_dimension_numbers<[1], [0], [0], [1], [0, 0, 1, 1], [], []>} : vector<128x128xbf16>, vector<128x1xbf16>, vector<128x1xf32> -> vector<128x1xf32>
    %cst_89 = arith.constant 5.000000e-01 : f32
    %83 = vector.broadcast %cst_89 : f32 to vector<128x1xf32>
    %84 = arith.mulf %83, %82 : vector<128x1xf32>
    %c0_90 = arith.constant 0 : index
    %c5 = arith.constant 5 : index
    %85 = vector.load %arg14[%c0_90, %c5] : memref<128x16xf32, #tpu.memory_space<vmem>>, vector<128x1xf32>
    tpu.vector_store %arg14[%c0_90, %c5], %84 {strides = array<i32>} : memref<128x16xf32, #tpu.memory_space<vmem>>, vector<128x1xf32>,
    %86 = arith.truncf %84 : vector<128x1xf32> to vector<128x1xbf16>
    %c0_i32_91 = arith.constant 0 : i32
    %c0_i32_92 = arith.constant 0 : i32
    %c0_i32_93 = arith.constant 0 : i32
    %c0_i32_94 = arith.constant 0 : i32
    %87 = tpu.memref_slice %arg3[%c0_i32_93, %c0_i32_94] : memref<128x128xbf16, #tpu.memory_space<any>> -> memref<128x128xbf16, #tpu.memory_space<any>>
    %c0_i32_95 = arith.constant 0 : i32
    %c0_i32_96 = arith.constant 0 : i32
    %88 = tpu.memref_slice %arg12[%c0_i32_91, %c0_i32_95, %c0_i32_96] : memref<2x128x128xbf16, #tpu.memory_space<vmem>> -> memref<1x128x128xbf16, #tpu.memory_space<vmem>>
    %89 = tpu.memref_squeeze %88 : memref<1x128x128xbf16, #tpu.memory_space<vmem>> -> memref<128x128xbf16, #tpu.memory_space<vmem>>
    %90 = tpu.memref_slice %arg13[%c0_i32_92] : memref<2x!tpu.dma_semaphore, #tpu.memory_space<semaphore_mem>> -> memref<1x!tpu.dma_semaphore, #tpu.memory_space<semaphore_mem>>
    %91 = tpu.memref_squeeze %90 : memref<1x!tpu.dma_semaphore, #tpu.memory_space<semaphore_mem>> -> memref<!tpu.dma_semaphore, #tpu.memory_space<semaphore_mem>>
    tpu.enqueue_dma source(%87 : memref<128x128xbf16, #tpu.memory_space<any>>) target(%89 : memref<128x128xbf16, #tpu.memory_space<vmem>>) target_semaphore(%91 : memref<!tpu.dma_semaphore, #tpu.memory_space<semaphore_mem>>)
    %c0_i32_97 = arith.constant 0 : i32
    %c0_i32_98 = arith.constant 0 : i32
    %c0_i32_99 = arith.constant 0 : i32
    %c0_i32_100 = arith.constant 0 : i32
    %92 = tpu.memref_slice %arg3[%c0_i32_99, %c0_i32_100] : memref<128x128xbf16, #tpu.memory_space<any>> -> memref<128x128xbf16, #tpu.memory_space<any>>
    %c0_i32_101 = arith.constant 0 : i32
    %c0_i32_102 = arith.constant 0 : i32
    %93 = tpu.memref_slice %arg12[%c0_i32_97, %c0_i32_101, %c0_i32_102] : memref<2x128x128xbf16, #tpu.memory_space<vmem>> -> memref<1x128x128xbf16, #tpu.memory_space<vmem>>
    %94 = tpu.memref_squeeze %93 : memref<1x128x128xbf16, #tpu.memory_space<vmem>> -> memref<128x128xbf16, #tpu.memory_space<vmem>>
    %95 = tpu.memref_slice %arg13[%c0_i32_98] : memref<2x!tpu.dma_semaphore, #tpu.memory_space<semaphore_mem>> -> memref<1x!tpu.dma_semaphore, #tpu.memory_space<semaphore_mem>>
    %96 = tpu.memref_squeeze %95 : memref<1x!tpu.dma_semaphore, #tpu.memory_space<semaphore_mem>> -> memref<!tpu.dma_semaphore, #tpu.memory_space<semaphore_mem>>
    tpu.wait_dma2 semaphore(%96 : memref<!tpu.dma_semaphore, #tpu.memory_space<semaphore_mem>>) src(%92 : memref<128x128xbf16, #tpu.memory_space<any>>) dst(%94 : memref<128x128xbf16, #tpu.memory_space<vmem>>)
    %c0_103 = arith.constant 0 : index
    %c0_104 = arith.constant 0 : index
    %c0_105 = arith.constant 0 : index
    %97 = vector.load %arg12[%c0_103, %c0_104, %c0_105] : memref<2x128x128xbf16, #tpu.memory_space<vmem>>, vector<1x128x128xbf16>
    %98 = vector.shape_cast %97 : vector<1x128x128xbf16> to vector<128x128xbf16>
    %cst_106 = arith.constant dense<0.000000e+00> : vector<128x1xf32>
    %99 = tpu.matmul %98, %86, %cst_106 {dimension_numbers = #tpu.dot_dimension_numbers<[1], [0], [0], [1], [0, 0, 1, 1], [], []>} : vector<128x128xbf16>, vector<128x1xbf16>, vector<128x1xf32> -> vector<128x1xf32>
    %100 = arith.subf %99, %2 : vector<128x1xf32>
    %c0_107 = arith.constant 0 : index
    %c6 = arith.constant 6 : index
    %101 = vector.load %arg14[%c0_107, %c6] : memref<128x16xf32, #tpu.memory_space<vmem>>, vector<128x1xf32>
    tpu.vector_store %arg14[%c0_107, %c6], %100 {strides = array<i32>} : memref<128x16xf32, #tpu.memory_space<vmem>>, vector<128x1xf32>,
    %102 = arith.truncf %100 : vector<128x1xf32> to vector<128x1xbf16>
    %c0_i32_108 = arith.constant 0 : i32
    %c0_i32_109 = arith.constant 0 : i32
    %c0_i32_110 = arith.constant 0 : i32
    %c0_i32_111 = arith.constant 0 : i32
    %103 = tpu.memref_slice %arg3[%c0_i32_110, %c0_i32_111] : memref<128x128xbf16, #tpu.memory_space<any>> -> memref<128x128xbf16, #tpu.memory_space<any>>
    %c0_i32_112 = arith.constant 0 : i32
    %c0_i32_113 = arith.constant 0 : i32
    %104 = tpu.memref_slice %arg12[%c0_i32_108, %c0_i32_112, %c0_i32_113] : memref<2x128x128xbf16, #tpu.memory_space<vmem>> -> memref<1x128x128xbf16, #tpu.memory_space<vmem>>
    %105 = tpu.memref_squeeze %104 : memref<1x128x128xbf16, #tpu.memory_space<vmem>> -> memref<128x128xbf16, #tpu.memory_space<vmem>>
    %106 = tpu.memref_slice %arg13[%c0_i32_109] : memref<2x!tpu.dma_semaphore, #tpu.memory_space<semaphore_mem>> -> memref<1x!tpu.dma_semaphore, #tpu.memory_space<semaphore_mem>>
    %107 = tpu.memref_squeeze %106 : memref<1x!tpu.dma_semaphore, #tpu.memory_space<semaphore_mem>> -> memref<!tpu.dma_semaphore, #tpu.memory_space<semaphore_mem>>
    tpu.enqueue_dma source(%103 : memref<128x128xbf16, #tpu.memory_space<any>>) target(%105 : memref<128x128xbf16, #tpu.memory_space<vmem>>) target_semaphore(%107 : memref<!tpu.dma_semaphore, #tpu.memory_space<semaphore_mem>>)
    %c0_i32_114 = arith.constant 0 : i32
    %c0_i32_115 = arith.constant 0 : i32
    %c0_i32_116 = arith.constant 0 : i32
    %c0_i32_117 = arith.constant 0 : i32
    %108 = tpu.memref_slice %arg3[%c0_i32_116, %c0_i32_117] : memref<128x128xbf16, #tpu.memory_space<any>> -> memref<128x128xbf16, #tpu.memory_space<any>>
    %c0_i32_118 = arith.constant 0 : i32
    %c0_i32_119 = arith.constant 0 : i32
    %109 = tpu.memref_slice %arg12[%c0_i32_114, %c0_i32_118, %c0_i32_119] : memref<2x128x128xbf16, #tpu.memory_space<vmem>> -> memref<1x128x128xbf16, #tpu.memory_space<vmem>>
    %110 = tpu.memref_squeeze %109 : memref<1x128x128xbf16, #tpu.memory_space<vmem>> -> memref<128x128xbf16, #tpu.memory_space<vmem>>
    %111 = tpu.memref_slice %arg13[%c0_i32_115] : memref<2x!tpu.dma_semaphore, #tpu.memory_space<semaphore_mem>> -> memref<1x!tpu.dma_semaphore, #tpu.memory_space<semaphore_mem>>
    %112 = tpu.memref_squeeze %111 : memref<1x!tpu.dma_semaphore, #tpu.memory_space<semaphore_mem>> -> memref<!tpu.dma_semaphore, #tpu.memory_space<semaphore_mem>>
    tpu.wait_dma2 semaphore(%112 : memref<!tpu.dma_semaphore, #tpu.memory_space<semaphore_mem>>) src(%108 : memref<128x128xbf16, #tpu.memory_space<any>>) dst(%110 : memref<128x128xbf16, #tpu.memory_space<vmem>>)
    %c0_120 = arith.constant 0 : index
    %c0_121 = arith.constant 0 : index
    %c0_122 = arith.constant 0 : index
    %113 = vector.load %arg12[%c0_120, %c0_121, %c0_122] : memref<2x128x128xbf16, #tpu.memory_space<vmem>>, vector<1x128x128xbf16>
    %114 = vector.shape_cast %113 : vector<1x128x128xbf16> to vector<128x128xbf16>
    %cst_123 = arith.constant dense<0.000000e+00> : vector<128x1xf32>
    %115 = tpu.matmul %114, %102, %cst_123 {dimension_numbers = #tpu.dot_dimension_numbers<[1], [0], [0], [1], [0, 0, 1, 1], [], []>} : vector<128x128xbf16>, vector<128x1xbf16>, vector<128x1xf32> -> vector<128x1xf32>
    %116 = arith.subf %115, %84 : vector<128x1xf32>
    %c0_124 = arith.constant 0 : index
    %c7 = arith.constant 7 : index
    %117 = vector.load %arg14[%c0_124, %c7] : memref<128x16xf32, #tpu.memory_space<vmem>>, vector<128x1xf32>
    tpu.vector_store %arg14[%c0_124, %c7], %116 {strides = array<i32>} : memref<128x16xf32, #tpu.memory_space<vmem>>, vector<128x1xf32>,
    %118 = arith.truncf %116 : vector<128x1xf32> to vector<128x1xbf16>
    %c0_i32_125 = arith.constant 0 : i32
    %c0_i32_126 = arith.constant 0 : i32
    %c0_i32_127 = arith.constant 0 : i32
    %c0_i32_128 = arith.constant 0 : i32
    %119 = tpu.memref_slice %arg3[%c0_i32_127, %c0_i32_128] : memref<128x128xbf16, #tpu.memory_space<any>> -> memref<128x128xbf16, #tpu.memory_space<any>>
    %c0_i32_129 = arith.constant 0 : i32
    %c0_i32_130 = arith.constant 0 : i32
    %120 = tpu.memref_slice %arg12[%c0_i32_125, %c0_i32_129, %c0_i32_130] : memref<2x128x128xbf16, #tpu.memory_space<vmem>> -> memref<1x128x128xbf16, #tpu.memory_space<vmem>>
    %121 = tpu.memref_squeeze %120 : memref<1x128x128xbf16, #tpu.memory_space<vmem>> -> memref<128x128xbf16, #tpu.memory_space<vmem>>
    %122 = tpu.memref_slice %arg13[%c0_i32_126] : memref<2x!tpu.dma_semaphore, #tpu.memory_space<semaphore_mem>> -> memref<1x!tpu.dma_semaphore, #tpu.memory_space<semaphore_mem>>
    %123 = tpu.memref_squeeze %122 : memref<1x!tpu.dma_semaphore, #tpu.memory_space<semaphore_mem>> -> memref<!tpu.dma_semaphore, #tpu.memory_space<semaphore_mem>>
    tpu.enqueue_dma source(%119 : memref<128x128xbf16, #tpu.memory_space<any>>) target(%121 : memref<128x128xbf16, #tpu.memory_space<vmem>>) target_semaphore(%123 : memref<!tpu.dma_semaphore, #tpu.memory_space<semaphore_mem>>)
    %c0_i32_131 = arith.constant 0 : i32
    %c0_i32_132 = arith.constant 0 : i32
    %c0_i32_133 = arith.constant 0 : i32
    %c0_i32_134 = arith.constant 0 : i32
    %124 = tpu.memref_slice %arg3[%c0_i32_133, %c0_i32_134] : memref<128x128xbf16, #tpu.memory_space<any>> -> memref<128x128xbf16, #tpu.memory_space<any>>
    %c0_i32_135 = arith.constant 0 : i32
    %c0_i32_136 = arith.constant 0 : i32
    %125 = tpu.memref_slice %arg12[%c0_i32_131, %c0_i32_135, %c0_i32_136] : memref<2x128x128xbf16, #tpu.memory_space<vmem>> -> memref<1x128x128xbf16, #tpu.memory_space<vmem>>
    %126 = tpu.memref_squeeze %125 : memref<1x128x128xbf16, #tpu.memory_space<vmem>> -> memref<128x128xbf16, #tpu.memory_space<vmem>>
    %127 = tpu.memref_slice %arg13[%c0_i32_132] : memref<2x!tpu.dma_semaphore, #tpu.memory_space<semaphore_mem>> -> memref<1x!tpu.dma_semaphore, #tpu.memory_space<semaphore_mem>>
    %128 = tpu.memref_squeeze %127 : memref<1x!tpu.dma_semaphore, #tpu.memory_space<semaphore_mem>> -> memref<!tpu.dma_semaphore, #tpu.memory_space<semaphore_mem>>
    tpu.wait_dma2 semaphore(%128 : memref<!tpu.dma_semaphore, #tpu.memory_space<semaphore_mem>>) src(%124 : memref<128x128xbf16, #tpu.memory_space<any>>) dst(%126 : memref<128x128xbf16, #tpu.memory_space<vmem>>)
    %c0_137 = arith.constant 0 : index
    %c0_138 = arith.constant 0 : index
    %c0_139 = arith.constant 0 : index
    %129 = vector.load %arg12[%c0_137, %c0_138, %c0_139] : memref<2x128x128xbf16, #tpu.memory_space<vmem>>, vector<1x128x128xbf16>
    %130 = vector.shape_cast %129 : vector<1x128x128xbf16> to vector<128x128xbf16>
    %cst_140 = arith.constant dense<0.000000e+00> : vector<128x1xf32>
    %131 = tpu.matmul %130, %118, %cst_140 {dimension_numbers = #tpu.dot_dimension_numbers<[1], [0], [0], [1], [0, 0, 1, 1], [], []>} : vector<128x128xbf16>, vector<128x1xbf16>, vector<128x1xf32> -> vector<128x1xf32>
    %132 = arith.subf %131, %100 : vector<128x1xf32>
    %c0_141 = arith.constant 0 : index
    %c8 = arith.constant 8 : index
    %133 = vector.load %arg14[%c0_141, %c8] : memref<128x16xf32, #tpu.memory_space<vmem>>, vector<128x1xf32>
    tpu.vector_store %arg14[%c0_141, %c8], %132 {strides = array<i32>} : memref<128x16xf32, #tpu.memory_space<vmem>>, vector<128x1xf32>,
    %c0_142 = arith.constant 0 : index
    %c0_143 = arith.constant 0 : index
    %134 = vector.load %arg14[%c0_142, %c0_143] : memref<128x16xf32, #tpu.memory_space<vmem>>, vector<128x16xf32>
    %135 = arith.truncf %134 : vector<128x16xf32> to vector<128x16xbf16>
    %c0_144 = arith.constant 0 : index
    %c0_145 = arith.constant 0 : index
    %136 = vector.load %arg4[%c0_144, %c0_145] : memref<16x128xbf16, #tpu.memory_space<vmem>>, vector<16x128xbf16>
    %cst_146 = arith.constant dense<0.000000e+00> : vector<128x128xf32>
    %137 = tpu.matmul %135, %136, %cst_146 {dimension_numbers = #tpu.dot_dimension_numbers<[1], [0], [0], [1], [0, 0, 1, 1], [], []>} : vector<128x16xbf16>, vector<16x128xbf16>, vector<128x128xf32> -> vector<128x128xf32>
    %c0_147 = arith.constant 0 : index
    %c0_148 = arith.constant 0 : index
    %138 = vector.load %arg5[%c0_147, %c0_148] : memref<1x128xf32, #tpu.memory_space<vmem>>, vector<1x128xf32>
    %139 = vector.broadcast %138 : vector<1x128xf32> to vector<128x128xf32>
    %140 = arith.addf %137, %139 : vector<128x128xf32>
    %cst_149 = arith.constant 0.000000e+00 : f32
    %141 = vector.broadcast %cst_149 : f32 to vector<128x128xf32>
    %142 = arith.maximumf %140, %141 : vector<128x128xf32>
    %143 = arith.truncf %142 : vector<128x128xf32> to vector<128x128xbf16>
    %c0_150 = arith.constant 0 : index
    %c0_151 = arith.constant 0 : index
    %144 = vector.load %arg15[%c0_150, %c0_151] : memref<128x1152xbf16, #tpu.memory_space<vmem>>, vector<128x128xbf16>
    tpu.vector_store %arg15[%c0_150, %c0_151], %143 {strides = array<i32>} : memref<128x1152xbf16, #tpu.memory_space<vmem>>, vector<128x128xbf16>,
    %c0_152 = arith.constant 0 : index
    %c0_153 = arith.constant 0 : index
    %145 = vector.load %arg15[%c0_152, %c0_153] : memref<128x1152xbf16, #tpu.memory_space<vmem>>, vector<128x128xbf16>
    %c0_i32_154 = arith.constant 0 : i32
    %c0_i32_155 = arith.constant 0 : i32
    %c0_i32_156 = arith.constant 0 : i32
    %c0_i32_157 = arith.constant 0 : i32
    %146 = tpu.memref_slice %arg2[%c0_i32_156, %c0_i32_157] : memref<128x128xbf16, #tpu.memory_space<any>> -> memref<128x128xbf16, #tpu.memory_space<any>>
    %c0_i32_158 = arith.constant 0 : i32
    %c0_i32_159 = arith.constant 0 : i32
    %147 = tpu.memref_slice %arg12[%c0_i32_154, %c0_i32_158, %c0_i32_159] : memref<2x128x128xbf16, #tpu.memory_space<vmem>> -> memref<1x128x128xbf16, #tpu.memory_space<vmem>>
    %148 = tpu.memref_squeeze %147 : memref<1x128x128xbf16, #tpu.memory_space<vmem>> -> memref<128x128xbf16, #tpu.memory_space<vmem>>
    %149 = tpu.memref_slice %arg13[%c0_i32_155] : memref<2x!tpu.dma_semaphore, #tpu.memory_space<semaphore_mem>> -> memref<1x!tpu.dma_semaphore, #tpu.memory_space<semaphore_mem>>
    %150 = tpu.memref_squeeze %149 : memref<1x!tpu.dma_semaphore, #tpu.memory_space<semaphore_mem>> -> memref<!tpu.dma_semaphore, #tpu.memory_space<semaphore_mem>>
    tpu.enqueue_dma source(%146 : memref<128x128xbf16, #tpu.memory_space<any>>) target(%148 : memref<128x128xbf16, #tpu.memory_space<vmem>>) target_semaphore(%150 : memref<!tpu.dma_semaphore, #tpu.memory_space<semaphore_mem>>)
    %c0_i32_160 = arith.constant 0 : i32
    %c0_i32_161 = arith.constant 0 : i32
    %c0_i32_162 = arith.constant 0 : i32
    %c0_i32_163 = arith.constant 0 : i32
    %151 = tpu.memref_slice %arg2[%c0_i32_162, %c0_i32_163] : memref<128x128xbf16, #tpu.memory_space<any>> -> memref<128x128xbf16, #tpu.memory_space<any>>
    %c0_i32_164 = arith.constant 0 : i32
    %c0_i32_165 = arith.constant 0 : i32
    %152 = tpu.memref_slice %arg12[%c0_i32_160, %c0_i32_164, %c0_i32_165] : memref<2x128x128xbf16, #tpu.memory_space<vmem>> -> memref<1x128x128xbf16, #tpu.memory_space<vmem>>
    %153 = tpu.memref_squeeze %152 : memref<1x128x128xbf16, #tpu.memory_space<vmem>> -> memref<128x128xbf16, #tpu.memory_space<vmem>>
    %154 = tpu.memref_slice %arg13[%c0_i32_161] : memref<2x!tpu.dma_semaphore, #tpu.memory_space<semaphore_mem>> -> memref<1x!tpu.dma_semaphore, #tpu.memory_space<semaphore_mem>>
    %155 = tpu.memref_squeeze %154 : memref<1x!tpu.dma_semaphore, #tpu.memory_space<semaphore_mem>> -> memref<!tpu.dma_semaphore, #tpu.memory_space<semaphore_mem>>
    tpu.wait_dma2 semaphore(%155 : memref<!tpu.dma_semaphore, #tpu.memory_space<semaphore_mem>>) src(%151 : memref<128x128xbf16, #tpu.memory_space<any>>) dst(%153 : memref<128x128xbf16, #tpu.memory_space<vmem>>)
    %c0_166 = arith.constant 0 : index
    %c0_167 = arith.constant 0 : index
    %c0_168 = arith.constant 0 : index
    %156 = vector.load %arg12[%c0_166, %c0_167, %c0_168] : memref<2x128x128xbf16, #tpu.memory_space<vmem>>, vector<1x128x128xbf16>
    %157 = vector.shape_cast %156 : vector<1x128x128xbf16> to vector<128x128xbf16>
    %cst_169 = arith.constant dense<0.000000e+00> : vector<128x128xf32>
    %158 = tpu.matmul %157, %145, %cst_169 {dimension_numbers = #tpu.dot_dimension_numbers<[1], [0], [0], [1], [0, 0, 1, 1], [], []>} : vector<128x128xbf16>, vector<128x128xbf16>, vector<128x128xf32> -> vector<128x128xf32>
    %cst_170 = arith.constant 5.000000e-01 : f32
    %159 = vector.broadcast %cst_170 : f32 to vector<128x128xf32>
    %160 = arith.mulf %159, %158 : vector<128x128xf32>
    %161 = arith.truncf %160 : vector<128x128xf32> to vector<128x128xbf16>
    %c0_171 = arith.constant 0 : index
    %c128 = arith.constant 128 : index
    %162 = vector.load %arg15[%c0_171, %c128] : memref<128x1152xbf16, #tpu.memory_space<vmem>>, vector<128x128xbf16>
    tpu.vector_store %arg15[%c0_171, %c128], %161 {strides = array<i32>} : memref<128x1152xbf16, #tpu.memory_space<vmem>>, vector<128x128xbf16>,
    %c0_172 = arith.constant 0 : index
    %c128_173 = arith.constant 128 : index
    %163 = vector.load %arg15[%c0_172, %c128_173] : memref<128x1152xbf16, #tpu.memory_space<vmem>>, vector<128x128xbf16>
    %c0_174 = arith.constant 0 : index
    %c0_175 = arith.constant 0 : index
    %164 = vector.load %arg15[%c0_174, %c0_175] : memref<128x1152xbf16, #tpu.memory_space<vmem>>, vector<128x128xbf16>
    %c0_i32_176 = arith.constant 0 : i32
    %c0_i32_177 = arith.constant 0 : i32
    %c0_i32_178 = arith.constant 0 : i32
    %c0_i32_179 = arith.constant 0 : i32
    %165 = tpu.memref_slice %arg2[%c0_i32_178, %c0_i32_179] : memref<128x128xbf16, #tpu.memory_space<any>> -> memref<128x128xbf16, #tpu.memory_space<any>>
    %c0_i32_180 = arith.constant 0 : i32
    %c0_i32_181 = arith.constant 0 : i32
    %166 = tpu.memref_slice %arg12[%c0_i32_176, %c0_i32_180, %c0_i32_181] : memref<2x128x128xbf16, #tpu.memory_space<vmem>> -> memref<1x128x128xbf16, #tpu.memory_space<vmem>>
    %167 = tpu.memref_squeeze %166 : memref<1x128x128xbf16, #tpu.memory_space<vmem>> -> memref<128x128xbf16, #tpu.memory_space<vmem>>
    %168 = tpu.memref_slice %arg13[%c0_i32_177] : memref<2x!tpu.dma_semaphore, #tpu.memory_space<semaphore_mem>> -> memref<1x!tpu.dma_semaphore, #tpu.memory_space<semaphore_mem>>
    %169 = tpu.memref_squeeze %168 : memref<1x!tpu.dma_semaphore, #tpu.memory_space<semaphore_mem>> -> memref<!tpu.dma_semaphore, #tpu.memory_space<semaphore_mem>>
    tpu.enqueue_dma source(%165 : memref<128x128xbf16, #tpu.memory_space<any>>) target(%167 : memref<128x128xbf16, #tpu.memory_space<vmem>>) target_semaphore(%169 : memref<!tpu.dma_semaphore, #tpu.memory_space<semaphore_mem>>)
    %c0_i32_182 = arith.constant 0 : i32
    %c0_i32_183 = arith.constant 0 : i32
    %c0_i32_184 = arith.constant 0 : i32
    %c0_i32_185 = arith.constant 0 : i32
    %170 = tpu.memref_slice %arg2[%c0_i32_184, %c0_i32_185] : memref<128x128xbf16, #tpu.memory_space<any>> -> memref<128x128xbf16, #tpu.memory_space<any>>
    %c0_i32_186 = arith.constant 0 : i32
    %c0_i32_187 = arith.constant 0 : i32
    %171 = tpu.memref_slice %arg12[%c0_i32_182, %c0_i32_186, %c0_i32_187] : memref<2x128x128xbf16, #tpu.memory_space<vmem>> -> memref<1x128x128xbf16, #tpu.memory_space<vmem>>
    %172 = tpu.memref_squeeze %171 : memref<1x128x128xbf16, #tpu.memory_space<vmem>> -> memref<128x128xbf16, #tpu.memory_space<vmem>>
    %173 = tpu.memref_slice %arg13[%c0_i32_183] : memref<2x!tpu.dma_semaphore, #tpu.memory_space<semaphore_mem>> -> memref<1x!tpu.dma_semaphore, #tpu.memory_space<semaphore_mem>>
    %174 = tpu.memref_squeeze %173 : memref<1x!tpu.dma_semaphore, #tpu.memory_space<semaphore_mem>> -> memref<!tpu.dma_semaphore, #tpu.memory_space<semaphore_mem>>
    tpu.wait_dma2 semaphore(%174 : memref<!tpu.dma_semaphore, #tpu.memory_space<semaphore_mem>>) src(%170 : memref<128x128xbf16, #tpu.memory_space<any>>) dst(%172 : memref<128x128xbf16, #tpu.memory_space<vmem>>)
    %c0_188 = arith.constant 0 : index
    %c0_189 = arith.constant 0 : index
    %c0_190 = arith.constant 0 : index
    %175 = vector.load %arg12[%c0_188, %c0_189, %c0_190] : memref<2x128x128xbf16, #tpu.memory_space<vmem>>, vector<1x128x128xbf16>
    %176 = vector.shape_cast %175 : vector<1x128x128xbf16> to vector<128x128xbf16>
    %cst_191 = arith.constant dense<0.000000e+00> : vector<128x128xf32>
    %177 = tpu.matmul %176, %163, %cst_191 {dimension_numbers = #tpu.dot_dimension_numbers<[1], [0], [0], [1], [0, 0, 1, 1], [], []>} : vector<128x128xbf16>, vector<128x128xbf16>, vector<128x128xf32> -> vector<128x128xf32>
    %178 = arith.extf %164 : vector<128x128xbf16> to vector<128x128xf32>
    %179 = arith.subf %177, %178 : vector<128x128xf32>
    %180 = arith.truncf %179 : vector<128x128xf32> to vector<128x128xbf16>
    %c0_192 = arith.constant 0 : index
    %c256 = arith.constant 256 : index
    %181 = vector.load %arg15[%c0_192, %c256] : memref<128x1152xbf16, #tpu.memory_space<vmem>>, vector<128x128xbf16>
    tpu.vector_store %arg15[%c0_192, %c256], %180 {strides = array<i32>} : memref<128x1152xbf16, #tpu.memory_space<vmem>>, vector<128x128xbf16>,
    %c0_193 = arith.constant 0 : index
    %c256_194 = arith.constant 256 : index
    %182 = vector.load %arg15[%c0_193, %c256_194] : memref<128x1152xbf16, #tpu.memory_space<vmem>>, vector<128x128xbf16>
    %c0_195 = arith.constant 0 : index
    %c128_196 = arith.constant 128 : index
    %183 = vector.load %arg15[%c0_195, %c128_196] : memref<128x1152xbf16, #tpu.memory_space<vmem>>, vector<128x128xbf16>
    %c0_i32_197 = arith.constant 0 : i32
    %c0_i32_198 = arith.constant 0 : i32
    %c0_i32_199 = arith.constant 0 : i32
    %c0_i32_200 = arith.constant 0 : i32
    %184 = tpu.memref_slice %arg2[%c0_i32_199, %c0_i32_200] : memref<128x128xbf16, #tpu.memory_space<any>> -> memref<128x128xbf16, #tpu.memory_space<any>>
    %c0_i32_201 = arith.constant 0 : i32
    %c0_i32_202 = arith.constant 0 : i32
    %185 = tpu.memref_slice %arg12[%c0_i32_197, %c0_i32_201, %c0_i32_202] : memref<2x128x128xbf16, #tpu.memory_space<vmem>> -> memref<1x128x128xbf16, #tpu.memory_space<vmem>>
    %186 = tpu.memref_squeeze %185 : memref<1x128x128xbf16, #tpu.memory_space<vmem>> -> memref<128x128xbf16, #tpu.memory_space<vmem>>
    %187 = tpu.memref_slice %arg13[%c0_i32_198] : memref<2x!tpu.dma_semaphore, #tpu.memory_space<semaphore_mem>> -> memref<1x!tpu.dma_semaphore, #tpu.memory_space<semaphore_mem>>
    %188 = tpu.memref_squeeze %187 : memref<1x!tpu.dma_semaphore, #tpu.memory_space<semaphore_mem>> -> memref<!tpu.dma_semaphore, #tpu.memory_space<semaphore_mem>>
    tpu.enqueue_dma source(%184 : memref<128x128xbf16, #tpu.memory_space<any>>) target(%186 : memref<128x128xbf16, #tpu.memory_space<vmem>>) target_semaphore(%188 : memref<!tpu.dma_semaphore, #tpu.memory_space<semaphore_mem>>)
    %c0_i32_203 = arith.constant 0 : i32
    %c0_i32_204 = arith.constant 0 : i32
    %c0_i32_205 = arith.constant 0 : i32
    %c0_i32_206 = arith.constant 0 : i32
    %189 = tpu.memref_slice %arg2[%c0_i32_205, %c0_i32_206] : memref<128x128xbf16, #tpu.memory_space<any>> -> memref<128x128xbf16, #tpu.memory_space<any>>
    %c0_i32_207 = arith.constant 0 : i32
    %c0_i32_208 = arith.constant 0 : i32
    %190 = tpu.memref_slice %arg12[%c0_i32_203, %c0_i32_207, %c0_i32_208] : memref<2x128x128xbf16, #tpu.memory_space<vmem>> -> memref<1x128x128xbf16, #tpu.memory_space<vmem>>
    %191 = tpu.memref_squeeze %190 : memref<1x128x128xbf16, #tpu.memory_space<vmem>> -> memref<128x128xbf16, #tpu.memory_space<vmem>>
    %192 = tpu.memref_slice %arg13[%c0_i32_204] : memref<2x!tpu.dma_semaphore, #tpu.memory_space<semaphore_mem>> -> memref<1x!tpu.dma_semaphore, #tpu.memory_space<semaphore_mem>>
    %193 = tpu.memref_squeeze %192 : memref<1x!tpu.dma_semaphore, #tpu.memory_space<semaphore_mem>> -> memref<!tpu.dma_semaphore, #tpu.memory_space<semaphore_mem>>
    tpu.wait_dma2 semaphore(%193 : memref<!tpu.dma_semaphore, #tpu.memory_space<semaphore_mem>>) src(%189 : memref<128x128xbf16, #tpu.memory_space<any>>) dst(%191 : memref<128x128xbf16, #tpu.memory_space<vmem>>)
    %c0_209 = arith.constant 0 : index
    %c0_210 = arith.constant 0 : index
    %c0_211 = arith.constant 0 : index
    %194 = vector.load %arg12[%c0_209, %c0_210, %c0_211] : memref<2x128x128xbf16, #tpu.memory_space<vmem>>, vector<1x128x128xbf16>
    %195 = vector.shape_cast %194 : vector<1x128x128xbf16> to vector<128x128xbf16>
    %cst_212 = arith.constant dense<0.000000e+00> : vector<128x128xf32>
    %196 = tpu.matmul %195, %182, %cst_212 {dimension_numbers = #tpu.dot_dimension_numbers<[1], [0], [0], [1], [0, 0, 1, 1], [], []>} : vector<128x128xbf16>, vector<128x128xbf16>, vector<128x128xf32> -> vector<128x128xf32>
    %197 = arith.extf %183 : vector<128x128xbf16> to vector<128x128xf32>
    %198 = arith.subf %196, %197 : vector<128x128xf32>
    %199 = arith.truncf %198 : vector<128x128xf32> to vector<128x128xbf16>
    %c0_213 = arith.constant 0 : index
    %c384 = arith.constant 384 : index
    %200 = vector.load %arg15[%c0_213, %c384] : memref<128x1152xbf16, #tpu.memory_space<vmem>>, vector<128x128xbf16>
    tpu.vector_store %arg15[%c0_213, %c384], %199 {strides = array<i32>} : memref<128x1152xbf16, #tpu.memory_space<vmem>>, vector<128x128xbf16>,
    %c0_214 = arith.constant 0 : index
    %c384_215 = arith.constant 384 : index
    %201 = vector.load %arg15[%c0_214, %c384_215] : memref<128x1152xbf16, #tpu.memory_space<vmem>>, vector<128x128xbf16>
    %c0_216 = arith.constant 0 : index
    %c256_217 = arith.constant 256 : index
    %202 = vector.load %arg15[%c0_216, %c256_217] : memref<128x1152xbf16, #tpu.memory_space<vmem>>, vector<128x128xbf16>
    %c0_i32_218 = arith.constant 0 : i32
    %c0_i32_219 = arith.constant 0 : i32
    %c0_i32_220 = arith.constant 0 : i32
    %c0_i32_221 = arith.constant 0 : i32
    %203 = tpu.memref_slice %arg2[%c0_i32_220, %c0_i32_221] : memref<128x128xbf16, #tpu.memory_space<any>> -> memref<128x128xbf16, #tpu.memory_space<any>>
    %c0_i32_222 = arith.constant 0 : i32
    %c0_i32_223 = arith.constant 0 : i32
    %204 = tpu.memref_slice %arg12[%c0_i32_218, %c0_i32_222, %c0_i32_223] : memref<2x128x128xbf16, #tpu.memory_space<vmem>> -> memref<1x128x128xbf16, #tpu.memory_space<vmem>>
    %205 = tpu.memref_squeeze %204 : memref<1x128x128xbf16, #tpu.memory_space<vmem>> -> memref<128x128xbf16, #tpu.memory_space<vmem>>
    %206 = tpu.memref_slice %arg13[%c0_i32_219] : memref<2x!tpu.dma_semaphore, #tpu.memory_space<semaphore_mem>> -> memref<1x!tpu.dma_semaphore, #tpu.memory_space<semaphore_mem>>
    %207 = tpu.memref_squeeze %206 : memref<1x!tpu.dma_semaphore, #tpu.memory_space<semaphore_mem>> -> memref<!tpu.dma_semaphore, #tpu.memory_space<semaphore_mem>>
    tpu.enqueue_dma source(%203 : memref<128x128xbf16, #tpu.memory_space<any>>) target(%205 : memref<128x128xbf16, #tpu.memory_space<vmem>>) target_semaphore(%207 : memref<!tpu.dma_semaphore, #tpu.memory_space<semaphore_mem>>)
    %c0_i32_224 = arith.constant 0 : i32
    %c0_i32_225 = arith.constant 0 : i32
    %c0_i32_226 = arith.constant 0 : i32
    %c0_i32_227 = arith.constant 0 : i32
    %208 = tpu.memref_slice %arg2[%c0_i32_226, %c0_i32_227] : memref<128x128xbf16, #tpu.memory_space<any>> -> memref<128x128xbf16, #tpu.memory_space<any>>
    %c0_i32_228 = arith.constant 0 : i32
    %c0_i32_229 = arith.constant 0 : i32
    %209 = tpu.memref_slice %arg12[%c0_i32_224, %c0_i32_228, %c0_i32_229] : memref<2x128x128xbf16, #tpu.memory_space<vmem>> -> memref<1x128x128xbf16, #tpu.memory_space<vmem>>
    %210 = tpu.memref_squeeze %209 : memref<1x128x128xbf16, #tpu.memory_space<vmem>> -> memref<128x128xbf16, #tpu.memory_space<vmem>>
    %211 = tpu.memref_slice %arg13[%c0_i32_225] : memref<2x!tpu.dma_semaphore, #tpu.memory_space<semaphore_mem>> -> memref<1x!tpu.dma_semaphore, #tpu.memory_space<semaphore_mem>>
    %212 = tpu.memref_squeeze %211 : memref<1x!tpu.dma_semaphore, #tpu.memory_space<semaphore_mem>> -> memref<!tpu.dma_semaphore, #tpu.memory_space<semaphore_mem>>
    tpu.wait_dma2 semaphore(%212 : memref<!tpu.dma_semaphore, #tpu.memory_space<semaphore_mem>>) src(%208 : memref<128x128xbf16, #tpu.memory_space<any>>) dst(%210 : memref<128x128xbf16, #tpu.memory_space<vmem>>)
    %c0_230 = arith.constant 0 : index
    %c0_231 = arith.constant 0 : index
    %c0_232 = arith.constant 0 : index
    %213 = vector.load %arg12[%c0_230, %c0_231, %c0_232] : memref<2x128x128xbf16, #tpu.memory_space<vmem>>, vector<1x128x128xbf16>
    %214 = vector.shape_cast %213 : vector<1x128x128xbf16> to vector<128x128xbf16>
    %cst_233 = arith.constant dense<0.000000e+00> : vector<128x128xf32>
    %215 = tpu.matmul %214, %201, %cst_233 {dimension_numbers = #tpu.dot_dimension_numbers<[1], [0], [0], [1], [0, 0, 1, 1], [], []>} : vector<128x128xbf16>, vector<128x128xbf16>, vector<128x128xf32> -> vector<128x128xf32>
    %216 = arith.extf %202 : vector<128x128xbf16> to vector<128x128xf32>
    %217 = arith.subf %215, %216 : vector<128x128xf32>
    %218 = arith.truncf %217 : vector<128x128xf32> to vector<128x128xbf16>
    %c0_234 = arith.constant 0 : index
    %c512 = arith.constant 512 : index
    %219 = vector.load %arg15[%c0_234, %c512] : memref<128x1152xbf16, #tpu.memory_space<vmem>>, vector<128x128xbf16>
    tpu.vector_store %arg15[%c0_234, %c512], %218 {strides = array<i32>} : memref<128x1152xbf16, #tpu.memory_space<vmem>>, vector<128x128xbf16>,
    %c0_235 = arith.constant 0 : index
    %c0_236 = arith.constant 0 : index
    %220 = vector.load %arg15[%c0_235, %c0_236] : memref<128x1152xbf16, #tpu.memory_space<vmem>>, vector<128x128xbf16>
    %c0_i32_237 = arith.constant 0 : i32
    %c0_i32_238 = arith.constant 0 : i32
    %c0_i32_239 = arith.constant 0 : i32
    %c0_i32_240 = arith.constant 0 : i32
    %221 = tpu.memref_slice %arg3[%c0_i32_239, %c0_i32_240] : memref<128x128xbf16, #tpu.memory_space<any>> -> memref<128x128xbf16, #tpu.memory_space<any>>
    %c0_i32_241 = arith.constant 0 : i32
    %c0_i32_242 = arith.constant 0 : i32
    %222 = tpu.memref_slice %arg12[%c0_i32_237, %c0_i32_241, %c0_i32_242] : memref<2x128x128xbf16, #tpu.memory_space<vmem>> -> memref<1x128x128xbf16, #tpu.memory_space<vmem>>
    %223 = tpu.memref_squeeze %222 : memref<1x128x128xbf16, #tpu.memory_space<vmem>> -> memref<128x128xbf16, #tpu.memory_space<vmem>>
    %224 = tpu.memref_slice %arg13[%c0_i32_238] : memref<2x!tpu.dma_semaphore, #tpu.memory_space<semaphore_mem>> -> memref<1x!tpu.dma_semaphore, #tpu.memory_space<semaphore_mem>>
    %225 = tpu.memref_squeeze %224 : memref<1x!tpu.dma_semaphore, #tpu.memory_space<semaphore_mem>> -> memref<!tpu.dma_semaphore, #tpu.memory_space<semaphore_mem>>
    tpu.enqueue_dma source(%221 : memref<128x128xbf16, #tpu.memory_space<any>>) target(%223 : memref<128x128xbf16, #tpu.memory_space<vmem>>) target_semaphore(%225 : memref<!tpu.dma_semaphore, #tpu.memory_space<semaphore_mem>>)
    %c0_i32_243 = arith.constant 0 : i32
    %c0_i32_244 = arith.constant 0 : i32
    %c0_i32_245 = arith.constant 0 : i32
    %c0_i32_246 = arith.constant 0 : i32
    %226 = tpu.memref_slice %arg3[%c0_i32_245, %c0_i32_246] : memref<128x128xbf16, #tpu.memory_space<any>> -> memref<128x128xbf16, #tpu.memory_space<any>>
    %c0_i32_247 = arith.constant 0 : i32
    %c0_i32_248 = arith.constant 0 : i32
    %227 = tpu.memref_slice %arg12[%c0_i32_243, %c0_i32_247, %c0_i32_248] : memref<2x128x128xbf16, #tpu.memory_space<vmem>> -> memref<1x128x128xbf16, #tpu.memory_space<vmem>>
    %228 = tpu.memref_squeeze %227 : memref<1x128x128xbf16, #tpu.memory_space<vmem>> -> memref<128x128xbf16, #tpu.memory_space<vmem>>
    %229 = tpu.memref_slice %arg13[%c0_i32_244] : memref<2x!tpu.dma_semaphore, #tpu.memory_space<semaphore_mem>> -> memref<1x!tpu.dma_semaphore, #tpu.memory_space<semaphore_mem>>
    %230 = tpu.memref_squeeze %229 : memref<1x!tpu.dma_semaphore, #tpu.memory_space<semaphore_mem>> -> memref<!tpu.dma_semaphore, #tpu.memory_space<semaphore_mem>>
    tpu.wait_dma2 semaphore(%230 : memref<!tpu.dma_semaphore, #tpu.memory_space<semaphore_mem>>) src(%226 : memref<128x128xbf16, #tpu.memory_space<any>>) dst(%228 : memref<128x128xbf16, #tpu.memory_space<vmem>>)
    %c0_249 = arith.constant 0 : index
    %c0_250 = arith.constant 0 : index
    %c0_251 = arith.constant 0 : index
    %231 = vector.load %arg12[%c0_249, %c0_250, %c0_251] : memref<2x128x128xbf16, #tpu.memory_space<vmem>>, vector<1x128x128xbf16>
    %232 = vector.shape_cast %231 : vector<1x128x128xbf16> to vector<128x128xbf16>
    %cst_252 = arith.constant dense<0.000000e+00> : vector<128x128xf32>
    %233 = tpu.matmul %232, %220, %cst_252 {dimension_numbers = #tpu.dot_dimension_numbers<[1], [0], [0], [1], [0, 0, 1, 1], [], []>} : vector<128x128xbf16>, vector<128x128xbf16>, vector<128x128xf32> -> vector<128x128xf32>
    %cst_253 = arith.constant 5.000000e-01 : f32
    %234 = vector.broadcast %cst_253 : f32 to vector<128x128xf32>
    %235 = arith.mulf %234, %233 : vector<128x128xf32>
    %236 = arith.truncf %235 : vector<128x128xf32> to vector<128x128xbf16>
    %c0_254 = arith.constant 0 : index
    %c640 = arith.constant 640 : index
    %237 = vector.load %arg15[%c0_254, %c640] : memref<128x1152xbf16, #tpu.memory_space<vmem>>, vector<128x128xbf16>
    tpu.vector_store %arg15[%c0_254, %c640], %236 {strides = array<i32>} : memref<128x1152xbf16, #tpu.memory_space<vmem>>, vector<128x128xbf16>,
    %c0_255 = arith.constant 0 : index
    %c640_256 = arith.constant 640 : index
    %238 = vector.load %arg15[%c0_255, %c640_256] : memref<128x1152xbf16, #tpu.memory_space<vmem>>, vector<128x128xbf16>
    %c0_257 = arith.constant 0 : index
    %c0_258 = arith.constant 0 : index
    %239 = vector.load %arg15[%c0_257, %c0_258] : memref<128x1152xbf16, #tpu.memory_space<vmem>>, vector<128x128xbf16>
    %c0_i32_259 = arith.constant 0 : i32
    %c0_i32_260 = arith.constant 0 : i32
    %c0_i32_261 = arith.constant 0 : i32
    %c0_i32_262 = arith.constant 0 : i32
    %240 = tpu.memref_slice %arg3[%c0_i32_261, %c0_i32_262] : memref<128x128xbf16, #tpu.memory_space<any>> -> memref<128x128xbf16, #tpu.memory_space<any>>
    %c0_i32_263 = arith.constant 0 : i32
    %c0_i32_264 = arith.constant 0 : i32
    %241 = tpu.memref_slice %arg12[%c0_i32_259, %c0_i32_263, %c0_i32_264] : memref<2x128x128xbf16, #tpu.memory_space<vmem>> -> memref<1x128x128xbf16, #tpu.memory_space<vmem>>
    %242 = tpu.memref_squeeze %241 : memref<1x128x128xbf16, #tpu.memory_space<vmem>> -> memref<128x128xbf16, #tpu.memory_space<vmem>>
    %243 = tpu.memref_slice %arg13[%c0_i32_260] : memref<2x!tpu.dma_semaphore, #tpu.memory_space<semaphore_mem>> -> memref<1x!tpu.dma_semaphore, #tpu.memory_space<semaphore_mem>>
    %244 = tpu.memref_squeeze %243 : memref<1x!tpu.dma_semaphore, #tpu.memory_space<semaphore_mem>> -> memref<!tpu.dma_semaphore, #tpu.memory_space<semaphore_mem>>
    tpu.enqueue_dma source(%240 : memref<128x128xbf16, #tpu.memory_space<any>>) target(%242 : memref<128x128xbf16, #tpu.memory_space<vmem>>) target_semaphore(%244 : memref<!tpu.dma_semaphore, #tpu.memory_space<semaphore_mem>>)
    %c0_i32_265 = arith.constant 0 : i32
    %c0_i32_266 = arith.constant 0 : i32
    %c0_i32_267 = arith.constant 0 : i32
    %c0_i32_268 = arith.constant 0 : i32
    %245 = tpu.memref_slice %arg3[%c0_i32_267, %c0_i32_268] : memref<128x128xbf16, #tpu.memory_space<any>> -> memref<128x128xbf16, #tpu.memory_space<any>>
    %c0_i32_269 = arith.constant 0 : i32
    %c0_i32_270 = arith.constant 0 : i32
    %246 = tpu.memref_slice %arg12[%c0_i32_265, %c0_i32_269, %c0_i32_270] : memref<2x128x128xbf16, #tpu.memory_space<vmem>> -> memref<1x128x128xbf16, #tpu.memory_space<vmem>>
    %247 = tpu.memref_squeeze %246 : memref<1x128x128xbf16, #tpu.memory_space<vmem>> -> memref<128x128xbf16, #tpu.memory_space<vmem>>
    %248 = tpu.memref_slice %arg13[%c0_i32_266] : memref<2x!tpu.dma_semaphore, #tpu.memory_space<semaphore_mem>> -> memref<1x!tpu.dma_semaphore, #tpu.memory_space<semaphore_mem>>
    %249 = tpu.memref_squeeze %248 : memref<1x!tpu.dma_semaphore, #tpu.memory_space<semaphore_mem>> -> memref<!tpu.dma_semaphore, #tpu.memory_space<semaphore_mem>>
    tpu.wait_dma2 semaphore(%249 : memref<!tpu.dma_semaphore, #tpu.memory_space<semaphore_mem>>) src(%245 : memref<128x128xbf16, #tpu.memory_space<any>>) dst(%247 : memref<128x128xbf16, #tpu.memory_space<vmem>>)
    %c0_271 = arith.constant 0 : index
    %c0_272 = arith.constant 0 : index
    %c0_273 = arith.constant 0 : index
    %250 = vector.load %arg12[%c0_271, %c0_272, %c0_273] : memref<2x128x128xbf16, #tpu.memory_space<vmem>>, vector<1x128x128xbf16>
    %251 = vector.shape_cast %250 : vector<1x128x128xbf16> to vector<128x128xbf16>
    %cst_274 = arith.constant dense<0.000000e+00> : vector<128x128xf32>
    %252 = tpu.matmul %251, %238, %cst_274 {dimension_numbers = #tpu.dot_dimension_numbers<[1], [0], [0], [1], [0, 0, 1, 1], [], []>} : vector<128x128xbf16>, vector<128x128xbf16>, vector<128x128xf32> -> vector<128x128xf32>
    %253 = arith.extf %239 : vector<128x128xbf16> to vector<128x128xf32>
    %254 = arith.subf %252, %253 : vector<128x128xf32>
    %255 = arith.truncf %254 : vector<128x128xf32> to vector<128x128xbf16>
    %c0_275 = arith.constant 0 : index
    %c768 = arith.constant 768 : index
    %256 = vector.load %arg15[%c0_275, %c768] : memref<128x1152xbf16, #tpu.memory_space<vmem>>, vector<128x128xbf16>
    tpu.vector_store %arg15[%c0_275, %c768], %255 {strides = array<i32>} : memref<128x1152xbf16, #tpu.memory_space<vmem>>, vector<128x128xbf16>,
    %c0_276 = arith.constant 0 : index
    %c768_277 = arith.constant 768 : index
    %257 = vector.load %arg15[%c0_276, %c768_277] : memref<128x1152xbf16, #tpu.memory_space<vmem>>, vector<128x128xbf16>
    %c0_278 = arith.constant 0 : index
    %c640_279 = arith.constant 640 : index
    %258 = vector.load %arg15[%c0_278, %c640_279] : memref<128x1152xbf16, #tpu.memory_space<vmem>>, vector<128x128xbf16>
    %c0_i32_280 = arith.constant 0 : i32
    %c0_i32_281 = arith.constant 0 : i32
    %c0_i32_282 = arith.constant 0 : i32
    %c0_i32_283 = arith.constant 0 : i32
    %259 = tpu.memref_slice %arg3[%c0_i32_282, %c0_i32_283] : memref<128x128xbf16, #tpu.memory_space<any>> -> memref<128x128xbf16, #tpu.memory_space<any>>
    %c0_i32_284 = arith.constant 0 : i32
    %c0_i32_285 = arith.constant 0 : i32
    %260 = tpu.memref_slice %arg12[%c0_i32_280, %c0_i32_284, %c0_i32_285] : memref<2x128x128xbf16, #tpu.memory_space<vmem>> -> memref<1x128x128xbf16, #tpu.memory_space<vmem>>
    %261 = tpu.memref_squeeze %260 : memref<1x128x128xbf16, #tpu.memory_space<vmem>> -> memref<128x128xbf16, #tpu.memory_space<vmem>>
    %262 = tpu.memref_slice %arg13[%c0_i32_281] : memref<2x!tpu.dma_semaphore, #tpu.memory_space<semaphore_mem>> -> memref<1x!tpu.dma_semaphore, #tpu.memory_space<semaphore_mem>>
    %263 = tpu.memref_squeeze %262 : memref<1x!tpu.dma_semaphore, #tpu.memory_space<semaphore_mem>> -> memref<!tpu.dma_semaphore, #tpu.memory_space<semaphore_mem>>
    tpu.enqueue_dma source(%259 : memref<128x128xbf16, #tpu.memory_space<any>>) target(%261 : memref<128x128xbf16, #tpu.memory_space<vmem>>) target_semaphore(%263 : memref<!tpu.dma_semaphore, #tpu.memory_space<semaphore_mem>>)
    %c0_i32_286 = arith.constant 0 : i32
    %c0_i32_287 = arith.constant 0 : i32
    %c0_i32_288 = arith.constant 0 : i32
    %c0_i32_289 = arith.constant 0 : i32
    %264 = tpu.memref_slice %arg3[%c0_i32_288, %c0_i32_289] : memref<128x128xbf16, #tpu.memory_space<any>> -> memref<128x128xbf16, #tpu.memory_space<any>>
    %c0_i32_290 = arith.constant 0 : i32
    %c0_i32_291 = arith.constant 0 : i32
    %265 = tpu.memref_slice %arg12[%c0_i32_286, %c0_i32_290, %c0_i32_291] : memref<2x128x128xbf16, #tpu.memory_space<vmem>> -> memref<1x128x128xbf16, #tpu.memory_space<vmem>>
    %266 = tpu.memref_squeeze %265 : memref<1x128x128xbf16, #tpu.memory_space<vmem>> -> memref<128x128xbf16, #tpu.memory_space<vmem>>
    %267 = tpu.memref_slice %arg13[%c0_i32_287] : memref<2x!tpu.dma_semaphore, #tpu.memory_space<semaphore_mem>> -> memref<1x!tpu.dma_semaphore, #tpu.memory_space<semaphore_mem>>
    %268 = tpu.memref_squeeze %267 : memref<1x!tpu.dma_semaphore, #tpu.memory_space<semaphore_mem>> -> memref<!tpu.dma_semaphore, #tpu.memory_space<semaphore_mem>>
    tpu.wait_dma2 semaphore(%268 : memref<!tpu.dma_semaphore, #tpu.memory_space<semaphore_mem>>) src(%264 : memref<128x128xbf16, #tpu.memory_space<any>>) dst(%266 : memref<128x128xbf16, #tpu.memory_space<vmem>>)
    %c0_292 = arith.constant 0 : index
    %c0_293 = arith.constant 0 : index
    %c0_294 = arith.constant 0 : index
    %269 = vector.load %arg12[%c0_292, %c0_293, %c0_294] : memref<2x128x128xbf16, #tpu.memory_space<vmem>>, vector<1x128x128xbf16>
    %270 = vector.shape_cast %269 : vector<1x128x128xbf16> to vector<128x128xbf16>
    %cst_295 = arith.constant dense<0.000000e+00> : vector<128x128xf32>
    %271 = tpu.matmul %270, %257, %cst_295 {dimension_numbers = #tpu.dot_dimension_numbers<[1], [0], [0], [1], [0, 0, 1, 1], [], []>} : vector<128x128xbf16>, vector<128x128xbf16>, vector<128x128xf32> -> vector<128x128xf32>
    %272 = arith.extf %258 : vector<128x128xbf16> to vector<128x128xf32>
    %273 = arith.subf %271, %272 : vector<128x128xf32>
    %274 = arith.truncf %273 : vector<128x128xf32> to vector<128x128xbf16>
    %c0_296 = arith.constant 0 : index
    %c896 = arith.constant 896 : index
    %275 = vector.load %arg15[%c0_296, %c896] : memref<128x1152xbf16, #tpu.memory_space<vmem>>, vector<128x128xbf16>
    tpu.vector_store %arg15[%c0_296, %c896], %274 {strides = array<i32>} : memref<128x1152xbf16, #tpu.memory_space<vmem>>, vector<128x128xbf16>,
    %c0_297 = arith.constant 0 : index
    %c896_298 = arith.constant 896 : index
    %276 = vector.load %arg15[%c0_297, %c896_298] : memref<128x1152xbf16, #tpu.memory_space<vmem>>, vector<128x128xbf16>
    %c0_299 = arith.constant 0 : index
    %c768_300 = arith.constant 768 : index
    %277 = vector.load %arg15[%c0_299, %c768_300] : memref<128x1152xbf16, #tpu.memory_space<vmem>>, vector<128x128xbf16>
    %c0_i32_301 = arith.constant 0 : i32
    %c0_i32_302 = arith.constant 0 : i32
    %c0_i32_303 = arith.constant 0 : i32
    %c0_i32_304 = arith.constant 0 : i32
    %278 = tpu.memref_slice %arg3[%c0_i32_303, %c0_i32_304] : memref<128x128xbf16, #tpu.memory_space<any>> -> memref<128x128xbf16, #tpu.memory_space<any>>
    %c0_i32_305 = arith.constant 0 : i32
    %c0_i32_306 = arith.constant 0 : i32
    %279 = tpu.memref_slice %arg12[%c0_i32_301, %c0_i32_305, %c0_i32_306] : memref<2x128x128xbf16, #tpu.memory_space<vmem>> -> memref<1x128x128xbf16, #tpu.memory_space<vmem>>
    %280 = tpu.memref_squeeze %279 : memref<1x128x128xbf16, #tpu.memory_space<vmem>> -> memref<128x128xbf16, #tpu.memory_space<vmem>>
    %281 = tpu.memref_slice %arg13[%c0_i32_302] : memref<2x!tpu.dma_semaphore, #tpu.memory_space<semaphore_mem>> -> memref<1x!tpu.dma_semaphore, #tpu.memory_space<semaphore_mem>>
    %282 = tpu.memref_squeeze %281 : memref<1x!tpu.dma_semaphore, #tpu.memory_space<semaphore_mem>> -> memref<!tpu.dma_semaphore, #tpu.memory_space<semaphore_mem>>
    tpu.enqueue_dma source(%278 : memref<128x128xbf16, #tpu.memory_space<any>>) target(%280 : memref<128x128xbf16, #tpu.memory_space<vmem>>) target_semaphore(%282 : memref<!tpu.dma_semaphore, #tpu.memory_space<semaphore_mem>>)
    %c0_i32_307 = arith.constant 0 : i32
    %c0_i32_308 = arith.constant 0 : i32
    %c0_i32_309 = arith.constant 0 : i32
    %c0_i32_310 = arith.constant 0 : i32
    %283 = tpu.memref_slice %arg3[%c0_i32_309, %c0_i32_310] : memref<128x128xbf16, #tpu.memory_space<any>> -> memref<128x128xbf16, #tpu.memory_space<any>>
    %c0_i32_311 = arith.constant 0 : i32
    %c0_i32_312 = arith.constant 0 : i32
    %284 = tpu.memref_slice %arg12[%c0_i32_307, %c0_i32_311, %c0_i32_312] : memref<2x128x128xbf16, #tpu.memory_space<vmem>> -> memref<1x128x128xbf16, #tpu.memory_space<vmem>>
    %285 = tpu.memref_squeeze %284 : memref<1x128x128xbf16, #tpu.memory_space<vmem>> -> memref<128x128xbf16, #tpu.memory_space<vmem>>
    %286 = tpu.memref_slice %arg13[%c0_i32_308] : memref<2x!tpu.dma_semaphore, #tpu.memory_space<semaphore_mem>> -> memref<1x!tpu.dma_semaphore, #tpu.memory_space<semaphore_mem>>
    %287 = tpu.memref_squeeze %286 : memref<1x!tpu.dma_semaphore, #tpu.memory_space<semaphore_mem>> -> memref<!tpu.dma_semaphore, #tpu.memory_space<semaphore_mem>>
    tpu.wait_dma2 semaphore(%287 : memref<!tpu.dma_semaphore, #tpu.memory_space<semaphore_mem>>) src(%283 : memref<128x128xbf16, #tpu.memory_space<any>>) dst(%285 : memref<128x128xbf16, #tpu.memory_space<vmem>>)
    %c0_313 = arith.constant 0 : index
    %c0_314 = arith.constant 0 : index
    %c0_315 = arith.constant 0 : index
    %288 = vector.load %arg12[%c0_313, %c0_314, %c0_315] : memref<2x128x128xbf16, #tpu.memory_space<vmem>>, vector<1x128x128xbf16>
    %289 = vector.shape_cast %288 : vector<1x128x128xbf16> to vector<128x128xbf16>
    %cst_316 = arith.constant dense<0.000000e+00> : vector<128x128xf32>
    %290 = tpu.matmul %289, %276, %cst_316 {dimension_numbers = #tpu.dot_dimension_numbers<[1], [0], [0], [1], [0, 0, 1, 1], [], []>} : vector<128x128xbf16>, vector<128x128xbf16>, vector<128x128xf32> -> vector<128x128xf32>
    %291 = arith.extf %277 : vector<128x128xbf16> to vector<128x128xf32>
    %292 = arith.subf %290, %291 : vector<128x128xf32>
    %293 = arith.truncf %292 : vector<128x128xf32> to vector<128x128xbf16>
    %c0_317 = arith.constant 0 : index
    %c1024 = arith.constant 1024 : index
    %294 = vector.load %arg15[%c0_317, %c1024] : memref<128x1152xbf16, #tpu.memory_space<vmem>>, vector<128x128xbf16>
    tpu.vector_store %arg15[%c0_317, %c1024], %293 {strides = array<i32>} : memref<128x1152xbf16, #tpu.memory_space<vmem>>, vector<128x128xbf16>,
    %c0_318 = arith.constant 0 : index
    %c0_319 = arith.constant 0 : index
    %295 = vector.load %arg15[%c0_318, %c0_319] : memref<128x1152xbf16, #tpu.memory_space<vmem>>, vector<128x1152xbf16>
    %c0_320 = arith.constant 0 : index
    %c0_321 = arith.constant 0 : index
    %296 = vector.load %arg6[%c0_320, %c0_321] : memref<1152x512xbf16, #tpu.memory_space<vmem>>, vector<1152x512xbf16>
    %cst_322 = arith.constant dense<0.000000e+00> : vector<128x512xf32>
    %297 = tpu.matmul %295, %296, %cst_322 {dimension_numbers = #tpu.dot_dimension_numbers<[1], [0], [0], [1], [0, 0, 1, 1], [], []>} : vector<128x1152xbf16>, vector<1152x512xbf16>, vector<128x512xf32> -> vector<128x512xf32>
    %c0_323 = arith.constant 0 : index
    %c0_324 = arith.constant 0 : index
    %298 = vector.load %arg7[%c0_323, %c0_324] : memref<1x512xf32, #tpu.memory_space<vmem>>, vector<1x512xf32>
    %299 = vector.broadcast %298 : vector<1x512xf32> to vector<128x512xf32>
    %300 = arith.addf %297, %299 : vector<128x512xf32>
    %cst_325 = arith.constant 0.000000e+00 : f32
    %301 = vector.broadcast %cst_325 : f32 to vector<128x512xf32>
    %302 = arith.maximumf %300, %301 : vector<128x512xf32>
    %c0_326 = arith.constant 0 : index
    %c0_327 = arith.constant 0 : index
    %303 = vector.load %arg8[%c0_326, %c0_327] : memref<8x128xbf16, #tpu.memory_space<vmem>>, vector<8x128xbf16>
    %304 = arith.truncf %302 : vector<128x512xf32> to vector<128x512xbf16>
    %cst_328 = arith.constant dense<0.000000e+00> : vector<8x512xf32>
    %305 = tpu.matmul %303, %304, %cst_328 {dimension_numbers = #tpu.dot_dimension_numbers<[1], [0], [0], [1], [0, 0, 1, 1], [], []>} : vector<8x128xbf16>, vector<128x512xbf16>, vector<8x512xf32> -> vector<8x512xf32>
    %c0_329 = arith.constant 0 : index
    %c0_330 = arith.constant 0 : index
    %306 = vector.load %arg9[%c0_329, %c0_330] : memref<512x128xf32, #tpu.memory_space<vmem>>, vector<512x128xf32>
    %cst_331 = arith.constant dense<0.000000e+00> : vector<8x128xf32>
    %307 = tpu.matmul %305, %306, %cst_331 {dimension_numbers = #tpu.dot_dimension_numbers<[1], [0], [0], [1], [0, 0, 1, 1], [], []>, precision = #tpu.contract_precision<fp32>} : vector<8x512xf32>, vector<512x128xf32>, vector<8x128xf32> -> vector<8x128xf32>
    %c0_332 = arith.constant 0 : index
    %c0_333 = arith.constant 0 : index
    %308 = vector.load %arg10[%c0_332, %c0_333] : memref<1x128xf32, #tpu.memory_space<vmem>>, vector<1x128xf32>
    %309 = vector.broadcast %308 : vector<1x128xf32> to vector<8x128xf32>
    %310 = arith.addf %307, %309 : vector<8x128xf32>
    %cst_334 = arith.constant dense<0xFF800000> : vector<8xf32>
    %311 = vector.multi_reduction <maximumf>, %310, %cst_334 [1] : vector<8x128xf32> to vector<8xf32>
    %312 = vector.shape_cast %311 : vector<8xf32> to vector<8x1xf32>
    %313 = vector.broadcast %312 : vector<8x1xf32> to vector<8x128xf32>
    %314 = arith.subf %310, %313 : vector<8x128xf32>
    %315 = math.exp %314 : vector<8x128xf32>
    %cst_335 = arith.constant dense<0.000000e+00> : vector<8xf32>
    %316 = vector.multi_reduction <add>, %315, %cst_335 [1] : vector<8x128xf32> to vector<8xf32>
    %317 = vector.shape_cast %316 : vector<8xf32> to vector<8x1xf32>
    %318 = math.log %317 : vector<8x1xf32>
    %319 = vector.broadcast %318 : vector<8x1xf32> to vector<8x128xf32>
    %320 = arith.subf %314, %319 : vector<8x128xf32>
    %c0_336 = arith.constant 0 : index
    %c0_337 = arith.constant 0 : index
    %321 = vector.load %arg11[%c0_336, %c0_337] : memref<8x128xf32, #tpu.memory_space<vmem>>, vector<8x128xf32>
    tpu.vector_store %arg11[%c0_336, %c0_337], %320 {strides = array<i32>} : memref<8x128xf32, #tpu.memory_space<vmem>>, vector<8x128xf32>,
    return
  }
  func.func @transform_0(%arg0: i32) -> (i32, i32) {
    %c0_i32 = arith.constant 0 : i32
    %c0_i32_0 = arith.constant 0 : i32
    %c0_i32_1 = arith.constant 0 : i32
    return %c0_i32, %c0_i32_0 : i32, i32
  }
  func.func @transform_3(%arg0: i32) -> (i32, i32) {
    %c0_i32 = arith.constant 0 : i32
    %c0_i32_0 = arith.constant 0 : i32
    %c0_i32_1 = arith.constant 0 : i32
    return %c0_i32, %c0_i32_0 : i32, i32
  }
  func.func @transform_4(%arg0: i32) -> (i32, i32) {
    %c0_i32 = arith.constant 0 : i32
    %c0_i32_0 = arith.constant 0 : i32
    %c0_i32_1 = arith.constant 0 : i32
    return %c0_i32, %c0_i32_0 : i32, i32
  }
  func.func @transform_5(%arg0: i32) -> (i32, i32) {
    %c0_i32 = arith.constant 0 : i32
    %c0_i32_0 = arith.constant 0 : i32
    %c0_i32_1 = arith.constant 0 : i32
    return %c0_i32, %c0_i32_0 : i32, i32
  }
  func.func @transform_6(%arg0: i32) -> (i32, i32) {
    %c0_i32 = arith.constant 0 : i32
    %c0_i32_0 = arith.constant 0 : i32
    %c0_i32_1 = arith.constant 0 : i32
    return %c0_i32, %c0_i32_0 : i32, i32
  }
  func.func @transform_7(%arg0: i32) -> (i32, i32) {
    %c0_i32 = arith.constant 0 : i32
    %c0_i32_0 = arith.constant 0 : i32
    %c0_i32_1 = arith.constant 0 : i32
    return %c0_i32, %c0_i32_0 : i32, i32
  }
  func.func @transform_8(%arg0: i32) -> (i32, i32) {
    %c0_i32 = arith.constant 0 : i32
    %c0_i32_0 = arith.constant 0 : i32
    %c0_i32_1 = arith.constant 0 : i32
    return %c0_i32, %c0_i32_0 : i32, i32
  }
  func.func @transform_9(%arg0: i32) -> (i32, i32) {
    %c0_i32 = arith.constant 0 : i32
    %c0_i32_0 = arith.constant 0 : i32
    %c0_i32_1 = arith.constant 0 : i32
    return %c0_i32, %c0_i32_0 : i32, i32
  }
  func.func @transform_10(%arg0: i32) -> (i32, i32) {
    %c0_i32 = arith.constant 0 : i32
    %c0_i32_0 = arith.constant 0 : i32
    %c0_i32_1 = arith.constant 0 : i32
    return %c0_i32, %c0_i32_0 : i32, i32
  }
}

</mosaic_0001>

<llo_original>
// kernel: tpu_custom_call.1
$region0: #{tpu_custom_call.1}
  #allocation0 [shape = 'u32[]', space=smem, size = 0x4, offset = 0x4, fixed_abs, tag = 'smem constant byte address 0x4 - core index']
  #allocation1 [shape = 'u32[72,128]{1,0:T(1,128)}', space=vmem, size = 0x9000, scoped, tag = 'internal scratch']
  #allocation2 [shape = 'bf16[2,128,128]{2,1,0:T(8,128)(2,1)}', space=vmem, size = 0x10000, scoped, tag = 'scratch operand']
  #allocation3 [shape = 's32[2]{0}', space=sflag, size = 0x8, scoped, tag = 'scratch operand']
  #allocation4 [shape = 'f32[128,16]{1,0:T(8,128)}', space=vmem, size = 0x10000, scoped, tag = 'scratch operand']
  #allocation5 [shape = 'bf16[128,1152]{1,0:T(8,128)(2,1)}', space=vmem, size = 0x48000, scoped, tag = 'scratch operand']
  #allocation19 [shape = 's32[]', space=sflag, size = 0x4, offset = 0, fixed_abs, tag = 'sflag constant byte address 0x0 - dummy sync flag']
  #allocation20 [shape = 's32[]', space=sflag, size = 0x4, offset = 0, fixed_abs, tag = 'sflag constant byte address 0x0 - dummy sync flag']
  #allocation21 [shape = 'u32[]', space=smem, size = 0x4, offset = 0x44, fixed_abs, tag = 'smem constant byte address 0x44 - assertion arg 0']
  #allocation22 [shape = 'u32[]', space=smem, size = 0x4, offset = 0x48, fixed_abs, tag = 'smem constant byte address 0x48 - assertion arg 1']
  #allocation23 [shape = 's32[]', space=sflag, size = 0x4, offset = 0, fixed_abs, tag = 'sflag constant byte address 0x0 - dummy sync flag']
  #allocation24 [shape = 's32[]', space=sflag, size = 0x4, offset = 0, fixed_abs, tag = 'sflag constant byte address 0x0 - dummy sync flag']
  #allocation25 [shape = 's32[]', space=sflag, size = 0x4, offset = 0, fixed_abs, tag = 'sflag constant byte address 0x0 - dummy sync flag']
  #allocation26 [shape = 's32[]', space=sflag, size = 0x4, offset = 0, fixed_abs, tag = 'sflag constant byte address 0x0 - dummy sync flag']
  #allocation27 [shape = 's32[]', space=sflag, size = 0x4, offset = 0, fixed_abs, tag = 'sflag constant byte address 0x0 - dummy sync flag']
  #allocation28 [shape = 's32[]', space=sflag, size = 0x4, offset = 0, fixed_abs, tag = 'sflag constant byte address 0x0 - dummy sync flag']
  #allocation29 [shape = 's32[]', space=sflag, size = 0x4, offset = 0, fixed_abs, tag = 'sflag constant byte address 0x0 - dummy sync flag']
  #allocation30 [shape = 's32[]', space=sflag, size = 0x4, offset = 0, fixed_abs, tag = 'sflag constant byte address 0x0 - dummy sync flag']
  #allocation31 [shape = 's32[]', space=sflag, size = 0x4, offset = 0, fixed_abs, tag = 'sflag constant byte address 0x0 - dummy sync flag']
  #allocation32 [shape = 's32[]', space=sflag, size = 0x4, offset = 0, fixed_abs, tag = 'sflag constant byte address 0x0 - dummy sync flag']
  #allocation33 [shape = 's32[]', space=sflag, size = 0x4, offset = 0, fixed_abs, tag = 'sflag constant byte address 0x0 - dummy sync flag']
  #allocation34 [shape = 's32[]', space=sflag, size = 0x4, offset = 0, fixed_abs, tag = 'sflag constant byte address 0x0 - dummy sync flag']
  #allocation35 [shape = 's32[]', space=sflag, size = 0x4, offset = 0, fixed_abs, tag = 'sflag constant byte address 0x0 - dummy sync flag']
  #allocation36 [shape = 's32[]', space=sflag, size = 0x4, offset = 0, fixed_abs, tag = 'sflag constant byte address 0x0 - dummy sync flag']
  #allocation37 [shape = 's32[]', space=sflag, size = 0x4, offset = 0, fixed_abs, tag = 'sflag constant byte address 0x0 - dummy sync flag']
  #allocation38 [shape = 's32[]', space=sflag, size = 0x4, offset = 0, fixed_abs, tag = 'sflag constant byte address 0x0 - dummy sync flag']
  #allocation39 [shape = 's32[]', space=sflag, size = 0x4, offset = 0, fixed_abs, tag = 'sflag constant byte address 0x0 - dummy sync flag']
  #allocation40 [shape = 's32[]', space=sflag, size = 0x4, offset = 0, fixed_abs, tag = 'sflag constant byte address 0x0 - dummy sync flag']
  #allocation41 [shape = 's32[]', space=sflag, size = 0x4, offset = 0, fixed_abs, tag = 'sflag constant byte address 0x0 - dummy sync flag']
  #allocation42 [shape = 's32[]', space=sflag, size = 0x4, offset = 0, fixed_abs, tag = 'sflag constant byte address 0x0 - dummy sync flag']
  #allocation43 [shape = 's32[]', space=sflag, size = 0x4, offset = 0, fixed_abs, tag = 'sflag constant byte address 0x0 - dummy sync flag']
  #allocation44 [shape = 's32[]', space=sflag, size = 0x4, offset = 0, fixed_abs, tag = 'sflag constant byte address 0x0 - dummy sync flag']
  #allocation45 [shape = 's32[]', space=sflag, size = 0x4, offset = 0, fixed_abs, tag = 'sflag constant byte address 0x0 - dummy sync flag']
  #allocation46 [shape = 's32[]', space=sflag, size = 0x4, offset = 0, fixed_abs, tag = 'sflag constant byte address 0x0 - dummy sync flag']
  #allocation47 [shape = 's32[]', space=sflag, size = 0x4, offset = 0, fixed_abs, tag = 'sflag constant byte address 0x0 - dummy sync flag']
  #allocation48 [shape = 's32[]', space=sflag, size = 0x4, offset = 0, fixed_abs, tag = 'sflag constant byte address 0x0 - dummy sync flag']
  #allocation49 [shape = 's32[]', space=sflag, size = 0x4, offset = 0, fixed_abs, tag = 'sflag constant byte address 0x0 - dummy sync flag']
  #allocation50 [shape = 's32[]', space=sflag, size = 0x4, offset = 0, fixed_abs, tag = 'sflag constant byte address 0x0 - dummy sync flag']
  #allocation51 [shape = 's32[]', space=sflag, size = 0x4, offset = 0, fixed_abs, tag = 'sflag constant byte address 0x0 - dummy sync flag']
  #allocation52 [shape = 's32[]', space=sflag, size = 0x4, offset = 0, fixed_abs, tag = 'sflag constant byte address 0x0 - dummy sync flag']
  %s0 = inlined_call_operand.vmem [shape: f32[128,1], index: 0, kind: input, shape index: {}]
  %s1 = inlined_call_operand.hbm [shape: bf16[128,128], index: 1, kind: input, shape index: {}]
  %s2 = inlined_call_operand.hbm [shape: bf16[128,128], index: 2, kind: input, shape index: {}]
  %s3 = inlined_call_operand.hbm [shape: bf16[16,128], index: 3, kind: input, shape index: {}]
  %s4 = inlined_call_operand.hbm [shape: f32[1,128], index: 4, kind: input, shape index: {}]
  %s5 = inlined_call_operand.hbm [shape: bf16[1152,512], index: 5, kind: input, shape index: {}]
  %s6 = inlined_call_operand.hbm [shape: f32[1,512], index: 6, kind: input, shape index: {}]
  %s7 = inlined_call_operand.hbm [shape: bf16[8,128], index: 7, kind: input, shape index: {}]
  %s8 = inlined_call_operand.hbm [shape: f32[512,128], index: 8, kind: input, shape index: {}]
  %s9 = inlined_call_operand.hbm [shape: f32[1,128], index: 9, kind: input, shape index: {}]
  %s10 = inlined_call_operand.hbm [shape: f32[8,128], index: 10, kind: output, shape index: {}]
  %s11 = sld [smem:[#allocation0]]
  $region134: #{tpu_custom_call.1} parent=0
    _
  %s13 = ssub.s32 1, %s11
  %s14 = scalar_select 0, %s13, %s11
  $region1: #{tpu_custom_call.1} parent=0
    #allocation6 [shape = 'u8[4096]{0}', space=vmem, size = 0x1000, scoped, tag = 'input window, operand 3, single buffered']
    #allocation7 [shape = 's32[1]{0}', space=sflag, size = 0x4, scoped, tag = 'scoped memory for tpu_custom_call.1']
    #allocation8 [shape = 's32[1]{0}', space=sflag, size = 0x4, scoped, tag = 'scoped memory for tpu_custom_call.1']
    #allocation9 [shape = 'u8[512]{0}', space=vmem, size = 0x400, scoped, tag = 'input window, operand 4, single buffered']
    #allocation10 [shape = 's32[1]{0}', space=sflag, size = 0x4, scoped, tag = 'scoped memory for tpu_custom_call.1']
    #allocation11 [shape = 'u8[1179648]{0}', space=vmem, size = 0x120000, scoped, tag = 'input window, operand 5, single buffered']
    #allocation12 [shape = 'u8[2048]{0}', space=vmem, size = 0x800, scoped, tag = 'input window, operand 6, single buffered']
    #allocation13 [shape = 's32[1]{0}', space=sflag, size = 0x4, scoped, tag = 'scoped memory for tpu_custom_call.1']
    #allocation14 [shape = 'u8[2048]{0}', space=vmem, size = 0x800, scoped, tag = 'input window, operand 7, single buffered']
    #allocation15 [shape = 'u8[262144]{0}', space=vmem, size = 0x40000, scoped, tag = 'input window, operand 8, single buffered']
    #allocation16 [shape = 's32[1]{0}', space=sflag, size = 0x4, scoped, tag = 'scoped memory for tpu_custom_call.1']
    #allocation17 [shape = 'u8[512]{0}', space=vmem, size = 0x400, scoped, tag = 'input window, operand 9, single buffered']
    #allocation18 [shape = 'u8[4096]{0}', space=vmem, size = 0x1000, scoped, tag = 'output window, operand 0, single buffered']
    %15 = vsyncpa [#allocation7], 0
    %16 = vsyncpa [#allocation10], 0
    %17 = vsyncpa [#allocation13], 0
    %18 = vsyncpa [#allocation16], 0
    %19 = vsyncpa [#allocation8], 0
    // Predicated region
    $region2: #{tpu_custom_call.1} parent=1 // pred_check
      _
    $region3: #{tpu_custom_call.1} parent=1 // pred_check_branch
      %21 = sbr.rel (0) target = $region5
    $region4: #{tpu_custom_call.1} parent=1 // pred_region
      _
    $region5: #{tpu_custom_call.1} parent=1 // pred_fallthru
      _
    // Predicated region
    $region6: #{tpu_custom_call.1} parent=1 // pred_check
      _
    $region7: #{tpu_custom_call.1} parent=1 // pred_check_branch
      %23 = sbr.rel (0) target = $region9
    $region8: #{tpu_custom_call.1} parent=1 // pred_region
      %25 = vsyncadd [#allocation7], 0
      %s26 = sshll.u32 %s3, 4
      %s27 = int_to_ptr.hbm [resolvable:$true] %s26
      %s28 = sshll.u32 [#allocation6], 4
      %s29 = int_to_ptr.vmem [resolvable:$true] %s28
      %34 = dma.hbm_to_vmem [thread:$0]  %s27, 128, %s29, [#allocation7], 64, 64, 4
    $region9: #{tpu_custom_call.1} parent=1 // pred_fallthru
      _
    // Predicated region
    $region10: #{tpu_custom_call.1} parent=1 // pred_check
      _
    $region11: #{tpu_custom_call.1} parent=1 // pred_check_branch
      %36 = sbr.rel (0) target = $region13
    $region12: #{tpu_custom_call.1} parent=1 // pred_region
      %38 = vsyncadd [#allocation10], 0
      %s40 = sshll.u32 %s4, 4
      %s41 = int_to_ptr.hbm [resolvable:$true] %s40
      %s42 = sshll.u32 [#allocation9], 4
      %s43 = int_to_ptr.vmem [resolvable:$true] %s42
      %45 = dma.hbm_to_vmem [thread:$0]  %s41, 16, %s43, [#allocation10]
    $region13: #{tpu_custom_call.1} parent=1 // pred_fallthru
      _
    // Predicated region
    $region14: #{tpu_custom_call.1} parent=1 // pred_check
      _
    $region15: #{tpu_custom_call.1} parent=1 // pred_check_branch
      %47 = sbr.rel (0) target = $region17
    $region16: #{tpu_custom_call.1} parent=1 // pred_region
      %49 = vsyncadd [#allocation10], 0
      %s50 = sshll.u32 %s5, 4
      %s51 = int_to_ptr.hbm [resolvable:$true] %s50
      %s52 = sshll.u32 [#allocation11], 4
      %s53 = int_to_ptr.vmem [resolvable:$true] %s52
      %58 = dma.hbm_to_vmem [thread:$0]  %s51, 36864, %s53, [#allocation10], 256, 256, 16
    $region17: #{tpu_custom_call.1} parent=1 // pred_fallthru
      _
    // Predicated region
    $region18: #{tpu_custom_call.1} parent=1 // pred_check
      _
    $region19: #{tpu_custom_call.1} parent=1 // pred_check_branch
      %60 = sbr.rel (0) target = $region21
    $region20: #{tpu_custom_call.1} parent=1 // pred_region
      %62 = vsyncadd [#allocation13], 0
      %s64 = sshll.u32 %s6, 4
      %s65 = int_to_ptr.hbm [resolvable:$true] %s64
      %s66 = sshll.u32 [#allocation12], 4
      %s67 = int_to_ptr.vmem [resolvable:$true] %s66
      %69 = dma.hbm_to_vmem [thread:$0]  %s65, 64, %s67, [#allocation13]
    $region21: #{tpu_custom_call.1} parent=1 // pred_fallthru
      _
    // Predicated region
    $region22: #{tpu_custom_call.1} parent=1 // pred_check
      _
    $region23: #{tpu_custom_call.1} parent=1 // pred_check_branch
      %71 = sbr.rel (0) target = $region25
    $region24: #{tpu_custom_call.1} parent=1 // pred_region
      %73 = vsyncadd [#allocation13], 0
      %s75 = sshll.u32 %s7, 4
      %s76 = int_to_ptr.hbm [resolvable:$true] %s75
      %s77 = sshll.u32 [#allocation14], 4
      %s78 = int_to_ptr.vmem [resolvable:$true] %s77
      %80 = dma.hbm_to_vmem [thread:$0]  %s76, 64, %s78, [#allocation13]
    $region25: #{tpu_custom_call.1} parent=1 // pred_fallthru
      _
    // Predicated region
    $region26: #{tpu_custom_call.1} parent=1 // pred_check
      _
    $region27: #{tpu_custom_call.1} parent=1 // pred_check_branch
      %82 = sbr.rel (0) target = $region29
    $region28: #{tpu_custom_call.1} parent=1 // pred_region
      %84 = vsyncadd [#allocation16], 0
      %s85 = sshll.u32 %s8, 4
      %s86 = int_to_ptr.hbm [resolvable:$true] %s85
      %s87 = sshll.u32 [#allocation15], 4
      %s88 = int_to_ptr.vmem [resolvable:$true] %s87
      %93 = dma.hbm_to_vmem [thread:$0]  %s86, 8192, %s88, [#allocation16], 128, 128, 8
    $region29: #{tpu_custom_call.1} parent=1 // pred_fallthru
      _
    // Predicated region
    $region30: #{tpu_custom_call.1} parent=1 // pred_check
      _
    $region31: #{tpu_custom_call.1} parent=1 // pred_check_branch
      %95 = sbr.rel (0) target = $region33
    $region32: #{tpu_custom_call.1} parent=1 // pred_region
      %97 = vsyncadd [#allocation16], 0
      %s99 = sshll.u32 %s9, 4
      %s100 = int_to_ptr.hbm [resolvable:$true] %s99
      %s101 = sshll.u32 [#allocation17], 4
      %s102 = int_to_ptr.vmem [resolvable:$true] %s101
      %104 = dma.hbm_to_vmem [thread:$0]  %s100, 16, %s102, [#allocation16]
    $region33: #{tpu_custom_call.1} parent=1 // pred_fallthru
      _
    // Predicated region
    $region34: #{tpu_custom_call.1} parent=1 // pred_check
      _
    $region35: #{tpu_custom_call.1} parent=1 // pred_check_branch
      %106 = sbr.rel (0) target = $region37
    $region36: #{tpu_custom_call.1} parent=1 // pred_region
      %108 = dma.done [#allocation7], 128
    $region37: #{tpu_custom_call.1} parent=1 // pred_fallthru
      _
    // Predicated region
    $region38: #{tpu_custom_call.1} parent=1 // pred_check
      _
    $region39: #{tpu_custom_call.1} parent=1 // pred_check_branch
      %110 = sbr.rel (0) target = $region41
    $region40: #{tpu_custom_call.1} parent=1 // pred_region
      %112 = dma.done [#allocation10], 16
    $region41: #{tpu_custom_call.1} parent=1 // pred_fallthru
      _
    // Predicated region
    $region42: #{tpu_custom_call.1} parent=1 // pred_check
      _
    $region43: #{tpu_custom_call.1} parent=1 // pred_check_branch
      %114 = sbr.rel (0) target = $region45
    $region44: #{tpu_custom_call.1} parent=1 // pred_region
      %116 = dma.done [#allocation10], 36864
    $region45: #{tpu_custom_call.1} parent=1 // pred_fallthru
      _
    // Predicated region
    $region46: #{tpu_custom_call.1} parent=1 // pred_check
      _
    $region47: #{tpu_custom_call.1} parent=1 // pred_check_branch
      %118 = sbr.rel (0) target = $region49
    $region48: #{tpu_custom_call.1} parent=1 // pred_region
      %120 = dma.done [#allocation13], 64
    $region49: #{tpu_custom_call.1} parent=1 // pred_fallthru
      _
    // Predicated region
    $region50: #{tpu_custom_call.1} parent=1 // pred_check
      _
    $region51: #{tpu_custom_call.1} parent=1 // pred_check_branch
      %122 = sbr.rel (0) target = $region53
    $region52: #{tpu_custom_call.1} parent=1 // pred_region
      %124 = dma.done [#allocation13], 64
    $region53: #{tpu_custom_call.1} parent=1 // pred_fallthru
      _
    // Predicated region
    $region54: #{tpu_custom_call.1} parent=1 // pred_check
      _
    $region55: #{tpu_custom_call.1} parent=1 // pred_check_branch
      %126 = sbr.rel (0) target = $region57
    $region56: #{tpu_custom_call.1} parent=1 // pred_region
      %128 = dma.done [#allocation16], 8192
    $region57: #{tpu_custom_call.1} parent=1 // pred_fallthru
      _
    // Predicated region
    $region58: #{tpu_custom_call.1} parent=1 // pred_check
      _
    $region59: #{tpu_custom_call.1} parent=1 // pred_check_branch
      %130 = sbr.rel (0) target = $region61
    $region60: #{tpu_custom_call.1} parent=1 // pred_region
      %132 = dma.done [#allocation16], 16
    $region61: #{tpu_custom_call.1} parent=1 // pred_fallthru
      _
    %vm134 = vcmask 130048
    %135 = vst.msk [vmem:[#allocation4] sm:$0xff] %vm134, 0.0
    %136 = vst.msk [vmem:[#allocation4 + $0x8] sm:$0xff] %vm134, 0.0
    %137 = vst.msk [vmem:[#allocation4 + $0x10] sm:$0xff] %vm134, 0.0
    %138 = vst.msk [vmem:[#allocation4 + $0x18] sm:$0xff] %vm134, 0.0
    %139 = vst.msk [vmem:[#allocation4 + $0x20] sm:$0xff] %vm134, 0.0
    %140 = vst.msk [vmem:[#allocation4 + $0x28] sm:$0xff] %vm134, 0.0
    %141 = vst.msk [vmem:[#allocation4 + $0x30] sm:$0xff] %vm134, 0.0
    %142 = vst.msk [vmem:[#allocation4 + $0x38] sm:$0xff] %vm134, 0.0
    %143 = vst.msk [vmem:[#allocation4 + $0x40] sm:$0xff] %vm134, 0.0
    %144 = vst.msk [vmem:[#allocation4 + $0x48] sm:$0xff] %vm134, 0.0
    %145 = vst.msk [vmem:[#allocation4 + $0x50] sm:$0xff] %vm134, 0.0
    %146 = vst.msk [vmem:[#allocation4 + $0x58] sm:$0xff] %vm134, 0.0
    %147 = vst.msk [vmem:[#allocation4 + $0x60] sm:$0xff] %vm134, 0.0
    %148 = vst.msk [vmem:[#allocation4 + $0x68] sm:$0xff] %vm134, 0.0
    %149 = vst.msk [vmem:[#allocation4 + $0x70] sm:$0xff] %vm134, 0.0
    %150 = vst.msk [vmem:[#allocation4 + $0x78] sm:$0xff] %vm134, 0.0
    %v151 = vld [vmem:[%s0] sm:$0xff]
    %v152 = vld [vmem:[%s0 + $0x8] sm:$0xff]
    %v153 = vld [vmem:[%s0 + $0x10] sm:$0xff]
    %v154 = vld [vmem:[%s0 + $0x18] sm:$0xff]
    %v155 = vld [vmem:[%s0 + $0x20] sm:$0xff]
    %v156 = vld [vmem:[%s0 + $0x28] sm:$0xff]
    %v157 = vld [vmem:[%s0 + $0x30] sm:$0xff]
    %v158 = vld [vmem:[%s0 + $0x38] sm:$0xff]
    %v159 = vld [vmem:[%s0 + $0x40] sm:$0xff]
    %v160 = vld [vmem:[%s0 + $0x48] sm:$0xff]
    %v161 = vld [vmem:[%s0 + $0x50] sm:$0xff]
    %v162 = vld [vmem:[%s0 + $0x58] sm:$0xff]
    %v163 = vld [vmem:[%s0 + $0x60] sm:$0xff]
    %v164 = vld [vmem:[%s0 + $0x68] sm:$0xff]
    %v165 = vld [vmem:[%s0 + $0x70] sm:$0xff]
    %v166 = vld [vmem:[%s0 + $0x78] sm:$0xff]
    %vm167 = vcmask 7168
    %168 = vst.msk [vmem:[#allocation4] sm:$0xff] %vm167, %v151
    %169 = vst.msk [vmem:[#allocation4 + $0x8] sm:$0xff] %vm167, %v152
    %170 = vst.msk [vmem:[#allocation4 + $0x10] sm:$0xff] %vm167, %v153
    %171 = vst.msk [vmem:[#allocation4 + $0x18] sm:$0xff] %vm167, %v154
    %172 = vst.msk [vmem:[#allocation4 + $0x20] sm:$0xff] %vm167, %v155
    %173 = vst.msk [vmem:[#allocation4 + $0x28] sm:$0xff] %vm167, %v156
    %174 = vst.msk [vmem:[#allocation4 + $0x30] sm:$0xff] %vm167, %v157
    %175 = vst.msk [vmem:[#allocation4 + $0x38] sm:$0xff] %vm167, %v158
    %176 = vst.msk [vmem:[#allocation4 + $0x40] sm:$0xff] %vm167, %v159
    %177 = vst.msk [vmem:[#allocation4 + $0x48] sm:$0xff] %vm167, %v160
    %178 = vst.msk [vmem:[#allocation4 + $0x50] sm:$0xff] %vm167, %v161
    %179 = vst.msk [vmem:[#allocation4 + $0x58] sm:$0xff] %vm167, %v162
    %180 = vst.msk [vmem:[#allocation4 + $0x60] sm:$0xff] %vm167, %v163
    %181 = vst.msk [vmem:[#allocation4 + $0x68] sm:$0xff] %vm167, %v164
    %182 = vst.msk [vmem:[#allocation4 + $0x70] sm:$0xff] %vm167, %v165
    %183 = vst.msk [vmem:[#allocation4 + $0x78] sm:$0xff] %vm167, %v166
    %v184 = vpack.c.bf16 %v152, %v151
    %v185 = vpack.c.bf16 %v154, %v153
    %v186 = vpack.c.bf16 %v156, %v155
    %v187 = vpack.c.bf16 %v158, %v157
    %v188 = vpack.c.bf16 %v160, %v159
    %v189 = vpack.c.bf16 %v162, %v161
    %v190 = vpack.c.bf16 %v164, %v163
    %v191 = vpack.c.bf16 %v166, %v165
    // Predicated region
    $region62: #{tpu_custom_call.1} parent=1 // pred_check
      _
    $region63: #{tpu_custom_call.1} parent=1 // pred_check_branch
      %193 = sbr.rel target = $region65
    $region64: #{tpu_custom_call.1} parent=1 // pred_region
      %194 = sst [smem:[#allocation21]] [#allocation20]
      %195 = sst [smem:[#allocation22]] [#allocation19]
    $region65: #{tpu_custom_call.1} parent=1 // pred_fallthru
      _
    %197 = shalt.err (0)
    %s199 = sshll.u32 %s1, 4
    %s200 = int_to_ptr.hbm [resolvable:$true] %s199
    %s201 = sshll.u32 [#allocation2], 4
    %s202 = int_to_ptr.vmem [resolvable:$true] %s201
    %204 = dma.hbm_to_vmem [thread:$0]  %s200, 1024, %s202, [#allocation3]
    %s205 = smul.u32 4, 16
    %s206 = smul.u32 %s205, 1
    %s207 = sshll.u32 %s206, 4
    %208 = dma.done [#allocation3], %s207
    %v209 = vld [vmem:[#allocation2] sm:$0xf]
    %v210 = vld [vmem:[#allocation2 + $0x4] sm:$0xf]
    %v211 = vld [vmem:[#allocation2 + $0x8] sm:$0xf]
    %v212 = vld [vmem:[#allocation2 + $0xc] sm:$0xf]
    %v213 = vld [vmem:[#allocation2 + $0x10] sm:$0xf]
    %v214 = vld [vmem:[#allocation2 + $0x14] sm:$0xf]
    %v215 = vld [vmem:[#allocation2 + $0x18] sm:$0xf]
    %v216 = vld [vmem:[#allocation2 + $0x1c] sm:$0xf]
    %v217 = vld [vmem:[#allocation2 + $0x20] sm:$0xf]
    %v218 = vld [vmem:[#allocation2 + $0x24] sm:$0xf]
    %v219 = vld [vmem:[#allocation2 + $0x28] sm:$0xf]
    %v220 = vld [vmem:[#allocation2 + $0x2c] sm:$0xf]
    %v221 = vld [vmem:[#allocation2 + $0x30] sm:$0xf]
    %v222 = vld [vmem:[#allocation2 + $0x34] sm:$0xf]
    %v223 = vld [vmem:[#allocation2 + $0x38] sm:$0xf]
    %v224 = vld [vmem:[#allocation2 + $0x3c] sm:$0xf]
    %v241 = vunpack.c.l.b16 %v209
    %v242 = vunpack.c.l.b16 %v210
    %v243 = vunpack.c.l.b16 %v211
    %v244 = vunpack.c.l.b16 %v212
    %v245 = vunpack.c.l.b16 %v213
    %v246 = vunpack.c.l.b16 %v214
    %v247 = vunpack.c.l.b16 %v215
    %v248 = vunpack.c.l.b16 %v216
    %v249 = vunpack.c.l.b16 %v217
    %v250 = vunpack.c.l.b16 %v218
    %v251 = vunpack.c.l.b16 %v219
    %v252 = vunpack.c.l.b16 %v220
    %v253 = vunpack.c.l.b16 %v221
    %v254 = vunpack.c.l.b16 %v222
    %v255 = vunpack.c.l.b16 %v223
    %v256 = vunpack.c.l.b16 %v224
    %v257 = vpack.c.b16 %v242, %v241
    %v258 = vpack.c.b16 %v244, %v243
    %v259 = vpack.c.b16 %v246, %v245
    %v260 = vpack.c.b16 %v248, %v247
    %v261 = vpack.c.b16 %v250, %v249
    %v262 = vpack.c.b16 %v252, %v251
    %v263 = vpack.c.b16 %v254, %v253
    %v264 = vpack.c.b16 %v256, %v255
    %273 = vmatpush.bf16.msra.mxu0 %v191
    %274 = vmatpush.bf16.msra.mxu0 %v190
    %275 = vmatpush.bf16.msra.mxu0 %v189
    %276 = vmatpush.bf16.msra.mxu0 %v188
    %277 = vmatpush.bf16.msra.mxu0 %v187
    %278 = vmatpush.bf16.msra.mxu0 %v186
    %279 = vmatpush.bf16.msra.mxu0 %v185
    %280 = vmatpush.bf16.msra.mxu0 %v184
    %281 = vmatmul.bf16.gmra.mxu0 %v257
    %v282 = vpop.f32.mrf.mxu0
    %v283 = vadd.f32 0.0, %v282
    %v284 = vpop.f32.mrf.mxu0
    %v285 = vadd.f32 0.0, %v284
    %286 = vmatmul.bf16.gmra.mxu0 %v258
    %v287 = vpop.f32.mrf.mxu0
    %v288 = vadd.f32 0.0, %v287
    %v289 = vpop.f32.mrf.mxu0
    %v290 = vadd.f32 0.0, %v289
    %291 = vmatmul.bf16.gmra.mxu0 %v259
    %v292 = vpop.f32.mrf.mxu0
    %v293 = vadd.f32 0.0, %v292
    %v294 = vpop.f32.mrf.mxu0
    %v295 = vadd.f32 0.0, %v294
    %296 = vmatmul.bf16.gmra.mxu0 %v260
    %v297 = vpop.f32.mrf.mxu0
    %v298 = vadd.f32 0.0, %v297
    %v299 = vpop.f32.mrf.mxu0
    %v300 = vadd.f32 0.0, %v299
    %301 = vmatmul.bf16.gmra.mxu0 %v261
    %v302 = vpop.f32.mrf.mxu0
    %v303 = vadd.f32 0.0, %v302
    %v304 = vpop.f32.mrf.mxu0
    %v305 = vadd.f32 0.0, %v304
    %306 = vmatmul.bf16.gmra.mxu0 %v262
    %v307 = vpop.f32.mrf.mxu0
    %v308 = vadd.f32 0.0, %v307
    %v309 = vpop.f32.mrf.mxu0
    %v310 = vadd.f32 0.0, %v309
    %311 = vmatmul.bf16.gmra.mxu0 %v263
    %v312 = vpop.f32.mrf.mxu0
    %v313 = vadd.f32 0.0, %v312
    %v314 = vpop.f32.mrf.mxu0
    %v315 = vadd.f32 0.0, %v314
    %316 = vmatmul.bf16.gmra.mxu0 %v264
    %v317 = vpop.f32.mrf.mxu0
    %v318 = vadd.f32 0.0, %v317
    %v319 = vpop.f32.mrf.mxu0
    %v320 = vadd.f32 0.0, %v319
    %321 = vdwg.mxu0
    %v322 = vmul.f32 %v283, 0.5
    %v323 = vmul.f32 %v285, 0.5
    %v324 = vmul.f32 %v288, 0.5
    %v325 = vmul.f32 %v290, 0.5
    %v326 = vmul.f32 %v293, 0.5
    %v327 = vmul.f32 %v295, 0.5
    %v328 = vmul.f32 %v298, 0.5
    %v329 = vmul.f32 %v300, 0.5
    %v330 = vmul.f32 %v303, 0.5
    %v331 = vmul.f32 %v305, 0.5
    %v332 = vmul.f32 %v308, 0.5
    %v333 = vmul.f32 %v310, 0.5
    %v334 = vmul.f32 %v313, 0.5
    %v335 = vmul.f32 %v315, 0.5
    %v336 = vmul.f32 %v318, 0.5
    %v337 = vmul.f32 %v320, 0.5
    %354 = vrot.lane.b32.xlu0 %v322, 1
    %v355 = vpop.permute.xlu0 %354
    %356 = vrot.lane.b32.xlu0 %v323, 1
    %v357 = vpop.permute.xlu0 %356
    %358 = vrot.lane.b32.xlu0 %v324, 1
    %v359 = vpop.permute.xlu0 %358
    %360 = vrot.lane.b32.xlu0 %v325, 1
    %v361 = vpop.permute.xlu0 %360
    %362 = vrot.lane.b32.xlu0 %v326, 1
    %v363 = vpop.permute.xlu0 %362
    %364 = vrot.lane.b32.xlu0 %v327, 1
    %v365 = vpop.permute.xlu0 %364
    %366 = vrot.lane.b32.xlu0 %v328, 1
    %v367 = vpop.permute.xlu0 %366
    %368 = vrot.lane.b32.xlu0 %v329, 1
    %v369 = vpop.permute.xlu0 %368
    %370 = vrot.lane.b32.xlu0 %v330, 1
    %v371 = vpop.permute.xlu0 %370
    %372 = vrot.lane.b32.xlu0 %v331, 1
    %v373 = vpop.permute.xlu0 %372
    %374 = vrot.lane.b32.xlu0 %v332, 1
    %v375 = vpop.permute.xlu0 %374
    %376 = vrot.lane.b32.xlu0 %v333, 1
    %v377 = vpop.permute.xlu0 %376
    %378 = vrot.lane.b32.xlu0 %v334, 1
    %v379 = vpop.permute.xlu0 %378
    %380 = vrot.lane.b32.xlu0 %v335, 1
    %v381 = vpop.permute.xlu0 %380
    %382 = vrot.lane.b32.xlu0 %v336, 1
    %v383 = vpop.permute.xlu0 %382
    %384 = vrot.lane.b32.xlu0 %v337, 1
    %v385 = vpop.permute.xlu0 %384
    %vm402 = vcmask 15368
    %403 = vst.msk [vmem:[#allocation4] sm:$0xff] %vm402, %v355
    %404 = vst.msk [vmem:[#allocation4 + $0x8] sm:$0xff] %vm402, %v357
    %405 = vst.msk [vmem:[#allocation4 + $0x10] sm:$0xff] %vm402, %v359
    %406 = vst.msk [vmem:[#allocation4 + $0x18] sm:$0xff] %vm402, %v361
    %407 = vst.msk [vmem:[#allocation4 + $0x20] sm:$0xff] %vm402, %v363
    %408 = vst.msk [vmem:[#allocation4 + $0x28] sm:$0xff] %vm402, %v365
    %409 = vst.msk [vmem:[#allocation4 + $0x30] sm:$0xff] %vm402, %v367
    %410 = vst.msk [vmem:[#allocation4 + $0x38] sm:$0xff] %vm402, %v369
    %411 = vst.msk [vmem:[#allocation4 + $0x40] sm:$0xff] %vm402, %v371
    %412 = vst.msk [vmem:[#allocation4 + $0x48] sm:$0xff] %vm402, %v373
    %413 = vst.msk [vmem:[#allocation4 + $0x50] sm:$0xff] %vm402, %v375
    %414 = vst.msk [vmem:[#allocation4 + $0x58] sm:$0xff] %vm402, %v377
    %415 = vst.msk [vmem:[#allocation4 + $0x60] sm:$0xff] %vm402, %v379
    %416 = vst.msk [vmem:[#allocation4 + $0x68] sm:$0xff] %vm402, %v381
    %417 = vst.msk [vmem:[#allocation4 + $0x70] sm:$0xff] %vm402, %v383
    %418 = vst.msk [vmem:[#allocation4 + $0x78] sm:$0xff] %vm402, %v385
    %v419 = vpack.c.bf16 %v323, %v322
    %v420 = vpack.c.bf16 %v325, %v324
    %v421 = vpack.c.bf16 %v327, %v326
    %v422 = vpack.c.bf16 %v329, %v328
    %v423 = vpack.c.bf16 %v331, %v330
    %v424 = vpack.c.bf16 %v333, %v332
    %v425 = vpack.c.bf16 %v335, %v334
    %v426 = vpack.c.bf16 %v337, %v336
    // Predicated region
    $region66: #{tpu_custom_call.1} parent=1 // pred_check
      _
    $region67: #{tpu_custom_call.1} parent=1 // pred_check_branch
      %428 = sbr.rel target = $region69
    $region68: #{tpu_custom_call.1} parent=1 // pred_region
      %429 = sst [smem:[#allocation21]] [#allocation24]
      %430 = sst [smem:[#allocation22]] [#allocation23]
    $region69: #{tpu_custom_call.1} parent=1 // pred_fallthru
      _
    %432 = shalt.err (0)
    %s434 = sshll.u32 %s1, 4
    %s435 = int_to_ptr.hbm [resolvable:$true] %s434
    %s436 = sshll.u32 [#allocation2], 4
    %s437 = int_to_ptr.vmem [resolvable:$true] %s436
    %439 = dma.hbm_to_vmem [thread:$0]  %s435, 1024, %s437, [#allocation3]
    %s440 = sshll.u32 %s206, 4
    %441 = dma.done [#allocation3], %s440
    %v442 = vld [vmem:[#allocation2] sm:$0xf]
    %v443 = vld [vmem:[#allocation2 + $0x4] sm:$0xf]
    %v444 = vld [vmem:[#allocation2 + $0x8] sm:$0xf]
    %v445 = vld [vmem:[#allocation2 + $0xc] sm:$0xf]
    %v446 = vld [vmem:[#allocation2 + $0x10] sm:$0xf]
    %v447 = vld [vmem:[#allocation2 + $0x14] sm:$0xf]
    %v448 = vld [vmem:[#allocation2 + $0x18] sm:$0xf]
    %v449 = vld [vmem:[#allocation2 + $0x1c] sm:$0xf]
    %v450 = vld [vmem:[#allocation2 + $0x20] sm:$0xf]
    %v451 = vld [vmem:[#allocation2 + $0x24] sm:$0xf]
    %v452 = vld [vmem:[#allocation2 + $0x28] sm:$0xf]
    %v453 = vld [vmem:[#allocation2 + $0x2c] sm:$0xf]
    %v454 = vld [vmem:[#allocation2 + $0x30] sm:$0xf]
    %v455 = vld [vmem:[#allocation2 + $0x34] sm:$0xf]
    %v456 = vld [vmem:[#allocation2 + $0x38] sm:$0xf]
    %v457 = vld [vmem:[#allocation2 + $0x3c] sm:$0xf]
    %v474 = vunpack.c.l.b16 %v442
    %v475 = vunpack.c.l.b16 %v443
    %v476 = vunpack.c.l.b16 %v444
    %v477 = vunpack.c.l.b16 %v445
    %v478 = vunpack.c.l.b16 %v446
    %v479 = vunpack.c.l.b16 %v447
    %v480 = vunpack.c.l.b16 %v448
    %v481 = vunpack.c.l.b16 %v449
    %v482 = vunpack.c.l.b16 %v450
    %v483 = vunpack.c.l.b16 %v451
    %v484 = vunpack.c.l.b16 %v452
    %v485 = vunpack.c.l.b16 %v453
    %v486 = vunpack.c.l.b16 %v454
    %v487 = vunpack.c.l.b16 %v455
    %v488 = vunpack.c.l.b16 %v456
    %v489 = vunpack.c.l.b16 %v457
    %v490 = vpack.c.b16 %v475, %v474
    %v491 = vpack.c.b16 %v477, %v476
    %v492 = vpack.c.b16 %v479, %v478
    %v493 = vpack.c.b16 %v481, %v480
    %v494 = vpack.c.b16 %v483, %v482
    %v495 = vpack.c.b16 %v485, %v484
    %v496 = vpack.c.b16 %v487, %v486
    %v497 = vpack.c.b16 %v489, %v488
    %506 = vmatpush.bf16.msra.mxu0 %v426
    %507 = vmatpush.bf16.msra.mxu0 %v425
    %508 = vmatpush.bf16.msra.mxu0 %v424
    %509 = vmatpush.bf16.msra.mxu0 %v423
    %510 = vmatpush.bf16.msra.mxu0 %v422
    %511 = vmatpush.bf16.msra.mxu0 %v421
    %512 = vmatpush.bf16.msra.mxu0 %v420
    %513 = vmatpush.bf16.msra.mxu0 %v419
    %514 = vmatmul.bf16.gmra.mxu0 %v490
    %v515 = vpop.f32.mrf.mxu0
    %v516 = vadd.f32 0.0, %v515
    %v517 = vpop.f32.mrf.mxu0
    %v518 = vadd.f32 0.0, %v517
    %519 = vmatmul.bf16.gmra.mxu0 %v491
    %v520 = vpop.f32.mrf.mxu0
    %v521 = vadd.f32 0.0, %v520
    %v522 = vpop.f32.mrf.mxu0
    %v523 = vadd.f32 0.0, %v522
    %524 = vmatmul.bf16.gmra.mxu0 %v492
    %v525 = vpop.f32.mrf.mxu0
    %v526 = vadd.f32 0.0, %v525
    %v527 = vpop.f32.mrf.mxu0
    %v528 = vadd.f32 0.0, %v527
    %529 = vmatmul.bf16.gmra.mxu0 %v493
    %v530 = vpop.f32.mrf.mxu0
    %v531 = vadd.f32 0.0, %v530
    %v532 = vpop.f32.mrf.mxu0
    %v533 = vadd.f32 0.0, %v532
    %534 = vmatmul.bf16.gmra.mxu0 %v494
    %v535 = vpop.f32.mrf.mxu0
    %v536 = vadd.f32 0.0, %v535
    %v537 = vpop.f32.mrf.mxu0
    %v538 = vadd.f32 0.0, %v537
    %539 = vmatmul.bf16.gmra.mxu0 %v495
    %v540 = vpop.f32.mrf.mxu0
    %v541 = vadd.f32 0.0, %v540
    %v542 = vpop.f32.mrf.mxu0
    %v543 = vadd.f32 0.0, %v542
    %544 = vmatmul.bf16.gmra.mxu0 %v496
    %v545 = vpop.f32.mrf.mxu0
    %v546 = vadd.f32 0.0, %v545
    %v547 = vpop.f32.mrf.mxu0
    %v548 = vadd.f32 0.0, %v547
    %549 = vmatmul.bf16.gmra.mxu0 %v497
    %v550 = vpop.f32.mrf.mxu0
    %v551 = vadd.f32 0.0, %v550
    %v552 = vpop.f32.mrf.mxu0
    %v553 = vadd.f32 0.0, %v552
    %554 = vdwg.mxu0
    %v555 = vsub.f32 %v516, %v151
    %v556 = vsub.f32 %v518, %v152
    %v557 = vsub.f32 %v521, %v153
    %v558 = vsub.f32 %v523, %v154
    %v559 = vsub.f32 %v526, %v155
    %v560 = vsub.f32 %v528, %v156
    %v561 = vsub.f32 %v531, %v157
    %v562 = vsub.f32 %v533, %v158
    %v563 = vsub.f32 %v536, %v159
    %v564 = vsub.f32 %v538, %v160
    %v565 = vsub.f32 %v541, %v161
    %v566 = vsub.f32 %v543, %v162
    %v567 = vsub.f32 %v546, %v163
    %v568 = vsub.f32 %v548, %v164
    %v569 = vsub.f32 %v551, %v165
    %v570 = vsub.f32 %v553, %v166
    %587 = vrot.lane.b32.xlu0 %v555, 2
    %v588 = vpop.permute.xlu0 %587
    %589 = vrot.lane.b32.xlu0 %v556, 2
    %v590 = vpop.permute.xlu0 %589
    %591 = vrot.lane.b32.xlu0 %v557, 2
    %v592 = vpop.permute.xlu0 %591
    %593 = vrot.lane.b32.xlu0 %v558, 2
    %v594 = vpop.permute.xlu0 %593
    %595 = vrot.lane.b32.xlu0 %v559, 2
    %v596 = vpop.permute.xlu0 %595
    %597 = vrot.lane.b32.xlu0 %v560, 2
    %v598 = vpop.permute.xlu0 %597
    %599 = vrot.lane.b32.xlu0 %v561, 2
    %v600 = vpop.permute.xlu0 %599
    %601 = vrot.lane.b32.xlu0 %v562, 2
    %v602 = vpop.permute.xlu0 %601
    %603 = vrot.lane.b32.xlu0 %v563, 2
    %v604 = vpop.permute.xlu0 %603
    %605 = vrot.lane.b32.xlu0 %v564, 2
    %v606 = vpop.permute.xlu0 %605
    %607 = vrot.lane.b32.xlu0 %v565, 2
    %v608 = vpop.permute.xlu0 %607
    %609 = vrot.lane.b32.xlu0 %v566, 2
    %v610 = vpop.permute.xlu0 %609
    %611 = vrot.lane.b32.xlu0 %v567, 2
    %v612 = vpop.permute.xlu0 %611
    %613 = vrot.lane.b32.xlu0 %v568, 2
    %v614 = vpop.permute.xlu0 %613
    %615 = vrot.lane.b32.xlu0 %v569, 2
    %v616 = vpop.permute.xlu0 %615
    %617 = vrot.lane.b32.xlu0 %v570, 2
    %v618 = vpop.permute.xlu0 %617
    %vm635 = vcmask 23568
    %636 = vst.msk [vmem:[#allocation4] sm:$0xff] %vm635, %v588
    %637 = vst.msk [vmem:[#allocation4 + $0x8] sm:$0xff] %vm635, %v590
    %638 = vst.msk [vmem:[#allocation4 + $0x10] sm:$0xff] %vm635, %v592
    %639 = vst.msk [vmem:[#allocation4 + $0x18] sm:$0xff] %vm635, %v594
    %640 = vst.msk [vmem:[#allocation4 + $0x20] sm:$0xff] %vm635, %v596
    %641 = vst.msk [vmem:[#allocation4 + $0x28] sm:$0xff] %vm635, %v598
    %642 = vst.msk [vmem:[#allocation4 + $0x30] sm:$0xff] %vm635, %v600
    %643 = vst.msk [vmem:[#allocation4 + $0x38] sm:$0xff] %vm635, %v602
    %644 = vst.msk [vmem:[#allocation4 + $0x40] sm:$0xff] %vm635, %v604
    %645 = vst.msk [vmem:[#allocation4 + $0x48] sm:$0xff] %vm635, %v606
    %646 = vst.msk [vmem:[#allocation4 + $0x50] sm:$0xff] %vm635, %v608
    %647 = vst.msk [vmem:[#allocation4 + $0x58] sm:$0xff] %vm635, %v610
    %648 = vst.msk [vmem:[#allocation4 + $0x60] sm:$0xff] %vm635, %v612
    %649 = vst.msk [vmem:[#allocation4 + $0x68] sm:$0xff] %vm635, %v614
    %650 = vst.msk [vmem:[#allocation4 + $0x70] sm:$0xff] %vm635, %v616
    %651 = vst.msk [vmem:[#allocation4 + $0x78] sm:$0xff] %vm635, %v618
    %v652 = vpack.c.bf16 %v556, %v555
    %v653 = vpack.c.bf16 %v558, %v557
    %v654 = vpack.c.bf16 %v560, %v559
    %v655 = vpack.c.bf16 %v562, %v561
    %v656 = vpack.c.bf16 %v564, %v563
    %v657 = vpack.c.bf16 %v566, %v565
    %v658 = vpack.c.bf16 %v568, %v567
    %v659 = vpack.c.bf16 %v570, %v569
    // Predicated region
    $region70: #{tpu_custom_call.1} parent=1 // pred_check
      _
    $region71: #{tpu_custom_call.1} parent=1 // pred_check_branch
      %661 = sbr.rel target = $region73
    $region72: #{tpu_custom_call.1} parent=1 // pred_region
      %662 = sst [smem:[#allocation21]] [#allocation26]
      %663 = sst [smem:[#allocation22]] [#allocation25]
    $region73: #{tpu_custom_call.1} parent=1 // pred_fallthru
      _
    %665 = shalt.err (0)
    %s667 = sshll.u32 %s1, 4
    %s668 = int_to_ptr.hbm [resolvable:$true] %s667
    %s669 = sshll.u32 [#allocation2], 4
    %s670 = int_to_ptr.vmem [resolvable:$true] %s669
    %672 = dma.hbm_to_vmem [thread:$0]  %s668, 1024, %s670, [#allocation3]
    %s673 = sshll.u32 %s206, 4
    %674 = dma.done [#allocation3], %s673
    %v675 = vld [vmem:[#allocation2] sm:$0xf]
    %v676 = vld [vmem:[#allocation2 + $0x4] sm:$0xf]
    %v677 = vld [vmem:[#allocation2 + $0x8] sm:$0xf]
    %v678 = vld [vmem:[#allocation2 + $0xc] sm:$0xf]
    %v679 = vld [vmem:[#allocation2 + $0x10] sm:$0xf]
    %v680 = vld [vmem:[#allocation2 + $0x14] sm:$0xf]
    %v681 = vld [vmem:[#allocation2 + $0x18] sm:$0xf]
    %v682 = vld [vmem:[#allocation2 + $0x1c] sm:$0xf]
    %v683 = vld [vmem:[#allocation2 + $0x20] sm:$0xf]
    %v684 = vld [vmem:[#allocation2 + $0x24] sm:$0xf]
    %v685 = vld [vmem:[#allocation2 + $0x28] sm:$0xf]
    %v686 = vld [vmem:[#allocation2 + $0x2c] sm:$0xf]
    %v687 = vld [vmem:[#allocation2 + $0x30] sm:$0xf]
    %v688 = vld [vmem:[#allocation2 + $0x34] sm:$0xf]
    %v689 = vld [vmem:[#allocation2 + $0x38] sm:$0xf]
    %v690 = vld [vmem:[#allocation2 + $0x3c] sm:$0xf]
    %v707 = vunpack.c.l.b16 %v675
    %v708 = vunpack.c.l.b16 %v676
    %v709 = vunpack.c.l.b16 %v677
    %v710 = vunpack.c.l.b16 %v678
    %v711 = vunpack.c.l.b16 %v679
    %v712 = vunpack.c.l.b16 %v680
    %v713 = vunpack.c.l.b16 %v681
    %v714 = vunpack.c.l.b16 %v682
    %v715 = vunpack.c.l.b16 %v683
    %v716 = vunpack.c.l.b16 %v684
    %v717 = vunpack.c.l.b16 %v685
    %v718 = vunpack.c.l.b16 %v686
    %v719 = vunpack.c.l.b16 %v687
    %v720 = vunpack.c.l.b16 %v688
    %v721 = vunpack.c.l.b16 %v689
    %v722 = vunpack.c.l.b16 %v690
    %v723 = vpack.c.b16 %v708, %v707
    %v724 = vpack.c.b16 %v710, %v709
    %v725 = vpack.c.b16 %v712, %v711
    %v726 = vpack.c.b16 %v714, %v713
    %v727 = vpack.c.b16 %v716, %v715
    %v728 = vpack.c.b16 %v718, %v717
    %v729 = vpack.c.b16 %v720, %v719
    %v730 = vpack.c.b16 %v722, %v721
    %739 = vmatpush.bf16.msra.mxu0 %v659
    %740 = vmatpush.bf16.msra.mxu0 %v658
    %741 = vmatpush.bf16.msra.mxu0 %v657
    %742 = vmatpush.bf16.msra.mxu0 %v656
    %743 = vmatpush.bf16.msra.mxu0 %v655
    %744 = vmatpush.bf16.msra.mxu0 %v654
    %745 = vmatpush.bf16.msra.mxu0 %v653
    %746 = vmatpush.bf16.msra.mxu0 %v652
    %747 = vmatmul.bf16.gmra.mxu0 %v723
    %v748 = vpop.f32.mrf.mxu0
    %v749 = vadd.f32 0.0, %v748
    %v750 = vpop.f32.mrf.mxu0
    %v751 = vadd.f32 0.0, %v750
    %752 = vmatmul.bf16.gmra.mxu0 %v724
    %v753 = vpop.f32.mrf.mxu0
    %v754 = vadd.f32 0.0, %v753
    %v755 = vpop.f32.mrf.mxu0
    %v756 = vadd.f32 0.0, %v755
    %757 = vmatmul.bf16.gmra.mxu0 %v725
    %v758 = vpop.f32.mrf.mxu0
    %v759 = vadd.f32 0.0, %v758
    %v760 = vpop.f32.mrf.mxu0
    %v761 = vadd.f32 0.0, %v760
    %762 = vmatmul.bf16.gmra.mxu0 %v726
    %v763 = vpop.f32.mrf.mxu0
    %v764 = vadd.f32 0.0, %v763
    %v765 = vpop.f32.mrf.mxu0
    %v766 = vadd.f32 0.0, %v765
    %767 = vmatmul.bf16.gmra.mxu0 %v727
    %v768 = vpop.f32.mrf.mxu0
    %v769 = vadd.f32 0.0, %v768
    %v770 = vpop.f32.mrf.mxu0
    %v771 = vadd.f32 0.0, %v770
    %772 = vmatmul.bf16.gmra.mxu0 %v728
    %v773 = vpop.f32.mrf.mxu0
    %v774 = vadd.f32 0.0, %v773
    %v775 = vpop.f32.mrf.mxu0
    %v776 = vadd.f32 0.0, %v775
    %777 = vmatmul.bf16.gmra.mxu0 %v729
    %v778 = vpop.f32.mrf.mxu0
    %v779 = vadd.f32 0.0, %v778
    %v780 = vpop.f32.mrf.mxu0
    %v781 = vadd.f32 0.0, %v780
    %782 = vmatmul.bf16.gmra.mxu0 %v730
    %v783 = vpop.f32.mrf.mxu0
    %v784 = vadd.f32 0.0, %v783
    %v785 = vpop.f32.mrf.mxu0
    %v786 = vadd.f32 0.0, %v785
    %787 = vdwg.mxu0
    %v788 = vsub.f32 %v749, %v322
    %v789 = vsub.f32 %v751, %v323
    %v790 = vsub.f32 %v754, %v324
    %v791 = vsub.f32 %v756, %v325
    %v792 = vsub.f32 %v759, %v326
    %v793 = vsub.f32 %v761, %v327
    %v794 = vsub.f32 %v764, %v328
    %v795 = vsub.f32 %v766, %v329
    %v796 = vsub.f32 %v769, %v330
    %v797 = vsub.f32 %v771, %v331
    %v798 = vsub.f32 %v774, %v332
    %v799 = vsub.f32 %v776, %v333
    %v800 = vsub.f32 %v779, %v334
    %v801 = vsub.f32 %v781, %v335
    %v802 = vsub.f32 %v784, %v336
    %v803 = vsub.f32 %v786, %v337
    %820 = vrot.lane.b32.xlu0 %v788, 3
    %v821 = vpop.permute.xlu0 %820
    %822 = vrot.lane.b32.xlu0 %v789, 3
    %v823 = vpop.permute.xlu0 %822
    %824 = vrot.lane.b32.xlu0 %v790, 3
    %v825 = vpop.permute.xlu0 %824
    %826 = vrot.lane.b32.xlu0 %v791, 3
    %v827 = vpop.permute.xlu0 %826
    %828 = vrot.lane.b32.xlu0 %v792, 3
    %v829 = vpop.permute.xlu0 %828
    %830 = vrot.lane.b32.xlu0 %v793, 3
    %v831 = vpop.permute.xlu0 %830
    %832 = vrot.lane.b32.xlu0 %v794, 3
    %v833 = vpop.permute.xlu0 %832
    %834 = vrot.lane.b32.xlu0 %v795, 3
    %v835 = vpop.permute.xlu0 %834
    %836 = vrot.lane.b32.xlu0 %v796, 3
    %v837 = vpop.permute.xlu0 %836
    %838 = vrot.lane.b32.xlu0 %v797, 3
    %v839 = vpop.permute.xlu0 %838
    %840 = vrot.lane.b32.xlu0 %v798, 3
    %v841 = vpop.permute.xlu0 %840
    %842 = vrot.lane.b32.xlu0 %v799, 3
    %v843 = vpop.permute.xlu0 %842
    %844 = vrot.lane.b32.xlu0 %v800, 3
    %v845 = vpop.permute.xlu0 %844
    %846 = vrot.lane.b32.xlu0 %v801, 3
    %v847 = vpop.permute.xlu0 %846
    %848 = vrot.lane.b32.xlu0 %v802, 3
    %v849 = vpop.permute.xlu0 %848
    %850 = vrot.lane.b32.xlu0 %v803, 3
    %v851 = vpop.permute.xlu0 %850
    %vm868 = vcmask 31768
    %869 = vst.msk [vmem:[#allocation4] sm:$0xff] %vm868, %v821
    %870 = vst.msk [vmem:[#allocation4 + $0x8] sm:$0xff] %vm868, %v823
    %871 = vst.msk [vmem:[#allocation4 + $0x10] sm:$0xff] %vm868, %v825
    %872 = vst.msk [vmem:[#allocation4 + $0x18] sm:$0xff] %vm868, %v827
    %873 = vst.msk [vmem:[#allocation4 + $0x20] sm:$0xff] %vm868, %v829
    %874 = vst.msk [vmem:[#allocation4 + $0x28] sm:$0xff] %vm868, %v831
    %875 = vst.msk [vmem:[#allocation4 + $0x30] sm:$0xff] %vm868, %v833
    %876 = vst.msk [vmem:[#allocation4 + $0x38] sm:$0xff] %vm868, %v835
    %877 = vst.msk [vmem:[#allocation4 + $0x40] sm:$0xff] %vm868, %v837
    %878 = vst.msk [vmem:[#allocation4 + $0x48] sm:$0xff] %vm868, %v839
    %879 = vst.msk [vmem:[#allocation4 + $0x50] sm:$0xff] %vm868, %v841
    %880 = vst.msk [vmem:[#allocation4 + $0x58] sm:$0xff] %vm868, %v843
    %881 = vst.msk [vmem:[#allocation4 + $0x60] sm:$0xff] %vm868, %v845
    %882 = vst.msk [vmem:[#allocation4 + $0x68] sm:$0xff] %vm868, %v847
    %883 = vst.msk [vmem:[#allocation4 + $0x70] sm:$0xff] %vm868, %v849
    %884 = vst.msk [vmem:[#allocation4 + $0x78] sm:$0xff] %vm868, %v851
    %v885 = vpack.c.bf16 %v789, %v788
    %v886 = vpack.c.bf16 %v791, %v790
    %v887 = vpack.c.bf16 %v793, %v792
    %v888 = vpack.c.bf16 %v795, %v794
    %v889 = vpack.c.bf16 %v797, %v796
    %v890 = vpack.c.bf16 %v799, %v798
    %v891 = vpack.c.bf16 %v801, %v800
    %v892 = vpack.c.bf16 %v803, %v802
    // Predicated region
    $region74: #{tpu_custom_call.1} parent=1 // pred_check
      _
    $region75: #{tpu_custom_call.1} parent=1 // pred_check_branch
      %894 = sbr.rel target = $region77
    $region76: #{tpu_custom_call.1} parent=1 // pred_region
      %895 = sst [smem:[#allocation21]] [#allocation28]
      %896 = sst [smem:[#allocation22]] [#allocation27]
    $region77: #{tpu_custom_call.1} parent=1 // pred_fallthru
      _
    %898 = shalt.err (0)
    %s900 = sshll.u32 %s1, 4
    %s901 = int_to_ptr.hbm [resolvable:$true] %s900
    %s902 = sshll.u32 [#allocation2], 4
    %s903 = int_to_ptr.vmem [resolvable:$true] %s902
    %905 = dma.hbm_to_vmem [thread:$0]  %s901, 1024, %s903, [#allocation3]
    %s906 = sshll.u32 %s206, 4
    %907 = dma.done [#allocation3], %s906
    %v908 = vld [vmem:[#allocation2] sm:$0xf]
    %v909 = vld [vmem:[#allocation2 + $0x4] sm:$0xf]
    %v910 = vld [vmem:[#allocation2 + $0x8] sm:$0xf]
    %v911 = vld [vmem:[#allocation2 + $0xc] sm:$0xf]
    %v912 = vld [vmem:[#allocation2 + $0x10] sm:$0xf]
    %v913 = vld [vmem:[#allocation2 + $0x14] sm:$0xf]
    %v914 = vld [vmem:[#allocation2 + $0x18] sm:$0xf]
    %v915 = vld [vmem:[#allocation2 + $0x1c] sm:$0xf]
    %v916 = vld [vmem:[#allocation2 + $0x20] sm:$0xf]
    %v917 = vld [vmem:[#allocation2 + $0x24] sm:$0xf]
    %v918 = vld [vmem:[#allocation2 + $0x28] sm:$0xf]
    %v919 = vld [vmem:[#allocation2 + $0x2c] sm:$0xf]
    %v920 = vld [vmem:[#allocation2 + $0x30] sm:$0xf]
    %v921 = vld [vmem:[#allocation2 + $0x34] sm:$0xf]
    %v922 = vld [vmem:[#allocation2 + $0x38] sm:$0xf]
    %v923 = vld [vmem:[#allocation2 + $0x3c] sm:$0xf]
    %v940 = vunpack.c.l.b16 %v908
    %v941 = vunpack.c.l.b16 %v909
    %v942 = vunpack.c.l.b16 %v910
    %v943 = vunpack.c.l.b16 %v911
    %v944 = vunpack.c.l.b16 %v912
    %v945 = vunpack.c.l.b16 %v913
    %v946 = vunpack.c.l.b16 %v914
    %v947 = vunpack.c.l.b16 %v915
    %v948 = vunpack.c.l.b16 %v916
    %v949 = vunpack.c.l.b16 %v917
    %v950 = vunpack.c.l.b16 %v918
    %v951 = vunpack.c.l.b16 %v919
    %v952 = vunpack.c.l.b16 %v920
    %v953 = vunpack.c.l.b16 %v921
    %v954 = vunpack.c.l.b16 %v922
    %v955 = vunpack.c.l.b16 %v923
    %v956 = vpack.c.b16 %v941, %v940
    %v957 = vpack.c.b16 %v943, %v942
    %v958 = vpack.c.b16 %v945, %v944
    %v959 = vpack.c.b16 %v947, %v946
    %v960 = vpack.c.b16 %v949, %v948
    %v961 = vpack.c.b16 %v951, %v950
    %v962 = vpack.c.b16 %v953, %v952
    %v963 = vpack.c.b16 %v955, %v954
    %972 = vmatpush.bf16.msra.mxu0 %v892
    %973 = vmatpush.bf16.msra.mxu0 %v891
    %974 = vmatpush.bf16.msra.mxu0 %v890
    %975 = vmatpush.bf16.msra.mxu0 %v889
    %976 = vmatpush.bf16.msra.mxu0 %v888
    %977 = vmatpush.bf16.msra.mxu0 %v887
    %978 = vmatpush.bf16.msra.mxu0 %v886
    %979 = vmatpush.bf16.msra.mxu0 %v885
    %980 = vmatmul.bf16.gmra.mxu0 %v956
    %v981 = vpop.f32.mrf.mxu0
    %v982 = vadd.f32 0.0, %v981
    %v983 = vpop.f32.mrf.mxu0
    %v984 = vadd.f32 0.0, %v983
    %985 = vmatmul.bf16.gmra.mxu0 %v957
    %v986 = vpop.f32.mrf.mxu0
    %v987 = vadd.f32 0.0, %v986
    %v988 = vpop.f32.mrf.mxu0
    %v989 = vadd.f32 0.0, %v988
    %990 = vmatmul.bf16.gmra.mxu0 %v958
    %v991 = vpop.f32.mrf.mxu0
    %v992 = vadd.f32 0.0, %v991
    %v993 = vpop.f32.mrf.mxu0
    %v994 = vadd.f32 0.0, %v993
    %995 = vmatmul.bf16.gmra.mxu0 %v959
    %v996 = vpop.f32.mrf.mxu0
    %v997 = vadd.f32 0.0, %v996
    %v998 = vpop.f32.mrf.mxu0
    %v999 = vadd.f32 0.0, %v998
    %1000 = vmatmul.bf16.gmra.mxu0 %v960
    %v1001 = vpop.f32.mrf.mxu0
    %v1002 = vadd.f32 0.0, %v1001
    %v1003 = vpop.f32.mrf.mxu0
    %v1004 = vadd.f32 0.0, %v1003
    %1005 = vmatmul.bf16.gmra.mxu0 %v961
    %v1006 = vpop.f32.mrf.mxu0
    %v1007 = vadd.f32 0.0, %v1006
    %v1008 = vpop.f32.mrf.mxu0
    %v1009 = vadd.f32 0.0, %v1008
    %1010 = vmatmul.bf16.gmra.mxu0 %v962
    %v1011 = vpop.f32.mrf.mxu0
    %v1012 = vadd.f32 0.0, %v1011
    %v1013 = vpop.f32.mrf.mxu0
    %v1014 = vadd.f32 0.0, %v1013
    %1015 = vmatmul.bf16.gmra.mxu0 %v963
    %v1016 = vpop.f32.mrf.mxu0
    %v1017 = vadd.f32 0.0, %v1016
    %v1018 = vpop.f32.mrf.mxu0
    %v1019 = vadd.f32 0.0, %v1018
    %1020 = vdwg.mxu0
    %v1021 = vsub.f32 %v982, %v555
    %v1022 = vsub.f32 %v984, %v556
    %v1023 = vsub.f32 %v987, %v557
    %v1024 = vsub.f32 %v989, %v558
    %v1025 = vsub.f32 %v992, %v559
    %v1026 = vsub.f32 %v994, %v560
    %v1027 = vsub.f32 %v997, %v561
    %v1028 = vsub.f32 %v999, %v562
    %v1029 = vsub.f32 %v1002, %v563
    %v1030 = vsub.f32 %v1004, %v564
    %v1031 = vsub.f32 %v1007, %v565
    %v1032 = vsub.f32 %v1009, %v566
    %v1033 = vsub.f32 %v1012, %v567
    %v1034 = vsub.f32 %v1014, %v568
    %v1035 = vsub.f32 %v1017, %v569
    %v1036 = vsub.f32 %v1019, %v570
    %1053 = vrot.lane.b32.xlu0 %v1021, 4
    %v1054 = vpop.permute.xlu0 %1053
    %1055 = vrot.lane.b32.xlu0 %v1022, 4
    %v1056 = vpop.permute.xlu0 %1055
    %1057 = vrot.lane.b32.xlu0 %v1023, 4
    %v1058 = vpop.permute.xlu0 %1057
    %1059 = vrot.lane.b32.xlu0 %v1024, 4
    %v1060 = vpop.permute.xlu0 %1059
    %1061 = vrot.lane.b32.xlu0 %v1025, 4
    %v1062 = vpop.permute.xlu0 %1061
    %1063 = vrot.lane.b32.xlu0 %v1026, 4
    %v1064 = vpop.permute.xlu0 %1063
    %1065 = vrot.lane.b32.xlu0 %v1027, 4
    %v1066 = vpop.permute.xlu0 %1065
    %1067 = vrot.lane.b32.xlu0 %v1028, 4
    %v1068 = vpop.permute.xlu0 %1067
    %1069 = vrot.lane.b32.xlu0 %v1029, 4
    %v1070 = vpop.permute.xlu0 %1069
    %1071 = vrot.lane.b32.xlu0 %v1030, 4
    %v1072 = vpop.permute.xlu0 %1071
    %1073 = vrot.lane.b32.xlu0 %v1031, 4
    %v1074 = vpop.permute.xlu0 %1073
    %1075 = vrot.lane.b32.xlu0 %v1032, 4
    %v1076 = vpop.permute.xlu0 %1075
    %1077 = vrot.lane.b32.xlu0 %v1033, 4
    %v1078 = vpop.permute.xlu0 %1077
    %1079 = vrot.lane.b32.xlu0 %v1034, 4
    %v1080 = vpop.permute.xlu0 %1079
    %1081 = vrot.lane.b32.xlu0 %v1035, 4
    %v1082 = vpop.permute.xlu0 %1081
    %1083 = vrot.lane.b32.xlu0 %v1036, 4
    %v1084 = vpop.permute.xlu0 %1083
    %vm1101 = vcmask 39968
    %1102 = vst.msk [vmem:[#allocation4] sm:$0xff] %vm1101, %v1054
    %1103 = vst.msk [vmem:[#allocation4 + $0x8] sm:$0xff] %vm1101, %v1056
    %1104 = vst.msk [vmem:[#allocation4 + $0x10] sm:$0xff] %vm1101, %v1058
    %1105 = vst.msk [vmem:[#allocation4 + $0x18] sm:$0xff] %vm1101, %v1060
    %1106 = vst.msk [vmem:[#allocation4 + $0x20] sm:$0xff] %vm1101, %v1062
    %1107 = vst.msk [vmem:[#allocation4 + $0x28] sm:$0xff] %vm1101, %v1064
    %1108 = vst.msk [vmem:[#allocation4 + $0x30] sm:$0xff] %vm1101, %v1066
    %1109 = vst.msk [vmem:[#allocation4 + $0x38] sm:$0xff] %vm1101, %v1068
    %1110 = vst.msk [vmem:[#allocation4 + $0x40] sm:$0xff] %vm1101, %v1070
    %1111 = vst.msk [vmem:[#allocation4 + $0x48] sm:$0xff] %vm1101, %v1072
    %1112 = vst.msk [vmem:[#allocation4 + $0x50] sm:$0xff] %vm1101, %v1074
    %1113 = vst.msk [vmem:[#allocation4 + $0x58] sm:$0xff] %vm1101, %v1076
    %1114 = vst.msk [vmem:[#allocation4 + $0x60] sm:$0xff] %vm1101, %v1078
    %1115 = vst.msk [vmem:[#allocation4 + $0x68] sm:$0xff] %vm1101, %v1080
    %1116 = vst.msk [vmem:[#allocation4 + $0x70] sm:$0xff] %vm1101, %v1082
    %1117 = vst.msk [vmem:[#allocation4 + $0x78] sm:$0xff] %vm1101, %v1084
    // Predicated region
    $region78: #{tpu_custom_call.1} parent=1 // pred_check
      _
    $region79: #{tpu_custom_call.1} parent=1 // pred_check_branch
      %1119 = sbr.rel target = $region81
    $region80: #{tpu_custom_call.1} parent=1 // pred_region
      %1120 = sst [smem:[#allocation21]] [#allocation30]
      %1121 = sst [smem:[#allocation22]] [#allocation29]
    $region81: #{tpu_custom_call.1} parent=1 // pred_fallthru
      _
    %1123 = shalt.err (0)
    %s1125 = sshll.u32 %s2, 4
    %s1126 = int_to_ptr.hbm [resolvable:$true] %s1125
    %s1127 = sshll.u32 [#allocation2], 4
    %s1128 = int_to_ptr.vmem [resolvable:$true] %s1127
    %1130 = dma.hbm_to_vmem [thread:$0]  %s1126, 1024, %s1128, [#allocation3]
    %s1131 = sshll.u32 %s206, 4
    %1132 = dma.done [#allocation3], %s1131
    %v1133 = vld [vmem:[#allocation2] sm:$0xf]
    %v1134 = vld [vmem:[#allocation2 + $0x4] sm:$0xf]
    %v1135 = vld [vmem:[#allocation2 + $0x8] sm:$0xf]
    %v1136 = vld [vmem:[#allocation2 + $0xc] sm:$0xf]
    %v1137 = vld [vmem:[#allocation2 + $0x10] sm:$0xf]
    %v1138 = vld [vmem:[#allocation2 + $0x14] sm:$0xf]
    %v1139 = vld [vmem:[#allocation2 + $0x18] sm:$0xf]
    %v1140 = vld [vmem:[#allocation2 + $0x1c] sm:$0xf]
    %v1141 = vld [vmem:[#allocation2 + $0x20] sm:$0xf]
    %v1142 = vld [vmem:[#allocation2 + $0x24] sm:$0xf]
    %v1143 = vld [vmem:[#allocation2 + $0x28] sm:$0xf]
    %v1144 = vld [vmem:[#allocation2 + $0x2c] sm:$0xf]
    %v1145 = vld [vmem:[#allocation2 + $0x30] sm:$0xf]
    %v1146 = vld [vmem:[#allocation2 + $0x34] sm:$0xf]
    %v1147 = vld [vmem:[#allocation2 + $0x38] sm:$0xf]
    %v1148 = vld [vmem:[#allocation2 + $0x3c] sm:$0xf]
    %v1165 = vunpack.c.l.b16 %v1133
    %v1166 = vunpack.c.l.b16 %v1134
    %v1167 = vunpack.c.l.b16 %v1135
    %v1168 = vunpack.c.l.b16 %v1136
    %v1169 = vunpack.c.l.b16 %v1137
    %v1170 = vunpack.c.l.b16 %v1138
    %v1171 = vunpack.c.l.b16 %v1139
    %v1172 = vunpack.c.l.b16 %v1140
    %v1173 = vunpack.c.l.b16 %v1141
    %v1174 = vunpack.c.l.b16 %v1142
    %v1175 = vunpack.c.l.b16 %v1143
    %v1176 = vunpack.c.l.b16 %v1144
    %v1177 = vunpack.c.l.b16 %v1145
    %v1178 = vunpack.c.l.b16 %v1146
    %v1179 = vunpack.c.l.b16 %v1147
    %v1180 = vunpack.c.l.b16 %v1148
    %v1181 = vpack.c.b16 %v1166, %v1165
    %v1182 = vpack.c.b16 %v1168, %v1167
    %v1183 = vpack.c.b16 %v1170, %v1169
    %v1184 = vpack.c.b16 %v1172, %v1171
    %v1185 = vpack.c.b16 %v1174, %v1173
    %v1186 = vpack.c.b16 %v1176, %v1175
    %v1187 = vpack.c.b16 %v1178, %v1177
    %v1188 = vpack.c.b16 %v1180, %v1179
    %1197 = vmatpush.bf16.msra.mxu0 %v191
    %1198 = vmatpush.bf16.msra.mxu0 %v190
    %1199 = vmatpush.bf16.msra.mxu0 %v189
    %1200 = vmatpush.bf16.msra.mxu0 %v188
    %1201 = vmatpush.bf16.msra.mxu0 %v187
    %1202 = vmatpush.bf16.msra.mxu0 %v186
    %1203 = vmatpush.bf16.msra.mxu0 %v185
    %1204 = vmatpush.bf16.msra.mxu0 %v184
    %1205 = vmatmul.bf16.gmra.mxu0 %v1181
    %v1206 = vpop.f32.mrf.mxu0
    %v1207 = vadd.f32 0.0, %v1206
    %v1208 = vpop.f32.mrf.mxu0
    %v1209 = vadd.f32 0.0, %v1208
    %1210 = vmatmul.bf16.gmra.mxu0 %v1182
    %v1211 = vpop.f32.mrf.mxu0
    %v1212 = vadd.f32 0.0, %v1211
    %v1213 = vpop.f32.mrf.mxu0
    %v1214 = vadd.f32 0.0, %v1213
    %1215 = vmatmul.bf16.gmra.mxu0 %v1183
    %v1216 = vpop.f32.mrf.mxu0
    %v1217 = vadd.f32 0.0, %v1216
    %v1218 = vpop.f32.mrf.mxu0
    %v1219 = vadd.f32 0.0, %v1218
    %1220 = vmatmul.bf16.gmra.mxu0 %v1184
    %v1221 = vpop.f32.mrf.mxu0
    %v1222 = vadd.f32 0.0, %v1221
    %v1223 = vpop.f32.mrf.mxu0
    %v1224 = vadd.f32 0.0, %v1223
    %1225 = vmatmul.bf16.gmra.mxu0 %v1185
    %v1226 = vpop.f32.mrf.mxu0
    %v1227 = vadd.f32 0.0, %v1226
    %v1228 = vpop.f32.mrf.mxu0
    %v1229 = vadd.f32 0.0, %v1228
    %1230 = vmatmul.bf16.gmra.mxu0 %v1186
    %v1231 = vpop.f32.mrf.mxu0
    %v1232 = vadd.f32 0.0, %v1231
    %v1233 = vpop.f32.mrf.mxu0
    %v1234 = vadd.f32 0.0, %v1233
    %1235 = vmatmul.bf16.gmra.mxu0 %v1187
    %v1236 = vpop.f32.mrf.mxu0
    %v1237 = vadd.f32 0.0, %v1236
    %v1238 = vpop.f32.mrf.mxu0
    %v1239 = vadd.f32 0.0, %v1238
    %1240 = vmatmul.bf16.gmra.mxu0 %v1188
    %v1241 = vpop.f32.mrf.mxu0
    %v1242 = vadd.f32 0.0, %v1241
    %v1243 = vpop.f32.mrf.mxu0
    %v1244 = vadd.f32 0.0, %v1243
    %1245 = vdwg.mxu0
    %v1246 = vmul.f32 %v1207, 0.5
    %v1247 = vmul.f32 %v1209, 0.5
    %v1248 = vmul.f32 %v1212, 0.5
    %v1249 = vmul.f32 %v1214, 0.5
    %v1250 = vmul.f32 %v1217, 0.5
    %v1251 = vmul.f32 %v1219, 0.5
    %v1252 = vmul.f32 %v1222, 0.5
    %v1253 = vmul.f32 %v1224, 0.5
    %v1254 = vmul.f32 %v1227, 0.5
    %v1255 = vmul.f32 %v1229, 0.5
    %v1256 = vmul.f32 %v1232, 0.5
    %v1257 = vmul.f32 %v1234, 0.5
    %v1258 = vmul.f32 %v1237, 0.5
    %v1259 = vmul.f32 %v1239, 0.5
    %v1260 = vmul.f32 %v1242, 0.5
    %v1261 = vmul.f32 %v1244, 0.5
    %1278 = vrot.lane.b32.xlu0 %v1246, 5
    %v1279 = vpop.permute.xlu0 %1278
    %1280 = vrot.lane.b32.xlu0 %v1247, 5
    %v1281 = vpop.permute.xlu0 %1280
    %1282 = vrot.lane.b32.xlu0 %v1248, 5
    %v1283 = vpop.permute.xlu0 %1282
    %1284 = vrot.lane.b32.xlu0 %v1249, 5
    %v1285 = vpop.permute.xlu0 %1284
    %1286 = vrot.lane.b32.xlu0 %v1250, 5
    %v1287 = vpop.permute.xlu0 %1286
    %1288 = vrot.lane.b32.xlu0 %v1251, 5
    %v1289 = vpop.permute.xlu0 %1288
    %1290 = vrot.lane.b32.xlu0 %v1252, 5
    %v1291 = vpop.permute.xlu0 %1290
    %1292 = vrot.lane.b32.xlu0 %v1253, 5
    %v1293 = vpop.permute.xlu0 %1292
    %1294 = vrot.lane.b32.xlu0 %v1254, 5
    %v1295 = vpop.permute.xlu0 %1294
    %1296 = vrot.lane.b32.xlu0 %v1255, 5
    %v1297 = vpop.permute.xlu0 %1296
    %1298 = vrot.lane.b32.xlu0 %v1256, 5
    %v1299 = vpop.permute.xlu0 %1298
    %1300 = vrot.lane.b32.xlu0 %v1257, 5
    %v1301 = vpop.permute.xlu0 %1300
    %1302 = vrot.lane.b32.xlu0 %v1258, 5
    %v1303 = vpop.permute.xlu0 %1302
    %1304 = vrot.lane.b32.xlu0 %v1259, 5
    %v1305 = vpop.permute.xlu0 %1304
    %1306 = vrot.lane.b32.xlu0 %v1260, 5
    %v1307 = vpop.permute.xlu0 %1306
    %1308 = vrot.lane.b32.xlu0 %v1261, 5
    %v1309 = vpop.permute.xlu0 %1308
    %vm1326 = vcmask 48168
    %1327 = vst.msk [vmem:[#allocation4] sm:$0xff] %vm1326, %v1279
    %1328 = vst.msk [vmem:[#allocation4 + $0x8] sm:$0xff] %vm1326, %v1281
    %1329 = vst.msk [vmem:[#allocation4 + $0x10] sm:$0xff] %vm1326, %v1283
    %1330 = vst.msk [vmem:[#allocation4 + $0x18] sm:$0xff] %vm1326, %v1285
    %1331 = vst.msk [vmem:[#allocation4 + $0x20] sm:$0xff] %vm1326, %v1287
    %1332 = vst.msk [vmem:[#allocation4 + $0x28] sm:$0xff] %vm1326, %v1289
    %1333 = vst.msk [vmem:[#allocation4 + $0x30] sm:$0xff] %vm1326, %v1291
    %1334 = vst.msk [vmem:[#allocation4 + $0x38] sm:$0xff] %vm1326, %v1293
    %1335 = vst.msk [vmem:[#allocation4 + $0x40] sm:$0xff] %vm1326, %v1295
    %1336 = vst.msk [vmem:[#allocation4 + $0x48] sm:$0xff] %vm1326, %v1297
    %1337 = vst.msk [vmem:[#allocation4 + $0x50] sm:$0xff] %vm1326, %v1299
    %1338 = vst.msk [vmem:[#allocation4 + $0x58] sm:$0xff] %vm1326, %v1301
    %1339 = vst.msk [vmem:[#allocation4 + $0x60] sm:$0xff] %vm1326, %v1303
    %1340 = vst.msk [vmem:[#allocation4 + $0x68] sm:$0xff] %vm1326, %v1305
    %1341 = vst.msk [vmem:[#allocation4 + $0x70] sm:$0xff] %vm1326, %v1307
    %1342 = vst.msk [vmem:[#allocation4 + $0x78] sm:$0xff] %vm1326, %v1309
    %v1343 = vpack.c.bf16 %v1247, %v1246
    %v1344 = vpack.c.bf16 %v1249, %v1248
    %v1345 = vpack.c.bf16 %v1251, %v1250
    %v1346 = vpack.c.bf16 %v1253, %v1252
    %v1347 = vpack.c.bf16 %v1255, %v1254
    %v1348 = vpack.c.bf16 %v1257, %v1256
    %v1349 = vpack.c.bf16 %v1259, %v1258
    %v1350 = vpack.c.bf16 %v1261, %v1260
    // Predicated region
    $region82: #{tpu_custom_call.1} parent=1 // pred_check
      _
    $region83: #{tpu_custom_call.1} parent=1 // pred_check_branch
      %1352 = sbr.rel target = $region85
    $region84: #{tpu_custom_call.1} parent=1 // pred_region
      %1353 = sst [smem:[#allocation21]] [#allocation32]
      %1354 = sst [smem:[#allocation22]] [#allocation31]
    $region85: #{tpu_custom_call.1} parent=1 // pred_fallthru
      _
    %1356 = shalt.err (0)
    %s1358 = sshll.u32 %s2, 4
    %s1359 = int_to_ptr.hbm [resolvable:$true] %s1358
    %s1360 = sshll.u32 [#allocation2], 4
    %s1361 = int_to_ptr.vmem [resolvable:$true] %s1360
    %1363 = dma.hbm_to_vmem [thread:$0]  %s1359, 1024, %s1361, [#allocation3]
    %s1364 = sshll.u32 %s206, 4
    %1365 = dma.done [#allocation3], %s1364
    %v1366 = vld [vmem:[#allocation2] sm:$0xf]
    %v1367 = vld [vmem:[#allocation2 + $0x4] sm:$0xf]
    %v1368 = vld [vmem:[#allocation2 + $0x8] sm:$0xf]
    %v1369 = vld [vmem:[#allocation2 + $0xc] sm:$0xf]
    %v1370 = vld [vmem:[#allocation2 + $0x10] sm:$0xf]
    %v1371 = vld [vmem:[#allocation2 + $0x14] sm:$0xf]
    %v1372 = vld [vmem:[#allocation2 + $0x18] sm:$0xf]
    %v1373 = vld [vmem:[#allocation2 + $0x1c] sm:$0xf]
    %v1374 = vld [vmem:[#allocation2 + $0x20] sm:$0xf]
    %v1375 = vld [vmem:[#allocation2 + $0x24] sm:$0xf]
    %v1376 = vld [vmem:[#allocation2 + $0x28] sm:$0xf]
    %v1377 = vld [vmem:[#allocation2 + $0x2c] sm:$0xf]
    %v1378 = vld [vmem:[#allocation2 + $0x30] sm:$0xf]
    %v1379 = vld [vmem:[#allocation2 + $0x34] sm:$0xf]
    %v1380 = vld [vmem:[#allocation2 + $0x38] sm:$0xf]
    %v1381 = vld [vmem:[#allocation2 + $0x3c] sm:$0xf]
    %v1398 = vunpack.c.l.b16 %v1366
    %v1399 = vunpack.c.l.b16 %v1367
    %v1400 = vunpack.c.l.b16 %v1368
    %v1401 = vunpack.c.l.b16 %v1369
    %v1402 = vunpack.c.l.b16 %v1370
    %v1403 = vunpack.c.l.b16 %v1371
    %v1404 = vunpack.c.l.b16 %v1372
    %v1405 = vunpack.c.l.b16 %v1373
    %v1406 = vunpack.c.l.b16 %v1374
    %v1407 = vunpack.c.l.b16 %v1375
    %v1408 = vunpack.c.l.b16 %v1376
    %v1409 = vunpack.c.l.b16 %v1377
    %v1410 = vunpack.c.l.b16 %v1378
    %v1411 = vunpack.c.l.b16 %v1379
    %v1412 = vunpack.c.l.b16 %v1380
    %v1413 = vunpack.c.l.b16 %v1381
    %v1414 = vpack.c.b16 %v1399, %v1398
    %v1415 = vpack.c.b16 %v1401, %v1400
    %v1416 = vpack.c.b16 %v1403, %v1402
    %v1417 = vpack.c.b16 %v1405, %v1404
    %v1418 = vpack.c.b16 %v1407, %v1406
    %v1419 = vpack.c.b16 %v1409, %v1408
    %v1420 = vpack.c.b16 %v1411, %v1410
    %v1421 = vpack.c.b16 %v1413, %v1412
    %1430 = vmatpush.bf16.msra.mxu0 %v1350
    %1431 = vmatpush.bf16.msra.mxu0 %v1349
    %1432 = vmatpush.bf16.msra.mxu0 %v1348
    %1433 = vmatpush.bf16.msra.mxu0 %v1347
    %1434 = vmatpush.bf16.msra.mxu0 %v1346
    %1435 = vmatpush.bf16.msra.mxu0 %v1345
    %1436 = vmatpush.bf16.msra.mxu0 %v1344
    %1437 = vmatpush.bf16.msra.mxu0 %v1343
    %1438 = vmatmul.bf16.gmra.mxu0 %v1414
    %v1439 = vpop.f32.mrf.mxu0
    %v1440 = vadd.f32 0.0, %v1439
    %v1441 = vpop.f32.mrf.mxu0
    %v1442 = vadd.f32 0.0, %v1441
    %1443 = vmatmul.bf16.gmra.mxu0 %v1415
    %v1444 = vpop.f32.mrf.mxu0
    %v1445 = vadd.f32 0.0, %v1444
    %v1446 = vpop.f32.mrf.mxu0
    %v1447 = vadd.f32 0.0, %v1446
    %1448 = vmatmul.bf16.gmra.mxu0 %v1416
    %v1449 = vpop.f32.mrf.mxu0
    %v1450 = vadd.f32 0.0, %v1449
    %v1451 = vpop.f32.mrf.mxu0
    %v1452 = vadd.f32 0.0, %v1451
    %1453 = vmatmul.bf16.gmra.mxu0 %v1417
    %v1454 = vpop.f32.mrf.mxu0
    %v1455 = vadd.f32 0.0, %v1454
    %v1456 = vpop.f32.mrf.mxu0
    %v1457 = vadd.f32 0.0, %v1456
    %1458 = vmatmul.bf16.gmra.mxu0 %v1418
    %v1459 = vpop.f32.mrf.mxu0
    %v1460 = vadd.f32 0.0, %v1459
    %v1461 = vpop.f32.mrf.mxu0
    %v1462 = vadd.f32 0.0, %v1461
    %1463 = vmatmul.bf16.gmra.mxu0 %v1419
    %v1464 = vpop.f32.mrf.mxu0
    %v1465 = vadd.f32 0.0, %v1464
    %v1466 = vpop.f32.mrf.mxu0
    %v1467 = vadd.f32 0.0, %v1466
    %1468 = vmatmul.bf16.gmra.mxu0 %v1420
    %v1469 = vpop.f32.mrf.mxu0
    %v1470 = vadd.f32 0.0, %v1469
    %v1471 = vpop.f32.mrf.mxu0
    %v1472 = vadd.f32 0.0, %v1471
    %1473 = vmatmul.bf16.gmra.mxu0 %v1421
    %v1474 = vpop.f32.mrf.mxu0
    %v1475 = vadd.f32 0.0, %v1474
    %v1476 = vpop.f32.mrf.mxu0
    %v1477 = vadd.f32 0.0, %v1476
    %1478 = vdwg.mxu0
    %v1479 = vsub.f32 %v1440, %v151
    %v1480 = vsub.f32 %v1442, %v152
    %v1481 = vsub.f32 %v1445, %v153
    %v1482 = vsub.f32 %v1447, %v154
    %v1483 = vsub.f32 %v1450, %v155
    %v1484 = vsub.f32 %v1452, %v156
    %v1485 = vsub.f32 %v1455, %v157
    %v1486 = vsub.f32 %v1457, %v158
    %v1487 = vsub.f32 %v1460, %v159
    %v1488 = vsub.f32 %v1462, %v160
    %v1489 = vsub.f32 %v1465, %v161
    %v1490 = vsub.f32 %v1467, %v162
    %v1491 = vsub.f32 %v1470, %v163
    %v1492 = vsub.f32 %v1472, %v164
    %v1493 = vsub.f32 %v1475, %v165
    %v1494 = vsub.f32 %v1477, %v166
    %1511 = vrot.lane.b32.xlu0 %v1479, 6
    %v1512 = vpop.permute.xlu0 %1511
    %1513 = vrot.lane.b32.xlu0 %v1480, 6
    %v1514 = vpop.permute.xlu0 %1513
    %1515 = vrot.lane.b32.xlu0 %v1481, 6
    %v1516 = vpop.permute.xlu0 %1515
    %1517 = vrot.lane.b32.xlu0 %v1482, 6
    %v1518 = vpop.permute.xlu0 %1517
    %1519 = vrot.lane.b32.xlu0 %v1483, 6
    %v1520 = vpop.permute.xlu0 %1519
    %1521 = vrot.lane.b32.xlu0 %v1484, 6
    %v1522 = vpop.permute.xlu0 %1521
    %1523 = vrot.lane.b32.xlu0 %v1485, 6
    %v1524 = vpop.permute.xlu0 %1523
    %1525 = vrot.lane.b32.xlu0 %v1486, 6
    %v1526 = vpop.permute.xlu0 %1525
    %1527 = vrot.lane.b32.xlu0 %v1487, 6
    %v1528 = vpop.permute.xlu0 %1527
    %1529 = vrot.lane.b32.xlu0 %v1488, 6
    %v1530 = vpop.permute.xlu0 %1529
    %1531 = vrot.lane.b32.xlu0 %v1489, 6
    %v1532 = vpop.permute.xlu0 %1531
    %1533 = vrot.lane.b32.xlu0 %v1490, 6
    %v1534 = vpop.permute.xlu0 %1533
    %1535 = vrot.lane.b32.xlu0 %v1491, 6
    %v1536 = vpop.permute.xlu0 %1535
    %1537 = vrot.lane.b32.xlu0 %v1492, 6
    %v1538 = vpop.permute.xlu0 %1537
    %1539 = vrot.lane.b32.xlu0 %v1493, 6
    %v1540 = vpop.permute.xlu0 %1539
    %1541 = vrot.lane.b32.xlu0 %v1494, 6
    %v1542 = vpop.permute.xlu0 %1541
    %vm1559 = vcmask 56368
    %1560 = vst.msk [vmem:[#allocation4] sm:$0xff] %vm1559, %v1512
    %1561 = vst.msk [vmem:[#allocation4 + $0x8] sm:$0xff] %vm1559, %v1514
    %1562 = vst.msk [vmem:[#allocation4 + $0x10] sm:$0xff] %vm1559, %v1516
    %1563 = vst.msk [vmem:[#allocation4 + $0x18] sm:$0xff] %vm1559, %v1518
    %1564 = vst.msk [vmem:[#allocation4 + $0x20] sm:$0xff] %vm1559, %v1520
    %1565 = vst.msk [vmem:[#allocation4 + $0x28] sm:$0xff] %vm1559, %v1522
    %1566 = vst.msk [vmem:[#allocation4 + $0x30] sm:$0xff] %vm1559, %v1524
    %1567 = vst.msk [vmem:[#allocation4 + $0x38] sm:$0xff] %vm1559, %v1526
    %1568 = vst.msk [vmem:[#allocation4 + $0x40] sm:$0xff] %vm1559, %v1528
    %1569 = vst.msk [vmem:[#allocation4 + $0x48] sm:$0xff] %vm1559, %v1530
    %1570 = vst.msk [vmem:[#allocation4 + $0x50] sm:$0xff] %vm1559, %v1532
    %1571 = vst.msk [vmem:[#allocation4 + $0x58] sm:$0xff] %vm1559, %v1534
    %1572 = vst.msk [vmem:[#allocation4 + $0x60] sm:$0xff] %vm1559, %v1536
    %1573 = vst.msk [vmem:[#allocation4 + $0x68] sm:$0xff] %vm1559, %v1538
    %1574 = vst.msk [vmem:[#allocation4 + $0x70] sm:$0xff] %vm1559, %v1540
    %1575 = vst.msk [vmem:[#allocation4 + $0x78] sm:$0xff] %vm1559, %v1542
    %v1576 = vpack.c.bf16 %v1480, %v1479
    %v1577 = vpack.c.bf16 %v1482, %v1481
    %v1578 = vpack.c.bf16 %v1484, %v1483
    %v1579 = vpack.c.bf16 %v1486, %v1485
    %v1580 = vpack.c.bf16 %v1488, %v1487
    %v1581 = vpack.c.bf16 %v1490, %v1489
    %v1582 = vpack.c.bf16 %v1492, %v1491
    %v1583 = vpack.c.bf16 %v1494, %v1493
    // Predicated region
    $region86: #{tpu_custom_call.1} parent=1 // pred_check
      _
    $region87: #{tpu_custom_call.1} parent=1 // pred_check_branch
      %1585 = sbr.rel target = $region89
    $region88: #{tpu_custom_call.1} parent=1 // pred_region
      %1586 = sst [smem:[#allocation21]] [#allocation34]
      %1587 = sst [smem:[#allocation22]] [#allocation33]
    $region89: #{tpu_custom_call.1} parent=1 // pred_fallthru
      _
    %1589 = shalt.err (0)
    %s1591 = sshll.u32 %s2, 4
    %s1592 = int_to_ptr.hbm [resolvable:$true] %s1591
    %s1593 = sshll.u32 [#allocation2], 4
    %s1594 = int_to_ptr.vmem [resolvable:$true] %s1593
    %1596 = dma.hbm_to_vmem [thread:$0]  %s1592, 1024, %s1594, [#allocation3]
    %s1597 = sshll.u32 %s206, 4
    %1598 = dma.done [#allocation3], %s1597
    %v1599 = vld [vmem:[#allocation2] sm:$0xf]
    %v1600 = vld [vmem:[#allocation2 + $0x4] sm:$0xf]
    %v1601 = vld [vmem:[#allocation2 + $0x8] sm:$0xf]
    %v1602 = vld [vmem:[#allocation2 + $0xc] sm:$0xf]
    %v1603 = vld [vmem:[#allocation2 + $0x10] sm:$0xf]
    %v1604 = vld [vmem:[#allocation2 + $0x14] sm:$0xf]
    %v1605 = vld [vmem:[#allocation2 + $0x18] sm:$0xf]
    %v1606 = vld [vmem:[#allocation2 + $0x1c] sm:$0xf]
    %v1607 = vld [vmem:[#allocation2 + $0x20] sm:$0xf]
    %v1608 = vld [vmem:[#allocation2 + $0x24] sm:$0xf]
    %v1609 = vld [vmem:[#allocation2 + $0x28] sm:$0xf]
    %v1610 = vld [vmem:[#allocation2 + $0x2c] sm:$0xf]
    %v1611 = vld [vmem:[#allocation2 + $0x30] sm:$0xf]
    %v1612 = vld [vmem:[#allocation2 + $0x34] sm:$0xf]
    %v1613 = vld [vmem:[#allocation2 + $0x38] sm:$0xf]
    %v1614 = vld [vmem:[#allocation2 + $0x3c] sm:$0xf]
    %v1631 = vunpack.c.l.b16 %v1599
    %v1632 = vunpack.c.l.b16 %v1600
    %v1633 = vunpack.c.l.b16 %v1601
    %v1634 = vunpack.c.l.b16 %v1602
    %v1635 = vunpack.c.l.b16 %v1603
    %v1636 = vunpack.c.l.b16 %v1604
    %v1637 = vunpack.c.l.b16 %v1605
    %v1638 = vunpack.c.l.b16 %v1606
    %v1639 = vunpack.c.l.b16 %v1607
    %v1640 = vunpack.c.l.b16 %v1608
    %v1641 = vunpack.c.l.b16 %v1609
    %v1642 = vunpack.c.l.b16 %v1610
    %v1643 = vunpack.c.l.b16 %v1611
    %v1644 = vunpack.c.l.b16 %v1612
    %v1645 = vunpack.c.l.b16 %v1613
    %v1646 = vunpack.c.l.b16 %v1614
    %v1647 = vpack.c.b16 %v1632, %v1631
    %v1648 = vpack.c.b16 %v1634, %v1633
    %v1649 = vpack.c.b16 %v1636, %v1635
    %v1650 = vpack.c.b16 %v1638, %v1637
    %v1651 = vpack.c.b16 %v1640, %v1639
    %v1652 = vpack.c.b16 %v1642, %v1641
    %v1653 = vpack.c.b16 %v1644, %v1643
    %v1654 = vpack.c.b16 %v1646, %v1645
    %1663 = vmatpush.bf16.msra.mxu0 %v1583
    %1664 = vmatpush.bf16.msra.mxu0 %v1582
    %1665 = vmatpush.bf16.msra.mxu0 %v1581
    %1666 = vmatpush.bf16.msra.mxu0 %v1580
    %1667 = vmatpush.bf16.msra.mxu0 %v1579
    %1668 = vmatpush.bf16.msra.mxu0 %v1578
    %1669 = vmatpush.bf16.msra.mxu0 %v1577
    %1670 = vmatpush.bf16.msra.mxu0 %v1576
    %1671 = vmatmul.bf16.gmra.mxu0 %v1647
    %v1672 = vpop.f32.mrf.mxu0
    %v1673 = vadd.f32 0.0, %v1672
    %v1674 = vpop.f32.mrf.mxu0
    %v1675 = vadd.f32 0.0, %v1674
    %1676 = vmatmul.bf16.gmra.mxu0 %v1648
    %v1677 = vpop.f32.mrf.mxu0
    %v1678 = vadd.f32 0.0, %v1677
    %v1679 = vpop.f32.mrf.mxu0
    %v1680 = vadd.f32 0.0, %v1679
    %1681 = vmatmul.bf16.gmra.mxu0 %v1649
    %v1682 = vpop.f32.mrf.mxu0
    %v1683 = vadd.f32 0.0, %v1682
    %v1684 = vpop.f32.mrf.mxu0
    %v1685 = vadd.f32 0.0, %v1684
    %1686 = vmatmul.bf16.gmra.mxu0 %v1650
    %v1687 = vpop.f32.mrf.mxu0
    %v1688 = vadd.f32 0.0, %v1687
    %v1689 = vpop.f32.mrf.mxu0
    %v1690 = vadd.f32 0.0, %v1689
    %1691 = vmatmul.bf16.gmra.mxu0 %v1651
    %v1692 = vpop.f32.mrf.mxu0
    %v1693 = vadd.f32 0.0, %v1692
    %v1694 = vpop.f32.mrf.mxu0
    %v1695 = vadd.f32 0.0, %v1694
    %1696 = vmatmul.bf16.gmra.mxu0 %v1652
    %v1697 = vpop.f32.mrf.mxu0
    %v1698 = vadd.f32 0.0, %v1697
    %v1699 = vpop.f32.mrf.mxu0
    %v1700 = vadd.f32 0.0, %v1699
    %1701 = vmatmul.bf16.gmra.mxu0 %v1653
    %v1702 = vpop.f32.mrf.mxu0
    %v1703 = vadd.f32 0.0, %v1702
    %v1704 = vpop.f32.mrf.mxu0
    %v1705 = vadd.f32 0.0, %v1704
    %1706 = vmatmul.bf16.gmra.mxu0 %v1654
    %v1707 = vpop.f32.mrf.mxu0
    %v1708 = vadd.f32 0.0, %v1707
    %v1709 = vpop.f32.mrf.mxu0
    %v1710 = vadd.f32 0.0, %v1709
    %1711 = vdwg.mxu0
    %v1712 = vsub.f32 %v1673, %v1246
    %v1713 = vsub.f32 %v1675, %v1247
    %v1714 = vsub.f32 %v1678, %v1248
    %v1715 = vsub.f32 %v1680, %v1249
    %v1716 = vsub.f32 %v1683, %v1250
    %v1717 = vsub.f32 %v1685, %v1251
    %v1718 = vsub.f32 %v1688, %v1252
    %v1719 = vsub.f32 %v1690, %v1253
    %v1720 = vsub.f32 %v1693, %v1254
    %v1721 = vsub.f32 %v1695, %v1255
    %v1722 = vsub.f32 %v1698, %v1256
    %v1723 = vsub.f32 %v1700, %v1257
    %v1724 = vsub.f32 %v1703, %v1258
    %v1725 = vsub.f32 %v1705, %v1259
    %v1726 = vsub.f32 %v1708, %v1260
    %v1727 = vsub.f32 %v1710, %v1261
    %1744 = vrot.lane.b32.xlu0 %v1712, 7
    %v1745 = vpop.permute.xlu0 %1744
    %1746 = vrot.lane.b32.xlu0 %v1713, 7
    %v1747 = vpop.permute.xlu0 %1746
    %1748 = vrot.lane.b32.xlu0 %v1714, 7
    %v1749 = vpop.permute.xlu0 %1748
    %1750 = vrot.lane.b32.xlu0 %v1715, 7
    %v1751 = vpop.permute.xlu0 %1750
    %1752 = vrot.lane.b32.xlu0 %v1716, 7
    %v1753 = vpop.permute.xlu0 %1752
    %1754 = vrot.lane.b32.xlu0 %v1717, 7
    %v1755 = vpop.permute.xlu0 %1754
    %1756 = vrot.lane.b32.xlu0 %v1718, 7
    %v1757 = vpop.permute.xlu0 %1756
    %1758 = vrot.lane.b32.xlu0 %v1719, 7
    %v1759 = vpop.permute.xlu0 %1758
    %1760 = vrot.lane.b32.xlu0 %v1720, 7
    %v1761 = vpop.permute.xlu0 %1760
    %1762 = vrot.lane.b32.xlu0 %v1721, 7
    %v1763 = vpop.permute.xlu0 %1762
    %1764 = vrot.lane.b32.xlu0 %v1722, 7
    %v1765 = vpop.permute.xlu0 %1764
    %1766 = vrot.lane.b32.xlu0 %v1723, 7
    %v1767 = vpop.permute.xlu0 %1766
    %1768 = vrot.lane.b32.xlu0 %v1724, 7
    %v1769 = vpop.permute.xlu0 %1768
    %1770 = vrot.lane.b32.xlu0 %v1725, 7
    %v1771 = vpop.permute.xlu0 %1770
    %1772 = vrot.lane.b32.xlu0 %v1726, 7
    %v1773 = vpop.permute.xlu0 %1772
    %1774 = vrot.lane.b32.xlu0 %v1727, 7
    %v1775 = vpop.permute.xlu0 %1774
    %vm1792 = vcmask 64568
    %1793 = vst.msk [vmem:[#allocation4] sm:$0xff] %vm1792, %v1745
    %1794 = vst.msk [vmem:[#allocation4 + $0x8] sm:$0xff] %vm1792, %v1747
    %1795 = vst.msk [vmem:[#allocation4 + $0x10] sm:$0xff] %vm1792, %v1749
    %1796 = vst.msk [vmem:[#allocation4 + $0x18] sm:$0xff] %vm1792, %v1751
    %1797 = vst.msk [vmem:[#allocation4 + $0x20] sm:$0xff] %vm1792, %v1753
    %1798 = vst.msk [vmem:[#allocation4 + $0x28] sm:$0xff] %vm1792, %v1755
    %1799 = vst.msk [vmem:[#allocation4 + $0x30] sm:$0xff] %vm1792, %v1757
    %1800 = vst.msk [vmem:[#allocation4 + $0x38] sm:$0xff] %vm1792, %v1759
    %1801 = vst.msk [vmem:[#allocation4 + $0x40] sm:$0xff] %vm1792, %v1761
    %1802 = vst.msk [vmem:[#allocation4 + $0x48] sm:$0xff] %vm1792, %v1763
    %1803 = vst.msk [vmem:[#allocation4 + $0x50] sm:$0xff] %vm1792, %v1765
    %1804 = vst.msk [vmem:[#allocation4 + $0x58] sm:$0xff] %vm1792, %v1767
    %1805 = vst.msk [vmem:[#allocation4 + $0x60] sm:$0xff] %vm1792, %v1769
    %1806 = vst.msk [vmem:[#allocation4 + $0x68] sm:$0xff] %vm1792, %v1771
    %1807 = vst.msk [vmem:[#allocation4 + $0x70] sm:$0xff] %vm1792, %v1773
    %1808 = vst.msk [vmem:[#allocation4 + $0x78] sm:$0xff] %vm1792, %v1775
    %v1809 = vpack.c.bf16 %v1713, %v1712
    %v1810 = vpack.c.bf16 %v1715, %v1714
    %v1811 = vpack.c.bf16 %v1717, %v1716
    %v1812 = vpack.c.bf16 %v1719, %v1718
    %v1813 = vpack.c.bf16 %v1721, %v1720
    %v1814 = vpack.c.bf16 %v1723, %v1722
    %v1815 = vpack.c.bf16 %v1725, %v1724
    %v1816 = vpack.c.bf16 %v1727, %v1726
    // Predicated region
    $region90: #{tpu_custom_call.1} parent=1 // pred_check
      _
    $region91: #{tpu_custom_call.1} parent=1 // pred_check_branch
      %1818 = sbr.rel target = $region93
    $region92: #{tpu_custom_call.1} parent=1 // pred_region
      %1819 = sst [smem:[#allocation21]] [#allocation36]
      %1820 = sst [smem:[#allocation22]] [#allocation35]
    $region93: #{tpu_custom_call.1} parent=1 // pred_fallthru
      _
    %1822 = shalt.err (0)
    %s1824 = sshll.u32 %s2, 4
    %s1825 = int_to_ptr.hbm [resolvable:$true] %s1824
    %s1826 = sshll.u32 [#allocation2], 4
    %s1827 = int_to_ptr.vmem [resolvable:$true] %s1826
    %1829 = dma.hbm_to_vmem [thread:$0]  %s1825, 1024, %s1827, [#allocation3]
    %s1830 = sshll.u32 %s206, 4
    %1831 = dma.done [#allocation3], %s1830
    %v1832 = vld [vmem:[#allocation2] sm:$0xf]
    %v1833 = vld [vmem:[#allocation2 + $0x4] sm:$0xf]
    %v1834 = vld [vmem:[#allocation2 + $0x8] sm:$0xf]
    %v1835 = vld [vmem:[#allocation2 + $0xc] sm:$0xf]
    %v1836 = vld [vmem:[#allocation2 + $0x10] sm:$0xf]
    %v1837 = vld [vmem:[#allocation2 + $0x14] sm:$0xf]
    %v1838 = vld [vmem:[#allocation2 + $0x18] sm:$0xf]
    %v1839 = vld [vmem:[#allocation2 + $0x1c] sm:$0xf]
    %v1840 = vld [vmem:[#allocation2 + $0x20] sm:$0xf]
    %v1841 = vld [vmem:[#allocation2 + $0x24] sm:$0xf]
    %v1842 = vld [vmem:[#allocation2 + $0x28] sm:$0xf]
    %v1843 = vld [vmem:[#allocation2 + $0x2c] sm:$0xf]
    %v1844 = vld [vmem:[#allocation2 + $0x30] sm:$0xf]
    %v1845 = vld [vmem:[#allocation2 + $0x34] sm:$0xf]
    %v1846 = vld [vmem:[#allocation2 + $0x38] sm:$0xf]
    %v1847 = vld [vmem:[#allocation2 + $0x3c] sm:$0xf]
    %v1864 = vunpack.c.l.b16 %v1832
    %v1865 = vunpack.c.l.b16 %v1833
    %v1866 = vunpack.c.l.b16 %v1834
    %v1867 = vunpack.c.l.b16 %v1835
    %v1868 = vunpack.c.l.b16 %v1836
    %v1869 = vunpack.c.l.b16 %v1837
    %v1870 = vunpack.c.l.b16 %v1838
    %v1871 = vunpack.c.l.b16 %v1839
    %v1872 = vunpack.c.l.b16 %v1840
    %v1873 = vunpack.c.l.b16 %v1841
    %v1874 = vunpack.c.l.b16 %v1842
    %v1875 = vunpack.c.l.b16 %v1843
    %v1876 = vunpack.c.l.b16 %v1844
    %v1877 = vunpack.c.l.b16 %v1845
    %v1878 = vunpack.c.l.b16 %v1846
    %v1879 = vunpack.c.l.b16 %v1847
    %v1880 = vpack.c.b16 %v1865, %v1864
    %v1881 = vpack.c.b16 %v1867, %v1866
    %v1882 = vpack.c.b16 %v1869, %v1868
    %v1883 = vpack.c.b16 %v1871, %v1870
    %v1884 = vpack.c.b16 %v1873, %v1872
    %v1885 = vpack.c.b16 %v1875, %v1874
    %v1886 = vpack.c.b16 %v1877, %v1876
    %v1887 = vpack.c.b16 %v1879, %v1878
    %1896 = vmatpush.bf16.msra.mxu0 %v1816
    %1897 = vmatpush.bf16.msra.mxu0 %v1815
    %1898 = vmatpush.bf16.msra.mxu0 %v1814
    %1899 = vmatpush.bf16.msra.mxu0 %v1813
    %1900 = vmatpush.bf16.msra.mxu0 %v1812
    %1901 = vmatpush.bf16.msra.mxu0 %v1811
    %1902 = vmatpush.bf16.msra.mxu0 %v1810
    %1903 = vmatpush.bf16.msra.mxu0 %v1809
    %1904 = vmatmul.bf16.gmra.mxu0 %v1880
    %v1905 = vpop.f32.mrf.mxu0
    %v1906 = vadd.f32 0.0, %v1905
    %v1907 = vpop.f32.mrf.mxu0
    %v1908 = vadd.f32 0.0, %v1907
    %1909 = vmatmul.bf16.gmra.mxu0 %v1881
    %v1910 = vpop.f32.mrf.mxu0
    %v1911 = vadd.f32 0.0, %v1910
    %v1912 = vpop.f32.mrf.mxu0
    %v1913 = vadd.f32 0.0, %v1912
    %1914 = vmatmul.bf16.gmra.mxu0 %v1882
    %v1915 = vpop.f32.mrf.mxu0
    %v1916 = vadd.f32 0.0, %v1915
    %v1917 = vpop.f32.mrf.mxu0
    %v1918 = vadd.f32 0.0, %v1917
    %1919 = vmatmul.bf16.gmra.mxu0 %v1883
    %v1920 = vpop.f32.mrf.mxu0
    %v1921 = vadd.f32 0.0, %v1920
    %v1922 = vpop.f32.mrf.mxu0
    %v1923 = vadd.f32 0.0, %v1922
    %1924 = vmatmul.bf16.gmra.mxu0 %v1884
    %v1925 = vpop.f32.mrf.mxu0
    %v1926 = vadd.f32 0.0, %v1925
    %v1927 = vpop.f32.mrf.mxu0
    %v1928 = vadd.f32 0.0, %v1927
    %1929 = vmatmul.bf16.gmra.mxu0 %v1885
    %v1930 = vpop.f32.mrf.mxu0
    %v1931 = vadd.f32 0.0, %v1930
    %v1932 = vpop.f32.mrf.mxu0
    %v1933 = vadd.f32 0.0, %v1932
    %1934 = vmatmul.bf16.gmra.mxu0 %v1886
    %v1935 = vpop.f32.mrf.mxu0
    %v1936 = vadd.f32 0.0, %v1935
    %v1937 = vpop.f32.mrf.mxu0
    %v1938 = vadd.f32 0.0, %v1937
    %1939 = vmatmul.bf16.gmra.mxu0 %v1887
    %v1940 = vpop.f32.mrf.mxu0
    %v1941 = vadd.f32 0.0, %v1940
    %v1942 = vpop.f32.mrf.mxu0
    %v1943 = vadd.f32 0.0, %v1942
    %1944 = vdwg.mxu0
    %v1945 = vsub.f32 %v1906, %v1479
    %v1946 = vsub.f32 %v1908, %v1480
    %v1947 = vsub.f32 %v1911, %v1481
    %v1948 = vsub.f32 %v1913, %v1482
    %v1949 = vsub.f32 %v1916, %v1483
    %v1950 = vsub.f32 %v1918, %v1484
    %v1951 = vsub.f32 %v1921, %v1485
    %v1952 = vsub.f32 %v1923, %v1486
    %v1953 = vsub.f32 %v1926, %v1487
    %v1954 = vsub.f32 %v1928, %v1488
    %v1955 = vsub.f32 %v1931, %v1489
    %v1956 = vsub.f32 %v1933, %v1490
    %v1957 = vsub.f32 %v1936, %v1491
    %v1958 = vsub.f32 %v1938, %v1492
    %v1959 = vsub.f32 %v1941, %v1493
    %v1960 = vsub.f32 %v1943, %v1494
    %1977 = vrot.lane.b32.xlu0 %v1945, 8
    %v1978 = vpop.permute.xlu0 %1977
    %1979 = vrot.lane.b32.xlu0 %v1946, 8
    %v1980 = vpop.permute.xlu0 %1979
    %1981 = vrot.lane.b32.xlu0 %v1947, 8
    %v1982 = vpop.permute.xlu0 %1981
    %1983 = vrot.lane.b32.xlu0 %v1948, 8
    %v1984 = vpop.permute.xlu0 %1983
    %1985 = vrot.lane.b32.xlu0 %v1949, 8
    %v1986 = vpop.permute.xlu0 %1985
    %1987 = vrot.lane.b32.xlu0 %v1950, 8
    %v1988 = vpop.permute.xlu0 %1987
    %1989 = vrot.lane.b32.xlu0 %v1951, 8
    %v1990 = vpop.permute.xlu0 %1989
    %1991 = vrot.lane.b32.xlu0 %v1952, 8
    %v1992 = vpop.permute.xlu0 %1991
    %1993 = vrot.lane.b32.xlu0 %v1953, 8
    %v1994 = vpop.permute.xlu0 %1993
    %1995 = vrot.lane.b32.xlu0 %v1954, 8
    %v1996 = vpop.permute.xlu0 %1995
    %1997 = vrot.lane.b32.xlu0 %v1955, 8
    %v1998 = vpop.permute.xlu0 %1997
    %1999 = vrot.lane.b32.xlu0 %v1956, 8
    %v2000 = vpop.permute.xlu0 %1999
    %2001 = vrot.lane.b32.xlu0 %v1957, 8
    %v2002 = vpop.permute.xlu0 %2001
    %2003 = vrot.lane.b32.xlu0 %v1958, 8
    %v2004 = vpop.permute.xlu0 %2003
    %2005 = vrot.lane.b32.xlu0 %v1959, 8
    %v2006 = vpop.permute.xlu0 %2005
    %2007 = vrot.lane.b32.xlu0 %v1960, 8
    %v2008 = vpop.permute.xlu0 %2007
    %vm2025 = vcmask 72768
    %2026 = vst.msk [vmem:[#allocation4] sm:$0xff] %vm2025, %v1978
    %2027 = vst.msk [vmem:[#allocation4 + $0x8] sm:$0xff] %vm2025, %v1980
    %2028 = vst.msk [vmem:[#allocation4 + $0x10] sm:$0xff] %vm2025, %v1982
    %2029 = vst.msk [vmem:[#allocation4 + $0x18] sm:$0xff] %vm2025, %v1984
    %2030 = vst.msk [vmem:[#allocation4 + $0x20] sm:$0xff] %vm2025, %v1986
    %2031 = vst.msk [vmem:[#allocation4 + $0x28] sm:$0xff] %vm2025, %v1988
    %2032 = vst.msk [vmem:[#allocation4 + $0x30] sm:$0xff] %vm2025, %v1990
    %2033 = vst.msk [vmem:[#allocation4 + $0x38] sm:$0xff] %vm2025, %v1992
    %2034 = vst.msk [vmem:[#allocation4 + $0x40] sm:$0xff] %vm2025, %v1994
    %2035 = vst.msk [vmem:[#allocation4 + $0x48] sm:$0xff] %vm2025, %v1996
    %2036 = vst.msk [vmem:[#allocation4 + $0x50] sm:$0xff] %vm2025, %v1998
    %2037 = vst.msk [vmem:[#allocation4 + $0x58] sm:$0xff] %vm2025, %v2000
    %2038 = vst.msk [vmem:[#allocation4 + $0x60] sm:$0xff] %vm2025, %v2002
    %2039 = vst.msk [vmem:[#allocation4 + $0x68] sm:$0xff] %vm2025, %v2004
    %2040 = vst.msk [vmem:[#allocation4 + $0x70] sm:$0xff] %vm2025, %v2006
    %2041 = vst.msk [vmem:[#allocation4 + $0x78] sm:$0xff] %vm2025, %v2008
    %v2042 = vld [vmem:[#allocation4] sm:$0xff]
    %v2043 = vld [vmem:[#allocation4 + $0x8] sm:$0xff]
    %v2044 = vld [vmem:[#allocation4 + $0x10] sm:$0xff]
    %v2045 = vld [vmem:[#allocation4 + $0x18] sm:$0xff]
    %v2046 = vld [vmem:[#allocation4 + $0x20] sm:$0xff]
    %v2047 = vld [vmem:[#allocation4 + $0x28] sm:$0xff]
    %v2048 = vld [vmem:[#allocation4 + $0x30] sm:$0xff]
    %v2049 = vld [vmem:[#allocation4 + $0x38] sm:$0xff]
    %v2050 = vld [vmem:[#allocation4 + $0x40] sm:$0xff]
    %v2051 = vld [vmem:[#allocation4 + $0x48] sm:$0xff]
    %v2052 = vld [vmem:[#allocation4 + $0x50] sm:$0xff]
    %v2053 = vld [vmem:[#allocation4 + $0x58] sm:$0xff]
    %v2054 = vld [vmem:[#allocation4 + $0x60] sm:$0xff]
    %v2055 = vld [vmem:[#allocation4 + $0x68] sm:$0xff]
    %v2056 = vld [vmem:[#allocation4 + $0x70] sm:$0xff]
    %v2057 = vld [vmem:[#allocation4 + $0x78] sm:$0xff]
    %v2058 = vpack.c.bf16 %v2043, %v2042
    %v2059 = vpack.c.bf16 %v2045, %v2044
    %v2060 = vpack.c.bf16 %v2047, %v2046
    %v2061 = vpack.c.bf16 %v2049, %v2048
    %v2062 = vpack.c.bf16 %v2051, %v2050
    %v2063 = vpack.c.bf16 %v2053, %v2052
    %v2064 = vpack.c.bf16 %v2055, %v2054
    %v2065 = vpack.c.bf16 %v2057, %v2056
    %v2066 = vld [vmem:[#allocation6] sm:$0xf]
    %v2067 = vld [vmem:[#allocation6 + $0x4] sm:$0xf]
    %v2068 = vld [vmem:[#allocation9] sm:$0x1]
    %v2070 = vperm.slane %v2068, 0
    %v2074 = vunpack.c.l.b16 %v2066
    %v2075 = vunpack.c.l.b16 %v2067
    %v2076 = vpack.c.b16 %v2075, %v2074
    %v2079 = vsel %vm134, %v2058, 0
    %v2082 = vsel %vm134, %v2059, 0
    %v2085 = vsel %vm134, %v2060, 0
    %v2088 = vsel %vm134, %v2061, 0
    %v2091 = vsel %vm134, %v2062, 0
    %v2094 = vsel %vm134, %v2063, 0
    %v2097 = vsel %vm134, %v2064, 0
    %v2100 = vsel %vm134, %v2065, 0
    %2102 = vmatpush.bf16.msra.mxu0 0
    %2103 = vmatpush.bf16.msra.mxu0 0
    %2104 = vmatpush.bf16.msra.mxu0 0
    %2105 = vmatpush.bf16.msra.mxu0 0
    %2106 = vmatpush.bf16.msra.mxu0 0
    %2107 = vmatpush.bf16.msra.mxu0 0
    %2108 = vmatpush.bf16.msra.mxu0 0
    %2109 = vmatpush.bf16.msra.mxu0 %v2076
    %2110 = vmatmul.bf16.gmra.mxu0 %v2079
    %v2111 = vpop.f32.mrf.mxu0
    %v2112 = vadd.f32 %v2070, %v2111
    %v2113 = vpop.f32.mrf.mxu0
    %v2114 = vadd.f32 %v2070, %v2113
    %2115 = vmatmul.bf16.gmra.mxu0 %v2082
    %v2116 = vpop.f32.mrf.mxu0
    %v2117 = vadd.f32 %v2070, %v2116
    %v2118 = vpop.f32.mrf.mxu0
    %v2119 = vadd.f32 %v2070, %v2118
    %2120 = vmatmul.bf16.gmra.mxu0 %v2085
    %v2121 = vpop.f32.mrf.mxu0
    %v2122 = vadd.f32 %v2070, %v2121
    %v2123 = vpop.f32.mrf.mxu0
    %v2124 = vadd.f32 %v2070, %v2123
    %2125 = vmatmul.bf16.gmra.mxu0 %v2088
    %v2126 = vpop.f32.mrf.mxu0
    %v2127 = vadd.f32 %v2070, %v2126
    %v2128 = vpop.f32.mrf.mxu0
    %v2129 = vadd.f32 %v2070, %v2128
    %2130 = vmatmul.bf16.gmra.mxu0 %v2091
    %v2131 = vpop.f32.mrf.mxu0
    %v2132 = vadd.f32 %v2070, %v2131
    %v2133 = vpop.f32.mrf.mxu0
    %v2134 = vadd.f32 %v2070, %v2133
    %2135 = vmatmul.bf16.gmra.mxu0 %v2094
    %v2136 = vpop.f32.mrf.mxu0
    %v2137 = vadd.f32 %v2070, %v2136
    %v2138 = vpop.f32.mrf.mxu0
    %v2139 = vadd.f32 %v2070, %v2138
    %2140 = vmatmul.bf16.gmra.mxu0 %v2097
    %v2141 = vpop.f32.mrf.mxu0
    %v2142 = vadd.f32 %v2070, %v2141
    %v2143 = vpop.f32.mrf.mxu0
    %v2144 = vadd.f32 %v2070, %v2143
    %2145 = vmatmul.bf16.gmra.mxu0 %v2100
    %v2146 = vpop.f32.mrf.mxu0
    %v2147 = vadd.f32 %v2070, %v2146
    %v2148 = vpop.f32.mrf.mxu0
    %v2149 = vadd.f32 %v2070, %v2148
    %2150 = vdwg.mxu0
    %v2151 = vmax.f32 %v2112, 0.0
    %v2152 = vmax.f32 %v2114, 0.0
    %v2153 = vmax.f32 %v2117, 0.0
    %v2154 = vmax.f32 %v2119, 0.0
    %v2155 = vmax.f32 %v2122, 0.0
    %v2156 = vmax.f32 %v2124, 0.0
    %v2157 = vmax.f32 %v2127, 0.0
    %v2158 = vmax.f32 %v2129, 0.0
    %v2159 = vmax.f32 %v2132, 0.0
    %v2160 = vmax.f32 %v2134, 0.0
    %v2161 = vmax.f32 %v2137, 0.0
    %v2162 = vmax.f32 %v2139, 0.0
    %v2163 = vmax.f32 %v2142, 0.0
    %v2164 = vmax.f32 %v2144, 0.0
    %v2165 = vmax.f32 %v2147, 0.0
    %v2166 = vmax.f32 %v2149, 0.0
    %v2167 = vpack.c.bf16 %v2151, %v2151
    %v2168 = vpack.c.bf16 %v2152, %v2152
    %v2169 = vpack.c.bf16 %v2153, %v2153
    %v2170 = vpack.c.bf16 %v2154, %v2154
    %v2171 = vpack.c.bf16 %v2155, %v2155
    %v2172 = vpack.c.bf16 %v2156, %v2156
    %v2173 = vpack.c.bf16 %v2157, %v2157
    %v2174 = vpack.c.bf16 %v2158, %v2158
    %v2175 = vpack.c.bf16 %v2159, %v2159
    %v2176 = vpack.c.bf16 %v2160, %v2160
    %v2177 = vpack.c.bf16 %v2161, %v2161
    %v2178 = vpack.c.bf16 %v2162, %v2162
    %v2179 = vpack.c.bf16 %v2163, %v2163
    %v2180 = vpack.c.bf16 %v2164, %v2164
    %v2181 = vpack.c.bf16 %v2165, %v2165
    %v2182 = vpack.c.bf16 %v2166, %v2166
    %2183 = vst [vmem:[#allocation5] sm:$0xf] %v2167
    %2184 = vst [vmem:[#allocation5 + $0x24] sm:$0xf] %v2168
    %2185 = vst [vmem:[#allocation5 + $0x48] sm:$0xf] %v2169
    %2186 = vst [vmem:[#allocation5 + $0x6c] sm:$0xf] %v2170
    %2187 = vst [vmem:[#allocation5 + $0x90] sm:$0xf] %v2171
    %2188 = vst [vmem:[#allocation5 + $0xb4] sm:$0xf] %v2172
    %2189 = vst [vmem:[#allocation5 + $0xd8] sm:$0xf] %v2173
    %2190 = vst [vmem:[#allocation5 + $0xfc] sm:$0xf] %v2174
    %2191 = vst [vmem:[#allocation5 + $0x120] sm:$0xf] %v2175
    %2192 = vst [vmem:[#allocation5 + $0x144] sm:$0xf] %v2176
    %2193 = vst [vmem:[#allocation5 + $0x168] sm:$0xf] %v2177
    %2194 = vst [vmem:[#allocation5 + $0x18c] sm:$0xf] %v2178
    %2195 = vst [vmem:[#allocation5 + $0x1b0] sm:$0xf] %v2179
    %2196 = vst [vmem:[#allocation5 + $0x1d4] sm:$0xf] %v2180
    %2197 = vst [vmem:[#allocation5 + $0x1f8] sm:$0xf] %v2181
    %2198 = vst [vmem:[#allocation5 + $0x21c] sm:$0xf] %v2182
    %v2199 = vld [vmem:[#allocation5] sm:$0xf]
    %v2200 = vld [vmem:[#allocation5 + $0x24] sm:$0xf]
    %v2201 = vld [vmem:[#allocation5 + $0x48] sm:$0xf]
    %v2202 = vld [vmem:[#allocation5 + $0x6c] sm:$0xf]
    %v2203 = vld [vmem:[#allocation5 + $0x90] sm:$0xf]
    %v2204 = vld [vmem:[#allocation5 + $0xb4] sm:$0xf]
    %v2205 = vld [vmem:[#allocation5 + $0xd8] sm:$0xf]
    %v2206 = vld [vmem:[#allocation5 + $0xfc] sm:$0xf]
    %v2207 = vld [vmem:[#allocation5 + $0x120] sm:$0xf]
    %v2208 = vld [vmem:[#allocation5 + $0x144] sm:$0xf]
    %v2209 = vld [vmem:[#allocation5 + $0x168] sm:$0xf]
    %v2210 = vld [vmem:[#allocation5 + $0x18c] sm:$0xf]
    %v2211 = vld [vmem:[#allocation5 + $0x1b0] sm:$0xf]
    %v2212 = vld [vmem:[#allocation5 + $0x1d4] sm:$0xf]
    %v2213 = vld [vmem:[#allocation5 + $0x1f8] sm:$0xf]
    %v2214 = vld [vmem:[#allocation5 + $0x21c] sm:$0xf]
    // Predicated region
    $region94: #{tpu_custom_call.1} parent=1 // pred_check
      _
    $region95: #{tpu_custom_call.1} parent=1 // pred_check_branch
      %2216 = sbr.rel target = $region97
    $region96: #{tpu_custom_call.1} parent=1 // pred_region
      %2217 = sst [smem:[#allocation21]] [#allocation38]
      %2218 = sst [smem:[#allocation22]] [#allocation37]
    $region97: #{tpu_custom_call.1} parent=1 // pred_fallthru
      _
    %2220 = shalt.err (0)
    %s2222 = sshll.u32 %s1, 4
    %s2223 = int_to_ptr.hbm [resolvable:$true] %s2222
    %s2224 = sshll.u32 [#allocation2], 4
    %s2225 = int_to_ptr.vmem [resolvable:$true] %s2224
    %2227 = dma.hbm_to_vmem [thread:$0]  %s2223, 1024, %s2225, [#allocation3]
    %s2228 = sshll.u32 %s206, 4
    %2229 = dma.done [#allocation3], %s2228
    %v2230 = vld [vmem:[#allocation2] sm:$0xf]
    %v2231 = vld [vmem:[#allocation2 + $0x4] sm:$0xf]
    %v2232 = vld [vmem:[#allocation2 + $0x8] sm:$0xf]
    %v2233 = vld [vmem:[#allocation2 + $0xc] sm:$0xf]
    %v2234 = vld [vmem:[#allocation2 + $0x10] sm:$0xf]
    %v2235 = vld [vmem:[#allocation2 + $0x14] sm:$0xf]
    %v2236 = vld [vmem:[#allocation2 + $0x18] sm:$0xf]
    %v2237 = vld [vmem:[#allocation2 + $0x1c] sm:$0xf]
    %v2238 = vld [vmem:[#allocation2 + $0x20] sm:$0xf]
    %v2239 = vld [vmem:[#allocation2 + $0x24] sm:$0xf]
    %v2240 = vld [vmem:[#allocation2 + $0x28] sm:$0xf]
    %v2241 = vld [vmem:[#allocation2 + $0x2c] sm:$0xf]
    %v2242 = vld [vmem:[#allocation2 + $0x30] sm:$0xf]
    %v2243 = vld [vmem:[#allocation2 + $0x34] sm:$0xf]
    %v2244 = vld [vmem:[#allocation2 + $0x38] sm:$0xf]
    %v2245 = vld [vmem:[#allocation2 + $0x3c] sm:$0xf]
    %v2262 = vunpack.c.l.b16 %v2230
    %v2263 = vunpack.c.l.b16 %v2231
    %v2264 = vunpack.c.l.b16 %v2232
    %v2265 = vunpack.c.l.b16 %v2233
    %v2266 = vunpack.c.l.b16 %v2234
    %v2267 = vunpack.c.l.b16 %v2235
    %v2268 = vunpack.c.l.b16 %v2236
    %v2269 = vunpack.c.l.b16 %v2237
    %v2270 = vunpack.c.l.b16 %v2238
    %v2271 = vunpack.c.l.b16 %v2239
    %v2272 = vunpack.c.l.b16 %v2240
    %v2273 = vunpack.c.l.b16 %v2241
    %v2274 = vunpack.c.l.b16 %v2242
    %v2275 = vunpack.c.l.b16 %v2243
    %v2276 = vunpack.c.l.b16 %v2244
    %v2277 = vunpack.c.l.b16 %v2245
    %v2278 = vpack.c.b16 %v2263, %v2262
    %v2279 = vpack.c.b16 %v2265, %v2264
    %v2280 = vpack.c.b16 %v2267, %v2266
    %v2281 = vpack.c.b16 %v2269, %v2268
    %v2282 = vpack.c.b16 %v2271, %v2270
    %v2283 = vpack.c.b16 %v2273, %v2272
    %v2284 = vpack.c.b16 %v2275, %v2274
    %v2285 = vpack.c.b16 %v2277, %v2276
    %v2310 = vunpack.c.l.b16 %v2199
    %v2311 = vunpack.c.l.b16 %v2200
    %v2312 = vunpack.c.l.b16 %v2201
    %v2313 = vunpack.c.l.b16 %v2202
    %v2314 = vunpack.c.l.b16 %v2203
    %v2315 = vunpack.c.l.b16 %v2204
    %v2316 = vunpack.c.l.b16 %v2205
    %v2317 = vunpack.c.l.b16 %v2206
    %v2318 = vunpack.c.l.b16 %v2207
    %v2319 = vunpack.c.l.b16 %v2208
    %v2320 = vunpack.c.l.b16 %v2209
    %v2321 = vunpack.c.l.b16 %v2210
    %v2322 = vunpack.c.l.b16 %v2211
    %v2323 = vunpack.c.l.b16 %v2212
    %v2324 = vunpack.c.l.b16 %v2213
    %v2325 = vunpack.c.l.b16 %v2214
    %v2326 = vpack.c.b16 %v2311, %v2310
    %v2327 = vpack.c.b16 %v2313, %v2312
    %v2328 = vpack.c.b16 %v2315, %v2314
    %v2329 = vpack.c.b16 %v2317, %v2316
    %v2330 = vpack.c.b16 %v2319, %v2318
    %v2331 = vpack.c.b16 %v2321, %v2320
    %v2332 = vpack.c.b16 %v2323, %v2322
    %v2333 = vpack.c.b16 %v2325, %v2324
    %2342 = vmatpush.bf16.msra.mxu0 %v2333
    %2343 = vmatpush.bf16.msra.mxu0 %v2332
    %2344 = vmatpush.bf16.msra.mxu0 %v2331
    %2345 = vmatpush.bf16.msra.mxu0 %v2330
    %2346 = vmatpush.bf16.msra.mxu0 %v2329
    %2347 = vmatpush.bf16.msra.mxu0 %v2328
    %2348 = vmatpush.bf16.msra.mxu0 %v2327
    %2349 = vmatpush.bf16.msra.mxu0 %v2326
    %2350 = vmatmul.bf16.gmra.mxu0 %v2278
    %v2351 = vpop.f32.mrf.mxu0
    %v2352 = vadd.f32 0.0, %v2351
    %v2353 = vpop.f32.mrf.mxu0
    %v2354 = vadd.f32 0.0, %v2353
    %2355 = vmatmul.bf16.gmra.mxu0 %v2279
    %v2356 = vpop.f32.mrf.mxu0
    %v2357 = vadd.f32 0.0, %v2356
    %v2358 = vpop.f32.mrf.mxu0
    %v2359 = vadd.f32 0.0, %v2358
    %2360 = vmatmul.bf16.gmra.mxu0 %v2280
    %v2361 = vpop.f32.mrf.mxu0
    %v2362 = vadd.f32 0.0, %v2361
    %v2363 = vpop.f32.mrf.mxu0
    %v2364 = vadd.f32 0.0, %v2363
    %2365 = vmatmul.bf16.gmra.mxu0 %v2281
    %v2366 = vpop.f32.mrf.mxu0
    %v2367 = vadd.f32 0.0, %v2366
    %v2368 = vpop.f32.mrf.mxu0
    %v2369 = vadd.f32 0.0, %v2368
    %2370 = vmatmul.bf16.gmra.mxu0 %v2282
    %v2371 = vpop.f32.mrf.mxu0
    %v2372 = vadd.f32 0.0, %v2371
    %v2373 = vpop.f32.mrf.mxu0
    %v2374 = vadd.f32 0.0, %v2373
    %2375 = vmatmul.bf16.gmra.mxu0 %v2283
    %v2376 = vpop.f32.mrf.mxu0
    %v2377 = vadd.f32 0.0, %v2376
    %v2378 = vpop.f32.mrf.mxu0
    %v2379 = vadd.f32 0.0, %v2378
    %2380 = vmatmul.bf16.gmra.mxu0 %v2284
    %v2381 = vpop.f32.mrf.mxu0
    %v2382 = vadd.f32 0.0, %v2381
    %v2383 = vpop.f32.mrf.mxu0
    %v2384 = vadd.f32 0.0, %v2383
    %2385 = vmatmul.bf16.gmra.mxu0 %v2285
    %v2386 = vpop.f32.mrf.mxu0
    %v2387 = vadd.f32 0.0, %v2386
    %v2388 = vpop.f32.mrf.mxu0
    %v2389 = vadd.f32 0.0, %v2388
    %2390 = vdwg.mxu0
    %v2391 = vmul.f32 %v2352, 0.5
    %v2392 = vmul.f32 %v2354, 0.5
    %v2393 = vmul.f32 %v2357, 0.5
    %v2394 = vmul.f32 %v2359, 0.5
    %v2395 = vmul.f32 %v2362, 0.5
    %v2396 = vmul.f32 %v2364, 0.5
    %v2397 = vmul.f32 %v2367, 0.5
    %v2398 = vmul.f32 %v2369, 0.5
    %v2399 = vmul.f32 %v2372, 0.5
    %v2400 = vmul.f32 %v2374, 0.5
    %v2401 = vmul.f32 %v2377, 0.5
    %v2402 = vmul.f32 %v2379, 0.5
    %v2403 = vmul.f32 %v2382, 0.5
    %v2404 = vmul.f32 %v2384, 0.5
    %v2405 = vmul.f32 %v2387, 0.5
    %v2406 = vmul.f32 %v2389, 0.5
    %v2407 = vpack.c.bf16 %v2391, %v2391
    %v2408 = vpack.c.bf16 %v2392, %v2392
    %v2409 = vpack.c.bf16 %v2393, %v2393
    %v2410 = vpack.c.bf16 %v2394, %v2394
    %v2411 = vpack.c.bf16 %v2395, %v2395
    %v2412 = vpack.c.bf16 %v2396, %v2396
    %v2413 = vpack.c.bf16 %v2397, %v2397
    %v2414 = vpack.c.bf16 %v2398, %v2398
    %v2415 = vpack.c.bf16 %v2399, %v2399
    %v2416 = vpack.c.bf16 %v2400, %v2400
    %v2417 = vpack.c.bf16 %v2401, %v2401
    %v2418 = vpack.c.bf16 %v2402, %v2402
    %v2419 = vpack.c.bf16 %v2403, %v2403
    %v2420 = vpack.c.bf16 %v2404, %v2404
    %v2421 = vpack.c.bf16 %v2405, %v2405
    %v2422 = vpack.c.bf16 %v2406, %v2406
    %2423 = vst [vmem:[#allocation5 + $0x4] sm:$0xf] %v2407
    %2424 = vst [vmem:[#allocation5 + $0x28] sm:$0xf] %v2408
    %2425 = vst [vmem:[#allocation5 + $0x4c] sm:$0xf] %v2409
    %2426 = vst [vmem:[#allocation5 + $0x70] sm:$0xf] %v2410
    %2427 = vst [vmem:[#allocation5 + $0x94] sm:$0xf] %v2411
    %2428 = vst [vmem:[#allocation5 + $0xb8] sm:$0xf] %v2412
    %2429 = vst [vmem:[#allocation5 + $0xdc] sm:$0xf] %v2413
    %2430 = vst [vmem:[#allocation5 + $0x100] sm:$0xf] %v2414
    %2431 = vst [vmem:[#allocation5 + $0x124] sm:$0xf] %v2415
    %2432 = vst [vmem:[#allocation5 + $0x148] sm:$0xf] %v2416
    %2433 = vst [vmem:[#allocation5 + $0x16c] sm:$0xf] %v2417
    %2434 = vst [vmem:[#allocation5 + $0x190] sm:$0xf] %v2418
    %2435 = vst [vmem:[#allocation5 + $0x1b4] sm:$0xf] %v2419
    %2436 = vst [vmem:[#allocation5 + $0x1d8] sm:$0xf] %v2420
    %2437 = vst [vmem:[#allocation5 + $0x1fc] sm:$0xf] %v2421
    %2438 = vst [vmem:[#allocation5 + $0x220] sm:$0xf] %v2422
    %v2439 = vld [vmem:[#allocation5 + $0x4] sm:$0xf]
    %v2440 = vld [vmem:[#allocation5 + $0x28] sm:$0xf]
    %v2441 = vld [vmem:[#allocation5 + $0x4c] sm:$0xf]
    %v2442 = vld [vmem:[#allocation5 + $0x70] sm:$0xf]
    %v2443 = vld [vmem:[#allocation5 + $0x94] sm:$0xf]
    %v2444 = vld [vmem:[#allocation5 + $0xb8] sm:$0xf]
    %v2445 = vld [vmem:[#allocation5 + $0xdc] sm:$0xf]
    %v2446 = vld [vmem:[#allocation5 + $0x100] sm:$0xf]
    %v2447 = vld [vmem:[#allocation5 + $0x124] sm:$0xf]
    %v2448 = vld [vmem:[#allocation5 + $0x148] sm:$0xf]
    %v2449 = vld [vmem:[#allocation5 + $0x16c] sm:$0xf]
    %v2450 = vld [vmem:[#allocation5 + $0x190] sm:$0xf]
    %v2451 = vld [vmem:[#allocation5 + $0x1b4] sm:$0xf]
    %v2452 = vld [vmem:[#allocation5 + $0x1d8] sm:$0xf]
    %v2453 = vld [vmem:[#allocation5 + $0x1fc] sm:$0xf]
    %v2454 = vld [vmem:[#allocation5 + $0x220] sm:$0xf]
    %v2455 = vld [vmem:[#allocation5] sm:$0xf]
    %v2456 = vld [vmem:[#allocation5 + $0x24] sm:$0xf]
    %v2457 = vld [vmem:[#allocation5 + $0x48] sm:$0xf]
    %v2458 = vld [vmem:[#allocation5 + $0x6c] sm:$0xf]
    %v2459 = vld [vmem:[#allocation5 + $0x90] sm:$0xf]
    %v2460 = vld [vmem:[#allocation5 + $0xb4] sm:$0xf]
    %v2461 = vld [vmem:[#allocation5 + $0xd8] sm:$0xf]
    %v2462 = vld [vmem:[#allocation5 + $0xfc] sm:$0xf]
    %v2463 = vld [vmem:[#allocation5 + $0x120] sm:$0xf]
    %v2464 = vld [vmem:[#allocation5 + $0x144] sm:$0xf]
    %v2465 = vld [vmem:[#allocation5 + $0x168] sm:$0xf]
    %v2466 = vld [vmem:[#allocation5 + $0x18c] sm:$0xf]
    %v2467 = vld [vmem:[#allocation5 + $0x1b0] sm:$0xf]
    %v2468 = vld [vmem:[#allocation5 + $0x1d4] sm:$0xf]
    %v2469 = vld [vmem:[#allocation5 + $0x1f8] sm:$0xf]
    %v2470 = vld [vmem:[#allocation5 + $0x21c] sm:$0xf]
    // Predicated region
    $region98: #{tpu_custom_call.1} parent=1 // pred_check
      _
    $region99: #{tpu_custom_call.1} parent=1 // pred_check_branch
      %2472 = sbr.rel target = $region101
    $region100: #{tpu_custom_call.1} parent=1 // pred_region
      %2473 = sst [smem:[#allocation21]] [#allocation40]
      %2474 = sst [smem:[#allocation22]] [#allocation39]
    $region101: #{tpu_custom_call.1} parent=1 // pred_fallthru
      _
    %2476 = shalt.err (0)
    %s2478 = sshll.u32 %s1, 4
    %s2479 = int_to_ptr.hbm [resolvable:$true] %s2478
    %s2480 = sshll.u32 [#allocation2], 4
    %s2481 = int_to_ptr.vmem [resolvable:$true] %s2480
    %2483 = dma.hbm_to_vmem [thread:$0]  %s2479, 1024, %s2481, [#allocation3]
    %s2484 = sshll.u32 %s206, 4
    %2485 = dma.done [#allocation3], %s2484
    %v2486 = vld [vmem:[#allocation2] sm:$0xf]
    %v2487 = vld [vmem:[#allocation2 + $0x4] sm:$0xf]
    %v2488 = vld [vmem:[#allocation2 + $0x8] sm:$0xf]
    %v2489 = vld [vmem:[#allocation2 + $0xc] sm:$0xf]
    %v2490 = vld [vmem:[#allocation2 + $0x10] sm:$0xf]
    %v2491 = vld [vmem:[#allocation2 + $0x14] sm:$0xf]
    %v2492 = vld [vmem:[#allocation2 + $0x18] sm:$0xf]
    %v2493 = vld [vmem:[#allocation2 + $0x1c] sm:$0xf]
    %v2494 = vld [vmem:[#allocation2 + $0x20] sm:$0xf]
    %v2495 = vld [vmem:[#allocation2 + $0x24] sm:$0xf]
    %v2496 = vld [vmem:[#allocation2 + $0x28] sm:$0xf]
    %v2497 = vld [vmem:[#allocation2 + $0x2c] sm:$0xf]
    %v2498 = vld [vmem:[#allocation2 + $0x30] sm:$0xf]
    %v2499 = vld [vmem:[#allocation2 + $0x34] sm:$0xf]
    %v2500 = vld [vmem:[#allocation2 + $0x38] sm:$0xf]
    %v2501 = vld [vmem:[#allocation2 + $0x3c] sm:$0xf]
    %v2518 = vunpack.c.l.b16 %v2486
    %v2519 = vunpack.c.l.b16 %v2487
    %v2520 = vunpack.c.l.b16 %v2488
    %v2521 = vunpack.c.l.b16 %v2489
    %v2522 = vunpack.c.l.b16 %v2490
    %v2523 = vunpack.c.l.b16 %v2491
    %v2524 = vunpack.c.l.b16 %v2492
    %v2525 = vunpack.c.l.b16 %v2493
    %v2526 = vunpack.c.l.b16 %v2494
    %v2527 = vunpack.c.l.b16 %v2495
    %v2528 = vunpack.c.l.b16 %v2496
    %v2529 = vunpack.c.l.b16 %v2497
    %v2530 = vunpack.c.l.b16 %v2498
    %v2531 = vunpack.c.l.b16 %v2499
    %v2532 = vunpack.c.l.b16 %v2500
    %v2533 = vunpack.c.l.b16 %v2501
    %v2534 = vpack.c.b16 %v2519, %v2518
    %v2535 = vpack.c.b16 %v2521, %v2520
    %v2536 = vpack.c.b16 %v2523, %v2522
    %v2537 = vpack.c.b16 %v2525, %v2524
    %v2538 = vpack.c.b16 %v2527, %v2526
    %v2539 = vpack.c.b16 %v2529, %v2528
    %v2540 = vpack.c.b16 %v2531, %v2530
    %v2541 = vpack.c.b16 %v2533, %v2532
    %v2566 = vunpack.c.l.b16 %v2439
    %v2567 = vunpack.c.l.b16 %v2440
    %v2568 = vunpack.c.l.b16 %v2441
    %v2569 = vunpack.c.l.b16 %v2442
    %v2570 = vunpack.c.l.b16 %v2443
    %v2571 = vunpack.c.l.b16 %v2444
    %v2572 = vunpack.c.l.b16 %v2445
    %v2573 = vunpack.c.l.b16 %v2446
    %v2574 = vunpack.c.l.b16 %v2447
    %v2575 = vunpack.c.l.b16 %v2448
    %v2576 = vunpack.c.l.b16 %v2449
    %v2577 = vunpack.c.l.b16 %v2450
    %v2578 = vunpack.c.l.b16 %v2451
    %v2579 = vunpack.c.l.b16 %v2452
    %v2580 = vunpack.c.l.b16 %v2453
    %v2581 = vunpack.c.l.b16 %v2454
    %v2582 = vpack.c.b16 %v2567, %v2566
    %v2583 = vpack.c.b16 %v2569, %v2568
    %v2584 = vpack.c.b16 %v2571, %v2570
    %v2585 = vpack.c.b16 %v2573, %v2572
    %v2586 = vpack.c.b16 %v2575, %v2574
    %v2587 = vpack.c.b16 %v2577, %v2576
    %v2588 = vpack.c.b16 %v2579, %v2578
    %v2589 = vpack.c.b16 %v2581, %v2580
    %2598 = vmatpush.bf16.msra.mxu0 %v2589
    %2599 = vmatpush.bf16.msra.mxu0 %v2588
    %2600 = vmatpush.bf16.msra.mxu0 %v2587
    %2601 = vmatpush.bf16.msra.mxu0 %v2586
    %2602 = vmatpush.bf16.msra.mxu0 %v2585
    %2603 = vmatpush.bf16.msra.mxu0 %v2584
    %2604 = vmatpush.bf16.msra.mxu0 %v2583
    %2605 = vmatpush.bf16.msra.mxu0 %v2582
    %2606 = vmatmul.bf16.gmra.mxu0 %v2534
    %v2607 = vpop.f32.mrf.mxu0
    %v2608 = vadd.f32 0.0, %v2607
    %v2609 = vpop.f32.mrf.mxu0
    %v2610 = vadd.f32 0.0, %v2609
    %2611 = vmatmul.bf16.gmra.mxu0 %v2535
    %v2612 = vpop.f32.mrf.mxu0
    %v2613 = vadd.f32 0.0, %v2612
    %v2614 = vpop.f32.mrf.mxu0
    %v2615 = vadd.f32 0.0, %v2614
    %2616 = vmatmul.bf16.gmra.mxu0 %v2536
    %v2617 = vpop.f32.mrf.mxu0
    %v2618 = vadd.f32 0.0, %v2617
    %v2619 = vpop.f32.mrf.mxu0
    %v2620 = vadd.f32 0.0, %v2619
    %2621 = vmatmul.bf16.gmra.mxu0 %v2537
    %v2622 = vpop.f32.mrf.mxu0
    %v2623 = vadd.f32 0.0, %v2622
    %v2624 = vpop.f32.mrf.mxu0
    %v2625 = vadd.f32 0.0, %v2624
    %2626 = vmatmul.bf16.gmra.mxu0 %v2538
    %v2627 = vpop.f32.mrf.mxu0
    %v2628 = vadd.f32 0.0, %v2627
    %v2629 = vpop.f32.mrf.mxu0
    %v2630 = vadd.f32 0.0, %v2629
    %2631 = vmatmul.bf16.gmra.mxu0 %v2539
    %v2632 = vpop.f32.mrf.mxu0
    %v2633 = vadd.f32 0.0, %v2632
    %v2634 = vpop.f32.mrf.mxu0
    %v2635 = vadd.f32 0.0, %v2634
    %2636 = vmatmul.bf16.gmra.mxu0 %v2540
    %v2637 = vpop.f32.mrf.mxu0
    %v2638 = vadd.f32 0.0, %v2637
    %v2639 = vpop.f32.mrf.mxu0
    %v2640 = vadd.f32 0.0, %v2639
    %2641 = vmatmul.bf16.gmra.mxu0 %v2541
    %v2642 = vpop.f32.mrf.mxu0
    %v2643 = vadd.f32 0.0, %v2642
    %v2644 = vpop.f32.mrf.mxu0
    %v2645 = vadd.f32 0.0, %v2644
    %2646 = vdwg.mxu0
    %v2647 = vunpack.c.l.bf16 %v2455
    %v2648 = vunpack.c.l.bf16 %v2456
    %v2649 = vunpack.c.l.bf16 %v2457
    %v2650 = vunpack.c.l.bf16 %v2458
    %v2651 = vunpack.c.l.bf16 %v2459
    %v2652 = vunpack.c.l.bf16 %v2460
    %v2653 = vunpack.c.l.bf16 %v2461
    %v2654 = vunpack.c.l.bf16 %v2462
    %v2655 = vunpack.c.l.bf16 %v2463
    %v2656 = vunpack.c.l.bf16 %v2464
    %v2657 = vunpack.c.l.bf16 %v2465
    %v2658 = vunpack.c.l.bf16 %v2466
    %v2659 = vunpack.c.l.bf16 %v2467
    %v2660 = vunpack.c.l.bf16 %v2468
    %v2661 = vunpack.c.l.bf16 %v2469
    %v2662 = vunpack.c.l.bf16 %v2470
    %v2663 = vsub.f32 %v2608, %v2647
    %v2664 = vsub.f32 %v2610, %v2648
    %v2665 = vsub.f32 %v2613, %v2649
    %v2666 = vsub.f32 %v2615, %v2650
    %v2667 = vsub.f32 %v2618, %v2651
    %v2668 = vsub.f32 %v2620, %v2652
    %v2669 = vsub.f32 %v2623, %v2653
    %v2670 = vsub.f32 %v2625, %v2654
    %v2671 = vsub.f32 %v2628, %v2655
    %v2672 = vsub.f32 %v2630, %v2656
    %v2673 = vsub.f32 %v2633, %v2657
    %v2674 = vsub.f32 %v2635, %v2658
    %v2675 = vsub.f32 %v2638, %v2659
    %v2676 = vsub.f32 %v2640, %v2660
    %v2677 = vsub.f32 %v2643, %v2661
    %v2678 = vsub.f32 %v2645, %v2662
    %v2679 = vpack.c.bf16 %v2663, %v2663
    %v2680 = vpack.c.bf16 %v2664, %v2664
    %v2681 = vpack.c.bf16 %v2665, %v2665
    %v2682 = vpack.c.bf16 %v2666, %v2666
    %v2683 = vpack.c.bf16 %v2667, %v2667
    %v2684 = vpack.c.bf16 %v2668, %v2668
    %v2685 = vpack.c.bf16 %v2669, %v2669
    %v2686 = vpack.c.bf16 %v2670, %v2670
    %v2687 = vpack.c.bf16 %v2671, %v2671
    %v2688 = vpack.c.bf16 %v2672, %v2672
    %v2689 = vpack.c.bf16 %v2673, %v2673
    %v2690 = vpack.c.bf16 %v2674, %v2674
    %v2691 = vpack.c.bf16 %v2675, %v2675
    %v2692 = vpack.c.bf16 %v2676, %v2676
    %v2693 = vpack.c.bf16 %v2677, %v2677
    %v2694 = vpack.c.bf16 %v2678, %v2678
    %2695 = vst [vmem:[#allocation5 + $0x8] sm:$0xf] %v2679
    %2696 = vst [vmem:[#allocation5 + $0x2c] sm:$0xf] %v2680
    %2697 = vst [vmem:[#allocation5 + $0x50] sm:$0xf] %v2681
    %2698 = vst [vmem:[#allocation5 + $0x74] sm:$0xf] %v2682
    %2699 = vst [vmem:[#allocation5 + $0x98] sm:$0xf] %v2683
    %2700 = vst [vmem:[#allocation5 + $0xbc] sm:$0xf] %v2684
    %2701 = vst [vmem:[#allocation5 + $0xe0] sm:$0xf] %v2685
    %2702 = vst [vmem:[#allocation5 + $0x104] sm:$0xf] %v2686
    %2703 = vst [vmem:[#allocation5 + $0x128] sm:$0xf] %v2687
    %2704 = vst [vmem:[#allocation5 + $0x14c] sm:$0xf] %v2688
    %2705 = vst [vmem:[#allocation5 + $0x170] sm:$0xf] %v2689
    %2706 = vst [vmem:[#allocation5 + $0x194] sm:$0xf] %v2690
    %2707 = vst [vmem:[#allocation5 + $0x1b8] sm:$0xf] %v2691
    %2708 = vst [vmem:[#allocation5 + $0x1dc] sm:$0xf] %v2692
    %2709 = vst [vmem:[#allocation5 + $0x200] sm:$0xf] %v2693
    %2710 = vst [vmem:[#allocation5 + $0x224] sm:$0xf] %v2694
    %v2711 = vld [vmem:[#allocation5 + $0x8] sm:$0xf]
    %v2712 = vld [vmem:[#allocation5 + $0x2c] sm:$0xf]
    %v2713 = vld [vmem:[#allocation5 + $0x50] sm:$0xf]
    %v2714 = vld [vmem:[#allocation5 + $0x74] sm:$0xf]
    %v2715 = vld [vmem:[#allocation5 + $0x98] sm:$0xf]
    %v2716 = vld [vmem:[#allocation5 + $0xbc] sm:$0xf]
    %v2717 = vld [vmem:[#allocation5 + $0xe0] sm:$0xf]
    %v2718 = vld [vmem:[#allocation5 + $0x104] sm:$0xf]
    %v2719 = vld [vmem:[#allocation5 + $0x128] sm:$0xf]
    %v2720 = vld [vmem:[#allocation5 + $0x14c] sm:$0xf]
    %v2721 = vld [vmem:[#allocation5 + $0x170] sm:$0xf]
    %v2722 = vld [vmem:[#allocation5 + $0x194] sm:$0xf]
    %v2723 = vld [vmem:[#allocation5 + $0x1b8] sm:$0xf]
    %v2724 = vld [vmem:[#allocation5 + $0x1dc] sm:$0xf]
    %v2725 = vld [vmem:[#allocation5 + $0x200] sm:$0xf]
    %v2726 = vld [vmem:[#allocation5 + $0x224] sm:$0xf]
    %v2727 = vld [vmem:[#allocation5 + $0x4] sm:$0xf]
    %v2728 = vld [vmem:[#allocation5 + $0x28] sm:$0xf]
    %v2729 = vld [vmem:[#allocation5 + $0x4c] sm:$0xf]
    %v2730 = vld [vmem:[#allocation5 + $0x70] sm:$0xf]
    %v2731 = vld [vmem:[#allocation5 + $0x94] sm:$0xf]
    %v2732 = vld [vmem:[#allocation5 + $0xb8] sm:$0xf]
    %v2733 = vld [vmem:[#allocation5 + $0xdc] sm:$0xf]
    %v2734 = vld [vmem:[#allocation5 + $0x100] sm:$0xf]
    %v2735 = vld [vmem:[#allocation5 + $0x124] sm:$0xf]
    %v2736 = vld [vmem:[#allocation5 + $0x148] sm:$0xf]
    %v2737 = vld [vmem:[#allocation5 + $0x16c] sm:$0xf]
    %v2738 = vld [vmem:[#allocation5 + $0x190] sm:$0xf]
    %v2739 = vld [vmem:[#allocation5 + $0x1b4] sm:$0xf]
    %v2740 = vld [vmem:[#allocation5 + $0x1d8] sm:$0xf]
    %v2741 = vld [vmem:[#allocation5 + $0x1fc] sm:$0xf]
    %v2742 = vld [vmem:[#allocation5 + $0x220] sm:$0xf]
    // Predicated region
    $region102: #{tpu_custom_call.1} parent=1 // pred_check
      _
    $region103: #{tpu_custom_call.1} parent=1 // pred_check_branch
      %2744 = sbr.rel target = $region105
    $region104: #{tpu_custom_call.1} parent=1 // pred_region
      %2745 = sst [smem:[#allocation21]] [#allocation42]
      %2746 = sst [smem:[#allocation22]] [#allocation41]
    $region105: #{tpu_custom_call.1} parent=1 // pred_fallthru
      _
    %2748 = shalt.err (0)
    %s2750 = sshll.u32 %s1, 4
    %s2751 = int_to_ptr.hbm [resolvable:$true] %s2750
    %s2752 = sshll.u32 [#allocation2], 4
    %s2753 = int_to_ptr.vmem [resolvable:$true] %s2752
    %2755 = dma.hbm_to_vmem [thread:$0]  %s2751, 1024, %s2753, [#allocation3]
    %s2756 = sshll.u32 %s206, 4
    %2757 = dma.done [#allocation3], %s2756
    %v2758 = vld [vmem:[#allocation2] sm:$0xf]
    %v2759 = vld [vmem:[#allocation2 + $0x4] sm:$0xf]
    %v2760 = vld [vmem:[#allocation2 + $0x8] sm:$0xf]
    %v2761 = vld [vmem:[#allocation2 + $0xc] sm:$0xf]
    %v2762 = vld [vmem:[#allocation2 + $0x10] sm:$0xf]
    %v2763 = vld [vmem:[#allocation2 + $0x14] sm:$0xf]
    %v2764 = vld [vmem:[#allocation2 + $0x18] sm:$0xf]
    %v2765 = vld [vmem:[#allocation2 + $0x1c] sm:$0xf]
    %v2766 = vld [vmem:[#allocation2 + $0x20] sm:$0xf]
    %v2767 = vld [vmem:[#allocation2 + $0x24] sm:$0xf]
    %v2768 = vld [vmem:[#allocation2 + $0x28] sm:$0xf]
    %v2769 = vld [vmem:[#allocation2 + $0x2c] sm:$0xf]
    %v2770 = vld [vmem:[#allocation2 + $0x30] sm:$0xf]
    %v2771 = vld [vmem:[#allocation2 + $0x34] sm:$0xf]
    %v2772 = vld [vmem:[#allocation2 + $0x38] sm:$0xf]
    %v2773 = vld [vmem:[#allocation2 + $0x3c] sm:$0xf]
    %v2790 = vunpack.c.l.b16 %v2758
    %v2791 = vunpack.c.l.b16 %v2759
    %v2792 = vunpack.c.l.b16 %v2760
    %v2793 = vunpack.c.l.b16 %v2761
    %v2794 = vunpack.c.l.b16 %v2762
    %v2795 = vunpack.c.l.b16 %v2763
    %v2796 = vunpack.c.l.b16 %v2764
    %v2797 = vunpack.c.l.b16 %v2765
    %v2798 = vunpack.c.l.b16 %v2766
    %v2799 = vunpack.c.l.b16 %v2767
    %v2800 = vunpack.c.l.b16 %v2768
    %v2801 = vunpack.c.l.b16 %v2769
    %v2802 = vunpack.c.l.b16 %v2770
    %v2803 = vunpack.c.l.b16 %v2771
    %v2804 = vunpack.c.l.b16 %v2772
    %v2805 = vunpack.c.l.b16 %v2773
    %v2806 = vpack.c.b16 %v2791, %v2790
    %v2807 = vpack.c.b16 %v2793, %v2792
    %v2808 = vpack.c.b16 %v2795, %v2794
    %v2809 = vpack.c.b16 %v2797, %v2796
    %v2810 = vpack.c.b16 %v2799, %v2798
    %v2811 = vpack.c.b16 %v2801, %v2800
    %v2812 = vpack.c.b16 %v2803, %v2802
    %v2813 = vpack.c.b16 %v2805, %v2804
    %v2838 = vunpack.c.l.b16 %v2711
    %v2839 = vunpack.c.l.b16 %v2712
    %v2840 = vunpack.c.l.b16 %v2713
    %v2841 = vunpack.c.l.b16 %v2714
    %v2842 = vunpack.c.l.b16 %v2715
    %v2843 = vunpack.c.l.b16 %v2716
    %v2844 = vunpack.c.l.b16 %v2717
    %v2845 = vunpack.c.l.b16 %v2718
    %v2846 = vunpack.c.l.b16 %v2719
    %v2847 = vunpack.c.l.b16 %v2720
    %v2848 = vunpack.c.l.b16 %v2721
    %v2849 = vunpack.c.l.b16 %v2722
    %v2850 = vunpack.c.l.b16 %v2723
    %v2851 = vunpack.c.l.b16 %v2724
    %v2852 = vunpack.c.l.b16 %v2725
    %v2853 = vunpack.c.l.b16 %v2726
    %v2854 = vpack.c.b16 %v2839, %v2838
    %v2855 = vpack.c.b16 %v2841, %v2840
    %v2856 = vpack.c.b16 %v2843, %v2842
    %v2857 = vpack.c.b16 %v2845, %v2844
    %v2858 = vpack.c.b16 %v2847, %v2846
    %v2859 = vpack.c.b16 %v2849, %v2848
    %v2860 = vpack.c.b16 %v2851, %v2850
    %v2861 = vpack.c.b16 %v2853, %v2852
    %2870 = vmatpush.bf16.msra.mxu0 %v2861
    %2871 = vmatpush.bf16.msra.mxu0 %v2860
    %2872 = vmatpush.bf16.msra.mxu0 %v2859
    %2873 = vmatpush.bf16.msra.mxu0 %v2858
    %2874 = vmatpush.bf16.msra.mxu0 %v2857
    %2875 = vmatpush.bf16.msra.mxu0 %v2856
    %2876 = vmatpush.bf16.msra.mxu0 %v2855
    %2877 = vmatpush.bf16.msra.mxu0 %v2854
    %2878 = vmatmul.bf16.gmra.mxu0 %v2806
    %v2879 = vpop.f32.mrf.mxu0
    %v2880 = vadd.f32 0.0, %v2879
    %v2881 = vpop.f32.mrf.mxu0
    %v2882 = vadd.f32 0.0, %v2881
    %2883 = vmatmul.bf16.gmra.mxu0 %v2807
    %v2884 = vpop.f32.mrf.mxu0
    %v2885 = vadd.f32 0.0, %v2884
    %v2886 = vpop.f32.mrf.mxu0
    %v2887 = vadd.f32 0.0, %v2886
    %2888 = vmatmul.bf16.gmra.mxu0 %v2808
    %v2889 = vpop.f32.mrf.mxu0
    %v2890 = vadd.f32 0.0, %v2889
    %v2891 = vpop.f32.mrf.mxu0
    %v2892 = vadd.f32 0.0, %v2891
    %2893 = vmatmul.bf16.gmra.mxu0 %v2809
    %v2894 = vpop.f32.mrf.mxu0
    %v2895 = vadd.f32 0.0, %v2894
    %v2896 = vpop.f32.mrf.mxu0
    %v2897 = vadd.f32 0.0, %v2896
    %2898 = vmatmul.bf16.gmra.mxu0 %v2810
    %v2899 = vpop.f32.mrf.mxu0
    %v2900 = vadd.f32 0.0, %v2899
    %v2901 = vpop.f32.mrf.mxu0
    %v2902 = vadd.f32 0.0, %v2901
    %2903 = vmatmul.bf16.gmra.mxu0 %v2811
    %v2904 = vpop.f32.mrf.mxu0
    %v2905 = vadd.f32 0.0, %v2904
    %v2906 = vpop.f32.mrf.mxu0
    %v2907 = vadd.f32 0.0, %v2906
    %2908 = vmatmul.bf16.gmra.mxu0 %v2812
    %v2909 = vpop.f32.mrf.mxu0
    %v2910 = vadd.f32 0.0, %v2909
    %v2911 = vpop.f32.mrf.mxu0
    %v2912 = vadd.f32 0.0, %v2911
    %2913 = vmatmul.bf16.gmra.mxu0 %v2813
    %v2914 = vpop.f32.mrf.mxu0
    %v2915 = vadd.f32 0.0, %v2914
    %v2916 = vpop.f32.mrf.mxu0
    %v2917 = vadd.f32 0.0, %v2916
    %2918 = vdwg.mxu0
    %v2919 = vunpack.c.l.bf16 %v2727
    %v2920 = vunpack.c.l.bf16 %v2728
    %v2921 = vunpack.c.l.bf16 %v2729
    %v2922 = vunpack.c.l.bf16 %v2730
    %v2923 = vunpack.c.l.bf16 %v2731
    %v2924 = vunpack.c.l.bf16 %v2732
    %v2925 = vunpack.c.l.bf16 %v2733
    %v2926 = vunpack.c.l.bf16 %v2734
    %v2927 = vunpack.c.l.bf16 %v2735
    %v2928 = vunpack.c.l.bf16 %v2736
    %v2929 = vunpack.c.l.bf16 %v2737
    %v2930 = vunpack.c.l.bf16 %v2738
    %v2931 = vunpack.c.l.bf16 %v2739
    %v2932 = vunpack.c.l.bf16 %v2740
    %v2933 = vunpack.c.l.bf16 %v2741
    %v2934 = vunpack.c.l.bf16 %v2742
    %v2935 = vsub.f32 %v2880, %v2919
    %v2936 = vsub.f32 %v2882, %v2920
    %v2937 = vsub.f32 %v2885, %v2921
    %v2938 = vsub.f32 %v2887, %v2922
    %v2939 = vsub.f32 %v2890, %v2923
    %v2940 = vsub.f32 %v2892, %v2924
    %v2941 = vsub.f32 %v2895, %v2925
    %v2942 = vsub.f32 %v2897, %v2926
    %v2943 = vsub.f32 %v2900, %v2927
    %v2944 = vsub.f32 %v2902, %v2928
    %v2945 = vsub.f32 %v2905, %v2929
    %v2946 = vsub.f32 %v2907, %v2930
    %v2947 = vsub.f32 %v2910, %v2931
    %v2948 = vsub.f32 %v2912, %v2932
    %v2949 = vsub.f32 %v2915, %v2933
    %v2950 = vsub.f32 %v2917, %v2934
    %v2951 = vpack.c.bf16 %v2935, %v2935
    %v2952 = vpack.c.bf16 %v2936, %v2936
    %v2953 = vpack.c.bf16 %v2937, %v2937
    %v2954 = vpack.c.bf16 %v2938, %v2938
    %v2955 = vpack.c.bf16 %v2939, %v2939
    %v2956 = vpack.c.bf16 %v2940, %v2940
    %v2957 = vpack.c.bf16 %v2941, %v2941
    %v2958 = vpack.c.bf16 %v2942, %v2942
    %v2959 = vpack.c.bf16 %v2943, %v2943
    %v2960 = vpack.c.bf16 %v2944, %v2944
    %v2961 = vpack.c.bf16 %v2945, %v2945
    %v2962 = vpack.c.bf16 %v2946, %v2946
    %v2963 = vpack.c.bf16 %v2947, %v2947
    %v2964 = vpack.c.bf16 %v2948, %v2948
    %v2965 = vpack.c.bf16 %v2949, %v2949
    %v2966 = vpack.c.bf16 %v2950, %v2950
    %2967 = vst [vmem:[#allocation5 + $0xc] sm:$0xf] %v2951
    %2968 = vst [vmem:[#allocation5 + $0x30] sm:$0xf] %v2952
    %2969 = vst [vmem:[#allocation5 + $0x54] sm:$0xf] %v2953
    %2970 = vst [vmem:[#allocation5 + $0x78] sm:$0xf] %v2954
    %2971 = vst [vmem:[#allocation5 + $0x9c] sm:$0xf] %v2955
    %2972 = vst [vmem:[#allocation5 + $0xc0] sm:$0xf] %v2956
    %2973 = vst [vmem:[#allocation5 + $0xe4] sm:$0xf] %v2957
    %2974 = vst [vmem:[#allocation5 + $0x108] sm:$0xf] %v2958
    %2975 = vst [vmem:[#allocation5 + $0x12c] sm:$0xf] %v2959
    %2976 = vst [vmem:[#allocation5 + $0x150] sm:$0xf] %v2960
    %2977 = vst [vmem:[#allocation5 + $0x174] sm:$0xf] %v2961
    %2978 = vst [vmem:[#allocation5 + $0x198] sm:$0xf] %v2962
    %2979 = vst [vmem:[#allocation5 + $0x1bc] sm:$0xf] %v2963
    %2980 = vst [vmem:[#allocation5 + $0x1e0] sm:$0xf] %v2964
    %2981 = vst [vmem:[#allocation5 + $0x204] sm:$0xf] %v2965
    %2982 = vst [vmem:[#allocation5 + $0x228] sm:$0xf] %v2966
    %v2983 = vld [vmem:[#allocation5 + $0xc] sm:$0xf]
    %v2984 = vld [vmem:[#allocation5 + $0x30] sm:$0xf]
    %v2985 = vld [vmem:[#allocation5 + $0x54] sm:$0xf]
    %v2986 = vld [vmem:[#allocation5 + $0x78] sm:$0xf]
    %v2987 = vld [vmem:[#allocation5 + $0x9c] sm:$0xf]
    %v2988 = vld [vmem:[#allocation5 + $0xc0] sm:$0xf]
    %v2989 = vld [vmem:[#allocation5 + $0xe4] sm:$0xf]
    %v2990 = vld [vmem:[#allocation5 + $0x108] sm:$0xf]
    %v2991 = vld [vmem:[#allocation5 + $0x12c] sm:$0xf]
    %v2992 = vld [vmem:[#allocation5 + $0x150] sm:$0xf]
    %v2993 = vld [vmem:[#allocation5 + $0x174] sm:$0xf]
    %v2994 = vld [vmem:[#allocation5 + $0x198] sm:$0xf]
    %v2995 = vld [vmem:[#allocation5 + $0x1bc] sm:$0xf]
    %v2996 = vld [vmem:[#allocation5 + $0x1e0] sm:$0xf]
    %v2997 = vld [vmem:[#allocation5 + $0x204] sm:$0xf]
    %v2998 = vld [vmem:[#allocation5 + $0x228] sm:$0xf]
    %v2999 = vld [vmem:[#allocation5 + $0x8] sm:$0xf]
    %v3000 = vld [vmem:[#allocation5 + $0x2c] sm:$0xf]
    %v3001 = vld [vmem:[#allocation5 + $0x50] sm:$0xf]
    %v3002 = vld [vmem:[#allocation5 + $0x74] sm:$0xf]
    %v3003 = vld [vmem:[#allocation5 + $0x98] sm:$0xf]
    %v3004 = vld [vmem:[#allocation5 + $0xbc] sm:$0xf]
    %v3005 = vld [vmem:[#allocation5 + $0xe0] sm:$0xf]
    %v3006 = vld [vmem:[#allocation5 + $0x104] sm:$0xf]
    %v3007 = vld [vmem:[#allocation5 + $0x128] sm:$0xf]
    %v3008 = vld [vmem:[#allocation5 + $0x14c] sm:$0xf]
    %v3009 = vld [vmem:[#allocation5 + $0x170] sm:$0xf]
    %v3010 = vld [vmem:[#allocation5 + $0x194] sm:$0xf]
    %v3011 = vld [vmem:[#allocation5 + $0x1b8] sm:$0xf]
    %v3012 = vld [vmem:[#allocation5 + $0x1dc] sm:$0xf]
    %v3013 = vld [vmem:[#allocation5 + $0x200] sm:$0xf]
    %v3014 = vld [vmem:[#allocation5 + $0x224] sm:$0xf]
    // Predicated region
    $region106: #{tpu_custom_call.1} parent=1 // pred_check
      _
    $region107: #{tpu_custom_call.1} parent=1 // pred_check_branch
      %3016 = sbr.rel target = $region109
    $region108: #{tpu_custom_call.1} parent=1 // pred_region
      %3017 = sst [smem:[#allocation21]] [#allocation44]
      %3018 = sst [smem:[#allocation22]] [#allocation43]
    $region109: #{tpu_custom_call.1} parent=1 // pred_fallthru
      _
    %3020 = shalt.err (0)
    %s3022 = sshll.u32 %s1, 4
    %s3023 = int_to_ptr.hbm [resolvable:$true] %s3022
    %s3024 = sshll.u32 [#allocation2], 4
    %s3025 = int_to_ptr.vmem [resolvable:$true] %s3024
    %3027 = dma.hbm_to_vmem [thread:$0]  %s3023, 1024, %s3025, [#allocation3]
    %s3028 = sshll.u32 %s206, 4
    %3029 = dma.done [#allocation3], %s3028
    %v3030 = vld [vmem:[#allocation2] sm:$0xf]
    %v3031 = vld [vmem:[#allocation2 + $0x4] sm:$0xf]
    %v3032 = vld [vmem:[#allocation2 + $0x8] sm:$0xf]
    %v3033 = vld [vmem:[#allocation2 + $0xc] sm:$0xf]
    %v3034 = vld [vmem:[#allocation2 + $0x10] sm:$0xf]
    %v3035 = vld [vmem:[#allocation2 + $0x14] sm:$0xf]
    %v3036 = vld [vmem:[#allocation2 + $0x18] sm:$0xf]
    %v3037 = vld [vmem:[#allocation2 + $0x1c] sm:$0xf]
    %v3038 = vld [vmem:[#allocation2 + $0x20] sm:$0xf]
    %v3039 = vld [vmem:[#allocation2 + $0x24] sm:$0xf]
    %v3040 = vld [vmem:[#allocation2 + $0x28] sm:$0xf]
    %v3041 = vld [vmem:[#allocation2 + $0x2c] sm:$0xf]
    %v3042 = vld [vmem:[#allocation2 + $0x30] sm:$0xf]
    %v3043 = vld [vmem:[#allocation2 + $0x34] sm:$0xf]
    %v3044 = vld [vmem:[#allocation2 + $0x38] sm:$0xf]
    %v3045 = vld [vmem:[#allocation2 + $0x3c] sm:$0xf]
    %v3062 = vunpack.c.l.b16 %v3030
    %v3063 = vunpack.c.l.b16 %v3031
    %v3064 = vunpack.c.l.b16 %v3032
    %v3065 = vunpack.c.l.b16 %v3033
    %v3066 = vunpack.c.l.b16 %v3034
    %v3067 = vunpack.c.l.b16 %v3035
    %v3068 = vunpack.c.l.b16 %v3036
    %v3069 = vunpack.c.l.b16 %v3037
    %v3070 = vunpack.c.l.b16 %v3038
    %v3071 = vunpack.c.l.b16 %v3039
    %v3072 = vunpack.c.l.b16 %v3040
    %v3073 = vunpack.c.l.b16 %v3041
    %v3074 = vunpack.c.l.b16 %v3042
    %v3075 = vunpack.c.l.b16 %v3043
    %v3076 = vunpack.c.l.b16 %v3044
    %v3077 = vunpack.c.l.b16 %v3045
    %v3078 = vpack.c.b16 %v3063, %v3062
    %v3079 = vpack.c.b16 %v3065, %v3064
    %v3080 = vpack.c.b16 %v3067, %v3066
    %v3081 = vpack.c.b16 %v3069, %v3068
    %v3082 = vpack.c.b16 %v3071, %v3070
    %v3083 = vpack.c.b16 %v3073, %v3072
    %v3084 = vpack.c.b16 %v3075, %v3074
    %v3085 = vpack.c.b16 %v3077, %v3076
    %v3110 = vunpack.c.l.b16 %v2983
    %v3111 = vunpack.c.l.b16 %v2984
    %v3112 = vunpack.c.l.b16 %v2985
    %v3113 = vunpack.c.l.b16 %v2986
    %v3114 = vunpack.c.l.b16 %v2987
    %v3115 = vunpack.c.l.b16 %v2988
    %v3116 = vunpack.c.l.b16 %v2989
    %v3117 = vunpack.c.l.b16 %v2990
    %v3118 = vunpack.c.l.b16 %v2991
    %v3119 = vunpack.c.l.b16 %v2992
    %v3120 = vunpack.c.l.b16 %v2993
    %v3121 = vunpack.c.l.b16 %v2994
    %v3122 = vunpack.c.l.b16 %v2995
    %v3123 = vunpack.c.l.b16 %v2996
    %v3124 = vunpack.c.l.b16 %v2997
    %v3125 = vunpack.c.l.b16 %v2998
    %v3126 = vpack.c.b16 %v3111, %v3110
    %v3127 = vpack.c.b16 %v3113, %v3112
    %v3128 = vpack.c.b16 %v3115, %v3114
    %v3129 = vpack.c.b16 %v3117, %v3116
    %v3130 = vpack.c.b16 %v3119, %v3118
    %v3131 = vpack.c.b16 %v3121, %v3120
    %v3132 = vpack.c.b16 %v3123, %v3122
    %v3133 = vpack.c.b16 %v3125, %v3124
    %3142 = vmatpush.bf16.msra.mxu0 %v3133
    %3143 = vmatpush.bf16.msra.mxu0 %v3132
    %3144 = vmatpush.bf16.msra.mxu0 %v3131
    %3145 = vmatpush.bf16.msra.mxu0 %v3130
    %3146 = vmatpush.bf16.msra.mxu0 %v3129
    %3147 = vmatpush.bf16.msra.mxu0 %v3128
    %3148 = vmatpush.bf16.msra.mxu0 %v3127
    %3149 = vmatpush.bf16.msra.mxu0 %v3126
    %3150 = vmatmul.bf16.gmra.mxu0 %v3078
    %v3151 = vpop.f32.mrf.mxu0
    %v3152 = vadd.f32 0.0, %v3151
    %v3153 = vpop.f32.mrf.mxu0
    %v3154 = vadd.f32 0.0, %v3153
    %3155 = vmatmul.bf16.gmra.mxu0 %v3079
    %v3156 = vpop.f32.mrf.mxu0
    %v3157 = vadd.f32 0.0, %v3156
    %v3158 = vpop.f32.mrf.mxu0
    %v3159 = vadd.f32 0.0, %v3158
    %3160 = vmatmul.bf16.gmra.mxu0 %v3080
    %v3161 = vpop.f32.mrf.mxu0
    %v3162 = vadd.f32 0.0, %v3161
    %v3163 = vpop.f32.mrf.mxu0
    %v3164 = vadd.f32 0.0, %v3163
    %3165 = vmatmul.bf16.gmra.mxu0 %v3081
    %v3166 = vpop.f32.mrf.mxu0
    %v3167 = vadd.f32 0.0, %v3166
    %v3168 = vpop.f32.mrf.mxu0
    %v3169 = vadd.f32 0.0, %v3168
    %3170 = vmatmul.bf16.gmra.mxu0 %v3082
    %v3171 = vpop.f32.mrf.mxu0
    %v3172 = vadd.f32 0.0, %v3171
    %v3173 = vpop.f32.mrf.mxu0
    %v3174 = vadd.f32 0.0, %v3173
    %3175 = vmatmul.bf16.gmra.mxu0 %v3083
    %v3176 = vpop.f32.mrf.mxu0
    %v3177 = vadd.f32 0.0, %v3176
    %v3178 = vpop.f32.mrf.mxu0
    %v3179 = vadd.f32 0.0, %v3178
    %3180 = vmatmul.bf16.gmra.mxu0 %v3084
    %v3181 = vpop.f32.mrf.mxu0
    %v3182 = vadd.f32 0.0, %v3181
    %v3183 = vpop.f32.mrf.mxu0
    %v3184 = vadd.f32 0.0, %v3183
    %3185 = vmatmul.bf16.gmra.mxu0 %v3085
    %v3186 = vpop.f32.mrf.mxu0
    %v3187 = vadd.f32 0.0, %v3186
    %v3188 = vpop.f32.mrf.mxu0
    %v3189 = vadd.f32 0.0, %v3188
    %3190 = vdwg.mxu0
    %v3191 = vunpack.c.l.bf16 %v2999
    %v3192 = vunpack.c.l.bf16 %v3000
    %v3193 = vunpack.c.l.bf16 %v3001
    %v3194 = vunpack.c.l.bf16 %v3002
    %v3195 = vunpack.c.l.bf16 %v3003
    %v3196 = vunpack.c.l.bf16 %v3004
    %v3197 = vunpack.c.l.bf16 %v3005
    %v3198 = vunpack.c.l.bf16 %v3006
    %v3199 = vunpack.c.l.bf16 %v3007
    %v3200 = vunpack.c.l.bf16 %v3008
    %v3201 = vunpack.c.l.bf16 %v3009
    %v3202 = vunpack.c.l.bf16 %v3010
    %v3203 = vunpack.c.l.bf16 %v3011
    %v3204 = vunpack.c.l.bf16 %v3012
    %v3205 = vunpack.c.l.bf16 %v3013
    %v3206 = vunpack.c.l.bf16 %v3014
    %v3207 = vsub.f32 %v3152, %v3191
    %v3208 = vsub.f32 %v3154, %v3192
    %v3209 = vsub.f32 %v3157, %v3193
    %v3210 = vsub.f32 %v3159, %v3194
    %v3211 = vsub.f32 %v3162, %v3195
    %v3212 = vsub.f32 %v3164, %v3196
    %v3213 = vsub.f32 %v3167, %v3197
    %v3214 = vsub.f32 %v3169, %v3198
    %v3215 = vsub.f32 %v3172, %v3199
    %v3216 = vsub.f32 %v3174, %v3200
    %v3217 = vsub.f32 %v3177, %v3201
    %v3218 = vsub.f32 %v3179, %v3202
    %v3219 = vsub.f32 %v3182, %v3203
    %v3220 = vsub.f32 %v3184, %v3204
    %v3221 = vsub.f32 %v3187, %v3205
    %v3222 = vsub.f32 %v3189, %v3206
    %v3223 = vpack.c.bf16 %v3207, %v3207
    %v3224 = vpack.c.bf16 %v3208, %v3208
    %v3225 = vpack.c.bf16 %v3209, %v3209
    %v3226 = vpack.c.bf16 %v3210, %v3210
    %v3227 = vpack.c.bf16 %v3211, %v3211
    %v3228 = vpack.c.bf16 %v3212, %v3212
    %v3229 = vpack.c.bf16 %v3213, %v3213
    %v3230 = vpack.c.bf16 %v3214, %v3214
    %v3231 = vpack.c.bf16 %v3215, %v3215
    %v3232 = vpack.c.bf16 %v3216, %v3216
    %v3233 = vpack.c.bf16 %v3217, %v3217
    %v3234 = vpack.c.bf16 %v3218, %v3218
    %v3235 = vpack.c.bf16 %v3219, %v3219
    %v3236 = vpack.c.bf16 %v3220, %v3220
    %v3237 = vpack.c.bf16 %v3221, %v3221
    %v3238 = vpack.c.bf16 %v3222, %v3222
    %3239 = vst [vmem:[#allocation5 + $0x10] sm:$0xf] %v3223
    %3240 = vst [vmem:[#allocation5 + $0x34] sm:$0xf] %v3224
    %3241 = vst [vmem:[#allocation5 + $0x58] sm:$0xf] %v3225
    %3242 = vst [vmem:[#allocation5 + $0x7c] sm:$0xf] %v3226
    %3243 = vst [vmem:[#allocation5 + $0xa0] sm:$0xf] %v3227
    %3244 = vst [vmem:[#allocation5 + $0xc4] sm:$0xf] %v3228
    %3245 = vst [vmem:[#allocation5 + $0xe8] sm:$0xf] %v3229
    %3246 = vst [vmem:[#allocation5 + $0x10c] sm:$0xf] %v3230
    %3247 = vst [vmem:[#allocation5 + $0x130] sm:$0xf] %v3231
    %3248 = vst [vmem:[#allocation5 + $0x154] sm:$0xf] %v3232
    %3249 = vst [vmem:[#allocation5 + $0x178] sm:$0xf] %v3233
    %3250 = vst [vmem:[#allocation5 + $0x19c] sm:$0xf] %v3234
    %3251 = vst [vmem:[#allocation5 + $0x1c0] sm:$0xf] %v3235
    %3252 = vst [vmem:[#allocation5 + $0x1e4] sm:$0xf] %v3236
    %3253 = vst [vmem:[#allocation5 + $0x208] sm:$0xf] %v3237
    %3254 = vst [vmem:[#allocation5 + $0x22c] sm:$0xf] %v3238
    %v3255 = vld [vmem:[#allocation5] sm:$0xf]
    %v3256 = vld [vmem:[#allocation5 + $0x24] sm:$0xf]
    %v3257 = vld [vmem:[#allocation5 + $0x48] sm:$0xf]
    %v3258 = vld [vmem:[#allocation5 + $0x6c] sm:$0xf]
    %v3259 = vld [vmem:[#allocation5 + $0x90] sm:$0xf]
    %v3260 = vld [vmem:[#allocation5 + $0xb4] sm:$0xf]
    %v3261 = vld [vmem:[#allocation5 + $0xd8] sm:$0xf]
    %v3262 = vld [vmem:[#allocation5 + $0xfc] sm:$0xf]
    %v3263 = vld [vmem:[#allocation5 + $0x120] sm:$0xf]
    %v3264 = vld [vmem:[#allocation5 + $0x144] sm:$0xf]
    %v3265 = vld [vmem:[#allocation5 + $0x168] sm:$0xf]
    %v3266 = vld [vmem:[#allocation5 + $0x18c] sm:$0xf]
    %v3267 = vld [vmem:[#allocation5 + $0x1b0] sm:$0xf]
    %v3268 = vld [vmem:[#allocation5 + $0x1d4] sm:$0xf]
    %v3269 = vld [vmem:[#allocation5 + $0x1f8] sm:$0xf]
    %v3270 = vld [vmem:[#allocation5 + $0x21c] sm:$0xf]
    // Predicated region
    $region110: #{tpu_custom_call.1} parent=1 // pred_check
      _
    $region111: #{tpu_custom_call.1} parent=1 // pred_check_branch
      %3272 = sbr.rel target = $region113
    $region112: #{tpu_custom_call.1} parent=1 // pred_region
      %3273 = sst [smem:[#allocation21]] [#allocation46]
      %3274 = sst [smem:[#allocation22]] [#allocation45]
    $region113: #{tpu_custom_call.1} parent=1 // pred_fallthru
      _
    %3276 = shalt.err (0)
    %s3278 = sshll.u32 %s2, 4
    %s3279 = int_to_ptr.hbm [resolvable:$true] %s3278
    %s3280 = sshll.u32 [#allocation2], 4
    %s3281 = int_to_ptr.vmem [resolvable:$true] %s3280
    %3283 = dma.hbm_to_vmem [thread:$0]  %s3279, 1024, %s3281, [#allocation3]
    %s3284 = sshll.u32 %s206, 4
    %3285 = dma.done [#allocation3], %s3284
    %v3286 = vld [vmem:[#allocation2] sm:$0xf]
    %v3287 = vld [vmem:[#allocation2 + $0x4] sm:$0xf]
    %v3288 = vld [vmem:[#allocation2 + $0x8] sm:$0xf]
    %v3289 = vld [vmem:[#allocation2 + $0xc] sm:$0xf]
    %v3290 = vld [vmem:[#allocation2 + $0x10] sm:$0xf]
    %v3291 = vld [vmem:[#allocation2 + $0x14] sm:$0xf]
    %v3292 = vld [vmem:[#allocation2 + $0x18] sm:$0xf]
    %v3293 = vld [vmem:[#allocation2 + $0x1c] sm:$0xf]
    %v3294 = vld [vmem:[#allocation2 + $0x20] sm:$0xf]
    %v3295 = vld [vmem:[#allocation2 + $0x24] sm:$0xf]
    %v3296 = vld [vmem:[#allocation2 + $0x28] sm:$0xf]
    %v3297 = vld [vmem:[#allocation2 + $0x2c] sm:$0xf]
    %v3298 = vld [vmem:[#allocation2 + $0x30] sm:$0xf]
    %v3299 = vld [vmem:[#allocation2 + $0x34] sm:$0xf]
    %v3300 = vld [vmem:[#allocation2 + $0x38] sm:$0xf]
    %v3301 = vld [vmem:[#allocation2 + $0x3c] sm:$0xf]
    %v3318 = vunpack.c.l.b16 %v3286
    %v3319 = vunpack.c.l.b16 %v3287
    %v3320 = vunpack.c.l.b16 %v3288
    %v3321 = vunpack.c.l.b16 %v3289
    %v3322 = vunpack.c.l.b16 %v3290
    %v3323 = vunpack.c.l.b16 %v3291
    %v3324 = vunpack.c.l.b16 %v3292
    %v3325 = vunpack.c.l.b16 %v3293
    %v3326 = vunpack.c.l.b16 %v3294
    %v3327 = vunpack.c.l.b16 %v3295
    %v3328 = vunpack.c.l.b16 %v3296
    %v3329 = vunpack.c.l.b16 %v3297
    %v3330 = vunpack.c.l.b16 %v3298
    %v3331 = vunpack.c.l.b16 %v3299
    %v3332 = vunpack.c.l.b16 %v3300
    %v3333 = vunpack.c.l.b16 %v3301
    %v3334 = vpack.c.b16 %v3319, %v3318
    %v3335 = vpack.c.b16 %v3321, %v3320
    %v3336 = vpack.c.b16 %v3323, %v3322
    %v3337 = vpack.c.b16 %v3325, %v3324
    %v3338 = vpack.c.b16 %v3327, %v3326
    %v3339 = vpack.c.b16 %v3329, %v3328
    %v3340 = vpack.c.b16 %v3331, %v3330
    %v3341 = vpack.c.b16 %v3333, %v3332
    %v3366 = vunpack.c.l.b16 %v3255
    %v3367 = vunpack.c.l.b16 %v3256
    %v3368 = vunpack.c.l.b16 %v3257
    %v3369 = vunpack.c.l.b16 %v3258
    %v3370 = vunpack.c.l.b16 %v3259
    %v3371 = vunpack.c.l.b16 %v3260
    %v3372 = vunpack.c.l.b16 %v3261
    %v3373 = vunpack.c.l.b16 %v3262
    %v3374 = vunpack.c.l.b16 %v3263
    %v3375 = vunpack.c.l.b16 %v3264
    %v3376 = vunpack.c.l.b16 %v3265
    %v3377 = vunpack.c.l.b16 %v3266
    %v3378 = vunpack.c.l.b16 %v3267
    %v3379 = vunpack.c.l.b16 %v3268
    %v3380 = vunpack.c.l.b16 %v3269
    %v3381 = vunpack.c.l.b16 %v3270
    %v3382 = vpack.c.b16 %v3367, %v3366
    %v3383 = vpack.c.b16 %v3369, %v3368
    %v3384 = vpack.c.b16 %v3371, %v3370
    %v3385 = vpack.c.b16 %v3373, %v3372
    %v3386 = vpack.c.b16 %v3375, %v3374
    %v3387 = vpack.c.b16 %v3377, %v3376
    %v3388 = vpack.c.b16 %v3379, %v3378
    %v3389 = vpack.c.b16 %v3381, %v3380
    %3398 = vmatpush.bf16.msra.mxu0 %v3389
    %3399 = vmatpush.bf16.msra.mxu0 %v3388
    %3400 = vmatpush.bf16.msra.mxu0 %v3387
    %3401 = vmatpush.bf16.msra.mxu0 %v3386
    %3402 = vmatpush.bf16.msra.mxu0 %v3385
    %3403 = vmatpush.bf16.msra.mxu0 %v3384
    %3404 = vmatpush.bf16.msra.mxu0 %v3383
    %3405 = vmatpush.bf16.msra.mxu0 %v3382
    %3406 = vmatmul.bf16.gmra.mxu0 %v3334
    %v3407 = vpop.f32.mrf.mxu0
    %v3408 = vadd.f32 0.0, %v3407
    %v3409 = vpop.f32.mrf.mxu0
    %v3410 = vadd.f32 0.0, %v3409
    %3411 = vmatmul.bf16.gmra.mxu0 %v3335
    %v3412 = vpop.f32.mrf.mxu0
    %v3413 = vadd.f32 0.0, %v3412
    %v3414 = vpop.f32.mrf.mxu0
    %v3415 = vadd.f32 0.0, %v3414
    %3416 = vmatmul.bf16.gmra.mxu0 %v3336
    %v3417 = vpop.f32.mrf.mxu0
    %v3418 = vadd.f32 0.0, %v3417
    %v3419 = vpop.f32.mrf.mxu0
    %v3420 = vadd.f32 0.0, %v3419
    %3421 = vmatmul.bf16.gmra.mxu0 %v3337
    %v3422 = vpop.f32.mrf.mxu0
    %v3423 = vadd.f32 0.0, %v3422
    %v3424 = vpop.f32.mrf.mxu0
    %v3425 = vadd.f32 0.0, %v3424
    %3426 = vmatmul.bf16.gmra.mxu0 %v3338
    %v3427 = vpop.f32.mrf.mxu0
    %v3428 = vadd.f32 0.0, %v3427
    %v3429 = vpop.f32.mrf.mxu0
    %v3430 = vadd.f32 0.0, %v3429
    %3431 = vmatmul.bf16.gmra.mxu0 %v3339
    %v3432 = vpop.f32.mrf.mxu0
    %v3433 = vadd.f32 0.0, %v3432
    %v3434 = vpop.f32.mrf.mxu0
    %v3435 = vadd.f32 0.0, %v3434
    %3436 = vmatmul.bf16.gmra.mxu0 %v3340
    %v3437 = vpop.f32.mrf.mxu0
    %v3438 = vadd.f32 0.0, %v3437
    %v3439 = vpop.f32.mrf.mxu0
    %v3440 = vadd.f32 0.0, %v3439
    %3441 = vmatmul.bf16.gmra.mxu0 %v3341
    %v3442 = vpop.f32.mrf.mxu0
    %v3443 = vadd.f32 0.0, %v3442
    %v3444 = vpop.f32.mrf.mxu0
    %v3445 = vadd.f32 0.0, %v3444
    %3446 = vdwg.mxu0
    %v3447 = vmul.f32 %v3408, 0.5
    %v3448 = vmul.f32 %v3410, 0.5
    %v3449 = vmul.f32 %v3413, 0.5
    %v3450 = vmul.f32 %v3415, 0.5
    %v3451 = vmul.f32 %v3418, 0.5
    %v3452 = vmul.f32 %v3420, 0.5
    %v3453 = vmul.f32 %v3423, 0.5
    %v3454 = vmul.f32 %v3425, 0.5
    %v3455 = vmul.f32 %v3428, 0.5
    %v3456 = vmul.f32 %v3430, 0.5
    %v3457 = vmul.f32 %v3433, 0.5
    %v3458 = vmul.f32 %v3435, 0.5
    %v3459 = vmul.f32 %v3438, 0.5
    %v3460 = vmul.f32 %v3440, 0.5
    %v3461 = vmul.f32 %v3443, 0.5
    %v3462 = vmul.f32 %v3445, 0.5
    %v3463 = vpack.c.bf16 %v3447, %v3447
    %v3464 = vpack.c.bf16 %v3448, %v3448
    %v3465 = vpack.c.bf16 %v3449, %v3449
    %v3466 = vpack.c.bf16 %v3450, %v3450
    %v3467 = vpack.c.bf16 %v3451, %v3451
    %v3468 = vpack.c.bf16 %v3452, %v3452
    %v3469 = vpack.c.bf16 %v3453, %v3453
    %v3470 = vpack.c.bf16 %v3454, %v3454
    %v3471 = vpack.c.bf16 %v3455, %v3455
    %v3472 = vpack.c.bf16 %v3456, %v3456
    %v3473 = vpack.c.bf16 %v3457, %v3457
    %v3474 = vpack.c.bf16 %v3458, %v3458
    %v3475 = vpack.c.bf16 %v3459, %v3459
    %v3476 = vpack.c.bf16 %v3460, %v3460
    %v3477 = vpack.c.bf16 %v3461, %v3461
    %v3478 = vpack.c.bf16 %v3462, %v3462
    %3479 = vst [vmem:[#allocation5 + $0x14] sm:$0xf] %v3463
    %3480 = vst [vmem:[#allocation5 + $0x38] sm:$0xf] %v3464
    %3481 = vst [vmem:[#allocation5 + $0x5c] sm:$0xf] %v3465
    %3482 = vst [vmem:[#allocation5 + $0x80] sm:$0xf] %v3466
    %3483 = vst [vmem:[#allocation5 + $0xa4] sm:$0xf] %v3467
    %3484 = vst [vmem:[#allocation5 + $0xc8] sm:$0xf] %v3468
    %3485 = vst [vmem:[#allocation5 + $0xec] sm:$0xf] %v3469
    %3486 = vst [vmem:[#allocation5 + $0x110] sm:$0xf] %v3470
    %3487 = vst [vmem:[#allocation5 + $0x134] sm:$0xf] %v3471
    %3488 = vst [vmem:[#allocation5 + $0x158] sm:$0xf] %v3472
    %3489 = vst [vmem:[#allocation5 + $0x17c] sm:$0xf] %v3473
    %3490 = vst [vmem:[#allocation5 + $0x1a0] sm:$0xf] %v3474
    %3491 = vst [vmem:[#allocation5 + $0x1c4] sm:$0xf] %v3475
    %3492 = vst [vmem:[#allocation5 + $0x1e8] sm:$0xf] %v3476
    %3493 = vst [vmem:[#allocation5 + $0x20c] sm:$0xf] %v3477
    %3494 = vst [vmem:[#allocation5 + $0x230] sm:$0xf] %v3478
    %v3495 = vld [vmem:[#allocation5 + $0x14] sm:$0xf]
    %v3496 = vld [vmem:[#allocation5 + $0x38] sm:$0xf]
    %v3497 = vld [vmem:[#allocation5 + $0x5c] sm:$0xf]
    %v3498 = vld [vmem:[#allocation5 + $0x80] sm:$0xf]
    %v3499 = vld [vmem:[#allocation5 + $0xa4] sm:$0xf]
    %v3500 = vld [vmem:[#allocation5 + $0xc8] sm:$0xf]
    %v3501 = vld [vmem:[#allocation5 + $0xec] sm:$0xf]
    %v3502 = vld [vmem:[#allocation5 + $0x110] sm:$0xf]
    %v3503 = vld [vmem:[#allocation5 + $0x134] sm:$0xf]
    %v3504 = vld [vmem:[#allocation5 + $0x158] sm:$0xf]
    %v3505 = vld [vmem:[#allocation5 + $0x17c] sm:$0xf]
    %v3506 = vld [vmem:[#allocation5 + $0x1a0] sm:$0xf]
    %v3507 = vld [vmem:[#allocation5 + $0x1c4] sm:$0xf]
    %v3508 = vld [vmem:[#allocation5 + $0x1e8] sm:$0xf]
    %v3509 = vld [vmem:[#allocation5 + $0x20c] sm:$0xf]
    %v3510 = vld [vmem:[#allocation5 + $0x230] sm:$0xf]
    %v3511 = vld [vmem:[#allocation5] sm:$0xf]
    %v3512 = vld [vmem:[#allocation5 + $0x24] sm:$0xf]
    %v3513 = vld [vmem:[#allocation5 + $0x48] sm:$0xf]
    %v3514 = vld [vmem:[#allocation5 + $0x6c] sm:$0xf]
    %v3515 = vld [vmem:[#allocation5 + $0x90] sm:$0xf]
    %v3516 = vld [vmem:[#allocation5 + $0xb4] sm:$0xf]
    %v3517 = vld [vmem:[#allocation5 + $0xd8] sm:$0xf]
    %v3518 = vld [vmem:[#allocation5 + $0xfc] sm:$0xf]
    %v3519 = vld [vmem:[#allocation5 + $0x120] sm:$0xf]
    %v3520 = vld [vmem:[#allocation5 + $0x144] sm:$0xf]
    %v3521 = vld [vmem:[#allocation5 + $0x168] sm:$0xf]
    %v3522 = vld [vmem:[#allocation5 + $0x18c] sm:$0xf]
    %v3523 = vld [vmem:[#allocation5 + $0x1b0] sm:$0xf]
    %v3524 = vld [vmem:[#allocation5 + $0x1d4] sm:$0xf]
    %v3525 = vld [vmem:[#allocation5 + $0x1f8] sm:$0xf]
    %v3526 = vld [vmem:[#allocation5 + $0x21c] sm:$0xf]
    // Predicated region
    $region114: #{tpu_custom_call.1} parent=1 // pred_check
      _
    $region115: #{tpu_custom_call.1} parent=1 // pred_check_branch
      %3528 = sbr.rel target = $region117
    $region116: #{tpu_custom_call.1} parent=1 // pred_region
      %3529 = sst [smem:[#allocation21]] [#allocation48]
      %3530 = sst [smem:[#allocation22]] [#allocation47]
    $region117: #{tpu_custom_call.1} parent=1 // pred_fallthru
      _
    %3532 = shalt.err (0)
    %s3534 = sshll.u32 %s2, 4
    %s3535 = int_to_ptr.hbm [resolvable:$true] %s3534
    %s3536 = sshll.u32 [#allocation2], 4
    %s3537 = int_to_ptr.vmem [resolvable:$true] %s3536
    %3539 = dma.hbm_to_vmem [thread:$0]  %s3535, 1024, %s3537, [#allocation3]
    %s3540 = sshll.u32 %s206, 4
    %3541 = dma.done [#allocation3], %s3540
    %v3542 = vld [vmem:[#allocation2] sm:$0xf]
    %v3543 = vld [vmem:[#allocation2 + $0x4] sm:$0xf]
    %v3544 = vld [vmem:[#allocation2 + $0x8] sm:$0xf]
    %v3545 = vld [vmem:[#allocation2 + $0xc] sm:$0xf]
    %v3546 = vld [vmem:[#allocation2 + $0x10] sm:$0xf]
    %v3547 = vld [vmem:[#allocation2 + $0x14] sm:$0xf]
    %v3548 = vld [vmem:[#allocation2 + $0x18] sm:$0xf]
    %v3549 = vld [vmem:[#allocation2 + $0x1c] sm:$0xf]
    %v3550 = vld [vmem:[#allocation2 + $0x20] sm:$0xf]
    %v3551 = vld [vmem:[#allocation2 + $0x24] sm:$0xf]
    %v3552 = vld [vmem:[#allocation2 + $0x28] sm:$0xf]
    %v3553 = vld [vmem:[#allocation2 + $0x2c] sm:$0xf]
    %v3554 = vld [vmem:[#allocation2 + $0x30] sm:$0xf]
    %v3555 = vld [vmem:[#allocation2 + $0x34] sm:$0xf]
    %v3556 = vld [vmem:[#allocation2 + $0x38] sm:$0xf]
    %v3557 = vld [vmem:[#allocation2 + $0x3c] sm:$0xf]
    %v3574 = vunpack.c.l.b16 %v3542
    %v3575 = vunpack.c.l.b16 %v3543
    %v3576 = vunpack.c.l.b16 %v3544
    %v3577 = vunpack.c.l.b16 %v3545
    %v3578 = vunpack.c.l.b16 %v3546
    %v3579 = vunpack.c.l.b16 %v3547
    %v3580 = vunpack.c.l.b16 %v3548
    %v3581 = vunpack.c.l.b16 %v3549
    %v3582 = vunpack.c.l.b16 %v3550
    %v3583 = vunpack.c.l.b16 %v3551
    %v3584 = vunpack.c.l.b16 %v3552
    %v3585 = vunpack.c.l.b16 %v3553
    %v3586 = vunpack.c.l.b16 %v3554
    %v3587 = vunpack.c.l.b16 %v3555
    %v3588 = vunpack.c.l.b16 %v3556
    %v3589 = vunpack.c.l.b16 %v3557
    %v3590 = vpack.c.b16 %v3575, %v3574
    %v3591 = vpack.c.b16 %v3577, %v3576
    %v3592 = vpack.c.b16 %v3579, %v3578
    %v3593 = vpack.c.b16 %v3581, %v3580
    %v3594 = vpack.c.b16 %v3583, %v3582
    %v3595 = vpack.c.b16 %v3585, %v3584
    %v3596 = vpack.c.b16 %v3587, %v3586
    %v3597 = vpack.c.b16 %v3589, %v3588
    %v3622 = vunpack.c.l.b16 %v3495
    %v3623 = vunpack.c.l.b16 %v3496
    %v3624 = vunpack.c.l.b16 %v3497
    %v3625 = vunpack.c.l.b16 %v3498
    %v3626 = vunpack.c.l.b16 %v3499
    %v3627 = vunpack.c.l.b16 %v3500
    %v3628 = vunpack.c.l.b16 %v3501
    %v3629 = vunpack.c.l.b16 %v3502
    %v3630 = vunpack.c.l.b16 %v3503
    %v3631 = vunpack.c.l.b16 %v3504
    %v3632 = vunpack.c.l.b16 %v3505
    %v3633 = vunpack.c.l.b16 %v3506
    %v3634 = vunpack.c.l.b16 %v3507
    %v3635 = vunpack.c.l.b16 %v3508
    %v3636 = vunpack.c.l.b16 %v3509
    %v3637 = vunpack.c.l.b16 %v3510
    %v3638 = vpack.c.b16 %v3623, %v3622
    %v3639 = vpack.c.b16 %v3625, %v3624
    %v3640 = vpack.c.b16 %v3627, %v3626
    %v3641 = vpack.c.b16 %v3629, %v3628
    %v3642 = vpack.c.b16 %v3631, %v3630
    %v3643 = vpack.c.b16 %v3633, %v3632
    %v3644 = vpack.c.b16 %v3635, %v3634
    %v3645 = vpack.c.b16 %v3637, %v3636
    %3654 = vmatpush.bf16.msra.mxu0 %v3645
    %3655 = vmatpush.bf16.msra.mxu0 %v3644
    %3656 = vmatpush.bf16.msra.mxu0 %v3643
    %3657 = vmatpush.bf16.msra.mxu0 %v3642
    %3658 = vmatpush.bf16.msra.mxu0 %v3641
    %3659 = vmatpush.bf16.msra.mxu0 %v3640
    %3660 = vmatpush.bf16.msra.mxu0 %v3639
    %3661 = vmatpush.bf16.msra.mxu0 %v3638
    %3662 = vmatmul.bf16.gmra.mxu0 %v3590
    %v3663 = vpop.f32.mrf.mxu0
    %v3664 = vadd.f32 0.0, %v3663
    %v3665 = vpop.f32.mrf.mxu0
    %v3666 = vadd.f32 0.0, %v3665
    %3667 = vmatmul.bf16.gmra.mxu0 %v3591
    %v3668 = vpop.f32.mrf.mxu0
    %v3669 = vadd.f32 0.0, %v3668
    %v3670 = vpop.f32.mrf.mxu0
    %v3671 = vadd.f32 0.0, %v3670
    %3672 = vmatmul.bf16.gmra.mxu0 %v3592
    %v3673 = vpop.f32.mrf.mxu0
    %v3674 = vadd.f32 0.0, %v3673
    %v3675 = vpop.f32.mrf.mxu0
    %v3676 = vadd.f32 0.0, %v3675
    %3677 = vmatmul.bf16.gmra.mxu0 %v3593
    %v3678 = vpop.f32.mrf.mxu0
    %v3679 = vadd.f32 0.0, %v3678
    %v3680 = vpop.f32.mrf.mxu0
    %v3681 = vadd.f32 0.0, %v3680
    %3682 = vmatmul.bf16.gmra.mxu0 %v3594
    %v3683 = vpop.f32.mrf.mxu0
    %v3684 = vadd.f32 0.0, %v3683
    %v3685 = vpop.f32.mrf.mxu0
    %v3686 = vadd.f32 0.0, %v3685
    %3687 = vmatmul.bf16.gmra.mxu0 %v3595
    %v3688 = vpop.f32.mrf.mxu0
    %v3689 = vadd.f32 0.0, %v3688
    %v3690 = vpop.f32.mrf.mxu0
    %v3691 = vadd.f32 0.0, %v3690
    %3692 = vmatmul.bf16.gmra.mxu0 %v3596
    %v3693 = vpop.f32.mrf.mxu0
    %v3694 = vadd.f32 0.0, %v3693
    %v3695 = vpop.f32.mrf.mxu0
    %v3696 = vadd.f32 0.0, %v3695
    %3697 = vmatmul.bf16.gmra.mxu0 %v3597
    %v3698 = vpop.f32.mrf.mxu0
    %v3699 = vadd.f32 0.0, %v3698
    %v3700 = vpop.f32.mrf.mxu0
    %v3701 = vadd.f32 0.0, %v3700
    %3702 = vdwg.mxu0
    %v3703 = vunpack.c.l.bf16 %v3511
    %v3704 = vunpack.c.l.bf16 %v3512
    %v3705 = vunpack.c.l.bf16 %v3513
    %v3706 = vunpack.c.l.bf16 %v3514
    %v3707 = vunpack.c.l.bf16 %v3515
    %v3708 = vunpack.c.l.bf16 %v3516
    %v3709 = vunpack.c.l.bf16 %v3517
    %v3710 = vunpack.c.l.bf16 %v3518
    %v3711 = vunpack.c.l.bf16 %v3519
    %v3712 = vunpack.c.l.bf16 %v3520
    %v3713 = vunpack.c.l.bf16 %v3521
    %v3714 = vunpack.c.l.bf16 %v3522
    %v3715 = vunpack.c.l.bf16 %v3523
    %v3716 = vunpack.c.l.bf16 %v3524
    %v3717 = vunpack.c.l.bf16 %v3525
    %v3718 = vunpack.c.l.bf16 %v3526
    %v3719 = vsub.f32 %v3664, %v3703
    %v3720 = vsub.f32 %v3666, %v3704
    %v3721 = vsub.f32 %v3669, %v3705
    %v3722 = vsub.f32 %v3671, %v3706
    %v3723 = vsub.f32 %v3674, %v3707
    %v3724 = vsub.f32 %v3676, %v3708
    %v3725 = vsub.f32 %v3679, %v3709
    %v3726 = vsub.f32 %v3681, %v3710
    %v3727 = vsub.f32 %v3684, %v3711
    %v3728 = vsub.f32 %v3686, %v3712
    %v3729 = vsub.f32 %v3689, %v3713
    %v3730 = vsub.f32 %v3691, %v3714
    %v3731 = vsub.f32 %v3694, %v3715
    %v3732 = vsub.f32 %v3696, %v3716
    %v3733 = vsub.f32 %v3699, %v3717
    %v3734 = vsub.f32 %v3701, %v3718
    %v3735 = vpack.c.bf16 %v3719, %v3719
    %v3736 = vpack.c.bf16 %v3720, %v3720
    %v3737 = vpack.c.bf16 %v3721, %v3721
    %v3738 = vpack.c.bf16 %v3722, %v3722
    %v3739 = vpack.c.bf16 %v3723, %v3723
    %v3740 = vpack.c.bf16 %v3724, %v3724
    %v3741 = vpack.c.bf16 %v3725, %v3725
    %v3742 = vpack.c.bf16 %v3726, %v3726
    %v3743 = vpack.c.bf16 %v3727, %v3727
    %v3744 = vpack.c.bf16 %v3728, %v3728
    %v3745 = vpack.c.bf16 %v3729, %v3729
    %v3746 = vpack.c.bf16 %v3730, %v3730
    %v3747 = vpack.c.bf16 %v3731, %v3731
    %v3748 = vpack.c.bf16 %v3732, %v3732
    %v3749 = vpack.c.bf16 %v3733, %v3733
    %v3750 = vpack.c.bf16 %v3734, %v3734
    %3751 = vst [vmem:[#allocation5 + $0x18] sm:$0xf] %v3735
    %3752 = vst [vmem:[#allocation5 + $0x3c] sm:$0xf] %v3736
    %3753 = vst [vmem:[#allocation5 + $0x60] sm:$0xf] %v3737
    %3754 = vst [vmem:[#allocation5 + $0x84] sm:$0xf] %v3738
    %3755 = vst [vmem:[#allocation5 + $0xa8] sm:$0xf] %v3739
    %3756 = vst [vmem:[#allocation5 + $0xcc] sm:$0xf] %v3740
    %3757 = vst [vmem:[#allocation5 + $0xf0] sm:$0xf] %v3741
    %3758 = vst [vmem:[#allocation5 + $0x114] sm:$0xf] %v3742
    %3759 = vst [vmem:[#allocation5 + $0x138] sm:$0xf] %v3743
    %3760 = vst [vmem:[#allocation5 + $0x15c] sm:$0xf] %v3744
    %3761 = vst [vmem:[#allocation5 + $0x180] sm:$0xf] %v3745
    %3762 = vst [vmem:[#allocation5 + $0x1a4] sm:$0xf] %v3746
    %3763 = vst [vmem:[#allocation5 + $0x1c8] sm:$0xf] %v3747
    %3764 = vst [vmem:[#allocation5 + $0x1ec] sm:$0xf] %v3748
    %3765 = vst [vmem:[#allocation5 + $0x210] sm:$0xf] %v3749
    %3766 = vst [vmem:[#allocation5 + $0x234] sm:$0xf] %v3750
    %v3767 = vld [vmem:[#allocation5 + $0x18] sm:$0xf]
    %v3768 = vld [vmem:[#allocation5 + $0x3c] sm:$0xf]
    %v3769 = vld [vmem:[#allocation5 + $0x60] sm:$0xf]
    %v3770 = vld [vmem:[#allocation5 + $0x84] sm:$0xf]
    %v3771 = vld [vmem:[#allocation5 + $0xa8] sm:$0xf]
    %v3772 = vld [vmem:[#allocation5 + $0xcc] sm:$0xf]
    %v3773 = vld [vmem:[#allocation5 + $0xf0] sm:$0xf]
    %v3774 = vld [vmem:[#allocation5 + $0x114] sm:$0xf]
    %v3775 = vld [vmem:[#allocation5 + $0x138] sm:$0xf]
    %v3776 = vld [vmem:[#allocation5 + $0x15c] sm:$0xf]
    %v3777 = vld [vmem:[#allocation5 + $0x180] sm:$0xf]
    %v3778 = vld [vmem:[#allocation5 + $0x1a4] sm:$0xf]
    %v3779 = vld [vmem:[#allocation5 + $0x1c8] sm:$0xf]
    %v3780 = vld [vmem:[#allocation5 + $0x1ec] sm:$0xf]
    %v3781 = vld [vmem:[#allocation5 + $0x210] sm:$0xf]
    %v3782 = vld [vmem:[#allocation5 + $0x234] sm:$0xf]
    %v3783 = vld [vmem:[#allocation5 + $0x14] sm:$0xf]
    %v3784 = vld [vmem:[#allocation5 + $0x38] sm:$0xf]
    %v3785 = vld [vmem:[#allocation5 + $0x5c] sm:$0xf]
    %v3786 = vld [vmem:[#allocation5 + $0x80] sm:$0xf]
    %v3787 = vld [vmem:[#allocation5 + $0xa4] sm:$0xf]
    %v3788 = vld [vmem:[#allocation5 + $0xc8] sm:$0xf]
    %v3789 = vld [vmem:[#allocation5 + $0xec] sm:$0xf]
    %v3790 = vld [vmem:[#allocation5 + $0x110] sm:$0xf]
    %v3791 = vld [vmem:[#allocation5 + $0x134] sm:$0xf]
    %v3792 = vld [vmem:[#allocation5 + $0x158] sm:$0xf]
    %v3793 = vld [vmem:[#allocation5 + $0x17c] sm:$0xf]
    %v3794 = vld [vmem:[#allocation5 + $0x1a0] sm:$0xf]
    %v3795 = vld [vmem:[#allocation5 + $0x1c4] sm:$0xf]
    %v3796 = vld [vmem:[#allocation5 + $0x1e8] sm:$0xf]
    %v3797 = vld [vmem:[#allocation5 + $0x20c] sm:$0xf]
    %v3798 = vld [vmem:[#allocation5 + $0x230] sm:$0xf]
    // Predicated region
    $region118: #{tpu_custom_call.1} parent=1 // pred_check
      _
    $region119: #{tpu_custom_call.1} parent=1 // pred_check_branch
      %3800 = sbr.rel target = $region121
    $region120: #{tpu_custom_call.1} parent=1 // pred_region
      %3801 = sst [smem:[#allocation21]] [#allocation50]
      %3802 = sst [smem:[#allocation22]] [#allocation49]
    $region121: #{tpu_custom_call.1} parent=1 // pred_fallthru
      _
    %3804 = shalt.err (0)
    %s3806 = sshll.u32 %s2, 4
    %s3807 = int_to_ptr.hbm [resolvable:$true] %s3806
    %s3808 = sshll.u32 [#allocation2], 4
    %s3809 = int_to_ptr.vmem [resolvable:$true] %s3808
    %3811 = dma.hbm_to_vmem [thread:$0]  %s3807, 1024, %s3809, [#allocation3]
    %s3812 = sshll.u32 %s206, 4
    %3813 = dma.done [#allocation3], %s3812
    %v3814 = vld [vmem:[#allocation2] sm:$0xf]
    %v3815 = vld [vmem:[#allocation2 + $0x4] sm:$0xf]
    %v3816 = vld [vmem:[#allocation2 + $0x8] sm:$0xf]
    %v3817 = vld [vmem:[#allocation2 + $0xc] sm:$0xf]
    %v3818 = vld [vmem:[#allocation2 + $0x10] sm:$0xf]
    %v3819 = vld [vmem:[#allocation2 + $0x14] sm:$0xf]
    %v3820 = vld [vmem:[#allocation2 + $0x18] sm:$0xf]
    %v3821 = vld [vmem:[#allocation2 + $0x1c] sm:$0xf]
    %v3822 = vld [vmem:[#allocation2 + $0x20] sm:$0xf]
    %v3823 = vld [vmem:[#allocation2 + $0x24] sm:$0xf]
    %v3824 = vld [vmem:[#allocation2 + $0x28] sm:$0xf]
    %v3825 = vld [vmem:[#allocation2 + $0x2c] sm:$0xf]
    %v3826 = vld [vmem:[#allocation2 + $0x30] sm:$0xf]
    %v3827 = vld [vmem:[#allocation2 + $0x34] sm:$0xf]
    %v3828 = vld [vmem:[#allocation2 + $0x38] sm:$0xf]
    %v3829 = vld [vmem:[#allocation2 + $0x3c] sm:$0xf]
    %v3846 = vunpack.c.l.b16 %v3814
    %v3847 = vunpack.c.l.b16 %v3815
    %v3848 = vunpack.c.l.b16 %v3816
    %v3849 = vunpack.c.l.b16 %v3817
    %v3850 = vunpack.c.l.b16 %v3818
    %v3851 = vunpack.c.l.b16 %v3819
    %v3852 = vunpack.c.l.b16 %v3820
    %v3853 = vunpack.c.l.b16 %v3821
    %v3854 = vunpack.c.l.b16 %v3822
    %v3855 = vunpack.c.l.b16 %v3823
    %v3856 = vunpack.c.l.b16 %v3824
    %v3857 = vunpack.c.l.b16 %v3825
    %v3858 = vunpack.c.l.b16 %v3826
    %v3859 = vunpack.c.l.b16 %v3827
    %v3860 = vunpack.c.l.b16 %v3828
    %v3861 = vunpack.c.l.b16 %v3829
    %v3862 = vpack.c.b16 %v3847, %v3846
    %v3863 = vpack.c.b16 %v3849, %v3848
    %v3864 = vpack.c.b16 %v3851, %v3850
    %v3865 = vpack.c.b16 %v3853, %v3852
    %v3866 = vpack.c.b16 %v3855, %v3854
    %v3867 = vpack.c.b16 %v3857, %v3856
    %v3868 = vpack.c.b16 %v3859, %v3858
    %v3869 = vpack.c.b16 %v3861, %v3860
    %v3894 = vunpack.c.l.b16 %v3767
    %v3895 = vunpack.c.l.b16 %v3768
    %v3896 = vunpack.c.l.b16 %v3769
    %v3897 = vunpack.c.l.b16 %v3770
    %v3898 = vunpack.c.l.b16 %v3771
    %v3899 = vunpack.c.l.b16 %v3772
    %v3900 = vunpack.c.l.b16 %v3773
    %v3901 = vunpack.c.l.b16 %v3774
    %v3902 = vunpack.c.l.b16 %v3775
    %v3903 = vunpack.c.l.b16 %v3776
    %v3904 = vunpack.c.l.b16 %v3777
    %v3905 = vunpack.c.l.b16 %v3778
    %v3906 = vunpack.c.l.b16 %v3779
    %v3907 = vunpack.c.l.b16 %v3780
    %v3908 = vunpack.c.l.b16 %v3781
    %v3909 = vunpack.c.l.b16 %v3782
    %v3910 = vpack.c.b16 %v3895, %v3894
    %v3911 = vpack.c.b16 %v3897, %v3896
    %v3912 = vpack.c.b16 %v3899, %v3898
    %v3913 = vpack.c.b16 %v3901, %v3900
    %v3914 = vpack.c.b16 %v3903, %v3902
    %v3915 = vpack.c.b16 %v3905, %v3904
    %v3916 = vpack.c.b16 %v3907, %v3906
    %v3917 = vpack.c.b16 %v3909, %v3908
    %3926 = vmatpush.bf16.msra.mxu0 %v3917
    %3927 = vmatpush.bf16.msra.mxu0 %v3916
    %3928 = vmatpush.bf16.msra.mxu0 %v3915
    %3929 = vmatpush.bf16.msra.mxu0 %v3914
    %3930 = vmatpush.bf16.msra.mxu0 %v3913
    %3931 = vmatpush.bf16.msra.mxu0 %v3912
    %3932 = vmatpush.bf16.msra.mxu0 %v3911
    %3933 = vmatpush.bf16.msra.mxu0 %v3910
    %3934 = vmatmul.bf16.gmra.mxu0 %v3862
    %v3935 = vpop.f32.mrf.mxu0
    %v3936 = vadd.f32 0.0, %v3935
    %v3937 = vpop.f32.mrf.mxu0
    %v3938 = vadd.f32 0.0, %v3937
    %3939 = vmatmul.bf16.gmra.mxu0 %v3863
    %v3940 = vpop.f32.mrf.mxu0
    %v3941 = vadd.f32 0.0, %v3940
    %v3942 = vpop.f32.mrf.mxu0
    %v3943 = vadd.f32 0.0, %v3942
    %3944 = vmatmul.bf16.gmra.mxu0 %v3864
    %v3945 = vpop.f32.mrf.mxu0
    %v3946 = vadd.f32 0.0, %v3945
    %v3947 = vpop.f32.mrf.mxu0
    %v3948 = vadd.f32 0.0, %v3947
    %3949 = vmatmul.bf16.gmra.mxu0 %v3865
    %v3950 = vpop.f32.mrf.mxu0
    %v3951 = vadd.f32 0.0, %v3950
    %v3952 = vpop.f32.mrf.mxu0
    %v3953 = vadd.f32 0.0, %v3952
    %3954 = vmatmul.bf16.gmra.mxu0 %v3866
    %v3955 = vpop.f32.mrf.mxu0
    %v3956 = vadd.f32 0.0, %v3955
    %v3957 = vpop.f32.mrf.mxu0
    %v3958 = vadd.f32 0.0, %v3957
    %3959 = vmatmul.bf16.gmra.mxu0 %v3867
    %v3960 = vpop.f32.mrf.mxu0
    %v3961 = vadd.f32 0.0, %v3960
    %v3962 = vpop.f32.mrf.mxu0
    %v3963 = vadd.f32 0.0, %v3962
    %3964 = vmatmul.bf16.gmra.mxu0 %v3868
    %v3965 = vpop.f32.mrf.mxu0
    %v3966 = vadd.f32 0.0, %v3965
    %v3967 = vpop.f32.mrf.mxu0
    %v3968 = vadd.f32 0.0, %v3967
    %3969 = vmatmul.bf16.gmra.mxu0 %v3869
    %v3970 = vpop.f32.mrf.mxu0
    %v3971 = vadd.f32 0.0, %v3970
    %v3972 = vpop.f32.mrf.mxu0
    %v3973 = vadd.f32 0.0, %v3972
    %3974 = vdwg.mxu0
    %v3975 = vunpack.c.l.bf16 %v3783
    %v3976 = vunpack.c.l.bf16 %v3784
    %v3977 = vunpack.c.l.bf16 %v3785
    %v3978 = vunpack.c.l.bf16 %v3786
    %v3979 = vunpack.c.l.bf16 %v3787
    %v3980 = vunpack.c.l.bf16 %v3788
    %v3981 = vunpack.c.l.bf16 %v3789
    %v3982 = vunpack.c.l.bf16 %v3790
    %v3983 = vunpack.c.l.bf16 %v3791
    %v3984 = vunpack.c.l.bf16 %v3792
    %v3985 = vunpack.c.l.bf16 %v3793
    %v3986 = vunpack.c.l.bf16 %v3794
    %v3987 = vunpack.c.l.bf16 %v3795
    %v3988 = vunpack.c.l.bf16 %v3796
    %v3989 = vunpack.c.l.bf16 %v3797
    %v3990 = vunpack.c.l.bf16 %v3798
    %v3991 = vsub.f32 %v3936, %v3975
    %v3992 = vsub.f32 %v3938, %v3976
    %v3993 = vsub.f32 %v3941, %v3977
    %v3994 = vsub.f32 %v3943, %v3978
    %v3995 = vsub.f32 %v3946, %v3979
    %v3996 = vsub.f32 %v3948, %v3980
    %v3997 = vsub.f32 %v3951, %v3981
    %v3998 = vsub.f32 %v3953, %v3982
    %v3999 = vsub.f32 %v3956, %v3983
    %v4000 = vsub.f32 %v3958, %v3984
    %v4001 = vsub.f32 %v3961, %v3985
    %v4002 = vsub.f32 %v3963, %v3986
    %v4003 = vsub.f32 %v3966, %v3987
    %v4004 = vsub.f32 %v3968, %v3988
    %v4005 = vsub.f32 %v3971, %v3989
    %v4006 = vsub.f32 %v3973, %v3990
    %v4007 = vpack.c.bf16 %v3991, %v3991
    %v4008 = vpack.c.bf16 %v3992, %v3992
    %v4009 = vpack.c.bf16 %v3993, %v3993
    %v4010 = vpack.c.bf16 %v3994, %v3994
    %v4011 = vpack.c.bf16 %v3995, %v3995
    %v4012 = vpack.c.bf16 %v3996, %v3996
    %v4013 = vpack.c.bf16 %v3997, %v3997
    %v4014 = vpack.c.bf16 %v3998, %v3998
    %v4015 = vpack.c.bf16 %v3999, %v3999
    %v4016 = vpack.c.bf16 %v4000, %v4000
    %v4017 = vpack.c.bf16 %v4001, %v4001
    %v4018 = vpack.c.bf16 %v4002, %v4002
    %v4019 = vpack.c.bf16 %v4003, %v4003
    %v4020 = vpack.c.bf16 %v4004, %v4004
    %v4021 = vpack.c.bf16 %v4005, %v4005
    %v4022 = vpack.c.bf16 %v4006, %v4006
    %4023 = vst [vmem:[#allocation5 + $0x1c] sm:$0xf] %v4007
    %4024 = vst [vmem:[#allocation5 + $0x40] sm:$0xf] %v4008
    %4025 = vst [vmem:[#allocation5 + $0x64] sm:$0xf] %v4009
    %4026 = vst [vmem:[#allocation5 + $0x88] sm:$0xf] %v4010
    %4027 = vst [vmem:[#allocation5 + $0xac] sm:$0xf] %v4011
    %4028 = vst [vmem:[#allocation5 + $0xd0] sm:$0xf] %v4012
    %4029 = vst [vmem:[#allocation5 + $0xf4] sm:$0xf] %v4013
    %4030 = vst [vmem:[#allocation5 + $0x118] sm:$0xf] %v4014
    %4031 = vst [vmem:[#allocation5 + $0x13c] sm:$0xf] %v4015
    %4032 = vst [vmem:[#allocation5 + $0x160] sm:$0xf] %v4016
    %4033 = vst [vmem:[#allocation5 + $0x184] sm:$0xf] %v4017
    %4034 = vst [vmem:[#allocation5 + $0x1a8] sm:$0xf] %v4018
    %4035 = vst [vmem:[#allocation5 + $0x1cc] sm:$0xf] %v4019
    %4036 = vst [vmem:[#allocation5 + $0x1f0] sm:$0xf] %v4020
    %4037 = vst [vmem:[#allocation5 + $0x214] sm:$0xf] %v4021
    %4038 = vst [vmem:[#allocation5 + $0x238] sm:$0xf] %v4022
    %v4039 = vld [vmem:[#allocation5 + $0x1c] sm:$0xf]
    %v4040 = vld [vmem:[#allocation5 + $0x40] sm:$0xf]
    %v4041 = vld [vmem:[#allocation5 + $0x64] sm:$0xf]
    %v4042 = vld [vmem:[#allocation5 + $0x88] sm:$0xf]
    %v4043 = vld [vmem:[#allocation5 + $0xac] sm:$0xf]
    %v4044 = vld [vmem:[#allocation5 + $0xd0] sm:$0xf]
    %v4045 = vld [vmem:[#allocation5 + $0xf4] sm:$0xf]
    %v4046 = vld [vmem:[#allocation5 + $0x118] sm:$0xf]
    %v4047 = vld [vmem:[#allocation5 + $0x13c] sm:$0xf]
    %v4048 = vld [vmem:[#allocation5 + $0x160] sm:$0xf]
    %v4049 = vld [vmem:[#allocation5 + $0x184] sm:$0xf]
    %v4050 = vld [vmem:[#allocation5 + $0x1a8] sm:$0xf]
    %v4051 = vld [vmem:[#allocation5 + $0x1cc] sm:$0xf]
    %v4052 = vld [vmem:[#allocation5 + $0x1f0] sm:$0xf]
    %v4053 = vld [vmem:[#allocation5 + $0x214] sm:$0xf]
    %v4054 = vld [vmem:[#allocation5 + $0x238] sm:$0xf]
    %v4055 = vld [vmem:[#allocation5 + $0x18] sm:$0xf]
    %v4056 = vld [vmem:[#allocation5 + $0x3c] sm:$0xf]
    %v4057 = vld [vmem:[#allocation5 + $0x60] sm:$0xf]
    %v4058 = vld [vmem:[#allocation5 + $0x84] sm:$0xf]
    %v4059 = vld [vmem:[#allocation5 + $0xa8] sm:$0xf]
    %v4060 = vld [vmem:[#allocation5 + $0xcc] sm:$0xf]
    %v4061 = vld [vmem:[#allocation5 + $0xf0] sm:$0xf]
    %v4062 = vld [vmem:[#allocation5 + $0x114] sm:$0xf]
    %v4063 = vld [vmem:[#allocation5 + $0x138] sm:$0xf]
    %v4064 = vld [vmem:[#allocation5 + $0x15c] sm:$0xf]
    %v4065 = vld [vmem:[#allocation5 + $0x180] sm:$0xf]
    %v4066 = vld [vmem:[#allocation5 + $0x1a4] sm:$0xf]
    %v4067 = vld [vmem:[#allocation5 + $0x1c8] sm:$0xf]
    %v4068 = vld [vmem:[#allocation5 + $0x1ec] sm:$0xf]
    %v4069 = vld [vmem:[#allocation5 + $0x210] sm:$0xf]
    %v4070 = vld [vmem:[#allocation5 + $0x234] sm:$0xf]
    // Predicated region
    $region122: #{tpu_custom_call.1} parent=1 // pred_check
      _
    $region123: #{tpu_custom_call.1} parent=1 // pred_check_branch
      %4072 = sbr.rel target = $region125
    $region124: #{tpu_custom_call.1} parent=1 // pred_region
      %4073 = sst [smem:[#allocation21]] [#allocation52]
      %4074 = sst [smem:[#allocation22]] [#allocation51]
    $region125: #{tpu_custom_call.1} parent=1 // pred_fallthru
      _
    %4076 = shalt.err (0)
    %s4078 = sshll.u32 %s2, 4
    %s4079 = int_to_ptr.hbm [resolvable:$true] %s4078
    %s4080 = sshll.u32 [#allocation2], 4
    %s4081 = int_to_ptr.vmem [resolvable:$true] %s4080
    %4083 = dma.hbm_to_vmem [thread:$0]  %s4079, 1024, %s4081, [#allocation3]
    %s4084 = sshll.u32 %s206, 4
    %4085 = dma.done [#allocation3], %s4084
    %v4086 = vld [vmem:[#allocation2] sm:$0xf]
    %v4087 = vld [vmem:[#allocation2 + $0x4] sm:$0xf]
    %v4088 = vld [vmem:[#allocation2 + $0x8] sm:$0xf]
    %v4089 = vld [vmem:[#allocation2 + $0xc] sm:$0xf]
    %v4090 = vld [vmem:[#allocation2 + $0x10] sm:$0xf]
    %v4091 = vld [vmem:[#allocation2 + $0x14] sm:$0xf]
    %v4092 = vld [vmem:[#allocation2 + $0x18] sm:$0xf]
    %v4093 = vld [vmem:[#allocation2 + $0x1c] sm:$0xf]
    %v4094 = vld [vmem:[#allocation2 + $0x20] sm:$0xf]
    %v4095 = vld [vmem:[#allocation2 + $0x24] sm:$0xf]
    %v4096 = vld [vmem:[#allocation2 + $0x28] sm:$0xf]
    %v4097 = vld [vmem:[#allocation2 + $0x2c] sm:$0xf]
    %v4098 = vld [vmem:[#allocation2 + $0x30] sm:$0xf]
    %v4099 = vld [vmem:[#allocation2 + $0x34] sm:$0xf]
    %v4100 = vld [vmem:[#allocation2 + $0x38] sm:$0xf]
    %v4101 = vld [vmem:[#allocation2 + $0x3c] sm:$0xf]
    %v4118 = vunpack.c.l.b16 %v4086
    %v4119 = vunpack.c.l.b16 %v4087
    %v4120 = vunpack.c.l.b16 %v4088
    %v4121 = vunpack.c.l.b16 %v4089
    %v4122 = vunpack.c.l.b16 %v4090
    %v4123 = vunpack.c.l.b16 %v4091
    %v4124 = vunpack.c.l.b16 %v4092
    %v4125 = vunpack.c.l.b16 %v4093
    %v4126 = vunpack.c.l.b16 %v4094
    %v4127 = vunpack.c.l.b16 %v4095
    %v4128 = vunpack.c.l.b16 %v4096
    %v4129 = vunpack.c.l.b16 %v4097
    %v4130 = vunpack.c.l.b16 %v4098
    %v4131 = vunpack.c.l.b16 %v4099
    %v4132 = vunpack.c.l.b16 %v4100
    %v4133 = vunpack.c.l.b16 %v4101
    %v4134 = vpack.c.b16 %v4119, %v4118
    %v4135 = vpack.c.b16 %v4121, %v4120
    %v4136 = vpack.c.b16 %v4123, %v4122
    %v4137 = vpack.c.b16 %v4125, %v4124
    %v4138 = vpack.c.b16 %v4127, %v4126
    %v4139 = vpack.c.b16 %v4129, %v4128
    %v4140 = vpack.c.b16 %v4131, %v4130
    %v4141 = vpack.c.b16 %v4133, %v4132
    %v4166 = vunpack.c.l.b16 %v4039
    %v4167 = vunpack.c.l.b16 %v4040
    %v4168 = vunpack.c.l.b16 %v4041
    %v4169 = vunpack.c.l.b16 %v4042
    %v4170 = vunpack.c.l.b16 %v4043
    %v4171 = vunpack.c.l.b16 %v4044
    %v4172 = vunpack.c.l.b16 %v4045
    %v4173 = vunpack.c.l.b16 %v4046
    %v4174 = vunpack.c.l.b16 %v4047
    %v4175 = vunpack.c.l.b16 %v4048
    %v4176 = vunpack.c.l.b16 %v4049
    %v4177 = vunpack.c.l.b16 %v4050
    %v4178 = vunpack.c.l.b16 %v4051
    %v4179 = vunpack.c.l.b16 %v4052
    %v4180 = vunpack.c.l.b16 %v4053
    %v4181 = vunpack.c.l.b16 %v4054
    %v4182 = vpack.c.b16 %v4167, %v4166
    %v4183 = vpack.c.b16 %v4169, %v4168
    %v4184 = vpack.c.b16 %v4171, %v4170
    %v4185 = vpack.c.b16 %v4173, %v4172
    %v4186 = vpack.c.b16 %v4175, %v4174
    %v4187 = vpack.c.b16 %v4177, %v4176
    %v4188 = vpack.c.b16 %v4179, %v4178
    %v4189 = vpack.c.b16 %v4181, %v4180
    %4198 = vmatpush.bf16.msra.mxu0 %v4189
    %4199 = vmatpush.bf16.msra.mxu0 %v4188
    %4200 = vmatpush.bf16.msra.mxu0 %v4187
    %4201 = vmatpush.bf16.msra.mxu0 %v4186
    %4202 = vmatpush.bf16.msra.mxu0 %v4185
    %4203 = vmatpush.bf16.msra.mxu0 %v4184
    %4204 = vmatpush.bf16.msra.mxu0 %v4183
    %4205 = vmatpush.bf16.msra.mxu0 %v4182
    %4206 = vmatmul.bf16.gmra.mxu0 %v4134
    %v4207 = vpop.f32.mrf.mxu0
    %v4208 = vadd.f32 0.0, %v4207
    %v4209 = vpop.f32.mrf.mxu0
    %v4210 = vadd.f32 0.0, %v4209
    %4211 = vmatmul.bf16.gmra.mxu0 %v4135
    %v4212 = vpop.f32.mrf.mxu0
    %v4213 = vadd.f32 0.0, %v4212
    %v4214 = vpop.f32.mrf.mxu0
    %v4215 = vadd.f32 0.0, %v4214
    %4216 = vmatmul.bf16.gmra.mxu0 %v4136
    %v4217 = vpop.f32.mrf.mxu0
    %v4218 = vadd.f32 0.0, %v4217
    %v4219 = vpop.f32.mrf.mxu0
    %v4220 = vadd.f32 0.0, %v4219
    %4221 = vmatmul.bf16.gmra.mxu0 %v4137
    %v4222 = vpop.f32.mrf.mxu0
    %v4223 = vadd.f32 0.0, %v4222
    %v4224 = vpop.f32.mrf.mxu0
    %v4225 = vadd.f32 0.0, %v4224
    %4226 = vmatmul.bf16.gmra.mxu0 %v4138
    %v4227 = vpop.f32.mrf.mxu0
    %v4228 = vadd.f32 0.0, %v4227
    %v4229 = vpop.f32.mrf.mxu0
    %v4230 = vadd.f32 0.0, %v4229
    %4231 = vmatmul.bf16.gmra.mxu0 %v4139
    %v4232 = vpop.f32.mrf.mxu0
    %v4233 = vadd.f32 0.0, %v4232
    %v4234 = vpop.f32.mrf.mxu0
    %v4235 = vadd.f32 0.0, %v4234
    %4236 = vmatmul.bf16.gmra.mxu0 %v4140
    %v4237 = vpop.f32.mrf.mxu0
    %v4238 = vadd.f32 0.0, %v4237
    %v4239 = vpop.f32.mrf.mxu0
    %v4240 = vadd.f32 0.0, %v4239
    %4241 = vmatmul.bf16.gmra.mxu0 %v4141
    %v4242 = vpop.f32.mrf.mxu0
    %v4243 = vadd.f32 0.0, %v4242
    %v4244 = vpop.f32.mrf.mxu0
    %v4245 = vadd.f32 0.0, %v4244
    %4246 = vdwg.mxu0
    %v4247 = vunpack.c.l.bf16 %v4055
    %v4248 = vunpack.c.l.bf16 %v4056
    %v4249 = vunpack.c.l.bf16 %v4057
    %v4250 = vunpack.c.l.bf16 %v4058
    %v4251 = vunpack.c.l.bf16 %v4059
    %v4252 = vunpack.c.l.bf16 %v4060
    %v4253 = vunpack.c.l.bf16 %v4061
    %v4254 = vunpack.c.l.bf16 %v4062
    %v4255 = vunpack.c.l.bf16 %v4063
    %v4256 = vunpack.c.l.bf16 %v4064
    %v4257 = vunpack.c.l.bf16 %v4065
    %v4258 = vunpack.c.l.bf16 %v4066
    %v4259 = vunpack.c.l.bf16 %v4067
    %v4260 = vunpack.c.l.bf16 %v4068
    %v4261 = vunpack.c.l.bf16 %v4069
    %v4262 = vunpack.c.l.bf16 %v4070
    %v4263 = vsub.f32 %v4208, %v4247
    %v4264 = vsub.f32 %v4210, %v4248
    %v4265 = vsub.f32 %v4213, %v4249
    %v4266 = vsub.f32 %v4215, %v4250
    %v4267 = vsub.f32 %v4218, %v4251
    %v4268 = vsub.f32 %v4220, %v4252
    %v4269 = vsub.f32 %v4223, %v4253
    %v4270 = vsub.f32 %v4225, %v4254
    %v4271 = vsub.f32 %v4228, %v4255
    %v4272 = vsub.f32 %v4230, %v4256
    %v4273 = vsub.f32 %v4233, %v4257
    %v4274 = vsub.f32 %v4235, %v4258
    %v4275 = vsub.f32 %v4238, %v4259
    %v4276 = vsub.f32 %v4240, %v4260
    %v4277 = vsub.f32 %v4243, %v4261
    %v4278 = vsub.f32 %v4245, %v4262
    %v4279 = vpack.c.bf16 %v4263, %v4263
    %v4280 = vpack.c.bf16 %v4264, %v4264
    %v4281 = vpack.c.bf16 %v4265, %v4265
    %v4282 = vpack.c.bf16 %v4266, %v4266
    %v4283 = vpack.c.bf16 %v4267, %v4267
    %v4284 = vpack.c.bf16 %v4268, %v4268
    %v4285 = vpack.c.bf16 %v4269, %v4269
    %v4286 = vpack.c.bf16 %v4270, %v4270
    %v4287 = vpack.c.bf16 %v4271, %v4271
    %v4288 = vpack.c.bf16 %v4272, %v4272
    %v4289 = vpack.c.bf16 %v4273, %v4273
    %v4290 = vpack.c.bf16 %v4274, %v4274
    %v4291 = vpack.c.bf16 %v4275, %v4275
    %v4292 = vpack.c.bf16 %v4276, %v4276
    %v4293 = vpack.c.bf16 %v4277, %v4277
    %v4294 = vpack.c.bf16 %v4278, %v4278
    %4295 = vst [vmem:[#allocation5 + $0x20] sm:$0xf] %v4279
    %4296 = vst [vmem:[#allocation5 + $0x44] sm:$0xf] %v4280
    %4297 = vst [vmem:[#allocation5 + $0x68] sm:$0xf] %v4281
    %4298 = vst [vmem:[#allocation5 + $0x8c] sm:$0xf] %v4282
    %4299 = vst [vmem:[#allocation5 + $0xb0] sm:$0xf] %v4283
    %4300 = vst [vmem:[#allocation5 + $0xd4] sm:$0xf] %v4284
    %4301 = vst [vmem:[#allocation5 + $0xf8] sm:$0xf] %v4285
    %4302 = vst [vmem:[#allocation5 + $0x11c] sm:$0xf] %v4286
    %4303 = vst [vmem:[#allocation5 + $0x140] sm:$0xf] %v4287
    %4304 = vst [vmem:[#allocation5 + $0x164] sm:$0xf] %v4288
    %4305 = vst [vmem:[#allocation5 + $0x188] sm:$0xf] %v4289
    %4306 = vst [vmem:[#allocation5 + $0x1ac] sm:$0xf] %v4290
    %4307 = vst [vmem:[#allocation5 + $0x1d0] sm:$0xf] %v4291
    %4308 = vst [vmem:[#allocation5 + $0x1f4] sm:$0xf] %v4292
    %4309 = vst [vmem:[#allocation5 + $0x218] sm:$0xf] %v4293
    %4310 = vst [vmem:[#allocation5 + $0x23c] sm:$0xf] %v4294
    %v4311 = vld [vmem:[#allocation5] sm:$0xff]
    %v4312 = vld [vmem:[#allocation5 + $0x8] sm:$0xff]
    %v4313 = vld [vmem:[#allocation5 + $0x10] sm:$0xff]
    %v4314 = vld [vmem:[#allocation5 + $0x18] sm:$0xff]
    %v4315 = vld [vmem:[#allocation5 + $0x20] sm:$0xf]
    %v4316 = vld [vmem:[#allocation5 + $0x24] sm:$0xff]
    %v4317 = vld [vmem:[#allocation5 + $0x2c] sm:$0xff]
    %v4318 = vld [vmem:[#allocation5 + $0x34] sm:$0xff]
    %v4319 = vld [vmem:[#allocation5 + $0x3c] sm:$0xff]
    %v4320 = vld [vmem:[#allocation5 + $0x44] sm:$0xf]
    %v4321 = vld [vmem:[#allocation5 + $0x48] sm:$0xff]
    %v4322 = vld [vmem:[#allocation5 + $0x50] sm:$0xff]
    %v4323 = vld [vmem:[#allocation5 + $0x58] sm:$0xff]
    %v4324 = vld [vmem:[#allocation5 + $0x60] sm:$0xff]
    %v4325 = vld [vmem:[#allocation5 + $0x68] sm:$0xf]
    %v4326 = vld [vmem:[#allocation5 + $0x6c] sm:$0xff]
    %v4327 = vld [vmem:[#allocation5 + $0x74] sm:$0xff]
    %v4328 = vld [vmem:[#allocation5 + $0x7c] sm:$0xff]
    %v4329 = vld [vmem:[#allocation5 + $0x84] sm:$0xff]
    %v4330 = vld [vmem:[#allocation5 + $0x8c] sm:$0xf]
    %v4331 = vld [vmem:[#allocation5 + $0x90] sm:$0xff]
    %v4332 = vld [vmem:[#allocation5 + $0x98] sm:$0xff]
    %v4333 = vld [vmem:[#allocation5 + $0xa0] sm:$0xff]
    %v4334 = vld [vmem:[#allocation5 + $0xa8] sm:$0xff]
    %v4335 = vld [vmem:[#allocation5 + $0xb0] sm:$0xf]
    %v4336 = vld [vmem:[#allocation5 + $0xb4] sm:$0xff]
    %v4337 = vld [vmem:[#allocation5 + $0xbc] sm:$0xff]
    %v4338 = vld [vmem:[#allocation5 + $0xc4] sm:$0xff]
    %v4339 = vld [vmem:[#allocation5 + $0xcc] sm:$0xff]
    %v4340 = vld [vmem:[#allocation5 + $0xd4] sm:$0xf]
    %v4341 = vld [vmem:[#allocation5 + $0xd8] sm:$0xff]
    %v4342 = vld [vmem:[#allocation5 + $0xe0] sm:$0xff]
    %v4343 = vld [vmem:[#allocation5 + $0xe8] sm:$0xff]
    %v4344 = vld [vmem:[#allocation5 + $0xf0] sm:$0xff]
    %v4345 = vld [vmem:[#allocation5 + $0xf8] sm:$0xf]
    %v4346 = vld [vmem:[#allocation5 + $0xfc] sm:$0xff]
    %v4347 = vld [vmem:[#allocation5 + $0x104] sm:$0xff]
    %v4348 = vld [vmem:[#allocation5 + $0x10c] sm:$0xff]
    %v4349 = vld [vmem:[#allocation5 + $0x114] sm:$0xff]
    %v4350 = vld [vmem:[#allocation5 + $0x11c] sm:$0xf]
    %v4351 = vld [vmem:[#allocation5 + $0x120] sm:$0xff]
    %v4352 = vld [vmem:[#allocation5 + $0x128] sm:$0xff]
    %v4353 = vld [vmem:[#allocation5 + $0x130] sm:$0xff]
    %v4354 = vld [vmem:[#allocation5 + $0x138] sm:$0xff]
    %v4355 = vld [vmem:[#allocation5 + $0x140] sm:$0xf]
    %v4356 = vld [vmem:[#allocation5 + $0x144] sm:$0xff]
    %v4357 = vld [vmem:[#allocation5 + $0x14c] sm:$0xff]
    %v4358 = vld [vmem:[#allocation5 + $0x154] sm:$0xff]
    %v4359 = vld [vmem:[#allocation5 + $0x15c] sm:$0xff]
    %v4360 = vld [vmem:[#allocation5 + $0x164] sm:$0xf]
    %v4361 = vld [vmem:[#allocation5 + $0x168] sm:$0xff]
    %v4362 = vld [vmem:[#allocation5 + $0x170] sm:$0xff]
    %v4363 = vld [vmem:[#allocation5 + $0x178] sm:$0xff]
    %v4364 = vld [vmem:[#allocation5 + $0x180] sm:$0xff]
    %v4365 = vld [vmem:[#allocation5 + $0x188] sm:$0xf]
    %v4366 = vld [vmem:[#allocation5 + $0x18c] sm:$0xff]
    %v4367 = vld [vmem:[#allocation5 + $0x194] sm:$0xff]
    %v4368 = vld [vmem:[#allocation5 + $0x19c] sm:$0xff]
    %v4369 = vld [vmem:[#allocation5 + $0x1a4] sm:$0xff]
    %v4370 = vld [vmem:[#allocation5 + $0x1ac] sm:$0xf]
    %v4371 = vld [vmem:[#allocation5 + $0x1b0] sm:$0xff]
    %v4372 = vld [vmem:[#allocation5 + $0x1b8] sm:$0xff]
    %v4373 = vld [vmem:[#allocation5 + $0x1c0] sm:$0xff]
    %v4374 = vld [vmem:[#allocation5 + $0x1c8] sm:$0xff]
    %v4375 = vld [vmem:[#allocation5 + $0x1d0] sm:$0xf]
    %v4376 = vld [vmem:[#allocation5 + $0x1d4] sm:$0xff]
    %v4377 = vld [vmem:[#allocation5 + $0x1dc] sm:$0xff]
    %v4378 = vld [vmem:[#allocation5 + $0x1e4] sm:$0xff]
    %v4379 = vld [vmem:[#allocation5 + $0x1ec] sm:$0xff]
    %v4380 = vld [vmem:[#allocation5 + $0x1f4] sm:$0xf]
    %v4381 = vld [vmem:[#allocation5 + $0x1f8] sm:$0xff]
    %v4382 = vld [vmem:[#allocation5 + $0x200] sm:$0xff]
    %v4383 = vld [vmem:[#allocation5 + $0x208] sm:$0xff]
    %v4384 = vld [vmem:[#allocation5 + $0x210] sm:$0xff]
    %v4385 = vld [vmem:[#allocation5 + $0x218] sm:$0xf]
    %v4386 = vld [vmem:[#allocation5 + $0x21c] sm:$0xff]
    %v4387 = vld [vmem:[#allocation5 + $0x224] sm:$0xff]
    %v4388 = vld [vmem:[#allocation5 + $0x22c] sm:$0xff]
    %v4389 = vld [vmem:[#allocation5 + $0x234] sm:$0xff]
    %v4390 = vld [vmem:[#allocation5 + $0x23c] sm:$0xf]
    %v4391 = vld [vmem:[#allocation11] sm:$0xff]
    %v4392 = vld [vmem:[#allocation11 + $0x8] sm:$0xff]
    %v4393 = vld [vmem:[#allocation11 + $0x10] sm:$0xff]
    %v4394 = vld [vmem:[#allocation11 + $0x18] sm:$0xff]
    %v4395 = vld [vmem:[#allocation11 + $0x20] sm:$0xff]
    %v4396 = vld [vmem:[#allocation11 + $0x28] sm:$0xff]
    %v4397 = vld [vmem:[#allocation11 + $0x30] sm:$0xff]
    %v4398 = vld [vmem:[#allocation11 + $0x38] sm:$0xff]
    %v4399 = vld [vmem:[#allocation11 + $0x40] sm:$0xff]
    %v4400 = vld [vmem:[#allocation11 + $0x48] sm:$0xff]
    %v4401 = vld [vmem:[#allocation11 + $0x50] sm:$0xff]
    %v4402 = vld [vmem:[#allocation11 + $0x58] sm:$0xff]
    %v4403 = vld [vmem:[#allocation11 + $0x60] sm:$0xff]
    %v4404 = vld [vmem:[#allocation11 + $0x68] sm:$0xff]
    %v4405 = vld [vmem:[#allocation11 + $0x70] sm:$0xff]
    %v4406 = vld [vmem:[#allocation11 + $0x78] sm:$0xff]
    %v4407 = vld [vmem:[#allocation11 + $0x80] sm:$0xff]
    %v4408 = vld [vmem:[#allocation11 + $0x88] sm:$0xff]
    %v4409 = vld [vmem:[#allocation11 + $0x90] sm:$0xff]
    %v4410 = vld [vmem:[#allocation11 + $0x98] sm:$0xff]
    %v4411 = vld [vmem:[#allocation11 + $0xa0] sm:$0xff]
    %v4412 = vld [vmem:[#allocation11 + $0xa8] sm:$0xff]
    %v4413 = vld [vmem:[#allocation11 + $0xb0] sm:$0xff]
    %v4414 = vld [vmem:[#allocation11 + $0xb8] sm:$0xff]
    %v4415 = vld [vmem:[#allocation11 + $0xc0] sm:$0xff]
    %v4416 = vld [vmem:[#allocation11 + $0xc8] sm:$0xff]
    %v4417 = vld [vmem:[#allocation11 + $0xd0] sm:$0xff]
    %v4418 = vld [vmem:[#allocation11 + $0xd8] sm:$0xff]
    %v4419 = vld [vmem:[#allocation11 + $0xe0] sm:$0xff]
    %v4420 = vld [vmem:[#allocation11 + $0xe8] sm:$0xff]
    %v4421 = vld [vmem:[#allocation11 + $0xf0] sm:$0xff]
    %v4422 = vld [vmem:[#allocation11 + $0xf8] sm:$0xff]
    %v4423 = vld [vmem:[#allocation11 + $0x100] sm:$0xff]
    %v4424 = vld [vmem:[#allocation11 + $0x108] sm:$0xff]
    %v4425 = vld [vmem:[#allocation11 + $0x110] sm:$0xff]
    %v4426 = vld [vmem:[#allocation11 + $0x118] sm:$0xff]
    %v4427 = vld [vmem:[#allocation11 + $0x120] sm:$0xff]
    %v4428 = vld [vmem:[#allocation11 + $0x128] sm:$0xff]
    %v4429 = vld [vmem:[#allocation11 + $0x130] sm:$0xff]
    %v4430 = vld [vmem:[#allocation11 + $0x138] sm:$0xff]
    %v4431 = vld [vmem:[#allocation11 + $0x140] sm:$0xff]
    %v4432 = vld [vmem:[#allocation11 + $0x148] sm:$0xff]
    %v4433 = vld [vmem:[#allocation11 + $0x150] sm:$0xff]
    %v4434 = vld [vmem:[#allocation11 + $0x158] sm:$0xff]
    %v4435 = vld [vmem:[#allocation11 + $0x160] sm:$0xff]
    %v4436 = vld [vmem:[#allocation11 + $0x168] sm:$0xff]
    %v4437 = vld [vmem:[#allocation11 + $0x170] sm:$0xff]
    %v4438 = vld [vmem:[#allocation11 + $0x178] sm:$0xff]
    %v4439 = vld [vmem:[#allocation11 + $0x180] sm:$0xff]
    %v4440 = vld [vmem:[#allocation11 + $0x188] sm:$0xff]
    %v4441 = vld [vmem:[#allocation11 + $0x190] sm:$0xff]
    %v4442 = vld [vmem:[#allocation11 + $0x198] sm:$0xff]
    %v4443 = vld [vmem:[#allocation11 + $0x1a0] sm:$0xff]
    %v4444 = vld [vmem:[#allocation11 + $0x1a8] sm:$0xff]
    %v4445 = vld [vmem:[#allocation11 + $0x1b0] sm:$0xff]
    %v4446 = vld [vmem:[#allocation11 + $0x1b8] sm:$0xff]
    %v4447 = vld [vmem:[#allocation11 + $0x1c0] sm:$0xff]
    %v4448 = vld [vmem:[#allocation11 + $0x1c8] sm:$0xff]
    %v4449 = vld [vmem:[#allocation11 + $0x1d0] sm:$0xff]
    %v4450 = vld [vmem:[#allocation11 + $0x1d8] sm:$0xff]
    %v4451 = vld [vmem:[#allocation11 + $0x1e0] sm:$0xff]
    %v4452 = vld [vmem:[#allocation11 + $0x1e8] sm:$0xff]
    %v4453 = vld [vmem:[#allocation11 + $0x1f0] sm:$0xff]
    %v4454 = vld [vmem:[#allocation11 + $0x1f8] sm:$0xff]
    %v4455 = vld [vmem:[#allocation11 + $0x200] sm:$0xff]
    %v4456 = vld [vmem:[#allocation11 + $0x208] sm:$0xff]
    %v4457 = vld [vmem:[#allocation11 + $0x210] sm:$0xff]
    %v4458 = vld [vmem:[#allocation11 + $0x218] sm:$0xff]
    %v4459 = vld [vmem:[#allocation11 + $0x220] sm:$0xff]
    %v4460 = vld [vmem:[#allocation11 + $0x228] sm:$0xff]
    %v4461 = vld [vmem:[#allocation11 + $0x230] sm:$0xff]
    %v4462 = vld [vmem:[#allocation11 + $0x238] sm:$0xff]
    %v4463 = vld [vmem:[#allocation11 + $0x240] sm:$0xff]
    %v4464 = vld [vmem:[#allocation11 + $0x248] sm:$0xff]
    %v4465 = vld [vmem:[#allocation11 + $0x250] sm:$0xff]
    %v4466 = vld [vmem:[#allocation11 + $0x258] sm:$0xff]
    %v4467 = vld [vmem:[#allocation11 + $0x260] sm:$0xff]
    %v4468 = vld [vmem:[#allocation11 + $0x268] sm:$0xff]
    %v4469 = vld [vmem:[#allocation11 + $0x270] sm:$0xff]
    %v4470 = vld [vmem:[#allocation11 + $0x278] sm:$0xff]
    %v4471 = vld [vmem:[#allocation11 + $0x280] sm:$0xff]
    %v4472 = vld [vmem:[#allocation11 + $0x288] sm:$0xff]
    %v4473 = vld [vmem:[#allocation11 + $0x290] sm:$0xff]
    %v4474 = vld [vmem:[#allocation11 + $0x298] sm:$0xff]
    %v4475 = vld [vmem:[#allocation11 + $0x2a0] sm:$0xff]
    %v4476 = vld [vmem:[#allocation11 + $0x2a8] sm:$0xff]
    %v4477 = vld [vmem:[#allocation11 + $0x2b0] sm:$0xff]
    %v4478 = vld [vmem:[#allocation11 + $0x2b8] sm:$0xff]
    %v4479 = vld [vmem:[#allocation11 + $0x2c0] sm:$0xff]
    %v4480 = vld [vmem:[#allocation11 + $0x2c8] sm:$0xff]
    %v4481 = vld [vmem:[#allocation11 + $0x2d0] sm:$0xff]
    %v4482 = vld [vmem:[#allocation11 + $0x2d8] sm:$0xff]
    %v4483 = vld [vmem:[#allocation11 + $0x2e0] sm:$0xff]
    %v4484 = vld [vmem:[#allocation11 + $0x2e8] sm:$0xff]
    %v4485 = vld [vmem:[#allocation11 + $0x2f0] sm:$0xff]
    %v4486 = vld [vmem:[#allocation11 + $0x2f8] sm:$0xff]
    %v4487 = vld [vmem:[#allocation11 + $0x300] sm:$0xff]
    %v4488 = vld [vmem:[#allocation11 + $0x308] sm:$0xff]
    %v4489 = vld [vmem:[#allocation11 + $0x310] sm:$0xff]
    %v4490 = vld [vmem:[#allocation11 + $0x318] sm:$0xff]
    %v4491 = vld [vmem:[#allocation11 + $0x320] sm:$0xff]
    %v4492 = vld [vmem:[#allocation11 + $0x328] sm:$0xff]
    %v4493 = vld [vmem:[#allocation11 + $0x330] sm:$0xff]
    %v4494 = vld [vmem:[#allocation11 + $0x338] sm:$0xff]
    %v4495 = vld [vmem:[#allocation11 + $0x340] sm:$0xff]
    %v4496 = vld [vmem:[#allocation11 + $0x348] sm:$0xff]
    %v4497 = vld [vmem:[#allocation11 + $0x350] sm:$0xff]
    %v4498 = vld [vmem:[#allocation11 + $0x358] sm:$0xff]
    %v4499 = vld [vmem:[#allocation11 + $0x360] sm:$0xff]
    %v4500 = vld [vmem:[#allocation11 + $0x368] sm:$0xff]
    %v4501 = vld [vmem:[#allocation11 + $0x370] sm:$0xff]
    %v4502 = vld [vmem:[#allocation11 + $0x378] sm:$0xff]
    %v4503 = vld [vmem:[#allocation11 + $0x380] sm:$0xff]
    %v4504 = vld [vmem:[#allocation11 + $0x388] sm:$0xff]
    %v4505 = vld [vmem:[#allocation11 + $0x390] sm:$0xff]
    %v4506 = vld [vmem:[#allocation11 + $0x398] sm:$0xff]
    %v4507 = vld [vmem:[#allocation11 + $0x3a0] sm:$0xff]
    %v4508 = vld [vmem:[#allocation11 + $0x3a8] sm:$0xff]
    %v4509 = vld [vmem:[#allocation11 + $0x3b0] sm:$0xff]
    %v4510 = vld [vmem:[#allocation11 + $0x3b8] sm:$0xff]
    %v4511 = vld [vmem:[#allocation11 + $0x3c0] sm:$0xff]
    %v4512 = vld [vmem:[#allocation11 + $0x3c8] sm:$0xff]
    %v4513 = vld [vmem:[#allocation11 + $0x3d0] sm:$0xff]
    %v4514 = vld [vmem:[#allocation11 + $0x3d8] sm:$0xff]
    %v4515 = vld [vmem:[#allocation11 + $0x3e0] sm:$0xff]
    %v4516 = vld [vmem:[#allocation11 + $0x3e8] sm:$0xff]
    %v4517 = vld [vmem:[#allocation11 + $0x3f0] sm:$0xff]
    %v4518 = vld [vmem:[#allocation11 + $0x3f8] sm:$0xff]
    %v4519 = vld [vmem:[#allocation11 + $0x400] sm:$0xff]
    %v4520 = vld [vmem:[#allocation11 + $0x408] sm:$0xff]
    %v4521 = vld [vmem:[#allocation11 + $0x410] sm:$0xff]
    %v4522 = vld [vmem:[#allocation11 + $0x418] sm:$0xff]
    %v4523 = vld [vmem:[#allocation11 + $0x420] sm:$0xff]
    %v4524 = vld [vmem:[#allocation11 + $0x428] sm:$0xff]
    %v4525 = vld [vmem:[#allocation11 + $0x430] sm:$0xff]
    %v4526 = vld [vmem:[#allocation11 + $0x438] sm:$0xff]
    %v4527 = vld [vmem:[#allocation11 + $0x440] sm:$0xff]
    %v4528 = vld [vmem:[#allocation11 + $0x448] sm:$0xff]
    %v4529 = vld [vmem:[#allocation11 + $0x450] sm:$0xff]
    %v4530 = vld [vmem:[#allocation11 + $0x458] sm:$0xff]
    %v4531 = vld [vmem:[#allocation11 + $0x460] sm:$0xff]
    %v4532 = vld [vmem:[#allocation11 + $0x468] sm:$0xff]
    %v4533 = vld [vmem:[#allocation11 + $0x470] sm:$0xff]
    %v4534 = vld [vmem:[#allocation11 + $0x478] sm:$0xff]
    %v4535 = vld [vmem:[#allocation11 + $0x480] sm:$0xff]
    %v4536 = vld [vmem:[#allocation11 + $0x488] sm:$0xff]
    %v4537 = vld [vmem:[#allocation11 + $0x490] sm:$0xff]
    %v4538 = vld [vmem:[#allocation11 + $0x498] sm:$0xff]
    %v4539 = vld [vmem:[#allocation11 + $0x4a0] sm:$0xff]
    %v4540 = vld [vmem:[#allocation11 + $0x4a8] sm:$0xff]
    %v4541 = vld [vmem:[#allocation11 + $0x4b0] sm:$0xff]
    %v4542 = vld [vmem:[#allocation11 + $0x4b8] sm:$0xff]
    %v4543 = vld [vmem:[#allocation11 + $0x4c0] sm:$0xff]
    %v4544 = vld [vmem:[#allocation11 + $0x4c8] sm:$0xff]
    %v4545 = vld [vmem:[#allocation11 + $0x4d0] sm:$0xff]
    %v4546 = vld [vmem:[#allocation11 + $0x4d8] sm:$0xff]
    %v4547 = vld [vmem:[#allocation11 + $0x4e0] sm:$0xff]
    %v4548 = vld [vmem:[#allocation11 + $0x4e8] sm:$0xff]
    %v4549 = vld [vmem:[#allocation11 + $0x4f0] sm:$0xff]
    %v4550 = vld [vmem:[#allocation11 + $0x4f8] sm:$0xff]
    %v4551 = vld [vmem:[#allocation11 + $0x500] sm:$0xff]
    %v4552 = vld [vmem:[#allocation11 + $0x508] sm:$0xff]
    %v4553 = vld [vmem:[#allocation11 + $0x510] sm:$0xff]
    %v4554 = vld [vmem:[#allocation11 + $0x518] sm:$0xff]
    %v4555 = vld [vmem:[#allocation11 + $0x520] sm:$0xff]
    %v4556 = vld [vmem:[#allocation11 + $0x528] sm:$0xff]
    %v4557 = vld [vmem:[#allocation11 + $0x530] sm:$0xff]
    %v4558 = vld [vmem:[#allocation11 + $0x538] sm:$0xff]
    %v4559 = vld [vmem:[#allocation11 + $0x540] sm:$0xff]
    %v4560 = vld [vmem:[#allocation11 + $0x548] sm:$0xff]
    %v4561 = vld [vmem:[#allocation11 + $0x550] sm:$0xff]
    %v4562 = vld [vmem:[#allocation11 + $0x558] sm:$0xff]
    %v4563 = vld [vmem:[#allocation11 + $0x560] sm:$0xff]
    %v4564 = vld [vmem:[#allocation11 + $0x568] sm:$0xff]
    %v4565 = vld [vmem:[#allocation11 + $0x570] sm:$0xff]
    %v4566 = vld [vmem:[#allocation11 + $0x578] sm:$0xff]
    %v4567 = vld [vmem:[#allocation11 + $0x580] sm:$0xff]
    %v4568 = vld [vmem:[#allocation11 + $0x588] sm:$0xff]
    %v4569 = vld [vmem:[#allocation11 + $0x590] sm:$0xff]
    %v4570 = vld [vmem:[#allocation11 + $0x598] sm:$0xff]
    %v4571 = vld [vmem:[#allocation11 + $0x5a0] sm:$0xff]
    %v4572 = vld [vmem:[#allocation11 + $0x5a8] sm:$0xff]
    %v4573 = vld [vmem:[#allocation11 + $0x5b0] sm:$0xff]
    %v4574 = vld [vmem:[#allocation11 + $0x5b8] sm:$0xff]
    %v4575 = vld [vmem:[#allocation11 + $0x5c0] sm:$0xff]
    %v4576 = vld [vmem:[#allocation11 + $0x5c8] sm:$0xff]
    %v4577 = vld [vmem:[#allocation11 + $0x5d0] sm:$0xff]
    %v4578 = vld [vmem:[#allocation11 + $0x5d8] sm:$0xff]
    %v4579 = vld [vmem:[#allocation11 + $0x5e0] sm:$0xff]
    %v4580 = vld [vmem:[#allocation11 + $0x5e8] sm:$0xff]
    %v4581 = vld [vmem:[#allocation11 + $0x5f0] sm:$0xff]
    %v4582 = vld [vmem:[#allocation11 + $0x5f8] sm:$0xff]
    %v4583 = vld [vmem:[#allocation11 + $0x600] sm:$0xff]
    %v4584 = vld [vmem:[#allocation11 + $0x608] sm:$0xff]
    %v4585 = vld [vmem:[#allocation11 + $0x610] sm:$0xff]
    %v4586 = vld [vmem:[#allocation11 + $0x618] sm:$0xff]
    %v4587 = vld [vmem:[#allocation11 + $0x620] sm:$0xff]
    %v4588 = vld [vmem:[#allocation11 + $0x628] sm:$0xff]
    %v4589 = vld [vmem:[#allocation11 + $0x630] sm:$0xff]
    %v4590 = vld [vmem:[#allocation11 + $0x638] sm:$0xff]
    %v4591 = vld [vmem:[#allocation11 + $0x640] sm:$0xff]
    %v4592 = vld [vmem:[#allocation11 + $0x648] sm:$0xff]
    %v4593 = vld [vmem:[#allocation11 + $0x650] sm:$0xff]
    %v4594 = vld [vmem:[#allocation11 + $0x658] sm:$0xff]
    %v4595 = vld [vmem:[#allocation11 + $0x660] sm:$0xff]
    %v4596 = vld [vmem:[#allocation11 + $0x668] sm:$0xff]
    %v4597 = vld [vmem:[#allocation11 + $0x670] sm:$0xff]
    %v4598 = vld [vmem:[#allocation11 + $0x678] sm:$0xff]
    %v4599 = vld [vmem:[#allocation11 + $0x680] sm:$0xff]
    %v4600 = vld [vmem:[#allocation11 + $0x688] sm:$0xff]
    %v4601 = vld [vmem:[#allocation11 + $0x690] sm:$0xff]
    %v4602 = vld [vmem:[#allocation11 + $0x698] sm:$0xff]
    %v4603 = vld [vmem:[#allocation11 + $0x6a0] sm:$0xff]
    %v4604 = vld [vmem:[#allocation11 + $0x6a8] sm:$0xff]
    %v4605 = vld [vmem:[#allocation11 + $0x6b0] sm:$0xff]
    %v4606 = vld [vmem:[#allocation11 + $0x6b8] sm:$0xff]
    %v4607 = vld [vmem:[#allocation11 + $0x6c0] sm:$0xff]
    %v4608 = vld [vmem:[#allocation11 + $0x6c8] sm:$0xff]
    %v4609 = vld [vmem:[#allocation11 + $0x6d0] sm:$0xff]
    %v4610 = vld [vmem:[#allocation11 + $0x6d8] sm:$0xff]
    %v4611 = vld [vmem:[#allocation11 + $0x6e0] sm:$0xff]
    %v4612 = vld [vmem:[#allocation11 + $0x6e8] sm:$0xff]
    %v4613 = vld [vmem:[#allocation11 + $0x6f0] sm:$0xff]
    %v4614 = vld [vmem:[#allocation11 + $0x6f8] sm:$0xff]
    %v4615 = vld [vmem:[#allocation11 + $0x700] sm:$0xff]
    %v4616 = vld [vmem:[#allocation11 + $0x708] sm:$0xff]
    %v4617 = vld [vmem:[#allocation11 + $0x710] sm:$0xff]
    %v4618 = vld [vmem:[#allocation11 + $0x718] sm:$0xff]
    %v4619 = vld [vmem:[#allocation11 + $0x720] sm:$0xff]
    %v4620 = vld [vmem:[#allocation11 + $0x728] sm:$0xff]
    %v4621 = vld [vmem:[#allocation11 + $0x730] sm:$0xff]
    %v4622 = vld [vmem:[#allocation11 + $0x738] sm:$0xff]
    %v4623 = vld [vmem:[#allocation11 + $0x740] sm:$0xff]
    %v4624 = vld [vmem:[#allocation11 + $0x748] sm:$0xff]
    %v4625 = vld [vmem:[#allocation11 + $0x750] sm:$0xff]
    %v4626 = vld [vmem:[#allocation11 + $0x758] sm:$0xff]
    %v4627 = vld [vmem:[#allocation11 + $0x760] sm:$0xff]
    %v4628 = vld [vmem:[#allocation11 + $0x768] sm:$0xff]
    %v4629 = vld [vmem:[#allocation11 + $0x770] sm:$0xff]
    %v4630 = vld [vmem:[#allocation11 + $0x778] sm:$0xff]
    %v4631 = vld [vmem:[#allocation11 + $0x780] sm:$0xff]
    %v4632 = vld [vmem:[#allocation11 + $0x788] sm:$0xff]
    %v4633 = vld [vmem:[#allocation11 + $0x790] sm:$0xff]
    %v4634 = vld [vmem:[#allocation11 + $0x798] sm:$0xff]
    %v4635 = vld [vmem:[#allocation11 + $0x7a0] sm:$0xff]
    %v4636 = vld [vmem:[#allocation11 + $0x7a8] sm:$0xff]
    %v4637 = vld [vmem:[#allocation11 + $0x7b0] sm:$0xff]
    %v4638 = vld [vmem:[#allocation11 + $0x7b8] sm:$0xff]
    %v4639 = vld [vmem:[#allocation11 + $0x7c0] sm:$0xff]
    %v4640 = vld [vmem:[#allocation11 + $0x7c8] sm:$0xff]
    %v4641 = vld [vmem:[#allocation11 + $0x7d0] sm:$0xff]
    %v4642 = vld [vmem:[#allocation11 + $0x7d8] sm:$0xff]
    %v4643 = vld [vmem:[#allocation11 + $0x7e0] sm:$0xff]
    %v4644 = vld [vmem:[#allocation11 + $0x7e8] sm:$0xff]
    %v4645 = vld [vmem:[#allocation11 + $0x7f0] sm:$0xff]
    %v4646 = vld [vmem:[#allocation11 + $0x7f8] sm:$0xff]
    %v4647 = vld [vmem:[#allocation11 + $0x800] sm:$0xff]
    %v4648 = vld [vmem:[#allocation11 + $0x808] sm:$0xff]
    %v4649 = vld [vmem:[#allocation11 + $0x810] sm:$0xff]
    %v4650 = vld [vmem:[#allocation11 + $0x818] sm:$0xff]
    %v4651 = vld [vmem:[#allocation11 + $0x820] sm:$0xff]
    %v4652 = vld [vmem:[#allocation11 + $0x828] sm:$0xff]
    %v4653 = vld [vmem:[#allocation11 + $0x830] sm:$0xff]
    %v4654 = vld [vmem:[#allocation11 + $0x838] sm:$0xff]
    %v4655 = vld [vmem:[#allocation11 + $0x840] sm:$0xff]
    %v4656 = vld [vmem:[#allocation11 + $0x848] sm:$0xff]
    %v4657 = vld [vmem:[#allocation11 + $0x850] sm:$0xff]
    %v4658 = vld [vmem:[#allocation11 + $0x858] sm:$0xff]
    %v4659 = vld [vmem:[#allocation11 + $0x860] sm:$0xff]
    %v4660 = vld [vmem:[#allocation11 + $0x868] sm:$0xff]
    %v4661 = vld [vmem:[#allocation11 + $0x870] sm:$0xff]
    %v4662 = vld [vmem:[#allocation11 + $0x878] sm:$0xff]
    %v4663 = vld [vmem:[#allocation11 + $0x880] sm:$0xff]
    %v4664 = vld [vmem:[#allocation11 + $0x888] sm:$0xff]
    %v4665 = vld [vmem:[#allocation11 + $0x890] sm:$0xff]
    %v4666 = vld [vmem:[#allocation11 + $0x898] sm:$0xff]
    %v4667 = vld [vmem:[#allocation11 + $0x8a0] sm:$0xff]
    %v4668 = vld [vmem:[#allocation11 + $0x8a8] sm:$0xff]
    %v4669 = vld [vmem:[#allocation11 + $0x8b0] sm:$0xff]
    %v4670 = vld [vmem:[#allocation11 + $0x8b8] sm:$0xff]
    %v4671 = vld [vmem:[#allocation11 + $0x8c0] sm:$0xff]
    %v4672 = vld [vmem:[#allocation11 + $0x8c8] sm:$0xff]
    %v4673 = vld [vmem:[#allocation11 + $0x8d0] sm:$0xff]
    %v4674 = vld [vmem:[#allocation11 + $0x8d8] sm:$0xff]
    %v4675 = vld [vmem:[#allocation11 + $0x8e0] sm:$0xff]
    %v4676 = vld [vmem:[#allocation11 + $0x8e8] sm:$0xff]
    %v4677 = vld [vmem:[#allocation11 + $0x8f0] sm:$0xff]
    %v4678 = vld [vmem:[#allocation11 + $0x8f8] sm:$0xff]
    %v4679 = vld [vmem:[#allocation12] sm:$0xf]
    %v4681 = vperm.slane %v4679, 0
    %v4682 = vperm.slane %v4679, 1
    %v4683 = vperm.slane %v4679, 2
    %v4684 = vperm.slane %v4679, 3
    %v4769 = vunpack.c.l.b16 %v4311
    %v4770 = vunpack.c.h.b16 %v4311
    %v4771 = vunpack.c.l.b16 %v4312
    %v4772 = vunpack.c.h.b16 %v4312
    %v4773 = vunpack.c.l.b16 %v4313
    %v4774 = vunpack.c.h.b16 %v4313
    %v4775 = vunpack.c.l.b16 %v4314
    %v4776 = vunpack.c.h.b16 %v4314
    %v4777 = vunpack.c.l.b16 %v4315
    %v4778 = vunpack.c.l.b16 %v4316
    %v4779 = vunpack.c.h.b16 %v4316
    %v4780 = vunpack.c.l.b16 %v4317
    %v4781 = vunpack.c.h.b16 %v4317
    %v4782 = vunpack.c.l.b16 %v4318
    %v4783 = vunpack.c.h.b16 %v4318
    %v4784 = vunpack.c.l.b16 %v4319
    %v4785 = vunpack.c.h.b16 %v4319
    %v4786 = vunpack.c.l.b16 %v4320
    %v4787 = vunpack.c.l.b16 %v4321
    %v4788 = vunpack.c.h.b16 %v4321
    %v4789 = vunpack.c.l.b16 %v4322
    %v4790 = vunpack.c.h.b16 %v4322
    %v4791 = vunpack.c.l.b16 %v4323
    %v4792 = vunpack.c.h.b16 %v4323
    %v4793 = vunpack.c.l.b16 %v4324
    %v4794 = vunpack.c.h.b16 %v4324
    %v4795 = vunpack.c.l.b16 %v4325
    %v4796 = vunpack.c.l.b16 %v4326
    %v4797 = vunpack.c.h.b16 %v4326
    %v4798 = vunpack.c.l.b16 %v4327
    %v4799 = vunpack.c.h.b16 %v4327
    %v4800 = vunpack.c.l.b16 %v4328
    %v4801 = vunpack.c.h.b16 %v4328
    %v4802 = vunpack.c.l.b16 %v4329
    %v4803 = vunpack.c.h.b16 %v4329
    %v4804 = vunpack.c.l.b16 %v4330
    %v4805 = vunpack.c.l.b16 %v4331
    %v4806 = vunpack.c.h.b16 %v4331
    %v4807 = vunpack.c.l.b16 %v4332
    %v4808 = vunpack.c.h.b16 %v4332
    %v4809 = vunpack.c.l.b16 %v4333
    %v4810 = vunpack.c.h.b16 %v4333
    %v4811 = vunpack.c.l.b16 %v4334
    %v4812 = vunpack.c.h.b16 %v4334
    %v4813 = vunpack.c.l.b16 %v4335
    %v4814 = vunpack.c.l.b16 %v4336
    %v4815 = vunpack.c.h.b16 %v4336
    %v4816 = vunpack.c.l.b16 %v4337
    %v4817 = vunpack.c.h.b16 %v4337
    %v4818 = vunpack.c.l.b16 %v4338
    %v4819 = vunpack.c.h.b16 %v4338
    %v4820 = vunpack.c.l.b16 %v4339
    %v4821 = vunpack.c.h.b16 %v4339
    %v4822 = vunpack.c.l.b16 %v4340
    %v4823 = vunpack.c.l.b16 %v4341
    %v4824 = vunpack.c.h.b16 %v4341
    %v4825 = vunpack.c.l.b16 %v4342
    %v4826 = vunpack.c.h.b16 %v4342
    %v4827 = vunpack.c.l.b16 %v4343
    %v4828 = vunpack.c.h.b16 %v4343
    %v4829 = vunpack.c.l.b16 %v4344
    %v4830 = vunpack.c.h.b16 %v4344
    %v4831 = vunpack.c.l.b16 %v4345
    %v4832 = vunpack.c.l.b16 %v4346
    %v4833 = vunpack.c.h.b16 %v4346
    %v4834 = vunpack.c.l.b16 %v4347
    %v4835 = vunpack.c.h.b16 %v4347
    %v4836 = vunpack.c.l.b16 %v4348
    %v4837 = vunpack.c.h.b16 %v4348
    %v4838 = vunpack.c.l.b16 %v4349
    %v4839 = vunpack.c.h.b16 %v4349
    %v4840 = vunpack.c.l.b16 %v4350
    %v4841 = vunpack.c.l.b16 %v4351
    %v4842 = vunpack.c.h.b16 %v4351
    %v4843 = vunpack.c.l.b16 %v4352
    %v4844 = vunpack.c.h.b16 %v4352
    %v4845 = vunpack.c.l.b16 %v4353
    %v4846 = vunpack.c.h.b16 %v4353
    %v4847 = vunpack.c.l.b16 %v4354
    %v4848 = vunpack.c.h.b16 %v4354
    %v4849 = vunpack.c.l.b16 %v4355
    %v4850 = vunpack.c.l.b16 %v4356
    %v4851 = vunpack.c.h.b16 %v4356
    %v4852 = vunpack.c.l.b16 %v4357
    %v4853 = vunpack.c.h.b16 %v4357
    %v4854 = vunpack.c.l.b16 %v4358
    %v4855 = vunpack.c.h.b16 %v4358
    %v4856 = vunpack.c.l.b16 %v4359
    %v4857 = vunpack.c.h.b16 %v4359
    %v4858 = vunpack.c.l.b16 %v4360
    %v4859 = vunpack.c.l.b16 %v4361
    %v4860 = vunpack.c.h.b16 %v4361
    %v4861 = vunpack.c.l.b16 %v4362
    %v4862 = vunpack.c.h.b16 %v4362
    %v4863 = vunpack.c.l.b16 %v4363
    %v4864 = vunpack.c.h.b16 %v4363
    %v4865 = vunpack.c.l.b16 %v4364
    %v4866 = vunpack.c.h.b16 %v4364
    %v4867 = vunpack.c.l.b16 %v4365
    %v4868 = vunpack.c.l.b16 %v4366
    %v4869 = vunpack.c.h.b16 %v4366
    %v4870 = vunpack.c.l.b16 %v4367
    %v4871 = vunpack.c.h.b16 %v4367
    %v4872 = vunpack.c.l.b16 %v4368
    %v4873 = vunpack.c.h.b16 %v4368
    %v4874 = vunpack.c.l.b16 %v4369
    %v4875 = vunpack.c.h.b16 %v4369
    %v4876 = vunpack.c.l.b16 %v4370
    %v4877 = vunpack.c.l.b16 %v4371
    %v4878 = vunpack.c.h.b16 %v4371
    %v4879 = vunpack.c.l.b16 %v4372
    %v4880 = vunpack.c.h.b16 %v4372
    %v4881 = vunpack.c.l.b16 %v4373
    %v4882 = vunpack.c.h.b16 %v4373
    %v4883 = vunpack.c.l.b16 %v4374
    %v4884 = vunpack.c.h.b16 %v4374
    %v4885 = vunpack.c.l.b16 %v4375
    %v4886 = vunpack.c.l.b16 %v4376
    %v4887 = vunpack.c.h.b16 %v4376
    %v4888 = vunpack.c.l.b16 %v4377
    %v4889 = vunpack.c.h.b16 %v4377
    %v4890 = vunpack.c.l.b16 %v4378
    %v4891 = vunpack.c.h.b16 %v4378
    %v4892 = vunpack.c.l.b16 %v4379
    %v4893 = vunpack.c.h.b16 %v4379
    %v4894 = vunpack.c.l.b16 %v4380
    %v4895 = vunpack.c.l.b16 %v4381
    %v4896 = vunpack.c.h.b16 %v4381
    %v4897 = vunpack.c.l.b16 %v4382
    %v4898 = vunpack.c.h.b16 %v4382
    %v4899 = vunpack.c.l.b16 %v4383
    %v4900 = vunpack.c.h.b16 %v4383
    %v4901 = vunpack.c.l.b16 %v4384
    %v4902 = vunpack.c.h.b16 %v4384
    %v4903 = vunpack.c.l.b16 %v4385
    %v4904 = vunpack.c.l.b16 %v4386
    %v4905 = vunpack.c.h.b16 %v4386
    %v4906 = vunpack.c.l.b16 %v4387
    %v4907 = vunpack.c.h.b16 %v4387
    %v4908 = vunpack.c.l.b16 %v4388
    %v4909 = vunpack.c.h.b16 %v4388
    %v4910 = vunpack.c.l.b16 %v4389
    %v4911 = vunpack.c.h.b16 %v4389
    %v4912 = vunpack.c.l.b16 %v4390
    %v4913 = vpack.c.b16 %v4778, %v4769
    %v4914 = vpack.c.b16 %v4779, %v4770
    %v4915 = vpack.c.b16 %v4780, %v4771
    %v4916 = vpack.c.b16 %v4781, %v4772
    %v4917 = vpack.c.b16 %v4782, %v4773
    %v4918 = vpack.c.b16 %v4783, %v4774
    %v4919 = vpack.c.b16 %v4784, %v4775
    %v4920 = vpack.c.b16 %v4785, %v4776
    %v4921 = vpack.c.b16 %v4786, %v4777
    %v4922 = vpack.c.b16 %v4796, %v4787
    %v4923 = vpack.c.b16 %v4797, %v4788
    %v4924 = vpack.c.b16 %v4798, %v4789
    %v4925 = vpack.c.b16 %v4799, %v4790
    %v4926 = vpack.c.b16 %v4800, %v4791
    %v4927 = vpack.c.b16 %v4801, %v4792
    %v4928 = vpack.c.b16 %v4802, %v4793
    %v4929 = vpack.c.b16 %v4803, %v4794
    %v4930 = vpack.c.b16 %v4804, %v4795
    %v4931 = vpack.c.b16 %v4814, %v4805
    %v4932 = vpack.c.b16 %v4815, %v4806
    %v4933 = vpack.c.b16 %v4816, %v4807
    %v4934 = vpack.c.b16 %v4817, %v4808
    %v4935 = vpack.c.b16 %v4818, %v4809
    %v4936 = vpack.c.b16 %v4819, %v4810
    %v4937 = vpack.c.b16 %v4820, %v4811
    %v4938 = vpack.c.b16 %v4821, %v4812
    %v4939 = vpack.c.b16 %v4822, %v4813
    %v4940 = vpack.c.b16 %v4832, %v4823
    %v4941 = vpack.c.b16 %v4833, %v4824
    %v4942 = vpack.c.b16 %v4834, %v4825
    %v4943 = vpack.c.b16 %v4835, %v4826
    %v4944 = vpack.c.b16 %v4836, %v4827
    %v4945 = vpack.c.b16 %v4837, %v4828
    %v4946 = vpack.c.b16 %v4838, %v4829
    %v4947 = vpack.c.b16 %v4839, %v4830
    %v4948 = vpack.c.b16 %v4840, %v4831
    %v4949 = vpack.c.b16 %v4850, %v4841
    %v4950 = vpack.c.b16 %v4851, %v4842
    %v4951 = vpack.c.b16 %v4852, %v4843
    %v4952 = vpack.c.b16 %v4853, %v4844
    %v4953 = vpack.c.b16 %v4854, %v4845
    %v4954 = vpack.c.b16 %v4855, %v4846
    %v4955 = vpack.c.b16 %v4856, %v4847
    %v4956 = vpack.c.b16 %v4857, %v4848
    %v4957 = vpack.c.b16 %v4858, %v4849
    %v4958 = vpack.c.b16 %v4868, %v4859
    %v4959 = vpack.c.b16 %v4869, %v4860
    %v4960 = vpack.c.b16 %v4870, %v4861
    %v4961 = vpack.c.b16 %v4871, %v4862
    %v4962 = vpack.c.b16 %v4872, %v4863
    %v4963 = vpack.c.b16 %v4873, %v4864
    %v4964 = vpack.c.b16 %v4874, %v4865
    %v4965 = vpack.c.b16 %v4875, %v4866
    %v4966 = vpack.c.b16 %v4876, %v4867
    %v4967 = vpack.c.b16 %v4886, %v4877
    %v4968 = vpack.c.b16 %v4887, %v4878
    %v4969 = vpack.c.b16 %v4888, %v4879
    %v4970 = vpack.c.b16 %v4889, %v4880
    %v4971 = vpack.c.b16 %v4890, %v4881
    %v4972 = vpack.c.b16 %v4891, %v4882
    %v4973 = vpack.c.b16 %v4892, %v4883
    %v4974 = vpack.c.b16 %v4893, %v4884
    %v4975 = vpack.c.b16 %v4894, %v4885
    %v4976 = vpack.c.b16 %v4904, %v4895
    %v4977 = vpack.c.b16 %v4905, %v4896
    %v4978 = vpack.c.b16 %v4906, %v4897
    %v4979 = vpack.c.b16 %v4907, %v4898
    %v4980 = vpack.c.b16 %v4908, %v4899
    %v4981 = vpack.c.b16 %v4909, %v4900
    %v4982 = vpack.c.b16 %v4910, %v4901
    %v4983 = vpack.c.b16 %v4911, %v4902
    %v4984 = vpack.c.b16 %v4912, %v4903
    %v5345 = vunpack.c.l.b16 %v4391
    %v5346 = vunpack.c.h.b16 %v4391
    %v5347 = vunpack.c.l.b16 %v4392
    %v5348 = vunpack.c.h.b16 %v4392
    %v5349 = vunpack.c.l.b16 %v4393
    %v5350 = vunpack.c.h.b16 %v4393
    %v5351 = vunpack.c.l.b16 %v4394
    %v5352 = vunpack.c.h.b16 %v4394
    %v5353 = vunpack.c.l.b16 %v4395
    %v5354 = vunpack.c.h.b16 %v4395
    %v5355 = vunpack.c.l.b16 %v4396
    %v5356 = vunpack.c.h.b16 %v4396
    %v5357 = vunpack.c.l.b16 %v4397
    %v5358 = vunpack.c.h.b16 %v4397
    %v5359 = vunpack.c.l.b16 %v4398
    %v5360 = vunpack.c.h.b16 %v4398
    %v5361 = vunpack.c.l.b16 %v4399
    %v5362 = vunpack.c.h.b16 %v4399
    %v5363 = vunpack.c.l.b16 %v4400
    %v5364 = vunpack.c.h.b16 %v4400
    %v5365 = vunpack.c.l.b16 %v4401
    %v5366 = vunpack.c.h.b16 %v4401
    %v5367 = vunpack.c.l.b16 %v4402
    %v5368 = vunpack.c.h.b16 %v4402
    %v5369 = vunpack.c.l.b16 %v4403
    %v5370 = vunpack.c.h.b16 %v4403
    %v5371 = vunpack.c.l.b16 %v4404
    %v5372 = vunpack.c.h.b16 %v4404
    %v5373 = vunpack.c.l.b16 %v4405
    %v5374 = vunpack.c.h.b16 %v4405
    %v5375 = vunpack.c.l.b16 %v4406
    %v5376 = vunpack.c.h.b16 %v4406
    %v5377 = vunpack.c.l.b16 %v4407
    %v5378 = vunpack.c.h.b16 %v4407
    %v5379 = vunpack.c.l.b16 %v4408
    %v5380 = vunpack.c.h.b16 %v4408
    %v5381 = vunpack.c.l.b16 %v4409
    %v5382 = vunpack.c.h.b16 %v4409
    %v5383 = vunpack.c.l.b16 %v4410
    %v5384 = vunpack.c.h.b16 %v4410
    %v5385 = vunpack.c.l.b16 %v4411
    %v5386 = vunpack.c.h.b16 %v4411
    %v5387 = vunpack.c.l.b16 %v4412
    %v5388 = vunpack.c.h.b16 %v4412
    %v5389 = vunpack.c.l.b16 %v4413
    %v5390 = vunpack.c.h.b16 %v4413
    %v5391 = vunpack.c.l.b16 %v4414
    %v5392 = vunpack.c.h.b16 %v4414
    %v5393 = vunpack.c.l.b16 %v4415
    %v5394 = vunpack.c.h.b16 %v4415
    %v5395 = vunpack.c.l.b16 %v4416
    %v5396 = vunpack.c.h.b16 %v4416
    %v5397 = vunpack.c.l.b16 %v4417
    %v5398 = vunpack.c.h.b16 %v4417
    %v5399 = vunpack.c.l.b16 %v4418
    %v5400 = vunpack.c.h.b16 %v4418
    %v5401 = vunpack.c.l.b16 %v4419
    %v5402 = vunpack.c.h.b16 %v4419
    %v5403 = vunpack.c.l.b16 %v4420
    %v5404 = vunpack.c.h.b16 %v4420
    %v5405 = vunpack.c.l.b16 %v4421
    %v5406 = vunpack.c.h.b16 %v4421
    %v5407 = vunpack.c.l.b16 %v4422
    %v5408 = vunpack.c.h.b16 %v4422
    %v5409 = vunpack.c.l.b16 %v4423
    %v5410 = vunpack.c.h.b16 %v4423
    %v5411 = vunpack.c.l.b16 %v4424
    %v5412 = vunpack.c.h.b16 %v4424
    %v5413 = vunpack.c.l.b16 %v4425
    %v5414 = vunpack.c.h.b16 %v4425
    %v5415 = vunpack.c.l.b16 %v4426
    %v5416 = vunpack.c.h.b16 %v4426
    %v5417 = vunpack.c.l.b16 %v4427
    %v5418 = vunpack.c.h.b16 %v4427
    %v5419 = vunpack.c.l.b16 %v4428
    %v5420 = vunpack.c.h.b16 %v4428
    %v5421 = vunpack.c.l.b16 %v4429
    %v5422 = vunpack.c.h.b16 %v4429
    %v5423 = vunpack.c.l.b16 %v4430
    %v5424 = vunpack.c.h.b16 %v4430
    %v5425 = vunpack.c.l.b16 %v4431
    %v5426 = vunpack.c.h.b16 %v4431
    %v5427 = vunpack.c.l.b16 %v4432
    %v5428 = vunpack.c.h.b16 %v4432
    %v5429 = vunpack.c.l.b16 %v4433
    %v5430 = vunpack.c.h.b16 %v4433
    %v5431 = vunpack.c.l.b16 %v4434
    %v5432 = vunpack.c.h.b16 %v4434
    %v5433 = vunpack.c.l.b16 %v4435
    %v5434 = vunpack.c.h.b16 %v4435
    %v5435 = vunpack.c.l.b16 %v4436
    %v5436 = vunpack.c.h.b16 %v4436
    %v5437 = vunpack.c.l.b16 %v4437
    %v5438 = vunpack.c.h.b16 %v4437
    %v5439 = vunpack.c.l.b16 %v4438
    %v5440 = vunpack.c.h.b16 %v4438
    %v5441 = vunpack.c.l.b16 %v4439
    %v5442 = vunpack.c.h.b16 %v4439
    %v5443 = vunpack.c.l.b16 %v4440
    %v5444 = vunpack.c.h.b16 %v4440
    %v5445 = vunpack.c.l.b16 %v4441
    %v5446 = vunpack.c.h.b16 %v4441
    %v5447 = vunpack.c.l.b16 %v4442
    %v5448 = vunpack.c.h.b16 %v4442
    %v5449 = vunpack.c.l.b16 %v4443
    %v5450 = vunpack.c.h.b16 %v4443
    %v5451 = vunpack.c.l.b16 %v4444
    %v5452 = vunpack.c.h.b16 %v4444
    %v5453 = vunpack.c.l.b16 %v4445
    %v5454 = vunpack.c.h.b16 %v4445
    %v5455 = vunpack.c.l.b16 %v4446
    %v5456 = vunpack.c.h.b16 %v4446
    %v5457 = vunpack.c.l.b16 %v4447
    %v5458 = vunpack.c.h.b16 %v4447
    %v5459 = vunpack.c.l.b16 %v4448
    %v5460 = vunpack.c.h.b16 %v4448
    %v5461 = vunpack.c.l.b16 %v4449
    %v5462 = vunpack.c.h.b16 %v4449
    %v5463 = vunpack.c.l.b16 %v4450
    %v5464 = vunpack.c.h.b16 %v4450
    %v5465 = vunpack.c.l.b16 %v4451
    %v5466 = vunpack.c.h.b16 %v4451
    %v5467 = vunpack.c.l.b16 %v4452
    %v5468 = vunpack.c.h.b16 %v4452
    %v5469 = vunpack.c.l.b16 %v4453
    %v5470 = vunpack.c.h.b16 %v4453
    %v5471 = vunpack.c.l.b16 %v4454
    %v5472 = vunpack.c.h.b16 %v4454
    %v5473 = vunpack.c.l.b16 %v4455
    %v5474 = vunpack.c.h.b16 %v4455
    %v5475 = vunpack.c.l.b16 %v4456
    %v5476 = vunpack.c.h.b16 %v4456
    %v5477 = vunpack.c.l.b16 %v4457
    %v5478 = vunpack.c.h.b16 %v4457
    %v5479 = vunpack.c.l.b16 %v4458
    %v5480 = vunpack.c.h.b16 %v4458
    %v5481 = vunpack.c.l.b16 %v4459
    %v5482 = vunpack.c.h.b16 %v4459
    %v5483 = vunpack.c.l.b16 %v4460
    %v5484 = vunpack.c.h.b16 %v4460
    %v5485 = vunpack.c.l.b16 %v4461
    %v5486 = vunpack.c.h.b16 %v4461
    %v5487 = vunpack.c.l.b16 %v4462
    %v5488 = vunpack.c.h.b16 %v4462
    %v5489 = vunpack.c.l.b16 %v4463
    %v5490 = vunpack.c.h.b16 %v4463
    %v5491 = vunpack.c.l.b16 %v4464
    %v5492 = vunpack.c.h.b16 %v4464
    %v5493 = vunpack.c.l.b16 %v4465
    %v5494 = vunpack.c.h.b16 %v4465
    %v5495 = vunpack.c.l.b16 %v4466
    %v5496 = vunpack.c.h.b16 %v4466
    %v5497 = vunpack.c.l.b16 %v4467
    %v5498 = vunpack.c.h.b16 %v4467
    %v5499 = vunpack.c.l.b16 %v4468
    %v5500 = vunpack.c.h.b16 %v4468
    %v5501 = vunpack.c.l.b16 %v4469
    %v5502 = vunpack.c.h.b16 %v4469
    %v5503 = vunpack.c.l.b16 %v4470
    %v5504 = vunpack.c.h.b16 %v4470
    %v5505 = vunpack.c.l.b16 %v4471
    %v5506 = vunpack.c.h.b16 %v4471
    %v5507 = vunpack.c.l.b16 %v4472
    %v5508 = vunpack.c.h.b16 %v4472
    %v5509 = vunpack.c.l.b16 %v4473
    %v5510 = vunpack.c.h.b16 %v4473
    %v5511 = vunpack.c.l.b16 %v4474
    %v5512 = vunpack.c.h.b16 %v4474
    %v5513 = vunpack.c.l.b16 %v4475
    %v5514 = vunpack.c.h.b16 %v4475
    %v5515 = vunpack.c.l.b16 %v4476
    %v5516 = vunpack.c.h.b16 %v4476
    %v5517 = vunpack.c.l.b16 %v4477
    %v5518 = vunpack.c.h.b16 %v4477
    %v5519 = vunpack.c.l.b16 %v4478
    %v5520 = vunpack.c.h.b16 %v4478
    %v5521 = vunpack.c.l.b16 %v4479
    %v5522 = vunpack.c.h.b16 %v4479
    %v5523 = vunpack.c.l.b16 %v4480
    %v5524 = vunpack.c.h.b16 %v4480
    %v5525 = vunpack.c.l.b16 %v4481
    %v5526 = vunpack.c.h.b16 %v4481
    %v5527 = vunpack.c.l.b16 %v4482
    %v5528 = vunpack.c.h.b16 %v4482
    %v5529 = vunpack.c.l.b16 %v4483
    %v5530 = vunpack.c.h.b16 %v4483
    %v5531 = vunpack.c.l.b16 %v4484
    %v5532 = vunpack.c.h.b16 %v4484
    %v5533 = vunpack.c.l.b16 %v4485
    %v5534 = vunpack.c.h.b16 %v4485
    %v5535 = vunpack.c.l.b16 %v4486
    %v5536 = vunpack.c.h.b16 %v4486
    %v5537 = vunpack.c.l.b16 %v4487
    %v5538 = vunpack.c.h.b16 %v4487
    %v5539 = vunpack.c.l.b16 %v4488
    %v5540 = vunpack.c.h.b16 %v4488
    %v5541 = vunpack.c.l.b16 %v4489
    %v5542 = vunpack.c.h.b16 %v4489
    %v5543 = vunpack.c.l.b16 %v4490
    %v5544 = vunpack.c.h.b16 %v4490
    %v5545 = vunpack.c.l.b16 %v4491
    %v5546 = vunpack.c.h.b16 %v4491
    %v5547 = vunpack.c.l.b16 %v4492
    %v5548 = vunpack.c.h.b16 %v4492
    %v5549 = vunpack.c.l.b16 %v4493
    %v5550 = vunpack.c.h.b16 %v4493
    %v5551 = vunpack.c.l.b16 %v4494
    %v5552 = vunpack.c.h.b16 %v4494
    %v5553 = vunpack.c.l.b16 %v4495
    %v5554 = vunpack.c.h.b16 %v4495
    %v5555 = vunpack.c.l.b16 %v4496
    %v5556 = vunpack.c.h.b16 %v4496
    %v5557 = vunpack.c.l.b16 %v4497
    %v5558 = vunpack.c.h.b16 %v4497
    %v5559 = vunpack.c.l.b16 %v4498
    %v5560 = vunpack.c.h.b16 %v4498
    %v5561 = vunpack.c.l.b16 %v4499
    %v5562 = vunpack.c.h.b16 %v4499
    %v5563 = vunpack.c.l.b16 %v4500
    %v5564 = vunpack.c.h.b16 %v4500
    %v5565 = vunpack.c.l.b16 %v4501
    %v5566 = vunpack.c.h.b16 %v4501
    %v5567 = vunpack.c.l.b16 %v4502
    %v5568 = vunpack.c.h.b16 %v4502
    %v5569 = vunpack.c.l.b16 %v4503
    %v5570 = vunpack.c.h.b16 %v4503
    %v5571 = vunpack.c.l.b16 %v4504
    %v5572 = vunpack.c.h.b16 %v4504
    %v5573 = vunpack.c.l.b16 %v4505
    %v5574 = vunpack.c.h.b16 %v4505
    %v5575 = vunpack.c.l.b16 %v4506
    %v5576 = vunpack.c.h.b16 %v4506
    %v5577 = vunpack.c.l.b16 %v4507
    %v5578 = vunpack.c.h.b16 %v4507
    %v5579 = vunpack.c.l.b16 %v4508
    %v5580 = vunpack.c.h.b16 %v4508
    %v5581 = vunpack.c.l.b16 %v4509
    %v5582 = vunpack.c.h.b16 %v4509
    %v5583 = vunpack.c.l.b16 %v4510
    %v5584 = vunpack.c.h.b16 %v4510
    %v5585 = vunpack.c.l.b16 %v4511
    %v5586 = vunpack.c.h.b16 %v4511
    %v5587 = vunpack.c.l.b16 %v4512
    %v5588 = vunpack.c.h.b16 %v4512
    %v5589 = vunpack.c.l.b16 %v4513
    %v5590 = vunpack.c.h.b16 %v4513
    %v5591 = vunpack.c.l.b16 %v4514
    %v5592 = vunpack.c.h.b16 %v4514
    %v5593 = vunpack.c.l.b16 %v4515
    %v5594 = vunpack.c.h.b16 %v4515
    %v5595 = vunpack.c.l.b16 %v4516
    %v5596 = vunpack.c.h.b16 %v4516
    %v5597 = vunpack.c.l.b16 %v4517
    %v5598 = vunpack.c.h.b16 %v4517
    %v5599 = vunpack.c.l.b16 %v4518
    %v5600 = vunpack.c.h.b16 %v4518
    %v5601 = vunpack.c.l.b16 %v4519
    %v5602 = vunpack.c.h.b16 %v4519
    %v5603 = vunpack.c.l.b16 %v4520
    %v5604 = vunpack.c.h.b16 %v4520
    %v5605 = vunpack.c.l.b16 %v4521
    %v5606 = vunpack.c.h.b16 %v4521
    %v5607 = vunpack.c.l.b16 %v4522
    %v5608 = vunpack.c.h.b16 %v4522
    %v5609 = vunpack.c.l.b16 %v4523
    %v5610 = vunpack.c.h.b16 %v4523
    %v5611 = vunpack.c.l.b16 %v4524
    %v5612 = vunpack.c.h.b16 %v4524
    %v5613 = vunpack.c.l.b16 %v4525
    %v5614 = vunpack.c.h.b16 %v4525
    %v5615 = vunpack.c.l.b16 %v4526
    %v5616 = vunpack.c.h.b16 %v4526
    %v5617 = vunpack.c.l.b16 %v4527
    %v5618 = vunpack.c.h.b16 %v4527
    %v5619 = vunpack.c.l.b16 %v4528
    %v5620 = vunpack.c.h.b16 %v4528
    %v5621 = vunpack.c.l.b16 %v4529
    %v5622 = vunpack.c.h.b16 %v4529
    %v5623 = vunpack.c.l.b16 %v4530
    %v5624 = vunpack.c.h.b16 %v4530
    %v5625 = vunpack.c.l.b16 %v4531
    %v5626 = vunpack.c.h.b16 %v4531
    %v5627 = vunpack.c.l.b16 %v4532
    %v5628 = vunpack.c.h.b16 %v4532
    %v5629 = vunpack.c.l.b16 %v4533
    %v5630 = vunpack.c.h.b16 %v4533
    %v5631 = vunpack.c.l.b16 %v4534
    %v5632 = vunpack.c.h.b16 %v4534
    %v5633 = vunpack.c.l.b16 %v4535
    %v5634 = vunpack.c.h.b16 %v4535
    %v5635 = vunpack.c.l.b16 %v4536
    %v5636 = vunpack.c.h.b16 %v4536
    %v5637 = vunpack.c.l.b16 %v4537
    %v5638 = vunpack.c.h.b16 %v4537
    %v5639 = vunpack.c.l.b16 %v4538
    %v5640 = vunpack.c.h.b16 %v4538
    %v5641 = vunpack.c.l.b16 %v4539
    %v5642 = vunpack.c.h.b16 %v4539
    %v5643 = vunpack.c.l.b16 %v4540
    %v5644 = vunpack.c.h.b16 %v4540
    %v5645 = vunpack.c.l.b16 %v4541
    %v5646 = vunpack.c.h.b16 %v4541
    %v5647 = vunpack.c.l.b16 %v4542
    %v5648 = vunpack.c.h.b16 %v4542
    %v5649 = vunpack.c.l.b16 %v4543
    %v5650 = vunpack.c.h.b16 %v4543
    %v5651 = vunpack.c.l.b16 %v4544
    %v5652 = vunpack.c.h.b16 %v4544
    %v5653 = vunpack.c.l.b16 %v4545
    %v5654 = vunpack.c.h.b16 %v4545
    %v5655 = vunpack.c.l.b16 %v4546
    %v5656 = vunpack.c.h.b16 %v4546
    %v5657 = vunpack.c.l.b16 %v4547
    %v5658 = vunpack.c.h.b16 %v4547
    %v5659 = vunpack.c.l.b16 %v4548
    %v5660 = vunpack.c.h.b16 %v4548
    %v5661 = vunpack.c.l.b16 %v4549
    %v5662 = vunpack.c.h.b16 %v4549
    %v5663 = vunpack.c.l.b16 %v4550
    %v5664 = vunpack.c.h.b16 %v4550
    %v5665 = vunpack.c.l.b16 %v4551
    %v5666 = vunpack.c.h.b16 %v4551
    %v5667 = vunpack.c.l.b16 %v4552
    %v5668 = vunpack.c.h.b16 %v4552
    %v5669 = vunpack.c.l.b16 %v4553
    %v5670 = vunpack.c.h.b16 %v4553
    %v5671 = vunpack.c.l.b16 %v4554
    %v5672 = vunpack.c.h.b16 %v4554
    %v5673 = vunpack.c.l.b16 %v4555
    %v5674 = vunpack.c.h.b16 %v4555
    %v5675 = vunpack.c.l.b16 %v4556
    %v5676 = vunpack.c.h.b16 %v4556
    %v5677 = vunpack.c.l.b16 %v4557
    %v5678 = vunpack.c.h.b16 %v4557
    %v5679 = vunpack.c.l.b16 %v4558
    %v5680 = vunpack.c.h.b16 %v4558
    %v5681 = vunpack.c.l.b16 %v4559
    %v5682 = vunpack.c.h.b16 %v4559
    %v5683 = vunpack.c.l.b16 %v4560
    %v5684 = vunpack.c.h.b16 %v4560
    %v5685 = vunpack.c.l.b16 %v4561
    %v5686 = vunpack.c.h.b16 %v4561
    %v5687 = vunpack.c.l.b16 %v4562
    %v5688 = vunpack.c.h.b16 %v4562
    %v5689 = vunpack.c.l.b16 %v4563
    %v5690 = vunpack.c.h.b16 %v4563
    %v5691 = vunpack.c.l.b16 %v4564
    %v5692 = vunpack.c.h.b16 %v4564
    %v5693 = vunpack.c.l.b16 %v4565
    %v5694 = vunpack.c.h.b16 %v4565
    %v5695 = vunpack.c.l.b16 %v4566
    %v5696 = vunpack.c.h.b16 %v4566
    %v5697 = vunpack.c.l.b16 %v4567
    %v5698 = vunpack.c.h.b16 %v4567
    %v5699 = vunpack.c.l.b16 %v4568
    %v5700 = vunpack.c.h.b16 %v4568
    %v5701 = vunpack.c.l.b16 %v4569
    %v5702 = vunpack.c.h.b16 %v4569
    %v5703 = vunpack.c.l.b16 %v4570
    %v5704 = vunpack.c.h.b16 %v4570
    %v5705 = vunpack.c.l.b16 %v4571
    %v5706 = vunpack.c.h.b16 %v4571
    %v5707 = vunpack.c.l.b16 %v4572
    %v5708 = vunpack.c.h.b16 %v4572
    %v5709 = vunpack.c.l.b16 %v4573
    %v5710 = vunpack.c.h.b16 %v4573
    %v5711 = vunpack.c.l.b16 %v4574
    %v5712 = vunpack.c.h.b16 %v4574
    %v5713 = vunpack.c.l.b16 %v4575
    %v5714 = vunpack.c.h.b16 %v4575
    %v5715 = vunpack.c.l.b16 %v4576
    %v5716 = vunpack.c.h.b16 %v4576
    %v5717 = vunpack.c.l.b16 %v4577
    %v5718 = vunpack.c.h.b16 %v4577
    %v5719 = vunpack.c.l.b16 %v4578
    %v5720 = vunpack.c.h.b16 %v4578
    %v5721 = vunpack.c.l.b16 %v4579
    %v5722 = vunpack.c.h.b16 %v4579
    %v5723 = vunpack.c.l.b16 %v4580
    %v5724 = vunpack.c.h.b16 %v4580
    %v5725 = vunpack.c.l.b16 %v4581
    %v5726 = vunpack.c.h.b16 %v4581
    %v5727 = vunpack.c.l.b16 %v4582
    %v5728 = vunpack.c.h.b16 %v4582
    %v5729 = vunpack.c.l.b16 %v4583
    %v5730 = vunpack.c.h.b16 %v4583
    %v5731 = vunpack.c.l.b16 %v4584
    %v5732 = vunpack.c.h.b16 %v4584
    %v5733 = vunpack.c.l.b16 %v4585
    %v5734 = vunpack.c.h.b16 %v4585
    %v5735 = vunpack.c.l.b16 %v4586
    %v5736 = vunpack.c.h.b16 %v4586
    %v5737 = vunpack.c.l.b16 %v4587
    %v5738 = vunpack.c.h.b16 %v4587
    %v5739 = vunpack.c.l.b16 %v4588
    %v5740 = vunpack.c.h.b16 %v4588
    %v5741 = vunpack.c.l.b16 %v4589
    %v5742 = vunpack.c.h.b16 %v4589
    %v5743 = vunpack.c.l.b16 %v4590
    %v5744 = vunpack.c.h.b16 %v4590
    %v5745 = vunpack.c.l.b16 %v4591
    %v5746 = vunpack.c.h.b16 %v4591
    %v5747 = vunpack.c.l.b16 %v4592
    %v5748 = vunpack.c.h.b16 %v4592
    %v5749 = vunpack.c.l.b16 %v4593
    %v5750 = vunpack.c.h.b16 %v4593
    %v5751 = vunpack.c.l.b16 %v4594
    %v5752 = vunpack.c.h.b16 %v4594
    %v5753 = vunpack.c.l.b16 %v4595
    %v5754 = vunpack.c.h.b16 %v4595
    %v5755 = vunpack.c.l.b16 %v4596
    %v5756 = vunpack.c.h.b16 %v4596
    %v5757 = vunpack.c.l.b16 %v4597
    %v5758 = vunpack.c.h.b16 %v4597
    %v5759 = vunpack.c.l.b16 %v4598
    %v5760 = vunpack.c.h.b16 %v4598
    %v5761 = vunpack.c.l.b16 %v4599
    %v5762 = vunpack.c.h.b16 %v4599
    %v5763 = vunpack.c.l.b16 %v4600
    %v5764 = vunpack.c.h.b16 %v4600
    %v5765 = vunpack.c.l.b16 %v4601
    %v5766 = vunpack.c.h.b16 %v4601
    %v5767 = vunpack.c.l.b16 %v4602
    %v5768 = vunpack.c.h.b16 %v4602
    %v5769 = vunpack.c.l.b16 %v4603
    %v5770 = vunpack.c.h.b16 %v4603
    %v5771 = vunpack.c.l.b16 %v4604
    %v5772 = vunpack.c.h.b16 %v4604
    %v5773 = vunpack.c.l.b16 %v4605
    %v5774 = vunpack.c.h.b16 %v4605
    %v5775 = vunpack.c.l.b16 %v4606
    %v5776 = vunpack.c.h.b16 %v4606
    %v5777 = vunpack.c.l.b16 %v4607
    %v5778 = vunpack.c.h.b16 %v4607
    %v5779 = vunpack.c.l.b16 %v4608
    %v5780 = vunpack.c.h.b16 %v4608
    %v5781 = vunpack.c.l.b16 %v4609
    %v5782 = vunpack.c.h.b16 %v4609
    %v5783 = vunpack.c.l.b16 %v4610
    %v5784 = vunpack.c.h.b16 %v4610
    %v5785 = vunpack.c.l.b16 %v4611
    %v5786 = vunpack.c.h.b16 %v4611
    %v5787 = vunpack.c.l.b16 %v4612
    %v5788 = vunpack.c.h.b16 %v4612
    %v5789 = vunpack.c.l.b16 %v4613
    %v5790 = vunpack.c.h.b16 %v4613
    %v5791 = vunpack.c.l.b16 %v4614
    %v5792 = vunpack.c.h.b16 %v4614
    %v5793 = vunpack.c.l.b16 %v4615
    %v5794 = vunpack.c.h.b16 %v4615
    %v5795 = vunpack.c.l.b16 %v4616
    %v5796 = vunpack.c.h.b16 %v4616
    %v5797 = vunpack.c.l.b16 %v4617
    %v5798 = vunpack.c.h.b16 %v4617
    %v5799 = vunpack.c.l.b16 %v4618
    %v5800 = vunpack.c.h.b16 %v4618
    %v5801 = vunpack.c.l.b16 %v4619
    %v5802 = vunpack.c.h.b16 %v4619
    %v5803 = vunpack.c.l.b16 %v4620
    %v5804 = vunpack.c.h.b16 %v4620
    %v5805 = vunpack.c.l.b16 %v4621
    %v5806 = vunpack.c.h.b16 %v4621
    %v5807 = vunpack.c.l.b16 %v4622
    %v5808 = vunpack.c.h.b16 %v4622
    %v5809 = vunpack.c.l.b16 %v4623
    %v5810 = vunpack.c.h.b16 %v4623
    %v5811 = vunpack.c.l.b16 %v4624
    %v5812 = vunpack.c.h.b16 %v4624
    %v5813 = vunpack.c.l.b16 %v4625
    %v5814 = vunpack.c.h.b16 %v4625
    %v5815 = vunpack.c.l.b16 %v4626
    %v5816 = vunpack.c.h.b16 %v4626
    %v5817 = vunpack.c.l.b16 %v4627
    %v5818 = vunpack.c.h.b16 %v4627
    %v5819 = vunpack.c.l.b16 %v4628
    %v5820 = vunpack.c.h.b16 %v4628
    %v5821 = vunpack.c.l.b16 %v4629
    %v5822 = vunpack.c.h.b16 %v4629
    %v5823 = vunpack.c.l.b16 %v4630
    %v5824 = vunpack.c.h.b16 %v4630
    %v5825 = vunpack.c.l.b16 %v4631
    %v5826 = vunpack.c.h.b16 %v4631
    %v5827 = vunpack.c.l.b16 %v4632
    %v5828 = vunpack.c.h.b16 %v4632
    %v5829 = vunpack.c.l.b16 %v4633
    %v5830 = vunpack.c.h.b16 %v4633
    %v5831 = vunpack.c.l.b16 %v4634
    %v5832 = vunpack.c.h.b16 %v4634
    %v5833 = vunpack.c.l.b16 %v4635
    %v5834 = vunpack.c.h.b16 %v4635
    %v5835 = vunpack.c.l.b16 %v4636
    %v5836 = vunpack.c.h.b16 %v4636
    %v5837 = vunpack.c.l.b16 %v4637
    %v5838 = vunpack.c.h.b16 %v4637
    %v5839 = vunpack.c.l.b16 %v4638
    %v5840 = vunpack.c.h.b16 %v4638
    %v5841 = vunpack.c.l.b16 %v4639
    %v5842 = vunpack.c.h.b16 %v4639
    %v5843 = vunpack.c.l.b16 %v4640
    %v5844 = vunpack.c.h.b16 %v4640
    %v5845 = vunpack.c.l.b16 %v4641
    %v5846 = vunpack.c.h.b16 %v4641
    %v5847 = vunpack.c.l.b16 %v4642
    %v5848 = vunpack.c.h.b16 %v4642
    %v5849 = vunpack.c.l.b16 %v4643
    %v5850 = vunpack.c.h.b16 %v4643
    %v5851 = vunpack.c.l.b16 %v4644
    %v5852 = vunpack.c.h.b16 %v4644
    %v5853 = vunpack.c.l.b16 %v4645
    %v5854 = vunpack.c.h.b16 %v4645
    %v5855 = vunpack.c.l.b16 %v4646
    %v5856 = vunpack.c.h.b16 %v4646
    %v5857 = vunpack.c.l.b16 %v4647
    %v5858 = vunpack.c.h.b16 %v4647
    %v5859 = vunpack.c.l.b16 %v4648
    %v5860 = vunpack.c.h.b16 %v4648
    %v5861 = vunpack.c.l.b16 %v4649
    %v5862 = vunpack.c.h.b16 %v4649
    %v5863 = vunpack.c.l.b16 %v4650
    %v5864 = vunpack.c.h.b16 %v4650
    %v5865 = vunpack.c.l.b16 %v4651
    %v5866 = vunpack.c.h.b16 %v4651
    %v5867 = vunpack.c.l.b16 %v4652
    %v5868 = vunpack.c.h.b16 %v4652
    %v5869 = vunpack.c.l.b16 %v4653
    %v5870 = vunpack.c.h.b16 %v4653
    %v5871 = vunpack.c.l.b16 %v4654
    %v5872 = vunpack.c.h.b16 %v4654
    %v5873 = vunpack.c.l.b16 %v4655
    %v5874 = vunpack.c.h.b16 %v4655
    %v5875 = vunpack.c.l.b16 %v4656
    %v5876 = vunpack.c.h.b16 %v4656
    %v5877 = vunpack.c.l.b16 %v4657
    %v5878 = vunpack.c.h.b16 %v4657
    %v5879 = vunpack.c.l.b16 %v4658
    %v5880 = vunpack.c.h.b16 %v4658
    %v5881 = vunpack.c.l.b16 %v4659
    %v5882 = vunpack.c.h.b16 %v4659
    %v5883 = vunpack.c.l.b16 %v4660
    %v5884 = vunpack.c.h.b16 %v4660
    %v5885 = vunpack.c.l.b16 %v4661
    %v5886 = vunpack.c.h.b16 %v4661
    %v5887 = vunpack.c.l.b16 %v4662
    %v5888 = vunpack.c.h.b16 %v4662
    %v5889 = vunpack.c.l.b16 %v4663
    %v5890 = vunpack.c.h.b16 %v4663
    %v5891 = vunpack.c.l.b16 %v4664
    %v5892 = vunpack.c.h.b16 %v4664
    %v5893 = vunpack.c.l.b16 %v4665
    %v5894 = vunpack.c.h.b16 %v4665
    %v5895 = vunpack.c.l.b16 %v4666
    %v5896 = vunpack.c.h.b16 %v4666
    %v5897 = vunpack.c.l.b16 %v4667
    %v5898 = vunpack.c.h.b16 %v4667
    %v5899 = vunpack.c.l.b16 %v4668
    %v5900 = vunpack.c.h.b16 %v4668
    %v5901 = vunpack.c.l.b16 %v4669
    %v5902 = vunpack.c.h.b16 %v4669
    %v5903 = vunpack.c.l.b16 %v4670
    %v5904 = vunpack.c.h.b16 %v4670
    %v5905 = vunpack.c.l.b16 %v4671
    %v5906 = vunpack.c.h.b16 %v4671
    %v5907 = vunpack.c.l.b16 %v4672
    %v5908 = vunpack.c.h.b16 %v4672
    %v5909 = vunpack.c.l.b16 %v4673
    %v5910 = vunpack.c.h.b16 %v4673
    %v5911 = vunpack.c.l.b16 %v4674
    %v5912 = vunpack.c.h.b16 %v4674
    %v5913 = vunpack.c.l.b16 %v4675
    %v5914 = vunpack.c.h.b16 %v4675
    %v5915 = vunpack.c.l.b16 %v4676
    %v5916 = vunpack.c.h.b16 %v4676
    %v5917 = vunpack.c.l.b16 %v4677
    %v5918 = vunpack.c.h.b16 %v4677
    %v5919 = vunpack.c.l.b16 %v4678
    %v5920 = vunpack.c.h.b16 %v4678
    %v5921 = vpack.c.b16 %v5349, %v5345
    %v5922 = vpack.c.b16 %v5350, %v5346
    %v5923 = vpack.c.b16 %v5351, %v5347
    %v5924 = vpack.c.b16 %v5352, %v5348
    %v5925 = vpack.c.b16 %v5357, %v5353
    %v5926 = vpack.c.b16 %v5358, %v5354
    %v5927 = vpack.c.b16 %v5359, %v5355
    %v5928 = vpack.c.b16 %v5360, %v5356
    %v5929 = vpack.c.b16 %v5365, %v5361
    %v5930 = vpack.c.b16 %v5366, %v5362
    %v5931 = vpack.c.b16 %v5367, %v5363
    %v5932 = vpack.c.b16 %v5368, %v5364
    %v5933 = vpack.c.b16 %v5373, %v5369
    %v5934 = vpack.c.b16 %v5374, %v5370
    %v5935 = vpack.c.b16 %v5375, %v5371
    %v5936 = vpack.c.b16 %v5376, %v5372
    %v5937 = vpack.c.b16 %v5381, %v5377
    %v5938 = vpack.c.b16 %v5382, %v5378
    %v5939 = vpack.c.b16 %v5383, %v5379
    %v5940 = vpack.c.b16 %v5384, %v5380
    %v5941 = vpack.c.b16 %v5389, %v5385
    %v5942 = vpack.c.b16 %v5390, %v5386
    %v5943 = vpack.c.b16 %v5391, %v5387
    %v5944 = vpack.c.b16 %v5392, %v5388
    %v5945 = vpack.c.b16 %v5397, %v5393
    %v5946 = vpack.c.b16 %v5398, %v5394
    %v5947 = vpack.c.b16 %v5399, %v5395
    %v5948 = vpack.c.b16 %v5400, %v5396
    %v5949 = vpack.c.b16 %v5405, %v5401
    %v5950 = vpack.c.b16 %v5406, %v5402
    %v5951 = vpack.c.b16 %v5407, %v5403
    %v5952 = vpack.c.b16 %v5408, %v5404
    %v5953 = vpack.c.b16 %v5413, %v5409
    %v5954 = vpack.c.b16 %v5414, %v5410
    %v5955 = vpack.c.b16 %v5415, %v5411
    %v5956 = vpack.c.b16 %v5416, %v5412
    %v5957 = vpack.c.b16 %v5421, %v5417
    %v5958 = vpack.c.b16 %v5422, %v5418
    %v5959 = vpack.c.b16 %v5423, %v5419
    %v5960 = vpack.c.b16 %v5424, %v5420
    %v5961 = vpack.c.b16 %v5429, %v5425
    %v5962 = vpack.c.b16 %v5430, %v5426
    %v5963 = vpack.c.b16 %v5431, %v5427
    %v5964 = vpack.c.b16 %v5432, %v5428
    %v5965 = vpack.c.b16 %v5437, %v5433
    %v5966 = vpack.c.b16 %v5438, %v5434
    %v5967 = vpack.c.b16 %v5439, %v5435
    %v5968 = vpack.c.b16 %v5440, %v5436
    %v5969 = vpack.c.b16 %v5445, %v5441
    %v5970 = vpack.c.b16 %v5446, %v5442
    %v5971 = vpack.c.b16 %v5447, %v5443
    %v5972 = vpack.c.b16 %v5448, %v5444
    %v5973 = vpack.c.b16 %v5453, %v5449
    %v5974 = vpack.c.b16 %v5454, %v5450
    %v5975 = vpack.c.b16 %v5455, %v5451
    %v5976 = vpack.c.b16 %v5456, %v5452
    %v5977 = vpack.c.b16 %v5461, %v5457
    %v5978 = vpack.c.b16 %v5462, %v5458
    %v5979 = vpack.c.b16 %v5463, %v5459
    %v5980 = vpack.c.b16 %v5464, %v5460
    %v5981 = vpack.c.b16 %v5469, %v5465
    %v5982 = vpack.c.b16 %v5470, %v5466
    %v5983 = vpack.c.b16 %v5471, %v5467
    %v5984 = vpack.c.b16 %v5472, %v5468
    %v5985 = vpack.c.b16 %v5477, %v5473
    %v5986 = vpack.c.b16 %v5478, %v5474
    %v5987 = vpack.c.b16 %v5479, %v5475
    %v5988 = vpack.c.b16 %v5480, %v5476
    %v5989 = vpack.c.b16 %v5485, %v5481
    %v5990 = vpack.c.b16 %v5486, %v5482
    %v5991 = vpack.c.b16 %v5487, %v5483
    %v5992 = vpack.c.b16 %v5488, %v5484
    %v5993 = vpack.c.b16 %v5493, %v5489
    %v5994 = vpack.c.b16 %v5494, %v5490
    %v5995 = vpack.c.b16 %v5495, %v5491
    %v5996 = vpack.c.b16 %v5496, %v5492
    %v5997 = vpack.c.b16 %v5501, %v5497
    %v5998 = vpack.c.b16 %v5502, %v5498
    %v5999 = vpack.c.b16 %v5503, %v5499
    %v6000 = vpack.c.b16 %v5504, %v5500
    %v6001 = vpack.c.b16 %v5509, %v5505
    %v6002 = vpack.c.b16 %v5510, %v5506
    %v6003 = vpack.c.b16 %v5511, %v5507
    %v6004 = vpack.c.b16 %v5512, %v5508
    %v6005 = vpack.c.b16 %v5517, %v5513
    %v6006 = vpack.c.b16 %v5518, %v5514
    %v6007 = vpack.c.b16 %v5519, %v5515
    %v6008 = vpack.c.b16 %v5520, %v5516
    %v6009 = vpack.c.b16 %v5525, %v5521
    %v6010 = vpack.c.b16 %v5526, %v5522
    %v6011 = vpack.c.b16 %v5527, %v5523
    %v6012 = vpack.c.b16 %v5528, %v5524
    %v6013 = vpack.c.b16 %v5533, %v5529
    %v6014 = vpack.c.b16 %v5534, %v5530
    %v6015 = vpack.c.b16 %v5535, %v5531
    %v6016 = vpack.c.b16 %v5536, %v5532
    %v6017 = vpack.c.b16 %v5541, %v5537
    %v6018 = vpack.c.b16 %v5542, %v5538
    %v6019 = vpack.c.b16 %v5543, %v5539
    %v6020 = vpack.c.b16 %v5544, %v5540
    %v6021 = vpack.c.b16 %v5549, %v5545
    %v6022 = vpack.c.b16 %v5550, %v5546
    %v6023 = vpack.c.b16 %v5551, %v5547
    %v6024 = vpack.c.b16 %v5552, %v5548
    %v6025 = vpack.c.b16 %v5557, %v5553
    %v6026 = vpack.c.b16 %v5558, %v5554
    %v6027 = vpack.c.b16 %v5559, %v5555
    %v6028 = vpack.c.b16 %v5560, %v5556
    %v6029 = vpack.c.b16 %v5565, %v5561
    %v6030 = vpack.c.b16 %v5566, %v5562
    %v6031 = vpack.c.b16 %v5567, %v5563
    %v6032 = vpack.c.b16 %v5568, %v5564
    %v6033 = vpack.c.b16 %v5573, %v5569
    %v6034 = vpack.c.b16 %v5574, %v5570
    %v6035 = vpack.c.b16 %v5575, %v5571
    %v6036 = vpack.c.b16 %v5576, %v5572
    %v6037 = vpack.c.b16 %v5581, %v5577
    %v6038 = vpack.c.b16 %v5582, %v5578
    %v6039 = vpack.c.b16 %v5583, %v5579
    %v6040 = vpack.c.b16 %v5584, %v5580
    %v6041 = vpack.c.b16 %v5589, %v5585
    %v6042 = vpack.c.b16 %v5590, %v5586
    %v6043 = vpack.c.b16 %v5591, %v5587
    %v6044 = vpack.c.b16 %v5592, %v5588
    %v6045 = vpack.c.b16 %v5597, %v5593
    %v6046 = vpack.c.b16 %v5598, %v5594
    %v6047 = vpack.c.b16 %v5599, %v5595
    %v6048 = vpack.c.b16 %v5600, %v5596
    %v6049 = vpack.c.b16 %v5605, %v5601
    %v6050 = vpack.c.b16 %v5606, %v5602
    %v6051 = vpack.c.b16 %v5607, %v5603
    %v6052 = vpack.c.b16 %v5608, %v5604
    %v6053 = vpack.c.b16 %v5613, %v5609
    %v6054 = vpack.c.b16 %v5614, %v5610
    %v6055 = vpack.c.b16 %v5615, %v5611
    %v6056 = vpack.c.b16 %v5616, %v5612
    %v6057 = vpack.c.b16 %v5621, %v5617
    %v6058 = vpack.c.b16 %v5622, %v5618
    %v6059 = vpack.c.b16 %v5623, %v5619
    %v6060 = vpack.c.b16 %v5624, %v5620
    %v6061 = vpack.c.b16 %v5629, %v5625
    %v6062 = vpack.c.b16 %v5630, %v5626
    %v6063 = vpack.c.b16 %v5631, %v5627
    %v6064 = vpack.c.b16 %v5632, %v5628
    %v6065 = vpack.c.b16 %v5637, %v5633
    %v6066 = vpack.c.b16 %v5638, %v5634
    %v6067 = vpack.c.b16 %v5639, %v5635
    %v6068 = vpack.c.b16 %v5640, %v5636
    %v6069 = vpack.c.b16 %v5645, %v5641
    %v6070 = vpack.c.b16 %v5646, %v5642
    %v6071 = vpack.c.b16 %v5647, %v5643
    %v6072 = vpack.c.b16 %v5648, %v5644
    %v6073 = vpack.c.b16 %v5653, %v5649
    %v6074 = vpack.c.b16 %v5654, %v5650
    %v6075 = vpack.c.b16 %v5655, %v5651
    %v6076 = vpack.c.b16 %v5656, %v5652
    %v6077 = vpack.c.b16 %v5661, %v5657
    %v6078 = vpack.c.b16 %v5662, %v5658
    %v6079 = vpack.c.b16 %v5663, %v5659
    %v6080 = vpack.c.b16 %v5664, %v5660
    %v6081 = vpack.c.b16 %v5669, %v5665
    %v6082 = vpack.c.b16 %v5670, %v5666
    %v6083 = vpack.c.b16 %v5671, %v5667
    %v6084 = vpack.c.b16 %v5672, %v5668
    %v6085 = vpack.c.b16 %v5677, %v5673
    %v6086 = vpack.c.b16 %v5678, %v5674
    %v6087 = vpack.c.b16 %v5679, %v5675
    %v6088 = vpack.c.b16 %v5680, %v5676
    %v6089 = vpack.c.b16 %v5685, %v5681
    %v6090 = vpack.c.b16 %v5686, %v5682
    %v6091 = vpack.c.b16 %v5687, %v5683
    %v6092 = vpack.c.b16 %v5688, %v5684
    %v6093 = vpack.c.b16 %v5693, %v5689
    %v6094 = vpack.c.b16 %v5694, %v5690
    %v6095 = vpack.c.b16 %v5695, %v5691
    %v6096 = vpack.c.b16 %v5696, %v5692
    %v6097 = vpack.c.b16 %v5701, %v5697
    %v6098 = vpack.c.b16 %v5702, %v5698
    %v6099 = vpack.c.b16 %v5703, %v5699
    %v6100 = vpack.c.b16 %v5704, %v5700
    %v6101 = vpack.c.b16 %v5709, %v5705
    %v6102 = vpack.c.b16 %v5710, %v5706
    %v6103 = vpack.c.b16 %v5711, %v5707
    %v6104 = vpack.c.b16 %v5712, %v5708
    %v6105 = vpack.c.b16 %v5717, %v5713
    %v6106 = vpack.c.b16 %v5718, %v5714
    %v6107 = vpack.c.b16 %v5719, %v5715
    %v6108 = vpack.c.b16 %v5720, %v5716
    %v6109 = vpack.c.b16 %v5725, %v5721
    %v6110 = vpack.c.b16 %v5726, %v5722
    %v6111 = vpack.c.b16 %v5727, %v5723
    %v6112 = vpack.c.b16 %v5728, %v5724
    %v6113 = vpack.c.b16 %v5733, %v5729
    %v6114 = vpack.c.b16 %v5734, %v5730
    %v6115 = vpack.c.b16 %v5735, %v5731
    %v6116 = vpack.c.b16 %v5736, %v5732
    %v6117 = vpack.c.b16 %v5741, %v5737
    %v6118 = vpack.c.b16 %v5742, %v5738
    %v6119 = vpack.c.b16 %v5743, %v5739
    %v6120 = vpack.c.b16 %v5744, %v5740
    %v6121 = vpack.c.b16 %v5749, %v5745
    %v6122 = vpack.c.b16 %v5750, %v5746
    %v6123 = vpack.c.b16 %v5751, %v5747
    %v6124 = vpack.c.b16 %v5752, %v5748
    %v6125 = vpack.c.b16 %v5757, %v5753
    %v6126 = vpack.c.b16 %v5758, %v5754
    %v6127 = vpack.c.b16 %v5759, %v5755
    %v6128 = vpack.c.b16 %v5760, %v5756
    %v6129 = vpack.c.b16 %v5765, %v5761
    %v6130 = vpack.c.b16 %v5766, %v5762
    %v6131 = vpack.c.b16 %v5767, %v5763
    %v6132 = vpack.c.b16 %v5768, %v5764
    %v6133 = vpack.c.b16 %v5773, %v5769
    %v6134 = vpack.c.b16 %v5774, %v5770
    %v6135 = vpack.c.b16 %v5775, %v5771
    %v6136 = vpack.c.b16 %v5776, %v5772
    %v6137 = vpack.c.b16 %v5781, %v5777
    %v6138 = vpack.c.b16 %v5782, %v5778
    %v6139 = vpack.c.b16 %v5783, %v5779
    %v6140 = vpack.c.b16 %v5784, %v5780
    %v6141 = vpack.c.b16 %v5789, %v5785
    %v6142 = vpack.c.b16 %v5790, %v5786
    %v6143 = vpack.c.b16 %v5791, %v5787
    %v6144 = vpack.c.b16 %v5792, %v5788
    %v6145 = vpack.c.b16 %v5797, %v5793
    %v6146 = vpack.c.b16 %v5798, %v5794
    %v6147 = vpack.c.b16 %v5799, %v5795
    %v6148 = vpack.c.b16 %v5800, %v5796
    %v6149 = vpack.c.b16 %v5805, %v5801
    %v6150 = vpack.c.b16 %v5806, %v5802
    %v6151 = vpack.c.b16 %v5807, %v5803
    %v6152 = vpack.c.b16 %v5808, %v5804
    %v6153 = vpack.c.b16 %v5813, %v5809
    %v6154 = vpack.c.b16 %v5814, %v5810
    %v6155 = vpack.c.b16 %v5815, %v5811
    %v6156 = vpack.c.b16 %v5816, %v5812
    %v6157 = vpack.c.b16 %v5821, %v5817
    %v6158 = vpack.c.b16 %v5822, %v5818
    %v6159 = vpack.c.b16 %v5823, %v5819
    %v6160 = vpack.c.b16 %v5824, %v5820
    %v6161 = vpack.c.b16 %v5829, %v5825
    %v6162 = vpack.c.b16 %v5830, %v5826
    %v6163 = vpack.c.b16 %v5831, %v5827
    %v6164 = vpack.c.b16 %v5832, %v5828
    %v6165 = vpack.c.b16 %v5837, %v5833
    %v6166 = vpack.c.b16 %v5838, %v5834
    %v6167 = vpack.c.b16 %v5839, %v5835
    %v6168 = vpack.c.b16 %v5840, %v5836
    %v6169 = vpack.c.b16 %v5845, %v5841
    %v6170 = vpack.c.b16 %v5846, %v5842
    %v6171 = vpack.c.b16 %v5847, %v5843
    %v6172 = vpack.c.b16 %v5848, %v5844
    %v6173 = vpack.c.b16 %v5853, %v5849
    %v6174 = vpack.c.b16 %v5854, %v5850
    %v6175 = vpack.c.b16 %v5855, %v5851
    %v6176 = vpack.c.b16 %v5856, %v5852
    %v6177 = vpack.c.b16 %v5861, %v5857
    %v6178 = vpack.c.b16 %v5862, %v5858
    %v6179 = vpack.c.b16 %v5863, %v5859
    %v6180 = vpack.c.b16 %v5864, %v5860
    %v6181 = vpack.c.b16 %v5869, %v5865
    %v6182 = vpack.c.b16 %v5870, %v5866
    %v6183 = vpack.c.b16 %v5871, %v5867
    %v6184 = vpack.c.b16 %v5872, %v5868
    %v6185 = vpack.c.b16 %v5877, %v5873
    %v6186 = vpack.c.b16 %v5878, %v5874
    %v6187 = vpack.c.b16 %v5879, %v5875
    %v6188 = vpack.c.b16 %v5880, %v5876
    %v6189 = vpack.c.b16 %v5885, %v5881
    %v6190 = vpack.c.b16 %v5886, %v5882
    %v6191 = vpack.c.b16 %v5887, %v5883
    %v6192 = vpack.c.b16 %v5888, %v5884
    %v6193 = vpack.c.b16 %v5893, %v5889
    %v6194 = vpack.c.b16 %v5894, %v5890
    %v6195 = vpack.c.b16 %v5895, %v5891
    %v6196 = vpack.c.b16 %v5896, %v5892
    %v6197 = vpack.c.b16 %v5901, %v5897
    %v6198 = vpack.c.b16 %v5902, %v5898
    %v6199 = vpack.c.b16 %v5903, %v5899
    %v6200 = vpack.c.b16 %v5904, %v5900
    %v6201 = vpack.c.b16 %v5909, %v5905
    %v6202 = vpack.c.b16 %v5910, %v5906
    %v6203 = vpack.c.b16 %v5911, %v5907
    %v6204 = vpack.c.b16 %v5912, %v5908
    %v6205 = vpack.c.b16 %v5917, %v5913
    %v6206 = vpack.c.b16 %v5918, %v5914
    %v6207 = vpack.c.b16 %v5919, %v5915
    %v6208 = vpack.c.b16 %v5920, %v5916
    %6497 = vmatpush.bf16.msra.mxu0 %v5949
    %6498 = vmatpush.bf16.msra.mxu0 %v5945
    %6499 = vmatpush.bf16.msra.mxu0 %v5941
    %6500 = vmatpush.bf16.msra.mxu0 %v5937
    %6501 = vmatpush.bf16.msra.mxu0 %v5933
    %6502 = vmatpush.bf16.msra.mxu0 %v5929
    %6503 = vmatpush.bf16.msra.mxu0 %v5925
    %6504 = vmatpush.bf16.msra.mxu0 %v5921
    %6505 = vmatmul.bf16.gmra.mxu0 %v4913
    %v6506 = vpop.f32.mrf.mxu0
    %v6507 = vadd.f32 %v4681, %v6506
    %v6508 = vpop.f32.mrf.mxu0
    %v6509 = vadd.f32 %v4681, %v6508
    %6510 = vmatmul.bf16.gmra.mxu0 %v4922
    %v6511 = vpop.f32.mrf.mxu0
    %v6512 = vadd.f32 %v4681, %v6511
    %v6513 = vpop.f32.mrf.mxu0
    %v6514 = vadd.f32 %v4681, %v6513
    %6515 = vmatmul.bf16.gmra.mxu0 %v4931
    %v6516 = vpop.f32.mrf.mxu0
    %v6517 = vadd.f32 %v4681, %v6516
    %v6518 = vpop.f32.mrf.mxu0
    %v6519 = vadd.f32 %v4681, %v6518
    %6520 = vmatmul.bf16.gmra.mxu0 %v4940
    %v6521 = vpop.f32.mrf.mxu0
    %v6522 = vadd.f32 %v4681, %v6521
    %v6523 = vpop.f32.mrf.mxu0
    %v6524 = vadd.f32 %v4681, %v6523
    %6525 = vmatmul.bf16.gmra.mxu0 %v4949
    %v6526 = vpop.f32.mrf.mxu0
    %v6527 = vadd.f32 %v4681, %v6526
    %v6528 = vpop.f32.mrf.mxu0
    %v6529 = vadd.f32 %v4681, %v6528
    %6530 = vmatmul.bf16.gmra.mxu0 %v4958
    %v6531 = vpop.f32.mrf.mxu0
    %v6532 = vadd.f32 %v4681, %v6531
    %v6533 = vpop.f32.mrf.mxu0
    %v6534 = vadd.f32 %v4681, %v6533
    %6535 = vmatmul.bf16.gmra.mxu0 %v4967
    %v6536 = vpop.f32.mrf.mxu0
    %v6537 = vadd.f32 %v4681, %v6536
    %v6538 = vpop.f32.mrf.mxu0
    %v6539 = vadd.f32 %v4681, %v6538
    %6540 = vmatmul.bf16.gmra.mxu0 %v4976
    %v6541 = vpop.f32.mrf.mxu0
    %v6542 = vadd.f32 %v4681, %v6541
    %v6543 = vpop.f32.mrf.mxu0
    %v6544 = vadd.f32 %v4681, %v6543
    %6545 = vdwg.mxu0
    %6546 = vmatpush.bf16.msra.mxu0 %v5981
    %6547 = vmatpush.bf16.msra.mxu0 %v5977
    %6548 = vmatpush.bf16.msra.mxu0 %v5973
    %6549 = vmatpush.bf16.msra.mxu0 %v5969
    %6550 = vmatpush.bf16.msra.mxu0 %v5965
    %6551 = vmatpush.bf16.msra.mxu0 %v5961
    %6552 = vmatpush.bf16.msra.mxu0 %v5957
    %6553 = vmatpush.bf16.msra.mxu0 %v5953
    %6554 = vmatmul.bf16.gmra.mxu0 %v4914
    %v6555 = vpop.f32.mrf.mxu0
    %v6556 = vadd.f32 %v6507, %v6555
    %v6557 = vpop.f32.mrf.mxu0
    %v6558 = vadd.f32 %v6509, %v6557
    %6559 = vmatmul.bf16.gmra.mxu0 %v4923
    %v6560 = vpop.f32.mrf.mxu0
    %v6561 = vadd.f32 %v6512, %v6560
    %v6562 = vpop.f32.mrf.mxu0
    %v6563 = vadd.f32 %v6514, %v6562
    %6564 = vmatmul.bf16.gmra.mxu0 %v4932
    %v6565 = vpop.f32.mrf.mxu0
    %v6566 = vadd.f32 %v6517, %v6565
    %v6567 = vpop.f32.mrf.mxu0
    %v6568 = vadd.f32 %v6519, %v6567
    %6569 = vmatmul.bf16.gmra.mxu0 %v4941
    %v6570 = vpop.f32.mrf.mxu0
    %v6571 = vadd.f32 %v6522, %v6570
    %v6572 = vpop.f32.mrf.mxu0
    %v6573 = vadd.f32 %v6524, %v6572
    %6574 = vmatmul.bf16.gmra.mxu0 %v4950
    %v6575 = vpop.f32.mrf.mxu0
    %v6576 = vadd.f32 %v6527, %v6575
    %v6577 = vpop.f32.mrf.mxu0
    %v6578 = vadd.f32 %v6529, %v6577
    %6579 = vmatmul.bf16.gmra.mxu0 %v4959
    %v6580 = vpop.f32.mrf.mxu0
    %v6581 = vadd.f32 %v6532, %v6580
    %v6582 = vpop.f32.mrf.mxu0
    %v6583 = vadd.f32 %v6534, %v6582
    %6584 = vmatmul.bf16.gmra.mxu0 %v4968
    %v6585 = vpop.f32.mrf.mxu0
    %v6586 = vadd.f32 %v6537, %v6585
    %v6587 = vpop.f32.mrf.mxu0
    %v6588 = vadd.f32 %v6539, %v6587
    %6589 = vmatmul.bf16.gmra.mxu0 %v4977
    %v6590 = vpop.f32.mrf.mxu0
    %v6591 = vadd.f32 %v6542, %v6590
    %v6592 = vpop.f32.mrf.mxu0
    %v6593 = vadd.f32 %v6544, %v6592
    %6594 = vdwg.mxu0
    %6595 = vmatpush.bf16.msra.mxu0 %v6013
    %6596 = vmatpush.bf16.msra.mxu0 %v6009
    %6597 = vmatpush.bf16.msra.mxu0 %v6005
    %6598 = vmatpush.bf16.msra.mxu0 %v6001
    %6599 = vmatpush.bf16.msra.mxu0 %v5997
    %6600 = vmatpush.bf16.msra.mxu0 %v5993
    %6601 = vmatpush.bf16.msra.mxu0 %v5989
    %6602 = vmatpush.bf16.msra.mxu0 %v5985
    %6603 = vmatmul.bf16.gmra.mxu0 %v4915
    %v6604 = vpop.f32.mrf.mxu0
    %v6605 = vadd.f32 %v6556, %v6604
    %v6606 = vpop.f32.mrf.mxu0
    %v6607 = vadd.f32 %v6558, %v6606
    %6608 = vmatmul.bf16.gmra.mxu0 %v4924
    %v6609 = vpop.f32.mrf.mxu0
    %v6610 = vadd.f32 %v6561, %v6609
    %v6611 = vpop.f32.mrf.mxu0
    %v6612 = vadd.f32 %v6563, %v6611
    %6613 = vmatmul.bf16.gmra.mxu0 %v4933
    %v6614 = vpop.f32.mrf.mxu0
    %v6615 = vadd.f32 %v6566, %v6614
    %v6616 = vpop.f32.mrf.mxu0
    %v6617 = vadd.f32 %v6568, %v6616
    %6618 = vmatmul.bf16.gmra.mxu0 %v4942
    %v6619 = vpop.f32.mrf.mxu0
    %v6620 = vadd.f32 %v6571, %v6619
    %v6621 = vpop.f32.mrf.mxu0
    %v6622 = vadd.f32 %v6573, %v6621
    %6623 = vmatmul.bf16.gmra.mxu0 %v4951
    %v6624 = vpop.f32.mrf.mxu0
    %v6625 = vadd.f32 %v6576, %v6624
    %v6626 = vpop.f32.mrf.mxu0
    %v6627 = vadd.f32 %v6578, %v6626
    %6628 = vmatmul.bf16.gmra.mxu0 %v4960
    %v6629 = vpop.f32.mrf.mxu0
    %v6630 = vadd.f32 %v6581, %v6629
    %v6631 = vpop.f32.mrf.mxu0
    %v6632 = vadd.f32 %v6583, %v6631
    %6633 = vmatmul.bf16.gmra.mxu0 %v4969
    %v6634 = vpop.f32.mrf.mxu0
    %v6635 = vadd.f32 %v6586, %v6634
    %v6636 = vpop.f32.mrf.mxu0
    %v6637 = vadd.f32 %v6588, %v6636
    %6638 = vmatmul.bf16.gmra.mxu0 %v4978
    %v6639 = vpop.f32.mrf.mxu0
    %v6640 = vadd.f32 %v6591, %v6639
    %v6641 = vpop.f32.mrf.mxu0
    %v6642 = vadd.f32 %v6593, %v6641
    %6643 = vdwg.mxu0
    %6644 = vmatpush.bf16.msra.mxu0 %v6045
    %6645 = vmatpush.bf16.msra.mxu0 %v6041
    %6646 = vmatpush.bf16.msra.mxu0 %v6037
    %6647 = vmatpush.bf16.msra.mxu0 %v6033
    %6648 = vmatpush.bf16.msra.mxu0 %v6029
    %6649 = vmatpush.bf16.msra.mxu0 %v6025
    %6650 = vmatpush.bf16.msra.mxu0 %v6021
    %6651 = vmatpush.bf16.msra.mxu0 %v6017
    %6652 = vmatmul.bf16.gmra.mxu0 %v4916
    %v6653 = vpop.f32.mrf.mxu0
    %v6654 = vadd.f32 %v6605, %v6653
    %v6655 = vpop.f32.mrf.mxu0
    %v6656 = vadd.f32 %v6607, %v6655
    %6657 = vmatmul.bf16.gmra.mxu0 %v4925
    %v6658 = vpop.f32.mrf.mxu0
    %v6659 = vadd.f32 %v6610, %v6658
    %v6660 = vpop.f32.mrf.mxu0
    %v6661 = vadd.f32 %v6612, %v6660
    %6662 = vmatmul.bf16.gmra.mxu0 %v4934
    %v6663 = vpop.f32.mrf.mxu0
    %v6664 = vadd.f32 %v6615, %v6663
    %v6665 = vpop.f32.mrf.mxu0
    %v6666 = vadd.f32 %v6617, %v6665
    %6667 = vmatmul.bf16.gmra.mxu0 %v4943
    %v6668 = vpop.f32.mrf.mxu0
    %v6669 = vadd.f32 %v6620, %v6668
    %v6670 = vpop.f32.mrf.mxu0
    %v6671 = vadd.f32 %v6622, %v6670
    %6672 = vmatmul.bf16.gmra.mxu0 %v4952
    %v6673 = vpop.f32.mrf.mxu0
    %v6674 = vadd.f32 %v6625, %v6673
    %v6675 = vpop.f32.mrf.mxu0
    %v6676 = vadd.f32 %v6627, %v6675
    %6677 = vmatmul.bf16.gmra.mxu0 %v4961
    %v6678 = vpop.f32.mrf.mxu0
    %v6679 = vadd.f32 %v6630, %v6678
    %v6680 = vpop.f32.mrf.mxu0
    %v6681 = vadd.f32 %v6632, %v6680
    %6682 = vmatmul.bf16.gmra.mxu0 %v4970
    %v6683 = vpop.f32.mrf.mxu0
    %v6684 = vadd.f32 %v6635, %v6683
    %v6685 = vpop.f32.mrf.mxu0
    %v6686 = vadd.f32 %v6637, %v6685
    %6687 = vmatmul.bf16.gmra.mxu0 %v4979
    %v6688 = vpop.f32.mrf.mxu0
    %v6689 = vadd.f32 %v6640, %v6688
    %v6690 = vpop.f32.mrf.mxu0
    %v6691 = vadd.f32 %v6642, %v6690
    %6692 = vdwg.mxu0
    %6693 = vmatpush.bf16.msra.mxu0 %v6077
    %6694 = vmatpush.bf16.msra.mxu0 %v6073
    %6695 = vmatpush.bf16.msra.mxu0 %v6069
    %6696 = vmatpush.bf16.msra.mxu0 %v6065
    %6697 = vmatpush.bf16.msra.mxu0 %v6061
    %6698 = vmatpush.bf16.msra.mxu0 %v6057
    %6699 = vmatpush.bf16.msra.mxu0 %v6053
    %6700 = vmatpush.bf16.msra.mxu0 %v6049
    %6701 = vmatmul.bf16.gmra.mxu0 %v4917
    %v6702 = vpop.f32.mrf.mxu0
    %v6703 = vadd.f32 %v6654, %v6702
    %v6704 = vpop.f32.mrf.mxu0
    %v6705 = vadd.f32 %v6656, %v6704
    %6706 = vmatmul.bf16.gmra.mxu0 %v4926
    %v6707 = vpop.f32.mrf.mxu0
    %v6708 = vadd.f32 %v6659, %v6707
    %v6709 = vpop.f32.mrf.mxu0
    %v6710 = vadd.f32 %v6661, %v6709
    %6711 = vmatmul.bf16.gmra.mxu0 %v4935
    %v6712 = vpop.f32.mrf.mxu0
    %v6713 = vadd.f32 %v6664, %v6712
    %v6714 = vpop.f32.mrf.mxu0
    %v6715 = vadd.f32 %v6666, %v6714
    %6716 = vmatmul.bf16.gmra.mxu0 %v4944
    %v6717 = vpop.f32.mrf.mxu0
    %v6718 = vadd.f32 %v6669, %v6717
    %v6719 = vpop.f32.mrf.mxu0
    %v6720 = vadd.f32 %v6671, %v6719
    %6721 = vmatmul.bf16.gmra.mxu0 %v4953
    %v6722 = vpop.f32.mrf.mxu0
    %v6723 = vadd.f32 %v6674, %v6722
    %v6724 = vpop.f32.mrf.mxu0
    %v6725 = vadd.f32 %v6676, %v6724
    %6726 = vmatmul.bf16.gmra.mxu0 %v4962
    %v6727 = vpop.f32.mrf.mxu0
    %v6728 = vadd.f32 %v6679, %v6727
    %v6729 = vpop.f32.mrf.mxu0
    %v6730 = vadd.f32 %v6681, %v6729
    %6731 = vmatmul.bf16.gmra.mxu0 %v4971
    %v6732 = vpop.f32.mrf.mxu0
    %v6733 = vadd.f32 %v6684, %v6732
    %v6734 = vpop.f32.mrf.mxu0
    %v6735 = vadd.f32 %v6686, %v6734
    %6736 = vmatmul.bf16.gmra.mxu0 %v4980
    %v6737 = vpop.f32.mrf.mxu0
    %v6738 = vadd.f32 %v6689, %v6737
    %v6739 = vpop.f32.mrf.mxu0
    %v6740 = vadd.f32 %v6691, %v6739
    %6741 = vdwg.mxu0
    %6742 = vmatpush.bf16.msra.mxu0 %v6109
    %6743 = vmatpush.bf16.msra.mxu0 %v6105
    %6744 = vmatpush.bf16.msra.mxu0 %v6101
    %6745 = vmatpush.bf16.msra.mxu0 %v6097
    %6746 = vmatpush.bf16.msra.mxu0 %v6093
    %6747 = vmatpush.bf16.msra.mxu0 %v6089
    %6748 = vmatpush.bf16.msra.mxu0 %v6085
    %6749 = vmatpush.bf16.msra.mxu0 %v6081
    %6750 = vmatmul.bf16.gmra.mxu0 %v4918
    %v6751 = vpop.f32.mrf.mxu0
    %v6752 = vadd.f32 %v6703, %v6751
    %v6753 = vpop.f32.mrf.mxu0
    %v6754 = vadd.f32 %v6705, %v6753
    %6755 = vmatmul.bf16.gmra.mxu0 %v4927
    %v6756 = vpop.f32.mrf.mxu0
    %v6757 = vadd.f32 %v6708, %v6756
    %v6758 = vpop.f32.mrf.mxu0
    %v6759 = vadd.f32 %v6710, %v6758
    %6760 = vmatmul.bf16.gmra.mxu0 %v4936
    %v6761 = vpop.f32.mrf.mxu0
    %v6762 = vadd.f32 %v6713, %v6761
    %v6763 = vpop.f32.mrf.mxu0
    %v6764 = vadd.f32 %v6715, %v6763
    %6765 = vmatmul.bf16.gmra.mxu0 %v4945
    %v6766 = vpop.f32.mrf.mxu0
    %v6767 = vadd.f32 %v6718, %v6766
    %v6768 = vpop.f32.mrf.mxu0
    %v6769 = vadd.f32 %v6720, %v6768
    %6770 = vmatmul.bf16.gmra.mxu0 %v4954
    %v6771 = vpop.f32.mrf.mxu0
    %v6772 = vadd.f32 %v6723, %v6771
    %v6773 = vpop.f32.mrf.mxu0
    %v6774 = vadd.f32 %v6725, %v6773
    %6775 = vmatmul.bf16.gmra.mxu0 %v4963
    %v6776 = vpop.f32.mrf.mxu0
    %v6777 = vadd.f32 %v6728, %v6776
    %v6778 = vpop.f32.mrf.mxu0
    %v6779 = vadd.f32 %v6730, %v6778
    %6780 = vmatmul.bf16.gmra.mxu0 %v4972
    %v6781 = vpop.f32.mrf.mxu0
    %v6782 = vadd.f32 %v6733, %v6781
    %v6783 = vpop.f32.mrf.mxu0
    %v6784 = vadd.f32 %v6735, %v6783
    %6785 = vmatmul.bf16.gmra.mxu0 %v4981
    %v6786 = vpop.f32.mrf.mxu0
    %v6787 = vadd.f32 %v6738, %v6786
    %v6788 = vpop.f32.mrf.mxu0
    %v6789 = vadd.f32 %v6740, %v6788
    %6790 = vdwg.mxu0
    %6791 = vmatpush.bf16.msra.mxu0 %v6141
    %6792 = vmatpush.bf16.msra.mxu0 %v6137
    %6793 = vmatpush.bf16.msra.mxu0 %v6133
    %6794 = vmatpush.bf16.msra.mxu0 %v6129
    %6795 = vmatpush.bf16.msra.mxu0 %v6125
    %6796 = vmatpush.bf16.msra.mxu0 %v6121
    %6797 = vmatpush.bf16.msra.mxu0 %v6117
    %6798 = vmatpush.bf16.msra.mxu0 %v6113
    %6799 = vmatmul.bf16.gmra.mxu0 %v4919
    %v6800 = vpop.f32.mrf.mxu0
    %v6801 = vadd.f32 %v6752, %v6800
    %v6802 = vpop.f32.mrf.mxu0
    %v6803 = vadd.f32 %v6754, %v6802
    %6804 = vmatmul.bf16.gmra.mxu0 %v4928
    %v6805 = vpop.f32.mrf.mxu0
    %v6806 = vadd.f32 %v6757, %v6805
    %v6807 = vpop.f32.mrf.mxu0
    %v6808 = vadd.f32 %v6759, %v6807
    %6809 = vmatmul.bf16.gmra.mxu0 %v4937
    %v6810 = vpop.f32.mrf.mxu0
    %v6811 = vadd.f32 %v6762, %v6810
    %v6812 = vpop.f32.mrf.mxu0
    %v6813 = vadd.f32 %v6764, %v6812
    %6814 = vmatmul.bf16.gmra.mxu0 %v4946
    %v6815 = vpop.f32.mrf.mxu0
    %v6816 = vadd.f32 %v6767, %v6815
    %v6817 = vpop.f32.mrf.mxu0
    %v6818 = vadd.f32 %v6769, %v6817
    %6819 = vmatmul.bf16.gmra.mxu0 %v4955
    %v6820 = vpop.f32.mrf.mxu0
    %v6821 = vadd.f32 %v6772, %v6820
    %v6822 = vpop.f32.mrf.mxu0
    %v6823 = vadd.f32 %v6774, %v6822
    %6824 = vmatmul.bf16.gmra.mxu0 %v4964
    %v6825 = vpop.f32.mrf.mxu0
    %v6826 = vadd.f32 %v6777, %v6825
    %v6827 = vpop.f32.mrf.mxu0
    %v6828 = vadd.f32 %v6779, %v6827
    %6829 = vmatmul.bf16.gmra.mxu0 %v4973
    %v6830 = vpop.f32.mrf.mxu0
    %v6831 = vadd.f32 %v6782, %v6830
    %v6832 = vpop.f32.mrf.mxu0
    %v6833 = vadd.f32 %v6784, %v6832
    %6834 = vmatmul.bf16.gmra.mxu0 %v4982
    %v6835 = vpop.f32.mrf.mxu0
    %v6836 = vadd.f32 %v6787, %v6835
    %v6837 = vpop.f32.mrf.mxu0
    %v6838 = vadd.f32 %v6789, %v6837
    %6839 = vdwg.mxu0
    %6840 = vmatpush.bf16.msra.mxu0 %v6173
    %6841 = vmatpush.bf16.msra.mxu0 %v6169
    %6842 = vmatpush.bf16.msra.mxu0 %v6165
    %6843 = vmatpush.bf16.msra.mxu0 %v6161
    %6844 = vmatpush.bf16.msra.mxu0 %v6157
    %6845 = vmatpush.bf16.msra.mxu0 %v6153
    %6846 = vmatpush.bf16.msra.mxu0 %v6149
    %6847 = vmatpush.bf16.msra.mxu0 %v6145
    %6848 = vmatmul.bf16.gmra.mxu0 %v4920
    %v6849 = vpop.f32.mrf.mxu0
    %v6850 = vadd.f32 %v6801, %v6849
    %v6851 = vpop.f32.mrf.mxu0
    %v6852 = vadd.f32 %v6803, %v6851
    %6853 = vmatmul.bf16.gmra.mxu0 %v4929
    %v6854 = vpop.f32.mrf.mxu0
    %v6855 = vadd.f32 %v6806, %v6854
    %v6856 = vpop.f32.mrf.mxu0
    %v6857 = vadd.f32 %v6808, %v6856
    %6858 = vmatmul.bf16.gmra.mxu0 %v4938
    %v6859 = vpop.f32.mrf.mxu0
    %v6860 = vadd.f32 %v6811, %v6859
    %v6861 = vpop.f32.mrf.mxu0
    %v6862 = vadd.f32 %v6813, %v6861
    %6863 = vmatmul.bf16.gmra.mxu0 %v4947
    %v6864 = vpop.f32.mrf.mxu0
    %v6865 = vadd.f32 %v6816, %v6864
    %v6866 = vpop.f32.mrf.mxu0
    %v6867 = vadd.f32 %v6818, %v6866
    %6868 = vmatmul.bf16.gmra.mxu0 %v4956
    %v6869 = vpop.f32.mrf.mxu0
    %v6870 = vadd.f32 %v6821, %v6869
    %v6871 = vpop.f32.mrf.mxu0
    %v6872 = vadd.f32 %v6823, %v6871
    %6873 = vmatmul.bf16.gmra.mxu0 %v4965
    %v6874 = vpop.f32.mrf.mxu0
    %v6875 = vadd.f32 %v6826, %v6874
    %v6876 = vpop.f32.mrf.mxu0
    %v6877 = vadd.f32 %v6828, %v6876
    %6878 = vmatmul.bf16.gmra.mxu0 %v4974
    %v6879 = vpop.f32.mrf.mxu0
    %v6880 = vadd.f32 %v6831, %v6879
    %v6881 = vpop.f32.mrf.mxu0
    %v6882 = vadd.f32 %v6833, %v6881
    %6883 = vmatmul.bf16.gmra.mxu0 %v4983
    %v6884 = vpop.f32.mrf.mxu0
    %v6885 = vadd.f32 %v6836, %v6884
    %v6886 = vpop.f32.mrf.mxu0
    %v6887 = vadd.f32 %v6838, %v6886
    %6888 = vdwg.mxu0
    %6889 = vmatpush.bf16.msra.mxu0 %v6205
    %6890 = vmatpush.bf16.msra.mxu0 %v6201
    %6891 = vmatpush.bf16.msra.mxu0 %v6197
    %6892 = vmatpush.bf16.msra.mxu0 %v6193
    %6893 = vmatpush.bf16.msra.mxu0 %v6189
    %6894 = vmatpush.bf16.msra.mxu0 %v6185
    %6895 = vmatpush.bf16.msra.mxu0 %v6181
    %6896 = vmatpush.bf16.msra.mxu0 %v6177
    %6897 = vmatmul.bf16.gmra.mxu0 %v4921
    %v6898 = vpop.f32.mrf.mxu0
    %v6899 = vadd.f32 %v6850, %v6898
    %v6900 = vpop.f32.mrf.mxu0
    %v6901 = vadd.f32 %v6852, %v6900
    %6902 = vmatmul.bf16.gmra.mxu0 %v4930
    %v6903 = vpop.f32.mrf.mxu0
    %v6904 = vadd.f32 %v6855, %v6903
    %v6905 = vpop.f32.mrf.mxu0
    %v6906 = vadd.f32 %v6857, %v6905
    %6907 = vmatmul.bf16.gmra.mxu0 %v4939
    %v6908 = vpop.f32.mrf.mxu0
    %v6909 = vadd.f32 %v6860, %v6908
    %v6910 = vpop.f32.mrf.mxu0
    %v6911 = vadd.f32 %v6862, %v6910
    %6912 = vmatmul.bf16.gmra.mxu0 %v4948
    %v6913 = vpop.f32.mrf.mxu0
    %v6914 = vadd.f32 %v6865, %v6913
    %v6915 = vpop.f32.mrf.mxu0
    %v6916 = vadd.f32 %v6867, %v6915
    %6917 = vmatmul.bf16.gmra.mxu0 %v4957
    %v6918 = vpop.f32.mrf.mxu0
    %v6919 = vadd.f32 %v6870, %v6918
    %v6920 = vpop.f32.mrf.mxu0
    %v6921 = vadd.f32 %v6872, %v6920
    %6922 = vmatmul.bf16.gmra.mxu0 %v4966
    %v6923 = vpop.f32.mrf.mxu0
    %v6924 = vadd.f32 %v6875, %v6923
    %v6925 = vpop.f32.mrf.mxu0
    %v6926 = vadd.f32 %v6877, %v6925
    %6927 = vmatmul.bf16.gmra.mxu0 %v4975
    %v6928 = vpop.f32.mrf.mxu0
    %v6929 = vadd.f32 %v6880, %v6928
    %v6930 = vpop.f32.mrf.mxu0
    %v6931 = vadd.f32 %v6882, %v6930
    %6932 = vmatmul.bf16.gmra.mxu0 %v4984
    %v6933 = vpop.f32.mrf.mxu0
    %v6934 = vadd.f32 %v6885, %v6933
    %v6935 = vpop.f32.mrf.mxu0
    %v6936 = vadd.f32 %v6887, %v6935
    %6937 = vdwg.mxu0
    %6938 = vmatpush.bf16.msra.mxu0 %v5950
    %6939 = vmatpush.bf16.msra.mxu0 %v5946
    %6940 = vmatpush.bf16.msra.mxu0 %v5942
    %6941 = vmatpush.bf16.msra.mxu0 %v5938
    %6942 = vmatpush.bf16.msra.mxu0 %v5934
    %6943 = vmatpush.bf16.msra.mxu0 %v5930
    %6944 = vmatpush.bf16.msra.mxu0 %v5926
    %6945 = vmatpush.bf16.msra.mxu0 %v5922
    %6946 = vmatmul.bf16.gmra.mxu0 %v4913
    %v6947 = vpop.f32.mrf.mxu0
    %v6948 = vadd.f32 %v4682, %v6947
    %v6949 = vpop.f32.mrf.mxu0
    %v6950 = vadd.f32 %v4682, %v6949
    %6951 = vmatmul.bf16.gmra.mxu0 %v4922
    %v6952 = vpop.f32.mrf.mxu0
    %v6953 = vadd.f32 %v4682, %v6952
    %v6954 = vpop.f32.mrf.mxu0
    %v6955 = vadd.f32 %v4682, %v6954
    %6956 = vmatmul.bf16.gmra.mxu0 %v4931
    %v6957 = vpop.f32.mrf.mxu0
    %v6958 = vadd.f32 %v4682, %v6957
    %v6959 = vpop.f32.mrf.mxu0
    %v6960 = vadd.f32 %v4682, %v6959
    %6961 = vmatmul.bf16.gmra.mxu0 %v4940
    %v6962 = vpop.f32.mrf.mxu0
    %v6963 = vadd.f32 %v4682, %v6962
    %v6964 = vpop.f32.mrf.mxu0
    %v6965 = vadd.f32 %v4682, %v6964
    %6966 = vmatmul.bf16.gmra.mxu0 %v4949
    %v6967 = vpop.f32.mrf.mxu0
    %v6968 = vadd.f32 %v4682, %v6967
    %v6969 = vpop.f32.mrf.mxu0
    %v6970 = vadd.f32 %v4682, %v6969
    %6971 = vmatmul.bf16.gmra.mxu0 %v4958
    %v6972 = vpop.f32.mrf.mxu0
    %v6973 = vadd.f32 %v4682, %v6972
    %v6974 = vpop.f32.mrf.mxu0
    %v6975 = vadd.f32 %v4682, %v6974
    %6976 = vmatmul.bf16.gmra.mxu0 %v4967
    %v6977 = vpop.f32.mrf.mxu0
    %v6978 = vadd.f32 %v4682, %v6977
    %v6979 = vpop.f32.mrf.mxu0
    %v6980 = vadd.f32 %v4682, %v6979
    %6981 = vmatmul.bf16.gmra.mxu0 %v4976
    %v6982 = vpop.f32.mrf.mxu0
    %v6983 = vadd.f32 %v4682, %v6982
    %v6984 = vpop.f32.mrf.mxu0
    %v6985 = vadd.f32 %v4682, %v6984
    %6986 = vdwg.mxu0
    %6987 = vmatpush.bf16.msra.mxu0 %v5982
    %6988 = vmatpush.bf16.msra.mxu0 %v5978
    %6989 = vmatpush.bf16.msra.mxu0 %v5974
    %6990 = vmatpush.bf16.msra.mxu0 %v5970
    %6991 = vmatpush.bf16.msra.mxu0 %v5966
    %6992 = vmatpush.bf16.msra.mxu0 %v5962
    %6993 = vmatpush.bf16.msra.mxu0 %v5958
    %6994 = vmatpush.bf16.msra.mxu0 %v5954
    %6995 = vmatmul.bf16.gmra.mxu0 %v4914
    %v6996 = vpop.f32.mrf.mxu0
    %v6997 = vadd.f32 %v6948, %v6996
    %v6998 = vpop.f32.mrf.mxu0
    %v6999 = vadd.f32 %v6950, %v6998
    %7000 = vmatmul.bf16.gmra.mxu0 %v4923
    %v7001 = vpop.f32.mrf.mxu0
    %v7002 = vadd.f32 %v6953, %v7001
    %v7003 = vpop.f32.mrf.mxu0
    %v7004 = vadd.f32 %v6955, %v7003
    %7005 = vmatmul.bf16.gmra.mxu0 %v4932
    %v7006 = vpop.f32.mrf.mxu0
    %v7007 = vadd.f32 %v6958, %v7006
    %v7008 = vpop.f32.mrf.mxu0
    %v7009 = vadd.f32 %v6960, %v7008
    %7010 = vmatmul.bf16.gmra.mxu0 %v4941
    %v7011 = vpop.f32.mrf.mxu0
    %v7012 = vadd.f32 %v6963, %v7011
    %v7013 = vpop.f32.mrf.mxu0
    %v7014 = vadd.f32 %v6965, %v7013
    %7015 = vmatmul.bf16.gmra.mxu0 %v4950
    %v7016 = vpop.f32.mrf.mxu0
    %v7017 = vadd.f32 %v6968, %v7016
    %v7018 = vpop.f32.mrf.mxu0
    %v7019 = vadd.f32 %v6970, %v7018
    %7020 = vmatmul.bf16.gmra.mxu0 %v4959
    %v7021 = vpop.f32.mrf.mxu0
    %v7022 = vadd.f32 %v6973, %v7021
    %v7023 = vpop.f32.mrf.mxu0
    %v7024 = vadd.f32 %v6975, %v7023
    %7025 = vmatmul.bf16.gmra.mxu0 %v4968
    %v7026 = vpop.f32.mrf.mxu0
    %v7027 = vadd.f32 %v6978, %v7026
    %v7028 = vpop.f32.mrf.mxu0
    %v7029 = vadd.f32 %v6980, %v7028
    %7030 = vmatmul.bf16.gmra.mxu0 %v4977
    %v7031 = vpop.f32.mrf.mxu0
    %v7032 = vadd.f32 %v6983, %v7031
    %v7033 = vpop.f32.mrf.mxu0
    %v7034 = vadd.f32 %v6985, %v7033
    %7035 = vdwg.mxu0
    %7036 = vmatpush.bf16.msra.mxu0 %v6014
    %7037 = vmatpush.bf16.msra.mxu0 %v6010
    %7038 = vmatpush.bf16.msra.mxu0 %v6006
    %7039 = vmatpush.bf16.msra.mxu0 %v6002
    %7040 = vmatpush.bf16.msra.mxu0 %v5998
    %7041 = vmatpush.bf16.msra.mxu0 %v5994
    %7042 = vmatpush.bf16.msra.mxu0 %v5990
    %7043 = vmatpush.bf16.msra.mxu0 %v5986
    %7044 = vmatmul.bf16.gmra.mxu0 %v4915
    %v7045 = vpop.f32.mrf.mxu0
    %v7046 = vadd.f32 %v6997, %v7045
    %v7047 = vpop.f32.mrf.mxu0
    %v7048 = vadd.f32 %v6999, %v7047
    %7049 = vmatmul.bf16.gmra.mxu0 %v4924
    %v7050 = vpop.f32.mrf.mxu0
    %v7051 = vadd.f32 %v7002, %v7050
    %v7052 = vpop.f32.mrf.mxu0
    %v7053 = vadd.f32 %v7004, %v7052
    %7054 = vmatmul.bf16.gmra.mxu0 %v4933
    %v7055 = vpop.f32.mrf.mxu0
    %v7056 = vadd.f32 %v7007, %v7055
    %v7057 = vpop.f32.mrf.mxu0
    %v7058 = vadd.f32 %v7009, %v7057
    %7059 = vmatmul.bf16.gmra.mxu0 %v4942
    %v7060 = vpop.f32.mrf.mxu0
    %v7061 = vadd.f32 %v7012, %v7060
    %v7062 = vpop.f32.mrf.mxu0
    %v7063 = vadd.f32 %v7014, %v7062
    %7064 = vmatmul.bf16.gmra.mxu0 %v4951
    %v7065 = vpop.f32.mrf.mxu0
    %v7066 = vadd.f32 %v7017, %v7065
    %v7067 = vpop.f32.mrf.mxu0
    %v7068 = vadd.f32 %v7019, %v7067
    %7069 = vmatmul.bf16.gmra.mxu0 %v4960
    %v7070 = vpop.f32.mrf.mxu0
    %v7071 = vadd.f32 %v7022, %v7070
    %v7072 = vpop.f32.mrf.mxu0
    %v7073 = vadd.f32 %v7024, %v7072
    %7074 = vmatmul.bf16.gmra.mxu0 %v4969
    %v7075 = vpop.f32.mrf.mxu0
    %v7076 = vadd.f32 %v7027, %v7075
    %v7077 = vpop.f32.mrf.mxu0
    %v7078 = vadd.f32 %v7029, %v7077
    %7079 = vmatmul.bf16.gmra.mxu0 %v4978
    %v7080 = vpop.f32.mrf.mxu0
    %v7081 = vadd.f32 %v7032, %v7080
    %v7082 = vpop.f32.mrf.mxu0
    %v7083 = vadd.f32 %v7034, %v7082
    %7084 = vdwg.mxu0
    %7085 = vmatpush.bf16.msra.mxu0 %v6046
    %7086 = vmatpush.bf16.msra.mxu0 %v6042
    %7087 = vmatpush.bf16.msra.mxu0 %v6038
    %7088 = vmatpush.bf16.msra.mxu0 %v6034
    %7089 = vmatpush.bf16.msra.mxu0 %v6030
    %7090 = vmatpush.bf16.msra.mxu0 %v6026
    %7091 = vmatpush.bf16.msra.mxu0 %v6022
    %7092 = vmatpush.bf16.msra.mxu0 %v6018
    %7093 = vmatmul.bf16.gmra.mxu0 %v4916
    %v7094 = vpop.f32.mrf.mxu0
    %v7095 = vadd.f32 %v7046, %v7094
    %v7096 = vpop.f32.mrf.mxu0
    %v7097 = vadd.f32 %v7048, %v7096
    %7098 = vmatmul.bf16.gmra.mxu0 %v4925
    %v7099 = vpop.f32.mrf.mxu0
    %v7100 = vadd.f32 %v7051, %v7099
    %v7101 = vpop.f32.mrf.mxu0
    %v7102 = vadd.f32 %v7053, %v7101
    %7103 = vmatmul.bf16.gmra.mxu0 %v4934
    %v7104 = vpop.f32.mrf.mxu0
    %v7105 = vadd.f32 %v7056, %v7104
    %v7106 = vpop.f32.mrf.mxu0
    %v7107 = vadd.f32 %v7058, %v7106
    %7108 = vmatmul.bf16.gmra.mxu0 %v4943
    %v7109 = vpop.f32.mrf.mxu0
    %v7110 = vadd.f32 %v7061, %v7109
    %v7111 = vpop.f32.mrf.mxu0
    %v7112 = vadd.f32 %v7063, %v7111
    %7113 = vmatmul.bf16.gmra.mxu0 %v4952
    %v7114 = vpop.f32.mrf.mxu0
    %v7115 = vadd.f32 %v7066, %v7114
    %v7116 = vpop.f32.mrf.mxu0
    %v7117 = vadd.f32 %v7068, %v7116
    %7118 = vmatmul.bf16.gmra.mxu0 %v4961
    %v7119 = vpop.f32.mrf.mxu0
    %v7120 = vadd.f32 %v7071, %v7119
    %v7121 = vpop.f32.mrf.mxu0
    %v7122 = vadd.f32 %v7073, %v7121
    %7123 = vmatmul.bf16.gmra.mxu0 %v4970
    %v7124 = vpop.f32.mrf.mxu0
    %v7125 = vadd.f32 %v7076, %v7124
    %v7126 = vpop.f32.mrf.mxu0
    %v7127 = vadd.f32 %v7078, %v7126
    %7128 = vmatmul.bf16.gmra.mxu0 %v4979
    %v7129 = vpop.f32.mrf.mxu0
    %v7130 = vadd.f32 %v7081, %v7129
    %v7131 = vpop.f32.mrf.mxu0
    %v7132 = vadd.f32 %v7083, %v7131
    %7133 = vdwg.mxu0
    %7134 = vmatpush.bf16.msra.mxu0 %v6078
    %7135 = vmatpush.bf16.msra.mxu0 %v6074
    %7136 = vmatpush.bf16.msra.mxu0 %v6070
    %7137 = vmatpush.bf16.msra.mxu0 %v6066
    %7138 = vmatpush.bf16.msra.mxu0 %v6062
    %7139 = vmatpush.bf16.msra.mxu0 %v6058
    %7140 = vmatpush.bf16.msra.mxu0 %v6054
    %7141 = vmatpush.bf16.msra.mxu0 %v6050
    %7142 = vmatmul.bf16.gmra.mxu0 %v4917
    %v7143 = vpop.f32.mrf.mxu0
    %v7144 = vadd.f32 %v7095, %v7143
    %v7145 = vpop.f32.mrf.mxu0
    %v7146 = vadd.f32 %v7097, %v7145
    %7147 = vmatmul.bf16.gmra.mxu0 %v4926
    %v7148 = vpop.f32.mrf.mxu0
    %v7149 = vadd.f32 %v7100, %v7148
    %v7150 = vpop.f32.mrf.mxu0
    %v7151 = vadd.f32 %v7102, %v7150
    %7152 = vmatmul.bf16.gmra.mxu0 %v4935
    %v7153 = vpop.f32.mrf.mxu0
    %v7154 = vadd.f32 %v7105, %v7153
    %v7155 = vpop.f32.mrf.mxu0
    %v7156 = vadd.f32 %v7107, %v7155
    %7157 = vmatmul.bf16.gmra.mxu0 %v4944
    %v7158 = vpop.f32.mrf.mxu0
    %v7159 = vadd.f32 %v7110, %v7158
    %v7160 = vpop.f32.mrf.mxu0
    %v7161 = vadd.f32 %v7112, %v7160
    %7162 = vmatmul.bf16.gmra.mxu0 %v4953
    %v7163 = vpop.f32.mrf.mxu0
    %v7164 = vadd.f32 %v7115, %v7163
    %v7165 = vpop.f32.mrf.mxu0
    %v7166 = vadd.f32 %v7117, %v7165
    %7167 = vmatmul.bf16.gmra.mxu0 %v4962
    %v7168 = vpop.f32.mrf.mxu0
    %v7169 = vadd.f32 %v7120, %v7168
    %v7170 = vpop.f32.mrf.mxu0
    %v7171 = vadd.f32 %v7122, %v7170
    %7172 = vmatmul.bf16.gmra.mxu0 %v4971
    %v7173 = vpop.f32.mrf.mxu0
    %v7174 = vadd.f32 %v7125, %v7173
    %v7175 = vpop.f32.mrf.mxu0
    %v7176 = vadd.f32 %v7127, %v7175
    %7177 = vmatmul.bf16.gmra.mxu0 %v4980
    %v7178 = vpop.f32.mrf.mxu0
    %v7179 = vadd.f32 %v7130, %v7178
    %v7180 = vpop.f32.mrf.mxu0
    %v7181 = vadd.f32 %v7132, %v7180
    %7182 = vdwg.mxu0
    %7183 = vmatpush.bf16.msra.mxu0 %v6110
    %7184 = vmatpush.bf16.msra.mxu0 %v6106
    %7185 = vmatpush.bf16.msra.mxu0 %v6102
    %7186 = vmatpush.bf16.msra.mxu0 %v6098
    %7187 = vmatpush.bf16.msra.mxu0 %v6094
    %7188 = vmatpush.bf16.msra.mxu0 %v6090
    %7189 = vmatpush.bf16.msra.mxu0 %v6086
    %7190 = vmatpush.bf16.msra.mxu0 %v6082
    %7191 = vmatmul.bf16.gmra.mxu0 %v4918
    %v7192 = vpop.f32.mrf.mxu0
    %v7193 = vadd.f32 %v7144, %v7192
    %v7194 = vpop.f32.mrf.mxu0
    %v7195 = vadd.f32 %v7146, %v7194
    %7196 = vmatmul.bf16.gmra.mxu0 %v4927
    %v7197 = vpop.f32.mrf.mxu0
    %v7198 = vadd.f32 %v7149, %v7197
    %v7199 = vpop.f32.mrf.mxu0
    %v7200 = vadd.f32 %v7151, %v7199
    %7201 = vmatmul.bf16.gmra.mxu0 %v4936
    %v7202 = vpop.f32.mrf.mxu0
    %v7203 = vadd.f32 %v7154, %v7202
    %v7204 = vpop.f32.mrf.mxu0
    %v7205 = vadd.f32 %v7156, %v7204
    %7206 = vmatmul.bf16.gmra.mxu0 %v4945
    %v7207 = vpop.f32.mrf.mxu0
    %v7208 = vadd.f32 %v7159, %v7207
    %v7209 = vpop.f32.mrf.mxu0
    %v7210 = vadd.f32 %v7161, %v7209
    %7211 = vmatmul.bf16.gmra.mxu0 %v4954
    %v7212 = vpop.f32.mrf.mxu0
    %v7213 = vadd.f32 %v7164, %v7212
    %v7214 = vpop.f32.mrf.mxu0
    %v7215 = vadd.f32 %v7166, %v7214
    %7216 = vmatmul.bf16.gmra.mxu0 %v4963
    %v7217 = vpop.f32.mrf.mxu0
    %v7218 = vadd.f32 %v7169, %v7217
    %v7219 = vpop.f32.mrf.mxu0
    %v7220 = vadd.f32 %v7171, %v7219
    %7221 = vmatmul.bf16.gmra.mxu0 %v4972
    %v7222 = vpop.f32.mrf.mxu0
    %v7223 = vadd.f32 %v7174, %v7222
    %v7224 = vpop.f32.mrf.mxu0
    %v7225 = vadd.f32 %v7176, %v7224
    %7226 = vmatmul.bf16.gmra.mxu0 %v4981
    %v7227 = vpop.f32.mrf.mxu0
    %v7228 = vadd.f32 %v7179, %v7227
    %v7229 = vpop.f32.mrf.mxu0
    %v7230 = vadd.f32 %v7181, %v7229
    %7231 = vdwg.mxu0
    %7232 = vmatpush.bf16.msra.mxu0 %v6142
    %7233 = vmatpush.bf16.msra.mxu0 %v6138
    %7234 = vmatpush.bf16.msra.mxu0 %v6134
    %7235 = vmatpush.bf16.msra.mxu0 %v6130
    %7236 = vmatpush.bf16.msra.mxu0 %v6126
    %7237 = vmatpush.bf16.msra.mxu0 %v6122
    %7238 = vmatpush.bf16.msra.mxu0 %v6118
    %7239 = vmatpush.bf16.msra.mxu0 %v6114
    %7240 = vmatmul.bf16.gmra.mxu0 %v4919
    %v7241 = vpop.f32.mrf.mxu0
    %v7242 = vadd.f32 %v7193, %v7241
    %v7243 = vpop.f32.mrf.mxu0
    %v7244 = vadd.f32 %v7195, %v7243
    %7245 = vmatmul.bf16.gmra.mxu0 %v4928
    %v7246 = vpop.f32.mrf.mxu0
    %v7247 = vadd.f32 %v7198, %v7246
    %v7248 = vpop.f32.mrf.mxu0
    %v7249 = vadd.f32 %v7200, %v7248
    %7250 = vmatmul.bf16.gmra.mxu0 %v4937
    %v7251 = vpop.f32.mrf.mxu0
    %v7252 = vadd.f32 %v7203, %v7251
    %v7253 = vpop.f32.mrf.mxu0
    %v7254 = vadd.f32 %v7205, %v7253
    %7255 = vmatmul.bf16.gmra.mxu0 %v4946
    %v7256 = vpop.f32.mrf.mxu0
    %v7257 = vadd.f32 %v7208, %v7256
    %v7258 = vpop.f32.mrf.mxu0
    %v7259 = vadd.f32 %v7210, %v7258
    %7260 = vmatmul.bf16.gmra.mxu0 %v4955
    %v7261 = vpop.f32.mrf.mxu0
    %v7262 = vadd.f32 %v7213, %v7261
    %v7263 = vpop.f32.mrf.mxu0
    %v7264 = vadd.f32 %v7215, %v7263
    %7265 = vmatmul.bf16.gmra.mxu0 %v4964
    %v7266 = vpop.f32.mrf.mxu0
    %v7267 = vadd.f32 %v7218, %v7266
    %v7268 = vpop.f32.mrf.mxu0
    %v7269 = vadd.f32 %v7220, %v7268
    %7270 = vmatmul.bf16.gmra.mxu0 %v4973
    %v7271 = vpop.f32.mrf.mxu0
    %v7272 = vadd.f32 %v7223, %v7271
    %v7273 = vpop.f32.mrf.mxu0
    %v7274 = vadd.f32 %v7225, %v7273
    %7275 = vmatmul.bf16.gmra.mxu0 %v4982
    %v7276 = vpop.f32.mrf.mxu0
    %v7277 = vadd.f32 %v7228, %v7276
    %v7278 = vpop.f32.mrf.mxu0
    %v7279 = vadd.f32 %v7230, %v7278
    %7280 = vdwg.mxu0
    %7281 = vmatpush.bf16.msra.mxu0 %v6174
    %7282 = vmatpush.bf16.msra.mxu0 %v6170
    %7283 = vmatpush.bf16.msra.mxu0 %v6166
    %7284 = vmatpush.bf16.msra.mxu0 %v6162
    %7285 = vmatpush.bf16.msra.mxu0 %v6158
    %7286 = vmatpush.bf16.msra.mxu0 %v6154
    %7287 = vmatpush.bf16.msra.mxu0 %v6150
    %7288 = vmatpush.bf16.msra.mxu0 %v6146
    %7289 = vmatmul.bf16.gmra.mxu0 %v4920
    %v7290 = vpop.f32.mrf.mxu0
    %v7291 = vadd.f32 %v7242, %v7290
    %v7292 = vpop.f32.mrf.mxu0
    %v7293 = vadd.f32 %v7244, %v7292
    %7294 = vmatmul.bf16.gmra.mxu0 %v4929
    %v7295 = vpop.f32.mrf.mxu0
    %v7296 = vadd.f32 %v7247, %v7295
    %v7297 = vpop.f32.mrf.mxu0
    %v7298 = vadd.f32 %v7249, %v7297
    %7299 = vmatmul.bf16.gmra.mxu0 %v4938
    %v7300 = vpop.f32.mrf.mxu0
    %v7301 = vadd.f32 %v7252, %v7300
    %v7302 = vpop.f32.mrf.mxu0
    %v7303 = vadd.f32 %v7254, %v7302
    %7304 = vmatmul.bf16.gmra.mxu0 %v4947
    %v7305 = vpop.f32.mrf.mxu0
    %v7306 = vadd.f32 %v7257, %v7305
    %v7307 = vpop.f32.mrf.mxu0
    %v7308 = vadd.f32 %v7259, %v7307
    %7309 = vmatmul.bf16.gmra.mxu0 %v4956
    %v7310 = vpop.f32.mrf.mxu0
    %v7311 = vadd.f32 %v7262, %v7310
    %v7312 = vpop.f32.mrf.mxu0
    %v7313 = vadd.f32 %v7264, %v7312
    %7314 = vmatmul.bf16.gmra.mxu0 %v4965
    %v7315 = vpop.f32.mrf.mxu0
    %v7316 = vadd.f32 %v7267, %v7315
    %v7317 = vpop.f32.mrf.mxu0
    %v7318 = vadd.f32 %v7269, %v7317
    %7319 = vmatmul.bf16.gmra.mxu0 %v4974
    %v7320 = vpop.f32.mrf.mxu0
    %v7321 = vadd.f32 %v7272, %v7320
    %v7322 = vpop.f32.mrf.mxu0
    %v7323 = vadd.f32 %v7274, %v7322
    %7324 = vmatmul.bf16.gmra.mxu0 %v4983
    %v7325 = vpop.f32.mrf.mxu0
    %v7326 = vadd.f32 %v7277, %v7325
    %v7327 = vpop.f32.mrf.mxu0
    %v7328 = vadd.f32 %v7279, %v7327
    %7329 = vdwg.mxu0
    %7330 = vmatpush.bf16.msra.mxu0 %v6206
    %7331 = vmatpush.bf16.msra.mxu0 %v6202
    %7332 = vmatpush.bf16.msra.mxu0 %v6198
    %7333 = vmatpush.bf16.msra.mxu0 %v6194
    %7334 = vmatpush.bf16.msra.mxu0 %v6190
    %7335 = vmatpush.bf16.msra.mxu0 %v6186
    %7336 = vmatpush.bf16.msra.mxu0 %v6182
    %7337 = vmatpush.bf16.msra.mxu0 %v6178
    %7338 = vmatmul.bf16.gmra.mxu0 %v4921
    %v7339 = vpop.f32.mrf.mxu0
    %v7340 = vadd.f32 %v7291, %v7339
    %v7341 = vpop.f32.mrf.mxu0
    %v7342 = vadd.f32 %v7293, %v7341
    %7343 = vmatmul.bf16.gmra.mxu0 %v4930
    %v7344 = vpop.f32.mrf.mxu0
    %v7345 = vadd.f32 %v7296, %v7344
    %v7346 = vpop.f32.mrf.mxu0
    %v7347 = vadd.f32 %v7298, %v7346
    %7348 = vmatmul.bf16.gmra.mxu0 %v4939
    %v7349 = vpop.f32.mrf.mxu0
    %v7350 = vadd.f32 %v7301, %v7349
    %v7351 = vpop.f32.mrf.mxu0
    %v7352 = vadd.f32 %v7303, %v7351
    %7353 = vmatmul.bf16.gmra.mxu0 %v4948
    %v7354 = vpop.f32.mrf.mxu0
    %v7355 = vadd.f32 %v7306, %v7354
    %v7356 = vpop.f32.mrf.mxu0
    %v7357 = vadd.f32 %v7308, %v7356
    %7358 = vmatmul.bf16.gmra.mxu0 %v4957
    %v7359 = vpop.f32.mrf.mxu0
    %v7360 = vadd.f32 %v7311, %v7359
    %v7361 = vpop.f32.mrf.mxu0
    %v7362 = vadd.f32 %v7313, %v7361
    %7363 = vmatmul.bf16.gmra.mxu0 %v4966
    %v7364 = vpop.f32.mrf.mxu0
    %v7365 = vadd.f32 %v7316, %v7364
    %v7366 = vpop.f32.mrf.mxu0
    %v7367 = vadd.f32 %v7318, %v7366
    %7368 = vmatmul.bf16.gmra.mxu0 %v4975
    %v7369 = vpop.f32.mrf.mxu0
    %v7370 = vadd.f32 %v7321, %v7369
    %v7371 = vpop.f32.mrf.mxu0
    %v7372 = vadd.f32 %v7323, %v7371
    %7373 = vmatmul.bf16.gmra.mxu0 %v4984
    %v7374 = vpop.f32.mrf.mxu0
    %v7375 = vadd.f32 %v7326, %v7374
    %v7376 = vpop.f32.mrf.mxu0
    %v7377 = vadd.f32 %v7328, %v7376
    %7378 = vdwg.mxu0
    %7379 = vmatpush.bf16.msra.mxu0 %v5951
    %7380 = vmatpush.bf16.msra.mxu0 %v5947
    %7381 = vmatpush.bf16.msra.mxu0 %v5943
    %7382 = vmatpush.bf16.msra.mxu0 %v5939
    %7383 = vmatpush.bf16.msra.mxu0 %v5935
    %7384 = vmatpush.bf16.msra.mxu0 %v5931
    %7385 = vmatpush.bf16.msra.mxu0 %v5927
    %7386 = vmatpush.bf16.msra.mxu0 %v5923
    %7387 = vmatmul.bf16.gmra.mxu0 %v4913
    %v7388 = vpop.f32.mrf.mxu0
    %v7389 = vadd.f32 %v4683, %v7388
    %v7390 = vpop.f32.mrf.mxu0
    %v7391 = vadd.f32 %v4683, %v7390
    %7392 = vmatmul.bf16.gmra.mxu0 %v4922
    %v7393 = vpop.f32.mrf.mxu0
    %v7394 = vadd.f32 %v4683, %v7393
    %v7395 = vpop.f32.mrf.mxu0
    %v7396 = vadd.f32 %v4683, %v7395
    %7397 = vmatmul.bf16.gmra.mxu0 %v4931
    %v7398 = vpop.f32.mrf.mxu0
    %v7399 = vadd.f32 %v4683, %v7398
    %v7400 = vpop.f32.mrf.mxu0
    %v7401 = vadd.f32 %v4683, %v7400
    %7402 = vmatmul.bf16.gmra.mxu0 %v4940
    %v7403 = vpop.f32.mrf.mxu0
    %v7404 = vadd.f32 %v4683, %v7403
    %v7405 = vpop.f32.mrf.mxu0
    %v7406 = vadd.f32 %v4683, %v7405
    %7407 = vmatmul.bf16.gmra.mxu0 %v4949
    %v7408 = vpop.f32.mrf.mxu0
    %v7409 = vadd.f32 %v4683, %v7408
    %v7410 = vpop.f32.mrf.mxu0
    %v7411 = vadd.f32 %v4683, %v7410
    %7412 = vmatmul.bf16.gmra.mxu0 %v4958
    %v7413 = vpop.f32.mrf.mxu0
    %v7414 = vadd.f32 %v4683, %v7413
    %v7415 = vpop.f32.mrf.mxu0
    %v7416 = vadd.f32 %v4683, %v7415
    %7417 = vmatmul.bf16.gmra.mxu0 %v4967
    %v7418 = vpop.f32.mrf.mxu0
    %v7419 = vadd.f32 %v4683, %v7418
    %v7420 = vpop.f32.mrf.mxu0
    %v7421 = vadd.f32 %v4683, %v7420
    %7422 = vmatmul.bf16.gmra.mxu0 %v4976
    %v7423 = vpop.f32.mrf.mxu0
    %v7424 = vadd.f32 %v4683, %v7423
    %v7425 = vpop.f32.mrf.mxu0
    %v7426 = vadd.f32 %v4683, %v7425
    %7427 = vdwg.mxu0
    %7428 = vmatpush.bf16.msra.mxu0 %v5983
    %7429 = vmatpush.bf16.msra.mxu0 %v5979
    %7430 = vmatpush.bf16.msra.mxu0 %v5975
    %7431 = vmatpush.bf16.msra.mxu0 %v5971
    %7432 = vmatpush.bf16.msra.mxu0 %v5967
    %7433 = vmatpush.bf16.msra.mxu0 %v5963
    %7434 = vmatpush.bf16.msra.mxu0 %v5959
    %7435 = vmatpush.bf16.msra.mxu0 %v5955
    %7436 = vmatmul.bf16.gmra.mxu0 %v4914
    %v7437 = vpop.f32.mrf.mxu0
    %v7438 = vadd.f32 %v7389, %v7437
    %v7439 = vpop.f32.mrf.mxu0
    %v7440 = vadd.f32 %v7391, %v7439
    %7441 = vmatmul.bf16.gmra.mxu0 %v4923
    %v7442 = vpop.f32.mrf.mxu0
    %v7443 = vadd.f32 %v7394, %v7442
    %v7444 = vpop.f32.mrf.mxu0
    %v7445 = vadd.f32 %v7396, %v7444
    %7446 = vmatmul.bf16.gmra.mxu0 %v4932
    %v7447 = vpop.f32.mrf.mxu0
    %v7448 = vadd.f32 %v7399, %v7447
    %v7449 = vpop.f32.mrf.mxu0
    %v7450 = vadd.f32 %v7401, %v7449
    %7451 = vmatmul.bf16.gmra.mxu0 %v4941
    %v7452 = vpop.f32.mrf.mxu0
    %v7453 = vadd.f32 %v7404, %v7452
    %v7454 = vpop.f32.mrf.mxu0
    %v7455 = vadd.f32 %v7406, %v7454
    %7456 = vmatmul.bf16.gmra.mxu0 %v4950
    %v7457 = vpop.f32.mrf.mxu0
    %v7458 = vadd.f32 %v7409, %v7457
    %v7459 = vpop.f32.mrf.mxu0
    %v7460 = vadd.f32 %v7411, %v7459
    %7461 = vmatmul.bf16.gmra.mxu0 %v4959
    %v7462 = vpop.f32.mrf.mxu0
    %v7463 = vadd.f32 %v7414, %v7462
    %v7464 = vpop.f32.mrf.mxu0
    %v7465 = vadd.f32 %v7416, %v7464
    %7466 = vmatmul.bf16.gmra.mxu0 %v4968
    %v7467 = vpop.f32.mrf.mxu0
    %v7468 = vadd.f32 %v7419, %v7467
    %v7469 = vpop.f32.mrf.mxu0
    %v7470 = vadd.f32 %v7421, %v7469
    %7471 = vmatmul.bf16.gmra.mxu0 %v4977
    %v7472 = vpop.f32.mrf.mxu0
    %v7473 = vadd.f32 %v7424, %v7472
    %v7474 = vpop.f32.mrf.mxu0
    %v7475 = vadd.f32 %v7426, %v7474
    %7476 = vdwg.mxu0
    %7477 = vmatpush.bf16.msra.mxu0 %v6015
    %7478 = vmatpush.bf16.msra.mxu0 %v6011
    %7479 = vmatpush.bf16.msra.mxu0 %v6007
    %7480 = vmatpush.bf16.msra.mxu0 %v6003
    %7481 = vmatpush.bf16.msra.mxu0 %v5999
    %7482 = vmatpush.bf16.msra.mxu0 %v5995
    %7483 = vmatpush.bf16.msra.mxu0 %v5991
    %7484 = vmatpush.bf16.msra.mxu0 %v5987
    %7485 = vmatmul.bf16.gmra.mxu0 %v4915
    %v7486 = vpop.f32.mrf.mxu0
    %v7487 = vadd.f32 %v7438, %v7486
    %v7488 = vpop.f32.mrf.mxu0
    %v7489 = vadd.f32 %v7440, %v7488
    %7490 = vmatmul.bf16.gmra.mxu0 %v4924
    %v7491 = vpop.f32.mrf.mxu0
    %v7492 = vadd.f32 %v7443, %v7491
    %v7493 = vpop.f32.mrf.mxu0
    %v7494 = vadd.f32 %v7445, %v7493
    %7495 = vmatmul.bf16.gmra.mxu0 %v4933
    %v7496 = vpop.f32.mrf.mxu0
    %v7497 = vadd.f32 %v7448, %v7496
    %v7498 = vpop.f32.mrf.mxu0
    %v7499 = vadd.f32 %v7450, %v7498
    %7500 = vmatmul.bf16.gmra.mxu0 %v4942
    %v7501 = vpop.f32.mrf.mxu0
    %v7502 = vadd.f32 %v7453, %v7501
    %v7503 = vpop.f32.mrf.mxu0
    %v7504 = vadd.f32 %v7455, %v7503
    %7505 = vmatmul.bf16.gmra.mxu0 %v4951
    %v7506 = vpop.f32.mrf.mxu0
    %v7507 = vadd.f32 %v7458, %v7506
    %v7508 = vpop.f32.mrf.mxu0
    %v7509 = vadd.f32 %v7460, %v7508
    %7510 = vmatmul.bf16.gmra.mxu0 %v4960
    %v7511 = vpop.f32.mrf.mxu0
    %v7512 = vadd.f32 %v7463, %v7511
    %v7513 = vpop.f32.mrf.mxu0
    %v7514 = vadd.f32 %v7465, %v7513
    %7515 = vmatmul.bf16.gmra.mxu0 %v4969
    %v7516 = vpop.f32.mrf.mxu0
    %v7517 = vadd.f32 %v7468, %v7516
    %v7518 = vpop.f32.mrf.mxu0
    %v7519 = vadd.f32 %v7470, %v7518
    %7520 = vmatmul.bf16.gmra.mxu0 %v4978
    %v7521 = vpop.f32.mrf.mxu0
    %v7522 = vadd.f32 %v7473, %v7521
    %v7523 = vpop.f32.mrf.mxu0
    %v7524 = vadd.f32 %v7475, %v7523
    %7525 = vdwg.mxu0
    %7526 = vmatpush.bf16.msra.mxu0 %v6047
    %7527 = vmatpush.bf16.msra.mxu0 %v6043
    %7528 = vmatpush.bf16.msra.mxu0 %v6039
    %7529 = vmatpush.bf16.msra.mxu0 %v6035
    %7530 = vmatpush.bf16.msra.mxu0 %v6031
    %7531 = vmatpush.bf16.msra.mxu0 %v6027
    %7532 = vmatpush.bf16.msra.mxu0 %v6023
    %7533 = vmatpush.bf16.msra.mxu0 %v6019
    %7534 = vmatmul.bf16.gmra.mxu0 %v4916
    %v7535 = vpop.f32.mrf.mxu0
    %v7536 = vadd.f32 %v7487, %v7535
    %v7537 = vpop.f32.mrf.mxu0
    %v7538 = vadd.f32 %v7489, %v7537
    %7539 = vmatmul.bf16.gmra.mxu0 %v4925
    %v7540 = vpop.f32.mrf.mxu0
    %v7541 = vadd.f32 %v7492, %v7540
    %v7542 = vpop.f32.mrf.mxu0
    %v7543 = vadd.f32 %v7494, %v7542
    %7544 = vmatmul.bf16.gmra.mxu0 %v4934
    %v7545 = vpop.f32.mrf.mxu0
    %v7546 = vadd.f32 %v7497, %v7545
    %v7547 = vpop.f32.mrf.mxu0
    %v7548 = vadd.f32 %v7499, %v7547
    %7549 = vmatmul.bf16.gmra.mxu0 %v4943
    %v7550 = vpop.f32.mrf.mxu0
    %v7551 = vadd.f32 %v7502, %v7550
    %v7552 = vpop.f32.mrf.mxu0
    %v7553 = vadd.f32 %v7504, %v7552
    %7554 = vmatmul.bf16.gmra.mxu0 %v4952
    %v7555 = vpop.f32.mrf.mxu0
    %v7556 = vadd.f32 %v7507, %v7555
    %v7557 = vpop.f32.mrf.mxu0
    %v7558 = vadd.f32 %v7509, %v7557
    %7559 = vmatmul.bf16.gmra.mxu0 %v4961
    %v7560 = vpop.f32.mrf.mxu0
    %v7561 = vadd.f32 %v7512, %v7560
    %v7562 = vpop.f32.mrf.mxu0
    %v7563 = vadd.f32 %v7514, %v7562
    %7564 = vmatmul.bf16.gmra.mxu0 %v4970
    %v7565 = vpop.f32.mrf.mxu0
    %v7566 = vadd.f32 %v7517, %v7565
    %v7567 = vpop.f32.mrf.mxu0
    %v7568 = vadd.f32 %v7519, %v7567
    %7569 = vmatmul.bf16.gmra.mxu0 %v4979
    %v7570 = vpop.f32.mrf.mxu0
    %v7571 = vadd.f32 %v7522, %v7570
    %v7572 = vpop.f32.mrf.mxu0
    %v7573 = vadd.f32 %v7524, %v7572
    %7574 = vdwg.mxu0
    %7575 = vmatpush.bf16.msra.mxu0 %v6079
    %7576 = vmatpush.bf16.msra.mxu0 %v6075
    %7577 = vmatpush.bf16.msra.mxu0 %v6071
    %7578 = vmatpush.bf16.msra.mxu0 %v6067
    %7579 = vmatpush.bf16.msra.mxu0 %v6063
    %7580 = vmatpush.bf16.msra.mxu0 %v6059
    %7581 = vmatpush.bf16.msra.mxu0 %v6055
    %7582 = vmatpush.bf16.msra.mxu0 %v6051
    %7583 = vmatmul.bf16.gmra.mxu0 %v4917
    %v7584 = vpop.f32.mrf.mxu0
    %v7585 = vadd.f32 %v7536, %v7584
    %v7586 = vpop.f32.mrf.mxu0
    %v7587 = vadd.f32 %v7538, %v7586
    %7588 = vmatmul.bf16.gmra.mxu0 %v4926
    %v7589 = vpop.f32.mrf.mxu0
    %v7590 = vadd.f32 %v7541, %v7589
    %v7591 = vpop.f32.mrf.mxu0
    %v7592 = vadd.f32 %v7543, %v7591
    %7593 = vmatmul.bf16.gmra.mxu0 %v4935
    %v7594 = vpop.f32.mrf.mxu0
    %v7595 = vadd.f32 %v7546, %v7594
    %v7596 = vpop.f32.mrf.mxu0
    %v7597 = vadd.f32 %v7548, %v7596
    %7598 = vmatmul.bf16.gmra.mxu0 %v4944
    %v7599 = vpop.f32.mrf.mxu0
    %v7600 = vadd.f32 %v7551, %v7599
    %v7601 = vpop.f32.mrf.mxu0
    %v7602 = vadd.f32 %v7553, %v7601
    %7603 = vmatmul.bf16.gmra.mxu0 %v4953
    %v7604 = vpop.f32.mrf.mxu0
    %v7605 = vadd.f32 %v7556, %v7604
    %v7606 = vpop.f32.mrf.mxu0
    %v7607 = vadd.f32 %v7558, %v7606
    %7608 = vmatmul.bf16.gmra.mxu0 %v4962
    %v7609 = vpop.f32.mrf.mxu0
    %v7610 = vadd.f32 %v7561, %v7609
    %v7611 = vpop.f32.mrf.mxu0
    %v7612 = vadd.f32 %v7563, %v7611
    %7613 = vmatmul.bf16.gmra.mxu0 %v4971
    %v7614 = vpop.f32.mrf.mxu0
    %v7615 = vadd.f32 %v7566, %v7614
    %v7616 = vpop.f32.mrf.mxu0
    %v7617 = vadd.f32 %v7568, %v7616
    %7618 = vmatmul.bf16.gmra.mxu0 %v4980
    %v7619 = vpop.f32.mrf.mxu0
    %v7620 = vadd.f32 %v7571, %v7619
    %v7621 = vpop.f32.mrf.mxu0
    %v7622 = vadd.f32 %v7573, %v7621
    %7623 = vdwg.mxu0
    %7624 = vmatpush.bf16.msra.mxu0 %v6111
    %7625 = vmatpush.bf16.msra.mxu0 %v6107
    %7626 = vmatpush.bf16.msra.mxu0 %v6103
    %7627 = vmatpush.bf16.msra.mxu0 %v6099
    %7628 = vmatpush.bf16.msra.mxu0 %v6095
    %7629 = vmatpush.bf16.msra.mxu0 %v6091
    %7630 = vmatpush.bf16.msra.mxu0 %v6087
    %7631 = vmatpush.bf16.msra.mxu0 %v6083
    %7632 = vmatmul.bf16.gmra.mxu0 %v4918
    %v7633 = vpop.f32.mrf.mxu0
    %v7634 = vadd.f32 %v7585, %v7633
    %v7635 = vpop.f32.mrf.mxu0
    %v7636 = vadd.f32 %v7587, %v7635
    %7637 = vmatmul.bf16.gmra.mxu0 %v4927
    %v7638 = vpop.f32.mrf.mxu0
    %v7639 = vadd.f32 %v7590, %v7638
    %v7640 = vpop.f32.mrf.mxu0
    %v7641 = vadd.f32 %v7592, %v7640
    %7642 = vmatmul.bf16.gmra.mxu0 %v4936
    %v7643 = vpop.f32.mrf.mxu0
    %v7644 = vadd.f32 %v7595, %v7643
    %v7645 = vpop.f32.mrf.mxu0
    %v7646 = vadd.f32 %v7597, %v7645
    %7647 = vmatmul.bf16.gmra.mxu0 %v4945
    %v7648 = vpop.f32.mrf.mxu0
    %v7649 = vadd.f32 %v7600, %v7648
    %v7650 = vpop.f32.mrf.mxu0
    %v7651 = vadd.f32 %v7602, %v7650
    %7652 = vmatmul.bf16.gmra.mxu0 %v4954
    %v7653 = vpop.f32.mrf.mxu0
    %v7654 = vadd.f32 %v7605, %v7653
    %v7655 = vpop.f32.mrf.mxu0
    %v7656 = vadd.f32 %v7607, %v7655
    %7657 = vmatmul.bf16.gmra.mxu0 %v4963
    %v7658 = vpop.f32.mrf.mxu0
    %v7659 = vadd.f32 %v7610, %v7658
    %v7660 = vpop.f32.mrf.mxu0
    %v7661 = vadd.f32 %v7612, %v7660
    %7662 = vmatmul.bf16.gmra.mxu0 %v4972
    %v7663 = vpop.f32.mrf.mxu0
    %v7664 = vadd.f32 %v7615, %v7663
    %v7665 = vpop.f32.mrf.mxu0
    %v7666 = vadd.f32 %v7617, %v7665
    %7667 = vmatmul.bf16.gmra.mxu0 %v4981
    %v7668 = vpop.f32.mrf.mxu0
    %v7669 = vadd.f32 %v7620, %v7668
    %v7670 = vpop.f32.mrf.mxu0
    %v7671 = vadd.f32 %v7622, %v7670
    %7672 = vdwg.mxu0
    %7673 = vmatpush.bf16.msra.mxu0 %v6143
    %7674 = vmatpush.bf16.msra.mxu0 %v6139
    %7675 = vmatpush.bf16.msra.mxu0 %v6135
    %7676 = vmatpush.bf16.msra.mxu0 %v6131
    %7677 = vmatpush.bf16.msra.mxu0 %v6127
    %7678 = vmatpush.bf16.msra.mxu0 %v6123
    %7679 = vmatpush.bf16.msra.mxu0 %v6119
    %7680 = vmatpush.bf16.msra.mxu0 %v6115
    %7681 = vmatmul.bf16.gmra.mxu0 %v4919
    %v7682 = vpop.f32.mrf.mxu0
    %v7683 = vadd.f32 %v7634, %v7682
    %v7684 = vpop.f32.mrf.mxu0
    %v7685 = vadd.f32 %v7636, %v7684
    %7686 = vmatmul.bf16.gmra.mxu0 %v4928
    %v7687 = vpop.f32.mrf.mxu0
    %v7688 = vadd.f32 %v7639, %v7687
    %v7689 = vpop.f32.mrf.mxu0
    %v7690 = vadd.f32 %v7641, %v7689
    %7691 = vmatmul.bf16.gmra.mxu0 %v4937
    %v7692 = vpop.f32.mrf.mxu0
    %v7693 = vadd.f32 %v7644, %v7692
    %v7694 = vpop.f32.mrf.mxu0
    %v7695 = vadd.f32 %v7646, %v7694
    %7696 = vmatmul.bf16.gmra.mxu0 %v4946
    %v7697 = vpop.f32.mrf.mxu0
    %v7698 = vadd.f32 %v7649, %v7697
    %v7699 = vpop.f32.mrf.mxu0
    %v7700 = vadd.f32 %v7651, %v7699
    %7701 = vmatmul.bf16.gmra.mxu0 %v4955
    %v7702 = vpop.f32.mrf.mxu0
    %v7703 = vadd.f32 %v7654, %v7702
    %v7704 = vpop.f32.mrf.mxu0
    %v7705 = vadd.f32 %v7656, %v7704
    %7706 = vmatmul.bf16.gmra.mxu0 %v4964
    %v7707 = vpop.f32.mrf.mxu0
    %v7708 = vadd.f32 %v7659, %v7707
    %v7709 = vpop.f32.mrf.mxu0
    %v7710 = vadd.f32 %v7661, %v7709
    %7711 = vmatmul.bf16.gmra.mxu0 %v4973
    %v7712 = vpop.f32.mrf.mxu0
    %v7713 = vadd.f32 %v7664, %v7712
    %v7714 = vpop.f32.mrf.mxu0
    %v7715 = vadd.f32 %v7666, %v7714
    %7716 = vmatmul.bf16.gmra.mxu0 %v4982
    %v7717 = vpop.f32.mrf.mxu0
    %v7718 = vadd.f32 %v7669, %v7717
    %v7719 = vpop.f32.mrf.mxu0
    %v7720 = vadd.f32 %v7671, %v7719
    %7721 = vdwg.mxu0
    %7722 = vmatpush.bf16.msra.mxu0 %v6175
    %7723 = vmatpush.bf16.msra.mxu0 %v6171
    %7724 = vmatpush.bf16.msra.mxu0 %v6167
    %7725 = vmatpush.bf16.msra.mxu0 %v6163
    %7726 = vmatpush.bf16.msra.mxu0 %v6159
    %7727 = vmatpush.bf16.msra.mxu0 %v6155
    %7728 = vmatpush.bf16.msra.mxu0 %v6151
    %7729 = vmatpush.bf16.msra.mxu0 %v6147
    %7730 = vmatmul.bf16.gmra.mxu0 %v4920
    %v7731 = vpop.f32.mrf.mxu0
    %v7732 = vadd.f32 %v7683, %v7731
    %v7733 = vpop.f32.mrf.mxu0
    %v7734 = vadd.f32 %v7685, %v7733
    %7735 = vmatmul.bf16.gmra.mxu0 %v4929
    %v7736 = vpop.f32.mrf.mxu0
    %v7737 = vadd.f32 %v7688, %v7736
    %v7738 = vpop.f32.mrf.mxu0
    %v7739 = vadd.f32 %v7690, %v7738
    %7740 = vmatmul.bf16.gmra.mxu0 %v4938
    %v7741 = vpop.f32.mrf.mxu0
    %v7742 = vadd.f32 %v7693, %v7741
    %v7743 = vpop.f32.mrf.mxu0
    %v7744 = vadd.f32 %v7695, %v7743
    %7745 = vmatmul.bf16.gmra.mxu0 %v4947
    %v7746 = vpop.f32.mrf.mxu0
    %v7747 = vadd.f32 %v7698, %v7746
    %v7748 = vpop.f32.mrf.mxu0
    %v7749 = vadd.f32 %v7700, %v7748
    %7750 = vmatmul.bf16.gmra.mxu0 %v4956
    %v7751 = vpop.f32.mrf.mxu0
    %v7752 = vadd.f32 %v7703, %v7751
    %v7753 = vpop.f32.mrf.mxu0
    %v7754 = vadd.f32 %v7705, %v7753
    %7755 = vmatmul.bf16.gmra.mxu0 %v4965
    %v7756 = vpop.f32.mrf.mxu0
    %v7757 = vadd.f32 %v7708, %v7756
    %v7758 = vpop.f32.mrf.mxu0
    %v7759 = vadd.f32 %v7710, %v7758
    %7760 = vmatmul.bf16.gmra.mxu0 %v4974
    %v7761 = vpop.f32.mrf.mxu0
    %v7762 = vadd.f32 %v7713, %v7761
    %v7763 = vpop.f32.mrf.mxu0
    %v7764 = vadd.f32 %v7715, %v7763
    %7765 = vmatmul.bf16.gmra.mxu0 %v4983
    %v7766 = vpop.f32.mrf.mxu0
    %v7767 = vadd.f32 %v7718, %v7766
    %v7768 = vpop.f32.mrf.mxu0
    %v7769 = vadd.f32 %v7720, %v7768
    %7770 = vdwg.mxu0
    %7771 = vmatpush.bf16.msra.mxu0 %v6207
    %7772 = vmatpush.bf16.msra.mxu0 %v6203
    %7773 = vmatpush.bf16.msra.mxu0 %v6199
    %7774 = vmatpush.bf16.msra.mxu0 %v6195
    %7775 = vmatpush.bf16.msra.mxu0 %v6191
    %7776 = vmatpush.bf16.msra.mxu0 %v6187
    %7777 = vmatpush.bf16.msra.mxu0 %v6183
    %7778 = vmatpush.bf16.msra.mxu0 %v6179
    %7779 = vmatmul.bf16.gmra.mxu0 %v4921
    %v7780 = vpop.f32.mrf.mxu0
    %v7781 = vadd.f32 %v7732, %v7780
    %v7782 = vpop.f32.mrf.mxu0
    %v7783 = vadd.f32 %v7734, %v7782
    %7784 = vmatmul.bf16.gmra.mxu0 %v4930
    %v7785 = vpop.f32.mrf.mxu0
    %v7786 = vadd.f32 %v7737, %v7785
    %v7787 = vpop.f32.mrf.mxu0
    %v7788 = vadd.f32 %v7739, %v7787
    %7789 = vmatmul.bf16.gmra.mxu0 %v4939
    %v7790 = vpop.f32.mrf.mxu0
    %v7791 = vadd.f32 %v7742, %v7790
    %v7792 = vpop.f32.mrf.mxu0
    %v7793 = vadd.f32 %v7744, %v7792
    %7794 = vmatmul.bf16.gmra.mxu0 %v4948
    %v7795 = vpop.f32.mrf.mxu0
    %v7796 = vadd.f32 %v7747, %v7795
    %v7797 = vpop.f32.mrf.mxu0
    %v7798 = vadd.f32 %v7749, %v7797
    %7799 = vmatmul.bf16.gmra.mxu0 %v4957
    %v7800 = vpop.f32.mrf.mxu0
    %v7801 = vadd.f32 %v7752, %v7800
    %v7802 = vpop.f32.mrf.mxu0
    %v7803 = vadd.f32 %v7754, %v7802
    %7804 = vmatmul.bf16.gmra.mxu0 %v4966
    %v7805 = vpop.f32.mrf.mxu0
    %v7806 = vadd.f32 %v7757, %v7805
    %v7807 = vpop.f32.mrf.mxu0
    %v7808 = vadd.f32 %v7759, %v7807
    %7809 = vmatmul.bf16.gmra.mxu0 %v4975
    %v7810 = vpop.f32.mrf.mxu0
    %v7811 = vadd.f32 %v7762, %v7810
    %v7812 = vpop.f32.mrf.mxu0
    %v7813 = vadd.f32 %v7764, %v7812
    %7814 = vmatmul.bf16.gmra.mxu0 %v4984
    %v7815 = vpop.f32.mrf.mxu0
    %v7816 = vadd.f32 %v7767, %v7815
    %v7817 = vpop.f32.mrf.mxu0
    %v7818 = vadd.f32 %v7769, %v7817
    %7819 = vdwg.mxu0
    %7820 = vmatpush.bf16.msra.mxu0 %v5952
    %7821 = vmatpush.bf16.msra.mxu0 %v5948
    %7822 = vmatpush.bf16.msra.mxu0 %v5944
    %7823 = vmatpush.bf16.msra.mxu0 %v5940
    %7824 = vmatpush.bf16.msra.mxu0 %v5936
    %7825 = vmatpush.bf16.msra.mxu0 %v5932
    %7826 = vmatpush.bf16.msra.mxu0 %v5928
    %7827 = vmatpush.bf16.msra.mxu0 %v5924
    %7828 = vmatmul.bf16.gmra.mxu0 %v4913
    %v7829 = vpop.f32.mrf.mxu0
    %v7830 = vadd.f32 %v4684, %v7829
    %v7831 = vpop.f32.mrf.mxu0
    %v7832 = vadd.f32 %v4684, %v7831
    %7833 = vmatmul.bf16.gmra.mxu0 %v4922
    %v7834 = vpop.f32.mrf.mxu0
    %v7835 = vadd.f32 %v4684, %v7834
    %v7836 = vpop.f32.mrf.mxu0
    %v7837 = vadd.f32 %v4684, %v7836
    %7838 = vmatmul.bf16.gmra.mxu0 %v4931
    %v7839 = vpop.f32.mrf.mxu0
    %v7840 = vadd.f32 %v4684, %v7839
    %v7841 = vpop.f32.mrf.mxu0
    %v7842 = vadd.f32 %v4684, %v7841
    %7843 = vmatmul.bf16.gmra.mxu0 %v4940
    %v7844 = vpop.f32.mrf.mxu0
    %v7845 = vadd.f32 %v4684, %v7844
    %v7846 = vpop.f32.mrf.mxu0
    %v7847 = vadd.f32 %v4684, %v7846
    %7848 = vmatmul.bf16.gmra.mxu0 %v4949
    %v7849 = vpop.f32.mrf.mxu0
    %v7850 = vadd.f32 %v4684, %v7849
    %v7851 = vpop.f32.mrf.mxu0
    %v7852 = vadd.f32 %v4684, %v7851
    %7853 = vmatmul.bf16.gmra.mxu0 %v4958
    %v7854 = vpop.f32.mrf.mxu0
    %v7855 = vadd.f32 %v4684, %v7854
    %v7856 = vpop.f32.mrf.mxu0
    %v7857 = vadd.f32 %v4684, %v7856
    %7858 = vmatmul.bf16.gmra.mxu0 %v4967
    %v7859 = vpop.f32.mrf.mxu0
    %v7860 = vadd.f32 %v4684, %v7859
    %v7861 = vpop.f32.mrf.mxu0
    %v7862 = vadd.f32 %v4684, %v7861
    %7863 = vmatmul.bf16.gmra.mxu0 %v4976
    %v7864 = vpop.f32.mrf.mxu0
    %v7865 = vadd.f32 %v4684, %v7864
    %v7866 = vpop.f32.mrf.mxu0
    %v7867 = vadd.f32 %v4684, %v7866
    %7868 = vdwg.mxu0
    %7869 = vmatpush.bf16.msra.mxu0 %v5984
    %7870 = vmatpush.bf16.msra.mxu0 %v5980
    %7871 = vmatpush.bf16.msra.mxu0 %v5976
    %7872 = vmatpush.bf16.msra.mxu0 %v5972
    %7873 = vmatpush.bf16.msra.mxu0 %v5968
    %7874 = vmatpush.bf16.msra.mxu0 %v5964
    %7875 = vmatpush.bf16.msra.mxu0 %v5960
    %7876 = vmatpush.bf16.msra.mxu0 %v5956
    %7877 = vmatmul.bf16.gmra.mxu0 %v4914
    %v7878 = vpop.f32.mrf.mxu0
    %v7879 = vadd.f32 %v7830, %v7878
    %v7880 = vpop.f32.mrf.mxu0
    %v7881 = vadd.f32 %v7832, %v7880
    %7882 = vmatmul.bf16.gmra.mxu0 %v4923
    %v7883 = vpop.f32.mrf.mxu0
    %v7884 = vadd.f32 %v7835, %v7883
    %v7885 = vpop.f32.mrf.mxu0
    %v7886 = vadd.f32 %v7837, %v7885
    %7887 = vmatmul.bf16.gmra.mxu0 %v4932
    %v7888 = vpop.f32.mrf.mxu0
    %v7889 = vadd.f32 %v7840, %v7888
    %v7890 = vpop.f32.mrf.mxu0
    %v7891 = vadd.f32 %v7842, %v7890
    %7892 = vmatmul.bf16.gmra.mxu0 %v4941
    %v7893 = vpop.f32.mrf.mxu0
    %v7894 = vadd.f32 %v7845, %v7893
    %v7895 = vpop.f32.mrf.mxu0
    %v7896 = vadd.f32 %v7847, %v7895
    %7897 = vmatmul.bf16.gmra.mxu0 %v4950
    %v7898 = vpop.f32.mrf.mxu0
    %v7899 = vadd.f32 %v7850, %v7898
    %v7900 = vpop.f32.mrf.mxu0
    %v7901 = vadd.f32 %v7852, %v7900
    %7902 = vmatmul.bf16.gmra.mxu0 %v4959
    %v7903 = vpop.f32.mrf.mxu0
    %v7904 = vadd.f32 %v7855, %v7903
    %v7905 = vpop.f32.mrf.mxu0
    %v7906 = vadd.f32 %v7857, %v7905
    %7907 = vmatmul.bf16.gmra.mxu0 %v4968
    %v7908 = vpop.f32.mrf.mxu0
    %v7909 = vadd.f32 %v7860, %v7908
    %v7910 = vpop.f32.mrf.mxu0
    %v7911 = vadd.f32 %v7862, %v7910
    %7912 = vmatmul.bf16.gmra.mxu0 %v4977
    %v7913 = vpop.f32.mrf.mxu0
    %v7914 = vadd.f32 %v7865, %v7913
    %v7915 = vpop.f32.mrf.mxu0
    %v7916 = vadd.f32 %v7867, %v7915
    %7917 = vdwg.mxu0
    %7918 = vmatpush.bf16.msra.mxu0 %v6016
    %7919 = vmatpush.bf16.msra.mxu0 %v6012
    %7920 = vmatpush.bf16.msra.mxu0 %v6008
    %7921 = vmatpush.bf16.msra.mxu0 %v6004
    %7922 = vmatpush.bf16.msra.mxu0 %v6000
    %7923 = vmatpush.bf16.msra.mxu0 %v5996
    %7924 = vmatpush.bf16.msra.mxu0 %v5992
    %7925 = vmatpush.bf16.msra.mxu0 %v5988
    %7926 = vmatmul.bf16.gmra.mxu0 %v4915
    %v7927 = vpop.f32.mrf.mxu0
    %v7928 = vadd.f32 %v7879, %v7927
    %v7929 = vpop.f32.mrf.mxu0
    %v7930 = vadd.f32 %v7881, %v7929
    %7931 = vmatmul.bf16.gmra.mxu0 %v4924
    %v7932 = vpop.f32.mrf.mxu0
    %v7933 = vadd.f32 %v7884, %v7932
    %v7934 = vpop.f32.mrf.mxu0
    %v7935 = vadd.f32 %v7886, %v7934
    %7936 = vmatmul.bf16.gmra.mxu0 %v4933
    %v7937 = vpop.f32.mrf.mxu0
    %v7938 = vadd.f32 %v7889, %v7937
    %v7939 = vpop.f32.mrf.mxu0
    %v7940 = vadd.f32 %v7891, %v7939
    %7941 = vmatmul.bf16.gmra.mxu0 %v4942
    %v7942 = vpop.f32.mrf.mxu0
    %v7943 = vadd.f32 %v7894, %v7942
    %v7944 = vpop.f32.mrf.mxu0
    %v7945 = vadd.f32 %v7896, %v7944
    %7946 = vmatmul.bf16.gmra.mxu0 %v4951
    %v7947 = vpop.f32.mrf.mxu0
    %v7948 = vadd.f32 %v7899, %v7947
    %v7949 = vpop.f32.mrf.mxu0
    %v7950 = vadd.f32 %v7901, %v7949
    %7951 = vmatmul.bf16.gmra.mxu0 %v4960
    %v7952 = vpop.f32.mrf.mxu0
    %v7953 = vadd.f32 %v7904, %v7952
    %v7954 = vpop.f32.mrf.mxu0
    %v7955 = vadd.f32 %v7906, %v7954
    %7956 = vmatmul.bf16.gmra.mxu0 %v4969
    %v7957 = vpop.f32.mrf.mxu0
    %v7958 = vadd.f32 %v7909, %v7957
    %v7959 = vpop.f32.mrf.mxu0
    %v7960 = vadd.f32 %v7911, %v7959
    %7961 = vmatmul.bf16.gmra.mxu0 %v4978
    %v7962 = vpop.f32.mrf.mxu0
    %v7963 = vadd.f32 %v7914, %v7962
    %v7964 = vpop.f32.mrf.mxu0
    %v7965 = vadd.f32 %v7916, %v7964
    %7966 = vdwg.mxu0
    %7967 = vmatpush.bf16.msra.mxu0 %v6048
    %7968 = vmatpush.bf16.msra.mxu0 %v6044
    %7969 = vmatpush.bf16.msra.mxu0 %v6040
    %7970 = vmatpush.bf16.msra.mxu0 %v6036
    %7971 = vmatpush.bf16.msra.mxu0 %v6032
    %7972 = vmatpush.bf16.msra.mxu0 %v6028
    %7973 = vmatpush.bf16.msra.mxu0 %v6024
    %7974 = vmatpush.bf16.msra.mxu0 %v6020
    %7975 = vmatmul.bf16.gmra.mxu0 %v4916
    %v7976 = vpop.f32.mrf.mxu0
    %v7977 = vadd.f32 %v7928, %v7976
    %v7978 = vpop.f32.mrf.mxu0
    %v7979 = vadd.f32 %v7930, %v7978
    %7980 = vmatmul.bf16.gmra.mxu0 %v4925
    %v7981 = vpop.f32.mrf.mxu0
    %v7982 = vadd.f32 %v7933, %v7981
    %v7983 = vpop.f32.mrf.mxu0
    %v7984 = vadd.f32 %v7935, %v7983
    %7985 = vmatmul.bf16.gmra.mxu0 %v4934
    %v7986 = vpop.f32.mrf.mxu0
    %v7987 = vadd.f32 %v7938, %v7986
    %v7988 = vpop.f32.mrf.mxu0
    %v7989 = vadd.f32 %v7940, %v7988
    %7990 = vmatmul.bf16.gmra.mxu0 %v4943
    %v7991 = vpop.f32.mrf.mxu0
    %v7992 = vadd.f32 %v7943, %v7991
    %v7993 = vpop.f32.mrf.mxu0
    %v7994 = vadd.f32 %v7945, %v7993
    %7995 = vmatmul.bf16.gmra.mxu0 %v4952
    %v7996 = vpop.f32.mrf.mxu0
    %v7997 = vadd.f32 %v7948, %v7996
    %v7998 = vpop.f32.mrf.mxu0
    %v7999 = vadd.f32 %v7950, %v7998
    %8000 = vmatmul.bf16.gmra.mxu0 %v4961
    %v8001 = vpop.f32.mrf.mxu0
    %v8002 = vadd.f32 %v7953, %v8001
    %v8003 = vpop.f32.mrf.mxu0
    %v8004 = vadd.f32 %v7955, %v8003
    %8005 = vmatmul.bf16.gmra.mxu0 %v4970
    %v8006 = vpop.f32.mrf.mxu0
    %v8007 = vadd.f32 %v7958, %v8006
    %v8008 = vpop.f32.mrf.mxu0
    %v8009 = vadd.f32 %v7960, %v8008
    %8010 = vmatmul.bf16.gmra.mxu0 %v4979
    %v8011 = vpop.f32.mrf.mxu0
    %v8012 = vadd.f32 %v7963, %v8011
    %v8013 = vpop.f32.mrf.mxu0
    %v8014 = vadd.f32 %v7965, %v8013
    %8015 = vdwg.mxu0
    %8016 = vmatpush.bf16.msra.mxu0 %v6080
    %8017 = vmatpush.bf16.msra.mxu0 %v6076
    %8018 = vmatpush.bf16.msra.mxu0 %v6072
    %8019 = vmatpush.bf16.msra.mxu0 %v6068
    %8020 = vmatpush.bf16.msra.mxu0 %v6064
    %8021 = vmatpush.bf16.msra.mxu0 %v6060
    %8022 = vmatpush.bf16.msra.mxu0 %v6056
    %8023 = vmatpush.bf16.msra.mxu0 %v6052
    %8024 = vmatmul.bf16.gmra.mxu0 %v4917
    %v8025 = vpop.f32.mrf.mxu0
    %v8026 = vadd.f32 %v7977, %v8025
    %v8027 = vpop.f32.mrf.mxu0
    %v8028 = vadd.f32 %v7979, %v8027
    %8029 = vmatmul.bf16.gmra.mxu0 %v4926
    %v8030 = vpop.f32.mrf.mxu0
    %v8031 = vadd.f32 %v7982, %v8030
    %v8032 = vpop.f32.mrf.mxu0
    %v8033 = vadd.f32 %v7984, %v8032
    %8034 = vmatmul.bf16.gmra.mxu0 %v4935
    %v8035 = vpop.f32.mrf.mxu0
    %v8036 = vadd.f32 %v7987, %v8035
    %v8037 = vpop.f32.mrf.mxu0
    %v8038 = vadd.f32 %v7989, %v8037
    %8039 = vmatmul.bf16.gmra.mxu0 %v4944
    %v8040 = vpop.f32.mrf.mxu0
    %v8041 = vadd.f32 %v7992, %v8040
    %v8042 = vpop.f32.mrf.mxu0
    %v8043 = vadd.f32 %v7994, %v8042
    %8044 = vmatmul.bf16.gmra.mxu0 %v4953
    %v8045 = vpop.f32.mrf.mxu0
    %v8046 = vadd.f32 %v7997, %v8045
    %v8047 = vpop.f32.mrf.mxu0
    %v8048 = vadd.f32 %v7999, %v8047
    %8049 = vmatmul.bf16.gmra.mxu0 %v4962
    %v8050 = vpop.f32.mrf.mxu0
    %v8051 = vadd.f32 %v8002, %v8050
    %v8052 = vpop.f32.mrf.mxu0
    %v8053 = vadd.f32 %v8004, %v8052
    %8054 = vmatmul.bf16.gmra.mxu0 %v4971
    %v8055 = vpop.f32.mrf.mxu0
    %v8056 = vadd.f32 %v8007, %v8055
    %v8057 = vpop.f32.mrf.mxu0
    %v8058 = vadd.f32 %v8009, %v8057
    %8059 = vmatmul.bf16.gmra.mxu0 %v4980
    %v8060 = vpop.f32.mrf.mxu0
    %v8061 = vadd.f32 %v8012, %v8060
    %v8062 = vpop.f32.mrf.mxu0
    %v8063 = vadd.f32 %v8014, %v8062
    %8064 = vdwg.mxu0
    %8065 = vmatpush.bf16.msra.mxu0 %v6112
    %8066 = vmatpush.bf16.msra.mxu0 %v6108
    %8067 = vmatpush.bf16.msra.mxu0 %v6104
    %8068 = vmatpush.bf16.msra.mxu0 %v6100
    %8069 = vmatpush.bf16.msra.mxu0 %v6096
    %8070 = vmatpush.bf16.msra.mxu0 %v6092
    %8071 = vmatpush.bf16.msra.mxu0 %v6088
    %8072 = vmatpush.bf16.msra.mxu0 %v6084
    %8073 = vmatmul.bf16.gmra.mxu0 %v4918
    %v8074 = vpop.f32.mrf.mxu0
    %v8075 = vadd.f32 %v8026, %v8074
    %v8076 = vpop.f32.mrf.mxu0
    %v8077 = vadd.f32 %v8028, %v8076
    %8078 = vmatmul.bf16.gmra.mxu0 %v4927
    %v8079 = vpop.f32.mrf.mxu0
    %v8080 = vadd.f32 %v8031, %v8079
    %v8081 = vpop.f32.mrf.mxu0
    %v8082 = vadd.f32 %v8033, %v8081
    %8083 = vmatmul.bf16.gmra.mxu0 %v4936
    %v8084 = vpop.f32.mrf.mxu0
    %v8085 = vadd.f32 %v8036, %v8084
    %v8086 = vpop.f32.mrf.mxu0
    %v8087 = vadd.f32 %v8038, %v8086
    %8088 = vmatmul.bf16.gmra.mxu0 %v4945
    %v8089 = vpop.f32.mrf.mxu0
    %v8090 = vadd.f32 %v8041, %v8089
    %v8091 = vpop.f32.mrf.mxu0
    %v8092 = vadd.f32 %v8043, %v8091
    %8093 = vmatmul.bf16.gmra.mxu0 %v4954
    %v8094 = vpop.f32.mrf.mxu0
    %v8095 = vadd.f32 %v8046, %v8094
    %v8096 = vpop.f32.mrf.mxu0
    %v8097 = vadd.f32 %v8048, %v8096
    %8098 = vmatmul.bf16.gmra.mxu0 %v4963
    %v8099 = vpop.f32.mrf.mxu0
    %v8100 = vadd.f32 %v8051, %v8099
    %v8101 = vpop.f32.mrf.mxu0
    %v8102 = vadd.f32 %v8053, %v8101
    %8103 = vmatmul.bf16.gmra.mxu0 %v4972
    %v8104 = vpop.f32.mrf.mxu0
    %v8105 = vadd.f32 %v8056, %v8104
    %v8106 = vpop.f32.mrf.mxu0
    %v8107 = vadd.f32 %v8058, %v8106
    %8108 = vmatmul.bf16.gmra.mxu0 %v4981
    %v8109 = vpop.f32.mrf.mxu0
    %v8110 = vadd.f32 %v8061, %v8109
    %v8111 = vpop.f32.mrf.mxu0
    %v8112 = vadd.f32 %v8063, %v8111
    %8113 = vdwg.mxu0
    %8114 = vmatpush.bf16.msra.mxu0 %v6144
    %8115 = vmatpush.bf16.msra.mxu0 %v6140
    %8116 = vmatpush.bf16.msra.mxu0 %v6136
    %8117 = vmatpush.bf16.msra.mxu0 %v6132
    %8118 = vmatpush.bf16.msra.mxu0 %v6128
    %8119 = vmatpush.bf16.msra.mxu0 %v6124
    %8120 = vmatpush.bf16.msra.mxu0 %v6120
    %8121 = vmatpush.bf16.msra.mxu0 %v6116
    %8122 = vmatmul.bf16.gmra.mxu0 %v4919
    %v8123 = vpop.f32.mrf.mxu0
    %v8124 = vadd.f32 %v8075, %v8123
    %v8125 = vpop.f32.mrf.mxu0
    %v8126 = vadd.f32 %v8077, %v8125
    %8127 = vmatmul.bf16.gmra.mxu0 %v4928
    %v8128 = vpop.f32.mrf.mxu0
    %v8129 = vadd.f32 %v8080, %v8128
    %v8130 = vpop.f32.mrf.mxu0
    %v8131 = vadd.f32 %v8082, %v8130
    %8132 = vmatmul.bf16.gmra.mxu0 %v4937
    %v8133 = vpop.f32.mrf.mxu0
    %v8134 = vadd.f32 %v8085, %v8133
    %v8135 = vpop.f32.mrf.mxu0
    %v8136 = vadd.f32 %v8087, %v8135
    %8137 = vmatmul.bf16.gmra.mxu0 %v4946
    %v8138 = vpop.f32.mrf.mxu0
    %v8139 = vadd.f32 %v8090, %v8138
    %v8140 = vpop.f32.mrf.mxu0
    %v8141 = vadd.f32 %v8092, %v8140
    %8142 = vmatmul.bf16.gmra.mxu0 %v4955
    %v8143 = vpop.f32.mrf.mxu0
    %v8144 = vadd.f32 %v8095, %v8143
    %v8145 = vpop.f32.mrf.mxu0
    %v8146 = vadd.f32 %v8097, %v8145
    %8147 = vmatmul.bf16.gmra.mxu0 %v4964
    %v8148 = vpop.f32.mrf.mxu0
    %v8149 = vadd.f32 %v8100, %v8148
    %v8150 = vpop.f32.mrf.mxu0
    %v8151 = vadd.f32 %v8102, %v8150
    %8152 = vmatmul.bf16.gmra.mxu0 %v4973
    %v8153 = vpop.f32.mrf.mxu0
    %v8154 = vadd.f32 %v8105, %v8153
    %v8155 = vpop.f32.mrf.mxu0
    %v8156 = vadd.f32 %v8107, %v8155
    %8157 = vmatmul.bf16.gmra.mxu0 %v4982
    %v8158 = vpop.f32.mrf.mxu0
    %v8159 = vadd.f32 %v8110, %v8158
    %v8160 = vpop.f32.mrf.mxu0
    %v8161 = vadd.f32 %v8112, %v8160
    %8162 = vdwg.mxu0
    %8163 = vmatpush.bf16.msra.mxu0 %v6176
    %8164 = vmatpush.bf16.msra.mxu0 %v6172
    %8165 = vmatpush.bf16.msra.mxu0 %v6168
    %8166 = vmatpush.bf16.msra.mxu0 %v6164
    %8167 = vmatpush.bf16.msra.mxu0 %v6160
    %8168 = vmatpush.bf16.msra.mxu0 %v6156
    %8169 = vmatpush.bf16.msra.mxu0 %v6152
    %8170 = vmatpush.bf16.msra.mxu0 %v6148
    %8171 = vmatmul.bf16.gmra.mxu0 %v4920
    %v8172 = vpop.f32.mrf.mxu0
    %v8173 = vadd.f32 %v8124, %v8172
    %v8174 = vpop.f32.mrf.mxu0
    %v8175 = vadd.f32 %v8126, %v8174
    %8176 = vmatmul.bf16.gmra.mxu0 %v4929
    %v8177 = vpop.f32.mrf.mxu0
    %v8178 = vadd.f32 %v8129, %v8177
    %v8179 = vpop.f32.mrf.mxu0
    %v8180 = vadd.f32 %v8131, %v8179
    %8181 = vmatmul.bf16.gmra.mxu0 %v4938
    %v8182 = vpop.f32.mrf.mxu0
    %v8183 = vadd.f32 %v8134, %v8182
    %v8184 = vpop.f32.mrf.mxu0
    %v8185 = vadd.f32 %v8136, %v8184
    %8186 = vmatmul.bf16.gmra.mxu0 %v4947
    %v8187 = vpop.f32.mrf.mxu0
    %v8188 = vadd.f32 %v8139, %v8187
    %v8189 = vpop.f32.mrf.mxu0
    %v8190 = vadd.f32 %v8141, %v8189
    %8191 = vmatmul.bf16.gmra.mxu0 %v4956
    %v8192 = vpop.f32.mrf.mxu0
    %v8193 = vadd.f32 %v8144, %v8192
    %v8194 = vpop.f32.mrf.mxu0
    %v8195 = vadd.f32 %v8146, %v8194
    %8196 = vmatmul.bf16.gmra.mxu0 %v4965
    %v8197 = vpop.f32.mrf.mxu0
    %v8198 = vadd.f32 %v8149, %v8197
    %v8199 = vpop.f32.mrf.mxu0
    %v8200 = vadd.f32 %v8151, %v8199
    %8201 = vmatmul.bf16.gmra.mxu0 %v4974
    %v8202 = vpop.f32.mrf.mxu0
    %v8203 = vadd.f32 %v8154, %v8202
    %v8204 = vpop.f32.mrf.mxu0
    %v8205 = vadd.f32 %v8156, %v8204
    %8206 = vmatmul.bf16.gmra.mxu0 %v4983
    %v8207 = vpop.f32.mrf.mxu0
    %v8208 = vadd.f32 %v8159, %v8207
    %v8209 = vpop.f32.mrf.mxu0
    %v8210 = vadd.f32 %v8161, %v8209
    %8211 = vdwg.mxu0
    %8212 = vmatpush.bf16.msra.mxu0 %v6208
    %8213 = vmatpush.bf16.msra.mxu0 %v6204
    %8214 = vmatpush.bf16.msra.mxu0 %v6200
    %8215 = vmatpush.bf16.msra.mxu0 %v6196
    %8216 = vmatpush.bf16.msra.mxu0 %v6192
    %8217 = vmatpush.bf16.msra.mxu0 %v6188
    %8218 = vmatpush.bf16.msra.mxu0 %v6184
    %8219 = vmatpush.bf16.msra.mxu0 %v6180
    %8220 = vmatmul.bf16.gmra.mxu0 %v4921
    %v8221 = vpop.f32.mrf.mxu0
    %v8222 = vadd.f32 %v8173, %v8221
    %v8223 = vpop.f32.mrf.mxu0
    %v8224 = vadd.f32 %v8175, %v8223
    %8225 = vmatmul.bf16.gmra.mxu0 %v4930
    %v8226 = vpop.f32.mrf.mxu0
    %v8227 = vadd.f32 %v8178, %v8226
    %v8228 = vpop.f32.mrf.mxu0
    %v8229 = vadd.f32 %v8180, %v8228
    %8230 = vmatmul.bf16.gmra.mxu0 %v4939
    %v8231 = vpop.f32.mrf.mxu0
    %v8232 = vadd.f32 %v8183, %v8231
    %v8233 = vpop.f32.mrf.mxu0
    %v8234 = vadd.f32 %v8185, %v8233
    %8235 = vmatmul.bf16.gmra.mxu0 %v4948
    %v8236 = vpop.f32.mrf.mxu0
    %v8237 = vadd.f32 %v8188, %v8236
    %v8238 = vpop.f32.mrf.mxu0
    %v8239 = vadd.f32 %v8190, %v8238
    %8240 = vmatmul.bf16.gmra.mxu0 %v4957
    %v8241 = vpop.f32.mrf.mxu0
    %v8242 = vadd.f32 %v8193, %v8241
    %v8243 = vpop.f32.mrf.mxu0
    %v8244 = vadd.f32 %v8195, %v8243
    %8245 = vmatmul.bf16.gmra.mxu0 %v4966
    %v8246 = vpop.f32.mrf.mxu0
    %v8247 = vadd.f32 %v8198, %v8246
    %v8248 = vpop.f32.mrf.mxu0
    %v8249 = vadd.f32 %v8200, %v8248
    %8250 = vmatmul.bf16.gmra.mxu0 %v4975
    %v8251 = vpop.f32.mrf.mxu0
    %v8252 = vadd.f32 %v8203, %v8251
    %v8253 = vpop.f32.mrf.mxu0
    %v8254 = vadd.f32 %v8205, %v8253
    %8255 = vmatmul.bf16.gmra.mxu0 %v4984
    %v8256 = vpop.f32.mrf.mxu0
    %v8257 = vadd.f32 %v8208, %v8256
    %v8258 = vpop.f32.mrf.mxu0
    %v8259 = vadd.f32 %v8210, %v8258
    %8260 = vdwg.mxu0
    %v8261 = vmax.f32 %v6899, 0.0
    %v8262 = vmax.f32 %v7340, 0.0
    %v8263 = vmax.f32 %v7781, 0.0
    %v8264 = vmax.f32 %v8222, 0.0
    %v8265 = vmax.f32 %v6901, 0.0
    %v8266 = vmax.f32 %v7342, 0.0
    %v8267 = vmax.f32 %v7783, 0.0
    %v8268 = vmax.f32 %v8224, 0.0
    %v8269 = vmax.f32 %v6904, 0.0
    %v8270 = vmax.f32 %v7345, 0.0
    %v8271 = vmax.f32 %v7786, 0.0
    %v8272 = vmax.f32 %v8227, 0.0
    %v8273 = vmax.f32 %v6906, 0.0
    %v8274 = vmax.f32 %v7347, 0.0
    %v8275 = vmax.f32 %v7788, 0.0
    %v8276 = vmax.f32 %v8229, 0.0
    %v8277 = vmax.f32 %v6909, 0.0
    %v8278 = vmax.f32 %v7350, 0.0
    %v8279 = vmax.f32 %v7791, 0.0
    %v8280 = vmax.f32 %v8232, 0.0
    %v8281 = vmax.f32 %v6911, 0.0
    %v8282 = vmax.f32 %v7352, 0.0
    %v8283 = vmax.f32 %v7793, 0.0
    %v8284 = vmax.f32 %v8234, 0.0
    %v8285 = vmax.f32 %v6914, 0.0
    %v8286 = vmax.f32 %v7355, 0.0
    %v8287 = vmax.f32 %v7796, 0.0
    %v8288 = vmax.f32 %v8237, 0.0
    %v8289 = vmax.f32 %v6916, 0.0
    %v8290 = vmax.f32 %v7357, 0.0
    %v8291 = vmax.f32 %v7798, 0.0
    %v8292 = vmax.f32 %v8239, 0.0
    %v8293 = vmax.f32 %v6919, 0.0
    %v8294 = vmax.f32 %v7360, 0.0
    %v8295 = vmax.f32 %v7801, 0.0
    %v8296 = vmax.f32 %v8242, 0.0
    %v8297 = vmax.f32 %v6921, 0.0
    %v8298 = vmax.f32 %v7362, 0.0
    %v8299 = vmax.f32 %v7803, 0.0
    %v8300 = vmax.f32 %v8244, 0.0
    %v8301 = vmax.f32 %v6924, 0.0
    %v8302 = vmax.f32 %v7365, 0.0
    %v8303 = vmax.f32 %v7806, 0.0
    %v8304 = vmax.f32 %v8247, 0.0
    %v8305 = vmax.f32 %v6926, 0.0
    %v8306 = vmax.f32 %v7367, 0.0
    %v8307 = vmax.f32 %v7808, 0.0
    %v8308 = vmax.f32 %v8249, 0.0
    %v8309 = vmax.f32 %v6929, 0.0
    %v8310 = vmax.f32 %v7370, 0.0
    %v8311 = vmax.f32 %v7811, 0.0
    %v8312 = vmax.f32 %v8252, 0.0
    %v8313 = vmax.f32 %v6931, 0.0
    %v8314 = vmax.f32 %v7372, 0.0
    %v8315 = vmax.f32 %v7813, 0.0
    %v8316 = vmax.f32 %v8254, 0.0
    %v8317 = vmax.f32 %v6934, 0.0
    %v8318 = vmax.f32 %v7375, 0.0
    %v8319 = vmax.f32 %v7816, 0.0
    %v8320 = vmax.f32 %v8257, 0.0
    %v8321 = vmax.f32 %v6936, 0.0
    %v8322 = vmax.f32 %v7377, 0.0
    %v8323 = vmax.f32 %v7818, 0.0
    %v8324 = vmax.f32 %v8259, 0.0
    %v8325 = vld [vmem:[#allocation14] sm:$0xf]
    %v8326 = vpack.c.bf16 %v8265, %v8261
    %v8327 = vpack.c.bf16 %v8266, %v8262
    %v8328 = vpack.c.bf16 %v8267, %v8263
    %v8329 = vpack.c.bf16 %v8268, %v8264
    %v8330 = vpack.c.bf16 %v8273, %v8269
    %v8331 = vpack.c.bf16 %v8274, %v8270
    %v8332 = vpack.c.bf16 %v8275, %v8271
    %v8333 = vpack.c.bf16 %v8276, %v8272
    %v8334 = vpack.c.bf16 %v8281, %v8277
    %v8335 = vpack.c.bf16 %v8282, %v8278
    %v8336 = vpack.c.bf16 %v8283, %v8279
    %v8337 = vpack.c.bf16 %v8284, %v8280
    %v8338 = vpack.c.bf16 %v8289, %v8285
    %v8339 = vpack.c.bf16 %v8290, %v8286
    %v8340 = vpack.c.bf16 %v8291, %v8287
    %v8341 = vpack.c.bf16 %v8292, %v8288
    %v8342 = vpack.c.bf16 %v8297, %v8293
    %v8343 = vpack.c.bf16 %v8298, %v8294
    %v8344 = vpack.c.bf16 %v8299, %v8295
    %v8345 = vpack.c.bf16 %v8300, %v8296
    %v8346 = vpack.c.bf16 %v8305, %v8301
    %v8347 = vpack.c.bf16 %v8306, %v8302
    %v8348 = vpack.c.bf16 %v8307, %v8303
    %v8349 = vpack.c.bf16 %v8308, %v8304
    %v8350 = vpack.c.bf16 %v8313, %v8309
    %v8351 = vpack.c.bf16 %v8314, %v8310
    %v8352 = vpack.c.bf16 %v8315, %v8311
    %v8353 = vpack.c.bf16 %v8316, %v8312
    %v8354 = vpack.c.bf16 %v8321, %v8317
    %v8355 = vpack.c.bf16 %v8322, %v8318
    %v8356 = vpack.c.bf16 %v8323, %v8319
    %v8357 = vpack.c.bf16 %v8324, %v8320
    %8358 = vmatpush.bf16.msra.mxu0 %v8354
    %8359 = vmatpush.bf16.msra.mxu0 %v8350
    %8360 = vmatpush.bf16.msra.mxu0 %v8346
    %8361 = vmatpush.bf16.msra.mxu0 %v8342
    %8362 = vmatpush.bf16.msra.mxu0 %v8338
    %8363 = vmatpush.bf16.msra.mxu0 %v8334
    %8364 = vmatpush.bf16.msra.mxu0 %v8330
    %8365 = vmatpush.bf16.msra.mxu0 %v8326
    %8366 = vmatmul.bf16.gmra.mxu0 %v8325
    %v8367 = vpop.f32.mrf.mxu0
    %v8368 = vadd.f32 0.0, %v8367
    %v8369 = vpop.f32.mrf.mxu0
    %8370 = vdwg.mxu0
    %8371 = vmatpush.bf16.msra.mxu0 %v8355
    %8372 = vmatpush.bf16.msra.mxu0 %v8351
    %8373 = vmatpush.bf16.msra.mxu0 %v8347
    %8374 = vmatpush.bf16.msra.mxu0 %v8343
    %8375 = vmatpush.bf16.msra.mxu0 %v8339
    %8376 = vmatpush.bf16.msra.mxu0 %v8335
    %8377 = vmatpush.bf16.msra.mxu0 %v8331
    %8378 = vmatpush.bf16.msra.mxu0 %v8327
    %8379 = vmatmul.bf16.gmra.mxu0 %v8325
    %v8380 = vpop.f32.mrf.mxu0
    %v8381 = vadd.f32 0.0, %v8380
    %v8382 = vpop.f32.mrf.mxu0
    %8383 = vdwg.mxu0
    %8384 = vmatpush.bf16.msra.mxu0 %v8356
    %8385 = vmatpush.bf16.msra.mxu0 %v8352
    %8386 = vmatpush.bf16.msra.mxu0 %v8348
    %8387 = vmatpush.bf16.msra.mxu0 %v8344
    %8388 = vmatpush.bf16.msra.mxu0 %v8340
    %8389 = vmatpush.bf16.msra.mxu0 %v8336
    %8390 = vmatpush.bf16.msra.mxu0 %v8332
    %8391 = vmatpush.bf16.msra.mxu0 %v8328
    %8392 = vmatmul.bf16.gmra.mxu0 %v8325
    %v8393 = vpop.f32.mrf.mxu0
    %v8394 = vadd.f32 0.0, %v8393
    %v8395 = vpop.f32.mrf.mxu0
    %8396 = vdwg.mxu0
    %8397 = vmatpush.bf16.msra.mxu0 %v8357
    %8398 = vmatpush.bf16.msra.mxu0 %v8353
    %8399 = vmatpush.bf16.msra.mxu0 %v8349
    %8400 = vmatpush.bf16.msra.mxu0 %v8345
    %8401 = vmatpush.bf16.msra.mxu0 %v8341
    %8402 = vmatpush.bf16.msra.mxu0 %v8337
    %8403 = vmatpush.bf16.msra.mxu0 %v8333
    %8404 = vmatpush.bf16.msra.mxu0 %v8329
    %8405 = vmatmul.bf16.gmra.mxu0 %v8325
    %v8406 = vpop.f32.mrf.mxu0
    %v8407 = vadd.f32 0.0, %v8406
    %v8408 = vpop.f32.mrf.mxu0
    %8409 = vdwg.mxu0
    %v8410 = vld [vmem:[#allocation15] sm:$0xff]
    %v8411 = vld [vmem:[#allocation15 + $0x8] sm:$0xff]
    %v8412 = vld [vmem:[#allocation15 + $0x10] sm:$0xff]
    %v8413 = vld [vmem:[#allocation15 + $0x18] sm:$0xff]
    %v8414 = vld [vmem:[#allocation15 + $0x20] sm:$0xff]
    %v8415 = vld [vmem:[#allocation15 + $0x28] sm:$0xff]
    %v8416 = vld [vmem:[#allocation15 + $0x30] sm:$0xff]
    %v8417 = vld [vmem:[#allocation15 + $0x38] sm:$0xff]
    %v8418 = vld [vmem:[#allocation15 + $0x40] sm:$0xff]
    %v8419 = vld [vmem:[#allocation15 + $0x48] sm:$0xff]
    %v8420 = vld [vmem:[#allocation15 + $0x50] sm:$0xff]
    %v8421 = vld [vmem:[#allocation15 + $0x58] sm:$0xff]
    %v8422 = vld [vmem:[#allocation15 + $0x60] sm:$0xff]
    %v8423 = vld [vmem:[#allocation15 + $0x68] sm:$0xff]
    %v8424 = vld [vmem:[#allocation15 + $0x70] sm:$0xff]
    %v8425 = vld [vmem:[#allocation15 + $0x78] sm:$0xff]
    %v8426 = vld [vmem:[#allocation15 + $0x80] sm:$0xff]
    %v8427 = vld [vmem:[#allocation15 + $0x88] sm:$0xff]
    %v8428 = vld [vmem:[#allocation15 + $0x90] sm:$0xff]
    %v8429 = vld [vmem:[#allocation15 + $0x98] sm:$0xff]
    %v8430 = vld [vmem:[#allocation15 + $0xa0] sm:$0xff]
    %v8431 = vld [vmem:[#allocation15 + $0xa8] sm:$0xff]
    %v8432 = vld [vmem:[#allocation15 + $0xb0] sm:$0xff]
    %v8433 = vld [vmem:[#allocation15 + $0xb8] sm:$0xff]
    %v8434 = vld [vmem:[#allocation15 + $0xc0] sm:$0xff]
    %v8435 = vld [vmem:[#allocation15 + $0xc8] sm:$0xff]
    %v8436 = vld [vmem:[#allocation15 + $0xd0] sm:$0xff]
    %v8437 = vld [vmem:[#allocation15 + $0xd8] sm:$0xff]
    %v8438 = vld [vmem:[#allocation15 + $0xe0] sm:$0xff]
    %v8439 = vld [vmem:[#allocation15 + $0xe8] sm:$0xff]
    %v8440 = vld [vmem:[#allocation15 + $0xf0] sm:$0xff]
    %v8441 = vld [vmem:[#allocation15 + $0xf8] sm:$0xff]
    %v8442 = vld [vmem:[#allocation15 + $0x100] sm:$0xff]
    %v8443 = vld [vmem:[#allocation15 + $0x108] sm:$0xff]
    %v8444 = vld [vmem:[#allocation15 + $0x110] sm:$0xff]
    %v8445 = vld [vmem:[#allocation15 + $0x118] sm:$0xff]
    %v8446 = vld [vmem:[#allocation15 + $0x120] sm:$0xff]
    %v8447 = vld [vmem:[#allocation15 + $0x128] sm:$0xff]
    %v8448 = vld [vmem:[#allocation15 + $0x130] sm:$0xff]
    %v8449 = vld [vmem:[#allocation15 + $0x138] sm:$0xff]
    %v8450 = vld [vmem:[#allocation15 + $0x140] sm:$0xff]
    %v8451 = vld [vmem:[#allocation15 + $0x148] sm:$0xff]
    %v8452 = vld [vmem:[#allocation15 + $0x150] sm:$0xff]
    %v8453 = vld [vmem:[#allocation15 + $0x158] sm:$0xff]
    %v8454 = vld [vmem:[#allocation15 + $0x160] sm:$0xff]
    %v8455 = vld [vmem:[#allocation15 + $0x168] sm:$0xff]
    %v8456 = vld [vmem:[#allocation15 + $0x170] sm:$0xff]
    %v8457 = vld [vmem:[#allocation15 + $0x178] sm:$0xff]
    %v8458 = vld [vmem:[#allocation15 + $0x180] sm:$0xff]
    %v8459 = vld [vmem:[#allocation15 + $0x188] sm:$0xff]
    %v8460 = vld [vmem:[#allocation15 + $0x190] sm:$0xff]
    %v8461 = vld [vmem:[#allocation15 + $0x198] sm:$0xff]
    %v8462 = vld [vmem:[#allocation15 + $0x1a0] sm:$0xff]
    %v8463 = vld [vmem:[#allocation15 + $0x1a8] sm:$0xff]
    %v8464 = vld [vmem:[#allocation15 + $0x1b0] sm:$0xff]
    %v8465 = vld [vmem:[#allocation15 + $0x1b8] sm:$0xff]
    %v8466 = vld [vmem:[#allocation15 + $0x1c0] sm:$0xff]
    %v8467 = vld [vmem:[#allocation15 + $0x1c8] sm:$0xff]
    %v8468 = vld [vmem:[#allocation15 + $0x1d0] sm:$0xff]
    %v8469 = vld [vmem:[#allocation15 + $0x1d8] sm:$0xff]
    %v8470 = vld [vmem:[#allocation15 + $0x1e0] sm:$0xff]
    %v8471 = vld [vmem:[#allocation15 + $0x1e8] sm:$0xff]
    %v8472 = vld [vmem:[#allocation15 + $0x1f0] sm:$0xff]
    %v8473 = vld [vmem:[#allocation15 + $0x1f8] sm:$0xff]
    %v8474 = vld [vmem:[#allocation17] sm:$0x1]
    %v8476 = vperm.slane %v8474, 0
    %v8478 = vand.u32 %v8425, 4294901760
    %8479 = vmatpush.msra.mxu0 %v8478
    %v8480 = vand.u32 %v8424, 4294901760
    %8481 = vmatpush.msra.mxu0 %v8480
    %v8482 = vand.u32 %v8423, 4294901760
    %8483 = vmatpush.msra.mxu0 %v8482
    %v8484 = vand.u32 %v8422, 4294901760
    %8485 = vmatpush.msra.mxu0 %v8484
    %v8486 = vand.u32 %v8421, 4294901760
    %8487 = vmatpush.msra.mxu0 %v8486
    %v8488 = vand.u32 %v8420, 4294901760
    %8489 = vmatpush.msra.mxu0 %v8488
    %v8490 = vand.u32 %v8419, 4294901760
    %8491 = vmatpush.msra.mxu0 %v8490
    %v8492 = vand.u32 %v8418, 4294901760
    %8493 = vmatpush.msra.mxu0 %v8492
    %v8494 = vand.u32 %v8417, 4294901760
    %8495 = vmatpush.msra.mxu0 %v8494
    %v8496 = vand.u32 %v8416, 4294901760
    %8497 = vmatpush.msra.mxu0 %v8496
    %v8498 = vand.u32 %v8415, 4294901760
    %8499 = vmatpush.msra.mxu0 %v8498
    %v8500 = vand.u32 %v8414, 4294901760
    %8501 = vmatpush.msra.mxu0 %v8500
    %v8502 = vand.u32 %v8413, 4294901760
    %8503 = vmatpush.msra.mxu0 %v8502
    %v8504 = vand.u32 %v8412, 4294901760
    %8505 = vmatpush.msra.mxu0 %v8504
    %v8506 = vand.u32 %v8411, 4294901760
    %8507 = vmatpush.msra.mxu0 %v8506
    %v8508 = vand.u32 %v8410, 4294901760
    %8509 = vmatpush.msra.mxu0 %v8508
    %v8510 = vand.u32 %v8368, 4294901760
    %v8511 = vsub.f32 %v8368, %v8510
    %v8512 = vand.u32 %v8511, 4294901760
    %v8513 = vsub.f32 %v8511, %v8512
    %v8514 = vand.u32 %v8513, 4294901760
    %8515 = vmatmul.f32.gmra.mxu0 %v8514
    %v8516 = vpop.f32.mrf.mxu0
    %v8517 = vadd.f32 %v8476, %v8516
    %8518 = vdwg.mxu0
    %v8519 = vand.u32 %v8425, 4294901760
    %v8520 = vsub.f32 %v8425, %v8519
    %v8521 = vand.u32 %v8520, 4294901760
    %v8522 = vsub.f32 %v8520, %v8521
    %v8523 = vand.u32 %v8522, 4294901760
    %8524 = vmatpush.msra.mxu0 %v8523
    %v8525 = vand.u32 %v8424, 4294901760
    %v8526 = vsub.f32 %v8424, %v8525
    %v8527 = vand.u32 %v8526, 4294901760
    %v8528 = vsub.f32 %v8526, %v8527
    %v8529 = vand.u32 %v8528, 4294901760
    %8530 = vmatpush.msra.mxu0 %v8529
    %v8531 = vand.u32 %v8423, 4294901760
    %v8532 = vsub.f32 %v8423, %v8531
    %v8533 = vand.u32 %v8532, 4294901760
    %v8534 = vsub.f32 %v8532, %v8533
    %v8535 = vand.u32 %v8534, 4294901760
    %8536 = vmatpush.msra.mxu0 %v8535
    %v8537 = vand.u32 %v8422, 4294901760
    %v8538 = vsub.f32 %v8422, %v8537
    %v8539 = vand.u32 %v8538, 4294901760
    %v8540 = vsub.f32 %v8538, %v8539
    %v8541 = vand.u32 %v8540, 4294901760
    %8542 = vmatpush.msra.mxu0 %v8541
    %v8543 = vand.u32 %v8421, 4294901760
    %v8544 = vsub.f32 %v8421, %v8543
    %v8545 = vand.u32 %v8544, 4294901760
    %v8546 = vsub.f32 %v8544, %v8545
    %v8547 = vand.u32 %v8546, 4294901760
    %8548 = vmatpush.msra.mxu0 %v8547
    %v8549 = vand.u32 %v8420, 4294901760
    %v8550 = vsub.f32 %v8420, %v8549
    %v8551 = vand.u32 %v8550, 4294901760
    %v8552 = vsub.f32 %v8550, %v8551
    %v8553 = vand.u32 %v8552, 4294901760
    %8554 = vmatpush.msra.mxu0 %v8553
    %v8555 = vand.u32 %v8419, 4294901760
    %v8556 = vsub.f32 %v8419, %v8555
    %v8557 = vand.u32 %v8556, 4294901760
    %v8558 = vsub.f32 %v8556, %v8557
    %v8559 = vand.u32 %v8558, 4294901760
    %8560 = vmatpush.msra.mxu0 %v8559
    %v8561 = vand.u32 %v8418, 4294901760
    %v8562 = vsub.f32 %v8418, %v8561
    %v8563 = vand.u32 %v8562, 4294901760
    %v8564 = vsub.f32 %v8562, %v8563
    %v8565 = vand.u32 %v8564, 4294901760
    %8566 = vmatpush.msra.mxu0 %v8565
    %v8567 = vand.u32 %v8417, 4294901760
    %v8568 = vsub.f32 %v8417, %v8567
    %v8569 = vand.u32 %v8568, 4294901760
    %v8570 = vsub.f32 %v8568, %v8569
    %v8571 = vand.u32 %v8570, 4294901760
    %8572 = vmatpush.msra.mxu0 %v8571
    %v8573 = vand.u32 %v8416, 4294901760
    %v8574 = vsub.f32 %v8416, %v8573
    %v8575 = vand.u32 %v8574, 4294901760
    %v8576 = vsub.f32 %v8574, %v8575
    %v8577 = vand.u32 %v8576, 4294901760
    %8578 = vmatpush.msra.mxu0 %v8577
    %v8579 = vand.u32 %v8415, 4294901760
    %v8580 = vsub.f32 %v8415, %v8579
    %v8581 = vand.u32 %v8580, 4294901760
    %v8582 = vsub.f32 %v8580, %v8581
    %v8583 = vand.u32 %v8582, 4294901760
    %8584 = vmatpush.msra.mxu0 %v8583
    %v8585 = vand.u32 %v8414, 4294901760
    %v8586 = vsub.f32 %v8414, %v8585
    %v8587 = vand.u32 %v8586, 4294901760
    %v8588 = vsub.f32 %v8586, %v8587
    %v8589 = vand.u32 %v8588, 4294901760
    %8590 = vmatpush.msra.mxu0 %v8589
    %v8591 = vand.u32 %v8413, 4294901760
    %v8592 = vsub.f32 %v8413, %v8591
    %v8593 = vand.u32 %v8592, 4294901760
    %v8594 = vsub.f32 %v8592, %v8593
    %v8595 = vand.u32 %v8594, 4294901760
    %8596 = vmatpush.msra.mxu0 %v8595
    %v8597 = vand.u32 %v8412, 4294901760
    %v8598 = vsub.f32 %v8412, %v8597
    %v8599 = vand.u32 %v8598, 4294901760
    %v8600 = vsub.f32 %v8598, %v8599
    %v8601 = vand.u32 %v8600, 4294901760
    %8602 = vmatpush.msra.mxu0 %v8601
    %v8603 = vand.u32 %v8411, 4294901760
    %v8604 = vsub.f32 %v8411, %v8603
    %v8605 = vand.u32 %v8604, 4294901760
    %v8606 = vsub.f32 %v8604, %v8605
    %v8607 = vand.u32 %v8606, 4294901760
    %8608 = vmatpush.msra.mxu0 %v8607
    %v8609 = vand.u32 %v8410, 4294901760
    %v8610 = vsub.f32 %v8410, %v8609
    %v8611 = vand.u32 %v8610, 4294901760
    %v8612 = vsub.f32 %v8610, %v8611
    %v8613 = vand.u32 %v8612, 4294901760
    %8614 = vmatpush.msra.mxu0 %v8613
    %v8615 = vand.u32 %v8368, 4294901760
    %8616 = vmatmul.f32.gmra.mxu0 %v8615
    %v8617 = vpop.f32.mrf.mxu0
    %v8618 = vadd.f32 %v8517, %v8617
    %8619 = vdwg.mxu0
    %v8620 = vand.u32 %v8425, 4294901760
    %v8621 = vsub.f32 %v8425, %v8620
    %8622 = vmatpush.msra.mxu0 %v8621
    %v8623 = vand.u32 %v8424, 4294901760
    %v8624 = vsub.f32 %v8424, %v8623
    %8625 = vmatpush.msra.mxu0 %v8624
    %v8626 = vand.u32 %v8423, 4294901760
    %v8627 = vsub.f32 %v8423, %v8626
    %8628 = vmatpush.msra.mxu0 %v8627
    %v8629 = vand.u32 %v8422, 4294901760
    %v8630 = vsub.f32 %v8422, %v8629
    %8631 = vmatpush.msra.mxu0 %v8630
    %v8632 = vand.u32 %v8421, 4294901760
    %v8633 = vsub.f32 %v8421, %v8632
    %8634 = vmatpush.msra.mxu0 %v8633
    %v8635 = vand.u32 %v8420, 4294901760
    %v8636 = vsub.f32 %v8420, %v8635
    %8637 = vmatpush.msra.mxu0 %v8636
    %v8638 = vand.u32 %v8419, 4294901760
    %v8639 = vsub.f32 %v8419, %v8638
    %8640 = vmatpush.msra.mxu0 %v8639
    %v8641 = vand.u32 %v8418, 4294901760
    %v8642 = vsub.f32 %v8418, %v8641
    %8643 = vmatpush.msra.mxu0 %v8642
    %v8644 = vand.u32 %v8417, 4294901760
    %v8645 = vsub.f32 %v8417, %v8644
    %8646 = vmatpush.msra.mxu0 %v8645
    %v8647 = vand.u32 %v8416, 4294901760
    %v8648 = vsub.f32 %v8416, %v8647
    %8649 = vmatpush.msra.mxu0 %v8648
    %v8650 = vand.u32 %v8415, 4294901760
    %v8651 = vsub.f32 %v8415, %v8650
    %8652 = vmatpush.msra.mxu0 %v8651
    %v8653 = vand.u32 %v8414, 4294901760
    %v8654 = vsub.f32 %v8414, %v8653
    %8655 = vmatpush.msra.mxu0 %v8654
    %v8656 = vand.u32 %v8413, 4294901760
    %v8657 = vsub.f32 %v8413, %v8656
    %8658 = vmatpush.msra.mxu0 %v8657
    %v8659 = vand.u32 %v8412, 4294901760
    %v8660 = vsub.f32 %v8412, %v8659
    %8661 = vmatpush.msra.mxu0 %v8660
    %v8662 = vand.u32 %v8411, 4294901760
    %v8663 = vsub.f32 %v8411, %v8662
    %8664 = vmatpush.msra.mxu0 %v8663
    %v8665 = vand.u32 %v8410, 4294901760
    %v8666 = vsub.f32 %v8410, %v8665
    %8667 = vmatpush.msra.mxu0 %v8666
    %v8668 = vand.u32 %v8368, 4294901760
    %v8669 = vsub.f32 %v8368, %v8668
    %8670 = vmatmul.f32.gmra.mxu0 %v8669
    %v8671 = vpop.f32.mrf.mxu0
    %v8672 = vadd.f32 %v8618, %v8671
    %8673 = vdwg.mxu0
    %v8674 = vand.u32 %v8425, 4294901760
    %8675 = vmatpush.msra.mxu0 %v8674
    %v8676 = vand.u32 %v8424, 4294901760
    %8677 = vmatpush.msra.mxu0 %v8676
    %v8678 = vand.u32 %v8423, 4294901760
    %8679 = vmatpush.msra.mxu0 %v8678
    %v8680 = vand.u32 %v8422, 4294901760
    %8681 = vmatpush.msra.mxu0 %v8680
    %v8682 = vand.u32 %v8421, 4294901760
    %8683 = vmatpush.msra.mxu0 %v8682
    %v8684 = vand.u32 %v8420, 4294901760
    %8685 = vmatpush.msra.mxu0 %v8684
    %v8686 = vand.u32 %v8419, 4294901760
    %8687 = vmatpush.msra.mxu0 %v8686
    %v8688 = vand.u32 %v8418, 4294901760
    %8689 = vmatpush.msra.mxu0 %v8688
    %v8690 = vand.u32 %v8417, 4294901760
    %8691 = vmatpush.msra.mxu0 %v8690
    %v8692 = vand.u32 %v8416, 4294901760
    %8693 = vmatpush.msra.mxu0 %v8692
    %v8694 = vand.u32 %v8415, 4294901760
    %8695 = vmatpush.msra.mxu0 %v8694
    %v8696 = vand.u32 %v8414, 4294901760
    %8697 = vmatpush.msra.mxu0 %v8696
    %v8698 = vand.u32 %v8413, 4294901760
    %8699 = vmatpush.msra.mxu0 %v8698
    %v8700 = vand.u32 %v8412, 4294901760
    %8701 = vmatpush.msra.mxu0 %v8700
    %v8702 = vand.u32 %v8411, 4294901760
    %8703 = vmatpush.msra.mxu0 %v8702
    %v8704 = vand.u32 %v8410, 4294901760
    %8705 = vmatpush.msra.mxu0 %v8704
    %v8706 = vand.u32 %v8368, 4294901760
    %v8707 = vsub.f32 %v8368, %v8706
    %v8708 = vand.u32 %v8707, 4294901760
    %8709 = vmatmul.f32.gmra.mxu0 %v8708
    %v8710 = vpop.f32.mrf.mxu0
    %v8711 = vadd.f32 %v8672, %v8710
    %8712 = vdwg.mxu0
    %v8713 = vand.u32 %v8425, 4294901760
    %v8714 = vsub.f32 %v8425, %v8713
    %v8715 = vand.u32 %v8714, 4294901760
    %8716 = vmatpush.msra.mxu0 %v8715
    %v8717 = vand.u32 %v8424, 4294901760
    %v8718 = vsub.f32 %v8424, %v8717
    %v8719 = vand.u32 %v8718, 4294901760
    %8720 = vmatpush.msra.mxu0 %v8719
    %v8721 = vand.u32 %v8423, 4294901760
    %v8722 = vsub.f32 %v8423, %v8721
    %v8723 = vand.u32 %v8722, 4294901760
    %8724 = vmatpush.msra.mxu0 %v8723
    %v8725 = vand.u32 %v8422, 4294901760
    %v8726 = vsub.f32 %v8422, %v8725
    %v8727 = vand.u32 %v8726, 4294901760
    %8728 = vmatpush.msra.mxu0 %v8727
    %v8729 = vand.u32 %v8421, 4294901760
    %v8730 = vsub.f32 %v8421, %v8729
    %v8731 = vand.u32 %v8730, 4294901760
    %8732 = vmatpush.msra.mxu0 %v8731
    %v8733 = vand.u32 %v8420, 4294901760
    %v8734 = vsub.f32 %v8420, %v8733
    %v8735 = vand.u32 %v8734, 4294901760
    %8736 = vmatpush.msra.mxu0 %v8735
    %v8737 = vand.u32 %v8419, 4294901760
    %v8738 = vsub.f32 %v8419, %v8737
    %v8739 = vand.u32 %v8738, 4294901760
    %8740 = vmatpush.msra.mxu0 %v8739
    %v8741 = vand.u32 %v8418, 4294901760
    %v8742 = vsub.f32 %v8418, %v8741
    %v8743 = vand.u32 %v8742, 4294901760
    %8744 = vmatpush.msra.mxu0 %v8743
    %v8745 = vand.u32 %v8417, 4294901760
    %v8746 = vsub.f32 %v8417, %v8745
    %v8747 = vand.u32 %v8746, 4294901760
    %8748 = vmatpush.msra.mxu0 %v8747
    %v8749 = vand.u32 %v8416, 4294901760
    %v8750 = vsub.f32 %v8416, %v8749
    %v8751 = vand.u32 %v8750, 4294901760
    %8752 = vmatpush.msra.mxu0 %v8751
    %v8753 = vand.u32 %v8415, 4294901760
    %v8754 = vsub.f32 %v8415, %v8753
    %v8755 = vand.u32 %v8754, 4294901760
    %8756 = vmatpush.msra.mxu0 %v8755
    %v8757 = vand.u32 %v8414, 4294901760
    %v8758 = vsub.f32 %v8414, %v8757
    %v8759 = vand.u32 %v8758, 4294901760
    %8760 = vmatpush.msra.mxu0 %v8759
    %v8761 = vand.u32 %v8413, 4294901760
    %v8762 = vsub.f32 %v8413, %v8761
    %v8763 = vand.u32 %v8762, 4294901760
    %8764 = vmatpush.msra.mxu0 %v8763
    %v8765 = vand.u32 %v8412, 4294901760
    %v8766 = vsub.f32 %v8412, %v8765
    %v8767 = vand.u32 %v8766, 4294901760
    %8768 = vmatpush.msra.mxu0 %v8767
    %v8769 = vand.u32 %v8411, 4294901760
    %v8770 = vsub.f32 %v8411, %v8769
    %v8771 = vand.u32 %v8770, 4294901760
    %8772 = vmatpush.msra.mxu0 %v8771
    %v8773 = vand.u32 %v8410, 4294901760
    %v8774 = vsub.f32 %v8410, %v8773
    %v8775 = vand.u32 %v8774, 4294901760
    %8776 = vmatpush.msra.mxu0 %v8775
    %v8777 = vand.u32 %v8368, 4294901760
    %8778 = vmatmul.f32.gmra.mxu0 %v8777
    %v8779 = vpop.f32.mrf.mxu0
    %v8780 = vadd.f32 %v8711, %v8779
    %8781 = vdwg.mxu0
    %v8782 = vand.u32 %v8425, 4294901760
    %8783 = vmatpush.msra.mxu0 %v8782
    %v8784 = vand.u32 %v8424, 4294901760
    %8785 = vmatpush.msra.mxu0 %v8784
    %v8786 = vand.u32 %v8423, 4294901760
    %8787 = vmatpush.msra.mxu0 %v8786
    %v8788 = vand.u32 %v8422, 4294901760
    %8789 = vmatpush.msra.mxu0 %v8788
    %v8790 = vand.u32 %v8421, 4294901760
    %8791 = vmatpush.msra.mxu0 %v8790
    %v8792 = vand.u32 %v8420, 4294901760
    %8793 = vmatpush.msra.mxu0 %v8792
    %v8794 = vand.u32 %v8419, 4294901760
    %8795 = vmatpush.msra.mxu0 %v8794
    %v8796 = vand.u32 %v8418, 4294901760
    %8797 = vmatpush.msra.mxu0 %v8796
    %v8798 = vand.u32 %v8417, 4294901760
    %8799 = vmatpush.msra.mxu0 %v8798
    %v8800 = vand.u32 %v8416, 4294901760
    %8801 = vmatpush.msra.mxu0 %v8800
    %v8802 = vand.u32 %v8415, 4294901760
    %8803 = vmatpush.msra.mxu0 %v8802
    %v8804 = vand.u32 %v8414, 4294901760
    %8805 = vmatpush.msra.mxu0 %v8804
    %v8806 = vand.u32 %v8413, 4294901760
    %8807 = vmatpush.msra.mxu0 %v8806
    %v8808 = vand.u32 %v8412, 4294901760
    %8809 = vmatpush.msra.mxu0 %v8808
    %v8810 = vand.u32 %v8411, 4294901760
    %8811 = vmatpush.msra.mxu0 %v8810
    %v8812 = vand.u32 %v8410, 4294901760
    %8813 = vmatpush.msra.mxu0 %v8812
    %v8814 = vand.u32 %v8368, 4294901760
    %8815 = vmatmul.f32.gmra.mxu0 %v8814
    %v8816 = vpop.f32.mrf.mxu0
    %v8817 = vadd.f32 %v8780, %v8816
    %8818 = vdwg.mxu0
    %v8819 = vand.u32 %v8441, 4294901760
    %8820 = vmatpush.msra.mxu0 %v8819
    %v8821 = vand.u32 %v8440, 4294901760
    %8822 = vmatpush.msra.mxu0 %v8821
    %v8823 = vand.u32 %v8439, 4294901760
    %8824 = vmatpush.msra.mxu0 %v8823
    %v8825 = vand.u32 %v8438, 4294901760
    %8826 = vmatpush.msra.mxu0 %v8825
    %v8827 = vand.u32 %v8437, 4294901760
    %8828 = vmatpush.msra.mxu0 %v8827
    %v8829 = vand.u32 %v8436, 4294901760
    %8830 = vmatpush.msra.mxu0 %v8829
    %v8831 = vand.u32 %v8435, 4294901760
    %8832 = vmatpush.msra.mxu0 %v8831
    %v8833 = vand.u32 %v8434, 4294901760
    %8834 = vmatpush.msra.mxu0 %v8833
    %v8835 = vand.u32 %v8433, 4294901760
    %8836 = vmatpush.msra.mxu0 %v8835
    %v8837 = vand.u32 %v8432, 4294901760
    %8838 = vmatpush.msra.mxu0 %v8837
    %v8839 = vand.u32 %v8431, 4294901760
    %8840 = vmatpush.msra.mxu0 %v8839
    %v8841 = vand.u32 %v8430, 4294901760
    %8842 = vmatpush.msra.mxu0 %v8841
    %v8843 = vand.u32 %v8429, 4294901760
    %8844 = vmatpush.msra.mxu0 %v8843
    %v8845 = vand.u32 %v8428, 4294901760
    %8846 = vmatpush.msra.mxu0 %v8845
    %v8847 = vand.u32 %v8427, 4294901760
    %8848 = vmatpush.msra.mxu0 %v8847
    %v8849 = vand.u32 %v8426, 4294901760
    %8850 = vmatpush.msra.mxu0 %v8849
    %v8851 = vand.u32 %v8381, 4294901760
    %v8852 = vsub.f32 %v8381, %v8851
    %v8853 = vand.u32 %v8852, 4294901760
    %v8854 = vsub.f32 %v8852, %v8853
    %v8855 = vand.u32 %v8854, 4294901760
    %8856 = vmatmul.f32.gmra.mxu0 %v8855
    %v8857 = vpop.f32.mrf.mxu0
    %v8858 = vadd.f32 %v8817, %v8857
    %8859 = vdwg.mxu0
    %v8860 = vand.u32 %v8441, 4294901760
    %v8861 = vsub.f32 %v8441, %v8860
    %v8862 = vand.u32 %v8861, 4294901760
    %v8863 = vsub.f32 %v8861, %v8862
    %v8864 = vand.u32 %v8863, 4294901760
    %8865 = vmatpush.msra.mxu0 %v8864
    %v8866 = vand.u32 %v8440, 4294901760
    %v8867 = vsub.f32 %v8440, %v8866
    %v8868 = vand.u32 %v8867, 4294901760
    %v8869 = vsub.f32 %v8867, %v8868
    %v8870 = vand.u32 %v8869, 4294901760
    %8871 = vmatpush.msra.mxu0 %v8870
    %v8872 = vand.u32 %v8439, 4294901760
    %v8873 = vsub.f32 %v8439, %v8872
    %v8874 = vand.u32 %v8873, 4294901760
    %v8875 = vsub.f32 %v8873, %v8874
    %v8876 = vand.u32 %v8875, 4294901760
    %8877 = vmatpush.msra.mxu0 %v8876
    %v8878 = vand.u32 %v8438, 4294901760
    %v8879 = vsub.f32 %v8438, %v8878
    %v8880 = vand.u32 %v8879, 4294901760
    %v8881 = vsub.f32 %v8879, %v8880
    %v8882 = vand.u32 %v8881, 4294901760
    %8883 = vmatpush.msra.mxu0 %v8882
    %v8884 = vand.u32 %v8437, 4294901760
    %v8885 = vsub.f32 %v8437, %v8884
    %v8886 = vand.u32 %v8885, 4294901760
    %v8887 = vsub.f32 %v8885, %v8886
    %v8888 = vand.u32 %v8887, 4294901760
    %8889 = vmatpush.msra.mxu0 %v8888
    %v8890 = vand.u32 %v8436, 4294901760
    %v8891 = vsub.f32 %v8436, %v8890
    %v8892 = vand.u32 %v8891, 4294901760
    %v8893 = vsub.f32 %v8891, %v8892
    %v8894 = vand.u32 %v8893, 4294901760
    %8895 = vmatpush.msra.mxu0 %v8894
    %v8896 = vand.u32 %v8435, 4294901760
    %v8897 = vsub.f32 %v8435, %v8896
    %v8898 = vand.u32 %v8897, 4294901760
    %v8899 = vsub.f32 %v8897, %v8898
    %v8900 = vand.u32 %v8899, 4294901760
    %8901 = vmatpush.msra.mxu0 %v8900
    %v8902 = vand.u32 %v8434, 4294901760
    %v8903 = vsub.f32 %v8434, %v8902
    %v8904 = vand.u32 %v8903, 4294901760
    %v8905 = vsub.f32 %v8903, %v8904
    %v8906 = vand.u32 %v8905, 4294901760
    %8907 = vmatpush.msra.mxu0 %v8906
    %v8908 = vand.u32 %v8433, 4294901760
    %v8909 = vsub.f32 %v8433, %v8908
    %v8910 = vand.u32 %v8909, 4294901760
    %v8911 = vsub.f32 %v8909, %v8910
    %v8912 = vand.u32 %v8911, 4294901760
    %8913 = vmatpush.msra.mxu0 %v8912
    %v8914 = vand.u32 %v8432, 4294901760
    %v8915 = vsub.f32 %v8432, %v8914
    %v8916 = vand.u32 %v8915, 4294901760
    %v8917 = vsub.f32 %v8915, %v8916
    %v8918 = vand.u32 %v8917, 4294901760
    %8919 = vmatpush.msra.mxu0 %v8918
    %v8920 = vand.u32 %v8431, 4294901760
    %v8921 = vsub.f32 %v8431, %v8920
    %v8922 = vand.u32 %v8921, 4294901760
    %v8923 = vsub.f32 %v8921, %v8922
    %v8924 = vand.u32 %v8923, 4294901760
    %8925 = vmatpush.msra.mxu0 %v8924
    %v8926 = vand.u32 %v8430, 4294901760
    %v8927 = vsub.f32 %v8430, %v8926
    %v8928 = vand.u32 %v8927, 4294901760
    %v8929 = vsub.f32 %v8927, %v8928
    %v8930 = vand.u32 %v8929, 4294901760
    %8931 = vmatpush.msra.mxu0 %v8930
    %v8932 = vand.u32 %v8429, 4294901760
    %v8933 = vsub.f32 %v8429, %v8932
    %v8934 = vand.u32 %v8933, 4294901760
    %v8935 = vsub.f32 %v8933, %v8934
    %v8936 = vand.u32 %v8935, 4294901760
    %8937 = vmatpush.msra.mxu0 %v8936
    %v8938 = vand.u32 %v8428, 4294901760
    %v8939 = vsub.f32 %v8428, %v8938
    %v8940 = vand.u32 %v8939, 4294901760
    %v8941 = vsub.f32 %v8939, %v8940
    %v8942 = vand.u32 %v8941, 4294901760
    %8943 = vmatpush.msra.mxu0 %v8942
    %v8944 = vand.u32 %v8427, 4294901760
    %v8945 = vsub.f32 %v8427, %v8944
    %v8946 = vand.u32 %v8945, 4294901760
    %v8947 = vsub.f32 %v8945, %v8946
    %v8948 = vand.u32 %v8947, 4294901760
    %8949 = vmatpush.msra.mxu0 %v8948
    %v8950 = vand.u32 %v8426, 4294901760
    %v8951 = vsub.f32 %v8426, %v8950
    %v8952 = vand.u32 %v8951, 4294901760
    %v8953 = vsub.f32 %v8951, %v8952
    %v8954 = vand.u32 %v8953, 4294901760
    %8955 = vmatpush.msra.mxu0 %v8954
    %v8956 = vand.u32 %v8381, 4294901760
    %8957 = vmatmul.f32.gmra.mxu0 %v8956
    %v8958 = vpop.f32.mrf.mxu0
    %v8959 = vadd.f32 %v8858, %v8958
    %8960 = vdwg.mxu0
    %v8961 = vand.u32 %v8441, 4294901760
    %v8962 = vsub.f32 %v8441, %v8961
    %8963 = vmatpush.msra.mxu0 %v8962
    %v8964 = vand.u32 %v8440, 4294901760
    %v8965 = vsub.f32 %v8440, %v8964
    %8966 = vmatpush.msra.mxu0 %v8965
    %v8967 = vand.u32 %v8439, 4294901760
    %v8968 = vsub.f32 %v8439, %v8967
    %8969 = vmatpush.msra.mxu0 %v8968
    %v8970 = vand.u32 %v8438, 4294901760
    %v8971 = vsub.f32 %v8438, %v8970
    %8972 = vmatpush.msra.mxu0 %v8971
    %v8973 = vand.u32 %v8437, 4294901760
    %v8974 = vsub.f32 %v8437, %v8973
    %8975 = vmatpush.msra.mxu0 %v8974
    %v8976 = vand.u32 %v8436, 4294901760
    %v8977 = vsub.f32 %v8436, %v8976
    %8978 = vmatpush.msra.mxu0 %v8977
    %v8979 = vand.u32 %v8435, 4294901760
    %v8980 = vsub.f32 %v8435, %v8979
    %8981 = vmatpush.msra.mxu0 %v8980
    %v8982 = vand.u32 %v8434, 4294901760
    %v8983 = vsub.f32 %v8434, %v8982
    %8984 = vmatpush.msra.mxu0 %v8983
    %v8985 = vand.u32 %v8433, 4294901760
    %v8986 = vsub.f32 %v8433, %v8985
    %8987 = vmatpush.msra.mxu0 %v8986
    %v8988 = vand.u32 %v8432, 4294901760
    %v8989 = vsub.f32 %v8432, %v8988
    %8990 = vmatpush.msra.mxu0 %v8989
    %v8991 = vand.u32 %v8431, 4294901760
    %v8992 = vsub.f32 %v8431, %v8991
    %8993 = vmatpush.msra.mxu0 %v8992
    %v8994 = vand.u32 %v8430, 4294901760
    %v8995 = vsub.f32 %v8430, %v8994
    %8996 = vmatpush.msra.mxu0 %v8995
    %v8997 = vand.u32 %v8429, 4294901760
    %v8998 = vsub.f32 %v8429, %v8997
    %8999 = vmatpush.msra.mxu0 %v8998
    %v9000 = vand.u32 %v8428, 4294901760
    %v9001 = vsub.f32 %v8428, %v9000
    %9002 = vmatpush.msra.mxu0 %v9001
    %v9003 = vand.u32 %v8427, 4294901760
    %v9004 = vsub.f32 %v8427, %v9003
    %9005 = vmatpush.msra.mxu0 %v9004
    %v9006 = vand.u32 %v8426, 4294901760
    %v9007 = vsub.f32 %v8426, %v9006
    %9008 = vmatpush.msra.mxu0 %v9007
    %v9009 = vand.u32 %v8381, 4294901760
    %v9010 = vsub.f32 %v8381, %v9009
    %9011 = vmatmul.f32.gmra.mxu0 %v9010
    %v9012 = vpop.f32.mrf.mxu0
    %v9013 = vadd.f32 %v8959, %v9012
    %9014 = vdwg.mxu0
    %v9015 = vand.u32 %v8441, 4294901760
    %9016 = vmatpush.msra.mxu0 %v9015
    %v9017 = vand.u32 %v8440, 4294901760
    %9018 = vmatpush.msra.mxu0 %v9017
    %v9019 = vand.u32 %v8439, 4294901760
    %9020 = vmatpush.msra.mxu0 %v9019
    %v9021 = vand.u32 %v8438, 4294901760
    %9022 = vmatpush.msra.mxu0 %v9021
    %v9023 = vand.u32 %v8437, 4294901760
    %9024 = vmatpush.msra.mxu0 %v9023
    %v9025 = vand.u32 %v8436, 4294901760
    %9026 = vmatpush.msra.mxu0 %v9025
    %v9027 = vand.u32 %v8435, 4294901760
    %9028 = vmatpush.msra.mxu0 %v9027
    %v9029 = vand.u32 %v8434, 4294901760
    %9030 = vmatpush.msra.mxu0 %v9029
    %v9031 = vand.u32 %v8433, 4294901760
    %9032 = vmatpush.msra.mxu0 %v9031
    %v9033 = vand.u32 %v8432, 4294901760
    %9034 = vmatpush.msra.mxu0 %v9033
    %v9035 = vand.u32 %v8431, 4294901760
    %9036 = vmatpush.msra.mxu0 %v9035
    %v9037 = vand.u32 %v8430, 4294901760
    %9038 = vmatpush.msra.mxu0 %v9037
    %v9039 = vand.u32 %v8429, 4294901760
    %9040 = vmatpush.msra.mxu0 %v9039
    %v9041 = vand.u32 %v8428, 4294901760
    %9042 = vmatpush.msra.mxu0 %v9041
    %v9043 = vand.u32 %v8427, 4294901760
    %9044 = vmatpush.msra.mxu0 %v9043
    %v9045 = vand.u32 %v8426, 4294901760
    %9046 = vmatpush.msra.mxu0 %v9045
    %v9047 = vand.u32 %v8381, 4294901760
    %v9048 = vsub.f32 %v8381, %v9047
    %v9049 = vand.u32 %v9048, 4294901760
    %9050 = vmatmul.f32.gmra.mxu0 %v9049
    %v9051 = vpop.f32.mrf.mxu0
    %v9052 = vadd.f32 %v9013, %v9051
    %9053 = vdwg.mxu0
    %v9054 = vand.u32 %v8441, 4294901760
    %v9055 = vsub.f32 %v8441, %v9054
    %v9056 = vand.u32 %v9055, 4294901760
    %9057 = vmatpush.msra.mxu0 %v9056
    %v9058 = vand.u32 %v8440, 4294901760
    %v9059 = vsub.f32 %v8440, %v9058
    %v9060 = vand.u32 %v9059, 4294901760
    %9061 = vmatpush.msra.mxu0 %v9060
    %v9062 = vand.u32 %v8439, 4294901760
    %v9063 = vsub.f32 %v8439, %v9062
    %v9064 = vand.u32 %v9063, 4294901760
    %9065 = vmatpush.msra.mxu0 %v9064
    %v9066 = vand.u32 %v8438, 4294901760
    %v9067 = vsub.f32 %v8438, %v9066
    %v9068 = vand.u32 %v9067, 4294901760
    %9069 = vmatpush.msra.mxu0 %v9068
    %v9070 = vand.u32 %v8437, 4294901760
    %v9071 = vsub.f32 %v8437, %v9070
    %v9072 = vand.u32 %v9071, 4294901760
    %9073 = vmatpush.msra.mxu0 %v9072
    %v9074 = vand.u32 %v8436, 4294901760
    %v9075 = vsub.f32 %v8436, %v9074
    %v9076 = vand.u32 %v9075, 4294901760
    %9077 = vmatpush.msra.mxu0 %v9076
    %v9078 = vand.u32 %v8435, 4294901760
    %v9079 = vsub.f32 %v8435, %v9078
    %v9080 = vand.u32 %v9079, 4294901760
    %9081 = vmatpush.msra.mxu0 %v9080
    %v9082 = vand.u32 %v8434, 4294901760
    %v9083 = vsub.f32 %v8434, %v9082
    %v9084 = vand.u32 %v9083, 4294901760
    %9085 = vmatpush.msra.mxu0 %v9084
    %v9086 = vand.u32 %v8433, 4294901760
    %v9087 = vsub.f32 %v8433, %v9086
    %v9088 = vand.u32 %v9087, 4294901760
    %9089 = vmatpush.msra.mxu0 %v9088
    %v9090 = vand.u32 %v8432, 4294901760
    %v9091 = vsub.f32 %v8432, %v9090
    %v9092 = vand.u32 %v9091, 4294901760
    %9093 = vmatpush.msra.mxu0 %v9092
    %v9094 = vand.u32 %v8431, 4294901760
    %v9095 = vsub.f32 %v8431, %v9094
    %v9096 = vand.u32 %v9095, 4294901760
    %9097 = vmatpush.msra.mxu0 %v9096
    %v9098 = vand.u32 %v8430, 4294901760
    %v9099 = vsub.f32 %v8430, %v9098
    %v9100 = vand.u32 %v9099, 4294901760
    %9101 = vmatpush.msra.mxu0 %v9100
    %v9102 = vand.u32 %v8429, 4294901760
    %v9103 = vsub.f32 %v8429, %v9102
    %v9104 = vand.u32 %v9103, 4294901760
    %9105 = vmatpush.msra.mxu0 %v9104
    %v9106 = vand.u32 %v8428, 4294901760
    %v9107 = vsub.f32 %v8428, %v9106
    %v9108 = vand.u32 %v9107, 4294901760
    %9109 = vmatpush.msra.mxu0 %v9108
    %v9110 = vand.u32 %v8427, 4294901760
    %v9111 = vsub.f32 %v8427, %v9110
    %v9112 = vand.u32 %v9111, 4294901760
    %9113 = vmatpush.msra.mxu0 %v9112
    %v9114 = vand.u32 %v8426, 4294901760
    %v9115 = vsub.f32 %v8426, %v9114
    %v9116 = vand.u32 %v9115, 4294901760
    %9117 = vmatpush.msra.mxu0 %v9116
    %v9118 = vand.u32 %v8381, 4294901760
    %9119 = vmatmul.f32.gmra.mxu0 %v9118
    %v9120 = vpop.f32.mrf.mxu0
    %v9121 = vadd.f32 %v9052, %v9120
    %9122 = vdwg.mxu0
    %v9123 = vand.u32 %v8441, 4294901760
    %9124 = vmatpush.msra.mxu0 %v9123
    %v9125 = vand.u32 %v8440, 4294901760
    %9126 = vmatpush.msra.mxu0 %v9125
    %v9127 = vand.u32 %v8439, 4294901760
    %9128 = vmatpush.msra.mxu0 %v9127
    %v9129 = vand.u32 %v8438, 4294901760
    %9130 = vmatpush.msra.mxu0 %v9129
    %v9131 = vand.u32 %v8437, 4294901760
    %9132 = vmatpush.msra.mxu0 %v9131
    %v9133 = vand.u32 %v8436, 4294901760
    %9134 = vmatpush.msra.mxu0 %v9133
    %v9135 = vand.u32 %v8435, 4294901760
    %9136 = vmatpush.msra.mxu0 %v9135
    %v9137 = vand.u32 %v8434, 4294901760
    %9138 = vmatpush.msra.mxu0 %v9137
    %v9139 = vand.u32 %v8433, 4294901760
    %9140 = vmatpush.msra.mxu0 %v9139
    %v9141 = vand.u32 %v8432, 4294901760
    %9142 = vmatpush.msra.mxu0 %v9141
    %v9143 = vand.u32 %v8431, 4294901760
    %9144 = vmatpush.msra.mxu0 %v9143
    %v9145 = vand.u32 %v8430, 4294901760
    %9146 = vmatpush.msra.mxu0 %v9145
    %v9147 = vand.u32 %v8429, 4294901760
    %9148 = vmatpush.msra.mxu0 %v9147
    %v9149 = vand.u32 %v8428, 4294901760
    %9150 = vmatpush.msra.mxu0 %v9149
    %v9151 = vand.u32 %v8427, 4294901760
    %9152 = vmatpush.msra.mxu0 %v9151
    %v9153 = vand.u32 %v8426, 4294901760
    %9154 = vmatpush.msra.mxu0 %v9153
    %v9155 = vand.u32 %v8381, 4294901760
    %9156 = vmatmul.f32.gmra.mxu0 %v9155
    %v9157 = vpop.f32.mrf.mxu0
    %v9158 = vadd.f32 %v9121, %v9157
    %9159 = vdwg.mxu0
    %v9160 = vand.u32 %v8457, 4294901760
    %9161 = vmatpush.msra.mxu0 %v9160
    %v9162 = vand.u32 %v8456, 4294901760
    %9163 = vmatpush.msra.mxu0 %v9162
    %v9164 = vand.u32 %v8455, 4294901760
    %9165 = vmatpush.msra.mxu0 %v9164
    %v9166 = vand.u32 %v8454, 4294901760
    %9167 = vmatpush.msra.mxu0 %v9166
    %v9168 = vand.u32 %v8453, 4294901760
    %9169 = vmatpush.msra.mxu0 %v9168
    %v9170 = vand.u32 %v8452, 4294901760
    %9171 = vmatpush.msra.mxu0 %v9170
    %v9172 = vand.u32 %v8451, 4294901760
    %9173 = vmatpush.msra.mxu0 %v9172
    %v9174 = vand.u32 %v8450, 4294901760
    %9175 = vmatpush.msra.mxu0 %v9174
    %v9176 = vand.u32 %v8449, 4294901760
    %9177 = vmatpush.msra.mxu0 %v9176
    %v9178 = vand.u32 %v8448, 4294901760
    %9179 = vmatpush.msra.mxu0 %v9178
    %v9180 = vand.u32 %v8447, 4294901760
    %9181 = vmatpush.msra.mxu0 %v9180
    %v9182 = vand.u32 %v8446, 4294901760
    %9183 = vmatpush.msra.mxu0 %v9182
    %v9184 = vand.u32 %v8445, 4294901760
    %9185 = vmatpush.msra.mxu0 %v9184
    %v9186 = vand.u32 %v8444, 4294901760
    %9187 = vmatpush.msra.mxu0 %v9186
    %v9188 = vand.u32 %v8443, 4294901760
    %9189 = vmatpush.msra.mxu0 %v9188
    %v9190 = vand.u32 %v8442, 4294901760
    %9191 = vmatpush.msra.mxu0 %v9190
    %v9192 = vand.u32 %v8394, 4294901760
    %v9193 = vsub.f32 %v8394, %v9192
    %v9194 = vand.u32 %v9193, 4294901760
    %v9195 = vsub.f32 %v9193, %v9194
    %v9196 = vand.u32 %v9195, 4294901760
    %9197 = vmatmul.f32.gmra.mxu0 %v9196
    %v9198 = vpop.f32.mrf.mxu0
    %v9199 = vadd.f32 %v9158, %v9198
    %9200 = vdwg.mxu0
    %v9201 = vand.u32 %v8457, 4294901760
    %v9202 = vsub.f32 %v8457, %v9201
    %v9203 = vand.u32 %v9202, 4294901760
    %v9204 = vsub.f32 %v9202, %v9203
    %v9205 = vand.u32 %v9204, 4294901760
    %9206 = vmatpush.msra.mxu0 %v9205
    %v9207 = vand.u32 %v8456, 4294901760
    %v9208 = vsub.f32 %v8456, %v9207
    %v9209 = vand.u32 %v9208, 4294901760
    %v9210 = vsub.f32 %v9208, %v9209
    %v9211 = vand.u32 %v9210, 4294901760
    %9212 = vmatpush.msra.mxu0 %v9211
    %v9213 = vand.u32 %v8455, 4294901760
    %v9214 = vsub.f32 %v8455, %v9213
    %v9215 = vand.u32 %v9214, 4294901760
    %v9216 = vsub.f32 %v9214, %v9215
    %v9217 = vand.u32 %v9216, 4294901760
    %9218 = vmatpush.msra.mxu0 %v9217
    %v9219 = vand.u32 %v8454, 4294901760
    %v9220 = vsub.f32 %v8454, %v9219
    %v9221 = vand.u32 %v9220, 4294901760
    %v9222 = vsub.f32 %v9220, %v9221
    %v9223 = vand.u32 %v9222, 4294901760
    %9224 = vmatpush.msra.mxu0 %v9223
    %v9225 = vand.u32 %v8453, 4294901760
    %v9226 = vsub.f32 %v8453, %v9225
    %v9227 = vand.u32 %v9226, 4294901760
    %v9228 = vsub.f32 %v9226, %v9227
    %v9229 = vand.u32 %v9228, 4294901760
    %9230 = vmatpush.msra.mxu0 %v9229
    %v9231 = vand.u32 %v8452, 4294901760
    %v9232 = vsub.f32 %v8452, %v9231
    %v9233 = vand.u32 %v9232, 4294901760
    %v9234 = vsub.f32 %v9232, %v9233
    %v9235 = vand.u32 %v9234, 4294901760
    %9236 = vmatpush.msra.mxu0 %v9235
    %v9237 = vand.u32 %v8451, 4294901760
    %v9238 = vsub.f32 %v8451, %v9237
    %v9239 = vand.u32 %v9238, 4294901760
    %v9240 = vsub.f32 %v9238, %v9239
    %v9241 = vand.u32 %v9240, 4294901760
    %9242 = vmatpush.msra.mxu0 %v9241
    %v9243 = vand.u32 %v8450, 4294901760
    %v9244 = vsub.f32 %v8450, %v9243
    %v9245 = vand.u32 %v9244, 4294901760
    %v9246 = vsub.f32 %v9244, %v9245
    %v9247 = vand.u32 %v9246, 4294901760
    %9248 = vmatpush.msra.mxu0 %v9247
    %v9249 = vand.u32 %v8449, 4294901760
    %v9250 = vsub.f32 %v8449, %v9249
    %v9251 = vand.u32 %v9250, 4294901760
    %v9252 = vsub.f32 %v9250, %v9251
    %v9253 = vand.u32 %v9252, 4294901760
    %9254 = vmatpush.msra.mxu0 %v9253
    %v9255 = vand.u32 %v8448, 4294901760
    %v9256 = vsub.f32 %v8448, %v9255
    %v9257 = vand.u32 %v9256, 4294901760
    %v9258 = vsub.f32 %v9256, %v9257
    %v9259 = vand.u32 %v9258, 4294901760
    %9260 = vmatpush.msra.mxu0 %v9259
    %v9261 = vand.u32 %v8447, 4294901760
    %v9262 = vsub.f32 %v8447, %v9261
    %v9263 = vand.u32 %v9262, 4294901760
    %v9264 = vsub.f32 %v9262, %v9263
    %v9265 = vand.u32 %v9264, 4294901760
    %9266 = vmatpush.msra.mxu0 %v9265
    %v9267 = vand.u32 %v8446, 4294901760
    %v9268 = vsub.f32 %v8446, %v9267
    %v9269 = vand.u32 %v9268, 4294901760
    %v9270 = vsub.f32 %v9268, %v9269
    %v9271 = vand.u32 %v9270, 4294901760
    %9272 = vmatpush.msra.mxu0 %v9271
    %v9273 = vand.u32 %v8445, 4294901760
    %v9274 = vsub.f32 %v8445, %v9273
    %v9275 = vand.u32 %v9274, 4294901760
    %v9276 = vsub.f32 %v9274, %v9275
    %v9277 = vand.u32 %v9276, 4294901760
    %9278 = vmatpush.msra.mxu0 %v9277
    %v9279 = vand.u32 %v8444, 4294901760
    %v9280 = vsub.f32 %v8444, %v9279
    %v9281 = vand.u32 %v9280, 4294901760
    %v9282 = vsub.f32 %v9280, %v9281
    %v9283 = vand.u32 %v9282, 4294901760
    %9284 = vmatpush.msra.mxu0 %v9283
    %v9285 = vand.u32 %v8443, 4294901760
    %v9286 = vsub.f32 %v8443, %v9285
    %v9287 = vand.u32 %v9286, 4294901760
    %v9288 = vsub.f32 %v9286, %v9287
    %v9289 = vand.u32 %v9288, 4294901760
    %9290 = vmatpush.msra.mxu0 %v9289
    %v9291 = vand.u32 %v8442, 4294901760
    %v9292 = vsub.f32 %v8442, %v9291
    %v9293 = vand.u32 %v9292, 4294901760
    %v9294 = vsub.f32 %v9292, %v9293
    %v9295 = vand.u32 %v9294, 4294901760
    %9296 = vmatpush.msra.mxu0 %v9295
    %v9297 = vand.u32 %v8394, 4294901760
    %9298 = vmatmul.f32.gmra.mxu0 %v9297
    %v9299 = vpop.f32.mrf.mxu0
    %v9300 = vadd.f32 %v9199, %v9299
    %9301 = vdwg.mxu0
    %v9302 = vand.u32 %v8457, 4294901760
    %v9303 = vsub.f32 %v8457, %v9302
    %9304 = vmatpush.msra.mxu0 %v9303
    %v9305 = vand.u32 %v8456, 4294901760
    %v9306 = vsub.f32 %v8456, %v9305
    %9307 = vmatpush.msra.mxu0 %v9306
    %v9308 = vand.u32 %v8455, 4294901760
    %v9309 = vsub.f32 %v8455, %v9308
    %9310 = vmatpush.msra.mxu0 %v9309
    %v9311 = vand.u32 %v8454, 4294901760
    %v9312 = vsub.f32 %v8454, %v9311
    %9313 = vmatpush.msra.mxu0 %v9312
    %v9314 = vand.u32 %v8453, 4294901760
    %v9315 = vsub.f32 %v8453, %v9314
    %9316 = vmatpush.msra.mxu0 %v9315
    %v9317 = vand.u32 %v8452, 4294901760
    %v9318 = vsub.f32 %v8452, %v9317
    %9319 = vmatpush.msra.mxu0 %v9318
    %v9320 = vand.u32 %v8451, 4294901760
    %v9321 = vsub.f32 %v8451, %v9320
    %9322 = vmatpush.msra.mxu0 %v9321
    %v9323 = vand.u32 %v8450, 4294901760
    %v9324 = vsub.f32 %v8450, %v9323
    %9325 = vmatpush.msra.mxu0 %v9324
    %v9326 = vand.u32 %v8449, 4294901760
    %v9327 = vsub.f32 %v8449, %v9326
    %9328 = vmatpush.msra.mxu0 %v9327
    %v9329 = vand.u32 %v8448, 4294901760
    %v9330 = vsub.f32 %v8448, %v9329
    %9331 = vmatpush.msra.mxu0 %v9330
    %v9332 = vand.u32 %v8447, 4294901760
    %v9333 = vsub.f32 %v8447, %v9332
    %9334 = vmatpush.msra.mxu0 %v9333
    %v9335 = vand.u32 %v8446, 4294901760
    %v9336 = vsub.f32 %v8446, %v9335
    %9337 = vmatpush.msra.mxu0 %v9336
    %v9338 = vand.u32 %v8445, 4294901760
    %v9339 = vsub.f32 %v8445, %v9338
    %9340 = vmatpush.msra.mxu0 %v9339
    %v9341 = vand.u32 %v8444, 4294901760
    %v9342 = vsub.f32 %v8444, %v9341
    %9343 = vmatpush.msra.mxu0 %v9342
    %v9344 = vand.u32 %v8443, 4294901760
    %v9345 = vsub.f32 %v8443, %v9344
    %9346 = vmatpush.msra.mxu0 %v9345
    %v9347 = vand.u32 %v8442, 4294901760
    %v9348 = vsub.f32 %v8442, %v9347
    %9349 = vmatpush.msra.mxu0 %v9348
    %v9350 = vand.u32 %v8394, 4294901760
    %v9351 = vsub.f32 %v8394, %v9350
    %9352 = vmatmul.f32.gmra.mxu0 %v9351
    %v9353 = vpop.f32.mrf.mxu0
    %v9354 = vadd.f32 %v9300, %v9353
    %9355 = vdwg.mxu0
    %v9356 = vand.u32 %v8457, 4294901760
    %9357 = vmatpush.msra.mxu0 %v9356
    %v9358 = vand.u32 %v8456, 4294901760
    %9359 = vmatpush.msra.mxu0 %v9358
    %v9360 = vand.u32 %v8455, 4294901760
    %9361 = vmatpush.msra.mxu0 %v9360
    %v9362 = vand.u32 %v8454, 4294901760
    %9363 = vmatpush.msra.mxu0 %v9362
    %v9364 = vand.u32 %v8453, 4294901760
    %9365 = vmatpush.msra.mxu0 %v9364
    %v9366 = vand.u32 %v8452, 4294901760
    %9367 = vmatpush.msra.mxu0 %v9366
    %v9368 = vand.u32 %v8451, 4294901760
    %9369 = vmatpush.msra.mxu0 %v9368
    %v9370 = vand.u32 %v8450, 4294901760
    %9371 = vmatpush.msra.mxu0 %v9370
    %v9372 = vand.u32 %v8449, 4294901760
    %9373 = vmatpush.msra.mxu0 %v9372
    %v9374 = vand.u32 %v8448, 4294901760
    %9375 = vmatpush.msra.mxu0 %v9374
    %v9376 = vand.u32 %v8447, 4294901760
    %9377 = vmatpush.msra.mxu0 %v9376
    %v9378 = vand.u32 %v8446, 4294901760
    %9379 = vmatpush.msra.mxu0 %v9378
    %v9380 = vand.u32 %v8445, 4294901760
    %9381 = vmatpush.msra.mxu0 %v9380
    %v9382 = vand.u32 %v8444, 4294901760
    %9383 = vmatpush.msra.mxu0 %v9382
    %v9384 = vand.u32 %v8443, 4294901760
    %9385 = vmatpush.msra.mxu0 %v9384
    %v9386 = vand.u32 %v8442, 4294901760
    %9387 = vmatpush.msra.mxu0 %v9386
    %v9388 = vand.u32 %v8394, 4294901760
    %v9389 = vsub.f32 %v8394, %v9388
    %v9390 = vand.u32 %v9389, 4294901760
    %9391 = vmatmul.f32.gmra.mxu0 %v9390
    %v9392 = vpop.f32.mrf.mxu0
    %v9393 = vadd.f32 %v9354, %v9392
    %9394 = vdwg.mxu0
    %v9395 = vand.u32 %v8457, 4294901760
    %v9396 = vsub.f32 %v8457, %v9395
    %v9397 = vand.u32 %v9396, 4294901760
    %9398 = vmatpush.msra.mxu0 %v9397
    %v9399 = vand.u32 %v8456, 4294901760
    %v9400 = vsub.f32 %v8456, %v9399
    %v9401 = vand.u32 %v9400, 4294901760
    %9402 = vmatpush.msra.mxu0 %v9401
    %v9403 = vand.u32 %v8455, 4294901760
    %v9404 = vsub.f32 %v8455, %v9403
    %v9405 = vand.u32 %v9404, 4294901760
    %9406 = vmatpush.msra.mxu0 %v9405
    %v9407 = vand.u32 %v8454, 4294901760
    %v9408 = vsub.f32 %v8454, %v9407
    %v9409 = vand.u32 %v9408, 4294901760
    %9410 = vmatpush.msra.mxu0 %v9409
    %v9411 = vand.u32 %v8453, 4294901760
    %v9412 = vsub.f32 %v8453, %v9411
    %v9413 = vand.u32 %v9412, 4294901760
    %9414 = vmatpush.msra.mxu0 %v9413
    %v9415 = vand.u32 %v8452, 4294901760
    %v9416 = vsub.f32 %v8452, %v9415
    %v9417 = vand.u32 %v9416, 4294901760
    %9418 = vmatpush.msra.mxu0 %v9417
    %v9419 = vand.u32 %v8451, 4294901760
    %v9420 = vsub.f32 %v8451, %v9419
    %v9421 = vand.u32 %v9420, 4294901760
    %9422 = vmatpush.msra.mxu0 %v9421
    %v9423 = vand.u32 %v8450, 4294901760
    %v9424 = vsub.f32 %v8450, %v9423
    %v9425 = vand.u32 %v9424, 4294901760
    %9426 = vmatpush.msra.mxu0 %v9425
    %v9427 = vand.u32 %v8449, 4294901760
    %v9428 = vsub.f32 %v8449, %v9427
    %v9429 = vand.u32 %v9428, 4294901760
    %9430 = vmatpush.msra.mxu0 %v9429
    %v9431 = vand.u32 %v8448, 4294901760
    %v9432 = vsub.f32 %v8448, %v9431
    %v9433 = vand.u32 %v9432, 4294901760
    %9434 = vmatpush.msra.mxu0 %v9433
    %v9435 = vand.u32 %v8447, 4294901760
    %v9436 = vsub.f32 %v8447, %v9435
    %v9437 = vand.u32 %v9436, 4294901760
    %9438 = vmatpush.msra.mxu0 %v9437
    %v9439 = vand.u32 %v8446, 4294901760
    %v9440 = vsub.f32 %v8446, %v9439
    %v9441 = vand.u32 %v9440, 4294901760
    %9442 = vmatpush.msra.mxu0 %v9441
    %v9443 = vand.u32 %v8445, 4294901760
    %v9444 = vsub.f32 %v8445, %v9443
    %v9445 = vand.u32 %v9444, 4294901760
    %9446 = vmatpush.msra.mxu0 %v9445
    %v9447 = vand.u32 %v8444, 4294901760
    %v9448 = vsub.f32 %v8444, %v9447
    %v9449 = vand.u32 %v9448, 4294901760
    %9450 = vmatpush.msra.mxu0 %v9449
    %v9451 = vand.u32 %v8443, 4294901760
    %v9452 = vsub.f32 %v8443, %v9451
    %v9453 = vand.u32 %v9452, 4294901760
    %9454 = vmatpush.msra.mxu0 %v9453
    %v9455 = vand.u32 %v8442, 4294901760
    %v9456 = vsub.f32 %v8442, %v9455
    %v9457 = vand.u32 %v9456, 4294901760
    %9458 = vmatpush.msra.mxu0 %v9457
    %v9459 = vand.u32 %v8394, 4294901760
    %9460 = vmatmul.f32.gmra.mxu0 %v9459
    %v9461 = vpop.f32.mrf.mxu0
    %v9462 = vadd.f32 %v9393, %v9461
    %9463 = vdwg.mxu0
    %v9464 = vand.u32 %v8457, 4294901760
    %9465 = vmatpush.msra.mxu0 %v9464
    %v9466 = vand.u32 %v8456, 4294901760
    %9467 = vmatpush.msra.mxu0 %v9466
    %v9468 = vand.u32 %v8455, 4294901760
    %9469 = vmatpush.msra.mxu0 %v9468
    %v9470 = vand.u32 %v8454, 4294901760
    %9471 = vmatpush.msra.mxu0 %v9470
    %v9472 = vand.u32 %v8453, 4294901760
    %9473 = vmatpush.msra.mxu0 %v9472
    %v9474 = vand.u32 %v8452, 4294901760
    %9475 = vmatpush.msra.mxu0 %v9474
    %v9476 = vand.u32 %v8451, 4294901760
    %9477 = vmatpush.msra.mxu0 %v9476
    %v9478 = vand.u32 %v8450, 4294901760
    %9479 = vmatpush.msra.mxu0 %v9478
    %v9480 = vand.u32 %v8449, 4294901760
    %9481 = vmatpush.msra.mxu0 %v9480
    %v9482 = vand.u32 %v8448, 4294901760
    %9483 = vmatpush.msra.mxu0 %v9482
    %v9484 = vand.u32 %v8447, 4294901760
    %9485 = vmatpush.msra.mxu0 %v9484
    %v9486 = vand.u32 %v8446, 4294901760
    %9487 = vmatpush.msra.mxu0 %v9486
    %v9488 = vand.u32 %v8445, 4294901760
    %9489 = vmatpush.msra.mxu0 %v9488
    %v9490 = vand.u32 %v8444, 4294901760
    %9491 = vmatpush.msra.mxu0 %v9490
    %v9492 = vand.u32 %v8443, 4294901760
    %9493 = vmatpush.msra.mxu0 %v9492
    %v9494 = vand.u32 %v8442, 4294901760
    %9495 = vmatpush.msra.mxu0 %v9494
    %v9496 = vand.u32 %v8394, 4294901760
    %9497 = vmatmul.f32.gmra.mxu0 %v9496
    %v9498 = vpop.f32.mrf.mxu0
    %v9499 = vadd.f32 %v9462, %v9498
    %9500 = vdwg.mxu0
    %v9501 = vand.u32 %v8473, 4294901760
    %9502 = vmatpush.msra.mxu0 %v9501
    %v9503 = vand.u32 %v8472, 4294901760
    %9504 = vmatpush.msra.mxu0 %v9503
    %v9505 = vand.u32 %v8471, 4294901760
    %9506 = vmatpush.msra.mxu0 %v9505
    %v9507 = vand.u32 %v8470, 4294901760
    %9508 = vmatpush.msra.mxu0 %v9507
    %v9509 = vand.u32 %v8469, 4294901760
    %9510 = vmatpush.msra.mxu0 %v9509
    %v9511 = vand.u32 %v8468, 4294901760
    %9512 = vmatpush.msra.mxu0 %v9511
    %v9513 = vand.u32 %v8467, 4294901760
    %9514 = vmatpush.msra.mxu0 %v9513
    %v9515 = vand.u32 %v8466, 4294901760
    %9516 = vmatpush.msra.mxu0 %v9515
    %v9517 = vand.u32 %v8465, 4294901760
    %9518 = vmatpush.msra.mxu0 %v9517
    %v9519 = vand.u32 %v8464, 4294901760
    %9520 = vmatpush.msra.mxu0 %v9519
    %v9521 = vand.u32 %v8463, 4294901760
    %9522 = vmatpush.msra.mxu0 %v9521
    %v9523 = vand.u32 %v8462, 4294901760
    %9524 = vmatpush.msra.mxu0 %v9523
    %v9525 = vand.u32 %v8461, 4294901760
    %9526 = vmatpush.msra.mxu0 %v9525
    %v9527 = vand.u32 %v8460, 4294901760
    %9528 = vmatpush.msra.mxu0 %v9527
    %v9529 = vand.u32 %v8459, 4294901760
    %9530 = vmatpush.msra.mxu0 %v9529
    %v9531 = vand.u32 %v8458, 4294901760
    %9532 = vmatpush.msra.mxu0 %v9531
    %v9533 = vand.u32 %v8407, 4294901760
    %v9534 = vsub.f32 %v8407, %v9533
    %v9535 = vand.u32 %v9534, 4294901760
    %v9536 = vsub.f32 %v9534, %v9535
    %v9537 = vand.u32 %v9536, 4294901760
    %9538 = vmatmul.f32.gmra.mxu0 %v9537
    %v9539 = vpop.f32.mrf.mxu0
    %v9540 = vadd.f32 %v9499, %v9539
    %9541 = vdwg.mxu0
    %v9542 = vand.u32 %v8473, 4294901760
    %v9543 = vsub.f32 %v8473, %v9542
    %v9544 = vand.u32 %v9543, 4294901760
    %v9545 = vsub.f32 %v9543, %v9544
    %v9546 = vand.u32 %v9545, 4294901760
    %9547 = vmatpush.msra.mxu0 %v9546
    %v9548 = vand.u32 %v8472, 4294901760
    %v9549 = vsub.f32 %v8472, %v9548
    %v9550 = vand.u32 %v9549, 4294901760
    %v9551 = vsub.f32 %v9549, %v9550
    %v9552 = vand.u32 %v9551, 4294901760
    %9553 = vmatpush.msra.mxu0 %v9552
    %v9554 = vand.u32 %v8471, 4294901760
    %v9555 = vsub.f32 %v8471, %v9554
    %v9556 = vand.u32 %v9555, 4294901760
    %v9557 = vsub.f32 %v9555, %v9556
    %v9558 = vand.u32 %v9557, 4294901760
    %9559 = vmatpush.msra.mxu0 %v9558
    %v9560 = vand.u32 %v8470, 4294901760
    %v9561 = vsub.f32 %v8470, %v9560
    %v9562 = vand.u32 %v9561, 4294901760
    %v9563 = vsub.f32 %v9561, %v9562
    %v9564 = vand.u32 %v9563, 4294901760
    %9565 = vmatpush.msra.mxu0 %v9564
    %v9566 = vand.u32 %v8469, 4294901760
    %v9567 = vsub.f32 %v8469, %v9566
    %v9568 = vand.u32 %v9567, 4294901760
    %v9569 = vsub.f32 %v9567, %v9568
    %v9570 = vand.u32 %v9569, 4294901760
    %9571 = vmatpush.msra.mxu0 %v9570
    %v9572 = vand.u32 %v8468, 4294901760
    %v9573 = vsub.f32 %v8468, %v9572
    %v9574 = vand.u32 %v9573, 4294901760
    %v9575 = vsub.f32 %v9573, %v9574
    %v9576 = vand.u32 %v9575, 4294901760
    %9577 = vmatpush.msra.mxu0 %v9576
    %v9578 = vand.u32 %v8467, 4294901760
    %v9579 = vsub.f32 %v8467, %v9578
    %v9580 = vand.u32 %v9579, 4294901760
    %v9581 = vsub.f32 %v9579, %v9580
    %v9582 = vand.u32 %v9581, 4294901760
    %9583 = vmatpush.msra.mxu0 %v9582
    %v9584 = vand.u32 %v8466, 4294901760
    %v9585 = vsub.f32 %v8466, %v9584
    %v9586 = vand.u32 %v9585, 4294901760
    %v9587 = vsub.f32 %v9585, %v9586
    %v9588 = vand.u32 %v9587, 4294901760
    %9589 = vmatpush.msra.mxu0 %v9588
    %v9590 = vand.u32 %v8465, 4294901760
    %v9591 = vsub.f32 %v8465, %v9590
    %v9592 = vand.u32 %v9591, 4294901760
    %v9593 = vsub.f32 %v9591, %v9592
    %v9594 = vand.u32 %v9593, 4294901760
    %9595 = vmatpush.msra.mxu0 %v9594
    %v9596 = vand.u32 %v8464, 4294901760
    %v9597 = vsub.f32 %v8464, %v9596
    %v9598 = vand.u32 %v9597, 4294901760
    %v9599 = vsub.f32 %v9597, %v9598
    %v9600 = vand.u32 %v9599, 4294901760
    %9601 = vmatpush.msra.mxu0 %v9600
    %v9602 = vand.u32 %v8463, 4294901760
    %v9603 = vsub.f32 %v8463, %v9602
    %v9604 = vand.u32 %v9603, 4294901760
    %v9605 = vsub.f32 %v9603, %v9604
    %v9606 = vand.u32 %v9605, 4294901760
    %9607 = vmatpush.msra.mxu0 %v9606
    %v9608 = vand.u32 %v8462, 4294901760
    %v9609 = vsub.f32 %v8462, %v9608
    %v9610 = vand.u32 %v9609, 4294901760
    %v9611 = vsub.f32 %v9609, %v9610
    %v9612 = vand.u32 %v9611, 4294901760
    %9613 = vmatpush.msra.mxu0 %v9612
    %v9614 = vand.u32 %v8461, 4294901760
    %v9615 = vsub.f32 %v8461, %v9614
    %v9616 = vand.u32 %v9615, 4294901760
    %v9617 = vsub.f32 %v9615, %v9616
    %v9618 = vand.u32 %v9617, 4294901760
    %9619 = vmatpush.msra.mxu0 %v9618
    %v9620 = vand.u32 %v8460, 4294901760
    %v9621 = vsub.f32 %v8460, %v9620
    %v9622 = vand.u32 %v9621, 4294901760
    %v9623 = vsub.f32 %v9621, %v9622
    %v9624 = vand.u32 %v9623, 4294901760
    %9625 = vmatpush.msra.mxu0 %v9624
    %v9626 = vand.u32 %v8459, 4294901760
    %v9627 = vsub.f32 %v8459, %v9626
    %v9628 = vand.u32 %v9627, 4294901760
    %v9629 = vsub.f32 %v9627, %v9628
    %v9630 = vand.u32 %v9629, 4294901760
    %9631 = vmatpush.msra.mxu0 %v9630
    %v9632 = vand.u32 %v8458, 4294901760
    %v9633 = vsub.f32 %v8458, %v9632
    %v9634 = vand.u32 %v9633, 4294901760
    %v9635 = vsub.f32 %v9633, %v9634
    %v9636 = vand.u32 %v9635, 4294901760
    %9637 = vmatpush.msra.mxu0 %v9636
    %v9638 = vand.u32 %v8407, 4294901760
    %9639 = vmatmul.f32.gmra.mxu0 %v9638
    %v9640 = vpop.f32.mrf.mxu0
    %v9641 = vadd.f32 %v9540, %v9640
    %9642 = vdwg.mxu0
    %v9643 = vand.u32 %v8473, 4294901760
    %v9644 = vsub.f32 %v8473, %v9643
    %9645 = vmatpush.msra.mxu0 %v9644
    %v9646 = vand.u32 %v8472, 4294901760
    %v9647 = vsub.f32 %v8472, %v9646
    %9648 = vmatpush.msra.mxu0 %v9647
    %v9649 = vand.u32 %v8471, 4294901760
    %v9650 = vsub.f32 %v8471, %v9649
    %9651 = vmatpush.msra.mxu0 %v9650
    %v9652 = vand.u32 %v8470, 4294901760
    %v9653 = vsub.f32 %v8470, %v9652
    %9654 = vmatpush.msra.mxu0 %v9653
    %v9655 = vand.u32 %v8469, 4294901760
    %v9656 = vsub.f32 %v8469, %v9655
    %9657 = vmatpush.msra.mxu0 %v9656
    %v9658 = vand.u32 %v8468, 4294901760
    %v9659 = vsub.f32 %v8468, %v9658
    %9660 = vmatpush.msra.mxu0 %v9659
    %v9661 = vand.u32 %v8467, 4294901760
    %v9662 = vsub.f32 %v8467, %v9661
    %9663 = vmatpush.msra.mxu0 %v9662
    %v9664 = vand.u32 %v8466, 4294901760
    %v9665 = vsub.f32 %v8466, %v9664
    %9666 = vmatpush.msra.mxu0 %v9665
    %v9667 = vand.u32 %v8465, 4294901760
    %v9668 = vsub.f32 %v8465, %v9667
    %9669 = vmatpush.msra.mxu0 %v9668
    %v9670 = vand.u32 %v8464, 4294901760
    %v9671 = vsub.f32 %v8464, %v9670
    %9672 = vmatpush.msra.mxu0 %v9671
    %v9673 = vand.u32 %v8463, 4294901760
    %v9674 = vsub.f32 %v8463, %v9673
    %9675 = vmatpush.msra.mxu0 %v9674
    %v9676 = vand.u32 %v8462, 4294901760
    %v9677 = vsub.f32 %v8462, %v9676
    %9678 = vmatpush.msra.mxu0 %v9677
    %v9679 = vand.u32 %v8461, 4294901760
    %v9680 = vsub.f32 %v8461, %v9679
    %9681 = vmatpush.msra.mxu0 %v9680
    %v9682 = vand.u32 %v8460, 4294901760
    %v9683 = vsub.f32 %v8460, %v9682
    %9684 = vmatpush.msra.mxu0 %v9683
    %v9685 = vand.u32 %v8459, 4294901760
    %v9686 = vsub.f32 %v8459, %v9685
    %9687 = vmatpush.msra.mxu0 %v9686
    %v9688 = vand.u32 %v8458, 4294901760
    %v9689 = vsub.f32 %v8458, %v9688
    %9690 = vmatpush.msra.mxu0 %v9689
    %v9691 = vand.u32 %v8407, 4294901760
    %v9692 = vsub.f32 %v8407, %v9691
    %9693 = vmatmul.f32.gmra.mxu0 %v9692
    %v9694 = vpop.f32.mrf.mxu0
    %v9695 = vadd.f32 %v9641, %v9694
    %9696 = vdwg.mxu0
    %v9697 = vand.u32 %v8473, 4294901760
    %9698 = vmatpush.msra.mxu0 %v9697
    %v9699 = vand.u32 %v8472, 4294901760
    %9700 = vmatpush.msra.mxu0 %v9699
    %v9701 = vand.u32 %v8471, 4294901760
    %9702 = vmatpush.msra.mxu0 %v9701
    %v9703 = vand.u32 %v8470, 4294901760
    %9704 = vmatpush.msra.mxu0 %v9703
    %v9705 = vand.u32 %v8469, 4294901760
    %9706 = vmatpush.msra.mxu0 %v9705
    %v9707 = vand.u32 %v8468, 4294901760
    %9708 = vmatpush.msra.mxu0 %v9707
    %v9709 = vand.u32 %v8467, 4294901760
    %9710 = vmatpush.msra.mxu0 %v9709
    %v9711 = vand.u32 %v8466, 4294901760
    %9712 = vmatpush.msra.mxu0 %v9711
    %v9713 = vand.u32 %v8465, 4294901760
    %9714 = vmatpush.msra.mxu0 %v9713
    %v9715 = vand.u32 %v8464, 4294901760
    %9716 = vmatpush.msra.mxu0 %v9715
    %v9717 = vand.u32 %v8463, 4294901760
    %9718 = vmatpush.msra.mxu0 %v9717
    %v9719 = vand.u32 %v8462, 4294901760
    %9720 = vmatpush.msra.mxu0 %v9719
    %v9721 = vand.u32 %v8461, 4294901760
    %9722 = vmatpush.msra.mxu0 %v9721
    %v9723 = vand.u32 %v8460, 4294901760
    %9724 = vmatpush.msra.mxu0 %v9723
    %v9725 = vand.u32 %v8459, 4294901760
    %9726 = vmatpush.msra.mxu0 %v9725
    %v9727 = vand.u32 %v8458, 4294901760
    %9728 = vmatpush.msra.mxu0 %v9727
    %v9729 = vand.u32 %v8407, 4294901760
    %v9730 = vsub.f32 %v8407, %v9729
    %v9731 = vand.u32 %v9730, 4294901760
    %9732 = vmatmul.f32.gmra.mxu0 %v9731
    %v9733 = vpop.f32.mrf.mxu0
    %v9734 = vadd.f32 %v9695, %v9733
    %9735 = vdwg.mxu0
    %v9736 = vand.u32 %v8473, 4294901760
    %v9737 = vsub.f32 %v8473, %v9736
    %v9738 = vand.u32 %v9737, 4294901760
    %9739 = vmatpush.msra.mxu0 %v9738
    %v9740 = vand.u32 %v8472, 4294901760
    %v9741 = vsub.f32 %v8472, %v9740
    %v9742 = vand.u32 %v9741, 4294901760
    %9743 = vmatpush.msra.mxu0 %v9742
    %v9744 = vand.u32 %v8471, 4294901760
    %v9745 = vsub.f32 %v8471, %v9744
    %v9746 = vand.u32 %v9745, 4294901760
    %9747 = vmatpush.msra.mxu0 %v9746
    %v9748 = vand.u32 %v8470, 4294901760
    %v9749 = vsub.f32 %v8470, %v9748
    %v9750 = vand.u32 %v9749, 4294901760
    %9751 = vmatpush.msra.mxu0 %v9750
    %v9752 = vand.u32 %v8469, 4294901760
    %v9753 = vsub.f32 %v8469, %v9752
    %v9754 = vand.u32 %v9753, 4294901760
    %9755 = vmatpush.msra.mxu0 %v9754
    %v9756 = vand.u32 %v8468, 4294901760
    %v9757 = vsub.f32 %v8468, %v9756
    %v9758 = vand.u32 %v9757, 4294901760
    %9759 = vmatpush.msra.mxu0 %v9758
    %v9760 = vand.u32 %v8467, 4294901760
    %v9761 = vsub.f32 %v8467, %v9760
    %v9762 = vand.u32 %v9761, 4294901760
    %9763 = vmatpush.msra.mxu0 %v9762
    %v9764 = vand.u32 %v8466, 4294901760
    %v9765 = vsub.f32 %v8466, %v9764
    %v9766 = vand.u32 %v9765, 4294901760
    %9767 = vmatpush.msra.mxu0 %v9766
    %v9768 = vand.u32 %v8465, 4294901760
    %v9769 = vsub.f32 %v8465, %v9768
    %v9770 = vand.u32 %v9769, 4294901760
    %9771 = vmatpush.msra.mxu0 %v9770
    %v9772 = vand.u32 %v8464, 4294901760
    %v9773 = vsub.f32 %v8464, %v9772
    %v9774 = vand.u32 %v9773, 4294901760
    %9775 = vmatpush.msra.mxu0 %v9774
    %v9776 = vand.u32 %v8463, 4294901760
    %v9777 = vsub.f32 %v8463, %v9776
    %v9778 = vand.u32 %v9777, 4294901760
    %9779 = vmatpush.msra.mxu0 %v9778
    %v9780 = vand.u32 %v8462, 4294901760
    %v9781 = vsub.f32 %v8462, %v9780
    %v9782 = vand.u32 %v9781, 4294901760
    %9783 = vmatpush.msra.mxu0 %v9782
    %v9784 = vand.u32 %v8461, 4294901760
    %v9785 = vsub.f32 %v8461, %v9784
    %v9786 = vand.u32 %v9785, 4294901760
    %9787 = vmatpush.msra.mxu0 %v9786
    %v9788 = vand.u32 %v8460, 4294901760
    %v9789 = vsub.f32 %v8460, %v9788
    %v9790 = vand.u32 %v9789, 4294901760
    %9791 = vmatpush.msra.mxu0 %v9790
    %v9792 = vand.u32 %v8459, 4294901760
    %v9793 = vsub.f32 %v8459, %v9792
    %v9794 = vand.u32 %v9793, 4294901760
    %9795 = vmatpush.msra.mxu0 %v9794
    %v9796 = vand.u32 %v8458, 4294901760
    %v9797 = vsub.f32 %v8458, %v9796
    %v9798 = vand.u32 %v9797, 4294901760
    %9799 = vmatpush.msra.mxu0 %v9798
    %v9800 = vand.u32 %v8407, 4294901760
    %9801 = vmatmul.f32.gmra.mxu0 %v9800
    %v9802 = vpop.f32.mrf.mxu0
    %v9803 = vadd.f32 %v9734, %v9802
    %9804 = vdwg.mxu0
    %v9805 = vand.u32 %v8473, 4294901760
    %9806 = vmatpush.msra.mxu0 %v9805
    %v9807 = vand.u32 %v8472, 4294901760
    %9808 = vmatpush.msra.mxu0 %v9807
    %v9809 = vand.u32 %v8471, 4294901760
    %9810 = vmatpush.msra.mxu0 %v9809
    %v9811 = vand.u32 %v8470, 4294901760
    %9812 = vmatpush.msra.mxu0 %v9811
    %v9813 = vand.u32 %v8469, 4294901760
    %9814 = vmatpush.msra.mxu0 %v9813
    %v9815 = vand.u32 %v8468, 4294901760
    %9816 = vmatpush.msra.mxu0 %v9815
    %v9817 = vand.u32 %v8467, 4294901760
    %9818 = vmatpush.msra.mxu0 %v9817
    %v9819 = vand.u32 %v8466, 4294901760
    %9820 = vmatpush.msra.mxu0 %v9819
    %v9821 = vand.u32 %v8465, 4294901760
    %9822 = vmatpush.msra.mxu0 %v9821
    %v9823 = vand.u32 %v8464, 4294901760
    %9824 = vmatpush.msra.mxu0 %v9823
    %v9825 = vand.u32 %v8463, 4294901760
    %9826 = vmatpush.msra.mxu0 %v9825
    %v9827 = vand.u32 %v8462, 4294901760
    %9828 = vmatpush.msra.mxu0 %v9827
    %v9829 = vand.u32 %v8461, 4294901760
    %9830 = vmatpush.msra.mxu0 %v9829
    %v9831 = vand.u32 %v8460, 4294901760
    %9832 = vmatpush.msra.mxu0 %v9831
    %v9833 = vand.u32 %v8459, 4294901760
    %9834 = vmatpush.msra.mxu0 %v9833
    %v9835 = vand.u32 %v8458, 4294901760
    %9836 = vmatpush.msra.mxu0 %v9835
    %v9837 = vand.u32 %v8407, 4294901760
    %9838 = vmatmul.f32.gmra.mxu0 %v9837
    %v9839 = vpop.f32.mrf.mxu0
    %v9840 = vadd.f32 %v9803, %v9839
    %9841 = vdwg.mxu0
    %9842 = vmax.xlane.f32.xlu0 %v9840
    %v9843 = vpop.xlane.xlu0 %9842
    %v9844 = vsub.f32 %v9840, %v9843
    %v9845 = vmul.f32 %v9844, 1.442695
    %v9846 = vpow.pop %v9845
    %9847 = vadd.xlane.f32.xlu0 %v9846
    %v9848 = vpop.xlane.xlu0 %9847
    %v9849 = vlog2.pop %v9848
    %v9850 = vmul.f32 %v9849, 0.6931472
    %v9851 = vsub.f32 %v9844, %v9850
    %9852 = vst [vmem:[#allocation18] sm:$0xff] %v9851
    // Predicated region
    $region126: #{tpu_custom_call.1} parent=1 // pred_check
      _
    $region127: #{tpu_custom_call.1} parent=1 // pred_check_branch
      %9854 = sbr.rel (0) target = $region129
    $region128: #{tpu_custom_call.1} parent=1 // pred_region
      %9856 = vsyncadd [#allocation8], 0
      %s9858 = sshll.u32 [#allocation18], 4
      %s9859 = int_to_ptr.vmem [resolvable:$true] %s9858
      %s9860 = sshll.u32 %s10, 4
      %s9861 = int_to_ptr.hbm [resolvable:$true] %s9860
      %9863 = dma.vmem_to_hbm [thread:$0]  %s9859, 128, %s9861, [#allocation8]
    $region129: #{tpu_custom_call.1} parent=1 // pred_fallthru
      _
    // Predicated region
    $region130: #{tpu_custom_call.1} parent=1 // pred_check
      _
    $region131: #{tpu_custom_call.1} parent=1 // pred_check_branch
      %9865 = sbr.rel (0) target = $region133
    $region132: #{tpu_custom_call.1} parent=1 // pred_region
      %9867 = dma.done [#allocation8], 128
    $region133: #{tpu_custom_call.1} parent=1 // pred_fallthru
      _
    %9868 = vsyncpa [#allocation7], 1
    %9869 = vsyncpa [#allocation10], 1
    %9870 = vsyncpa [#allocation13], 1
    %9871 = vsyncpa [#allocation16], 1
    %9872 = vsyncpa [#allocation8], 1
  %9873 = vsyncmov [#allocation3]
  %s9874 = vpop.sfrf %9873
  %p9875 = scmp.eq.s32.totalorder %s9874, 0
  %p9876 = pneg %p9875
  %9878 = shalt.err (%p9876)
  %s9879 = scalar_lea.sflag [#allocation3], 1
  %9880 = vsyncmov %s9879
  %s9881 = vpop.sfrf %9880
  %p9882 = scmp.eq.s32.totalorder %s9881, 0
  %p9883 = pneg %p9882
  %9885 = shalt.err (%p9883)

</llo_original>
